<compile_context>
chip_gen: v5e
topology: v5e:2x2
jax: 0.10.0
libtpu: 0.0.40
codegen_flags: <defaults>
</compile_context>

<pallas_src>
import functools
import math

import jax
import jax.numpy as jnp
from jax.experimental import pallas as pl
from jax.experimental.pallas import tpu as pltpu


# ----------------------------------------------------------------------------
# Fused bottleneck kernels (one grid step = one (batch, row-tile) block)
# ----------------------------------------------------------------------------
def _bottleneck_regular_kernel(
    alphas_ref, x_ref, w1_ref, b1_ref, w2_ref, b2_ref, w3_ref, b3_ref,
    o_ref, h1pad_ref, *,
    C, IC, TH, W, kh, kw, ph, pw, dh, dw, relu):
  THh = TH + 2 * ph
  M = TH * W

  def act(y, idx):
    if relu:
      return jnp.maximum(y, 0.0)
    return jnp.where(y >= 0.0, y, alphas_ref[idx] * y)

  x = x_ref[...]                                   # (C, THh, W) f32 (with halo)
  x_flat = x.reshape(C, THh * W)

  # ext_conv1: 1x1 conv (+ folded BN) + act, over halo rows too.
  h1 = jnp.dot(w1_ref[...], x_flat.astype(jnp.bfloat16),
               preferred_element_type=jnp.float32)
  h1 = act(h1 + b1_ref[...], 0)                    # (IC, THh*W) f32

  # Keep the narrow intermediate in VMEM (bf16), zero-padded along W.
  if pw > 0:
    h1pad_ref[...] = jnp.zeros_like(h1pad_ref)
    h1pad_ref[:, :, pw:pw + W] = h1.astype(jnp.bfloat16).reshape(IC, THh, W)
  else:
    h1pad_ref[...] = h1.astype(jnp.bfloat16).reshape(IC, THh, W)

  # ext_conv2: kh x kw (dilated) conv via in-VMEM tap accumulation on the MXU.
  acc = jnp.zeros((IC, M), jnp.float32)
  for a in range(kh):
    for b in range(kw):
      win = h1pad_ref[:, a * dh:a * dh + TH, b * dw:b * dw + W]   # (IC,TH,W)
      acc = acc + jnp.dot(w2_ref[a * kw + b], win.reshape(IC, M),
                          preferred_element_type=jnp.float32)
  h2 = act(acc + b2_ref[...], 1)                   # (IC, M) f32

  # ext_conv3: 1x1 conv (+ folded BN) + act.
  ext = jnp.dot(w3_ref[...], h2.astype(jnp.bfloat16),
                preferred_element_type=jnp.float32)
  ext = act(ext + b3_ref[...], 2)                  # (C, M) f32

  # TODO(synk): Dropout2d is eval-mode identity (training dropout not modeled).
  main = x[:, ph:ph + TH, :].reshape(C, M)         # residual (central rows)
  o_ref[...] = act(main + ext, 3)


def _bottleneck_asym_kernel(
    alphas_ref, x_ref, w1_ref, b1_ref, w2a_ref, b2a_ref, w2b_ref, b2b_ref,
    w3_ref, b3_ref, o_ref, h1buf_ref, h2pad_ref, *,
    C, IC, TH, W, k, ph, pw, dh, dw, relu):
  THh = TH + 2 * ph
  M = TH * W

  def act(y, idx):
    if relu:
      return jnp.maximum(y, 0.0)
    return jnp.where(y >= 0.0, y, alphas_ref[idx] * y)

  x = x_ref[...]                                   # (C, THh, W) f32
  x_flat = x.reshape(C, THh * W)

  # ext_conv1: 1x1 conv + act over halo rows.
  h1 = jnp.dot(w1_ref[...], x_flat.astype(jnp.bfloat16),
               preferred_element_type=jnp.float32)
  h1 = act(h1 + b1_ref[...], 0)
  h1buf_ref[...] = h1.astype(jnp.bfloat16).reshape(IC, THh, W)

  # ext_conv2 part A: (k, 1) vertical conv, padding (pad, 0).
  acc = jnp.zeros((IC, M), jnp.float32)
  for a in range(k):
    win = h1buf_ref[:, a * dh:a * dh + TH, :]
    acc = acc + jnp.dot(w2a_ref[a], win.reshape(IC, M),
                        preferred_element_type=jnp.float32)
  h2a = act(acc + b2a_ref[...], 1)

  # ext_conv2 part B: (1, k) horizontal conv, padding (0, pad).
  h2pad_ref[...] = jnp.zeros_like(h2pad_ref)
  h2pad_ref[:, :, pw:pw + W] = h2a.astype(jnp.bfloat16).reshape(IC, TH, W)
  acc = jnp.zeros((IC, M), jnp.float32)
  for b in range(k):
    win = h2pad_ref[:, :, b * dw:b * dw + W]
    acc = acc + jnp.dot(w2b_ref[b], win.reshape(IC, M),
                        preferred_element_type=jnp.float32)
  h2 = act(acc + b2b_ref[...], 2)

  # ext_conv3: 1x1 conv + act.
  ext = jnp.dot(w3_ref[...], h2.astype(jnp.bfloat16),
                preferred_element_type=jnp.float32)
  ext = act(ext + b3_ref[...], 3)

  # TODO(synk): Dropout2d is eval-mode identity (training dropout not modeled).
  main = x[:, ph:ph + TH, :].reshape(C, M)
  o_ref[...] = act(main + ext, 4)


# ----------------------------------------------------------------------------
# Wrapper: tiling + pallas_call
# ----------------------------------------------------------------------------
def _pick_row_tile(H, W, max_m=512):
  """Largest row-tile TH dividing H with TH*W a multiple of 128 (lane-dense
  output stores) and TH*W <= max_m output pixels per grid step (keeps per-step
  VMEM modest; re-derive/halve for v7x's smaller VMEM if tiles get large)."""
  lane_ok = [th for th in range(1, H + 1)
             if H % th == 0 and (th * W) % 128 == 0]
  small = [th for th in lane_ok if th * W <= max_m]
  if small:
    return max(small)
  if lane_ok:
    return min(lane_ok)
  return H   # fall back: single tile (block last dim == full dim)


def _replicated_spec(shape):
  nd = len(shape)
  return pl.BlockSpec(shape, lambda n, t: (0,) * nd)


def bottleneck_forward(prep, x, cfg):
  """Fused ENet Bottleneck forward.  x: NCHW float32."""
  N, C, H, W = x.shape
  IC = prep['w1'].shape[0]
  k = cfg['kernel_size']
  pad = cfg['padding']
  dil = cfg['dilation']
  asym = cfg['asymmetric']
  relu = cfg['relu']
  # Residual add (main + ext) requires a 'same'-size spatial conv.
  assert dil * (k - 1) == 2 * pad, "padding/dilation must preserve H, W"

  TH = _pick_row_tile(H, W)
  T = H // TH
  ph = pad
  THh = TH + 2 * ph

  # Overlapping row windows with halo (cheap XLA slicing; duplication factor
  # is (TH + 2*pad) / TH).  f32 is kept for the residual path; the kernel
  # casts to bf16 only for the MXU operands.
  xp = jnp.pad(x, ((0, 0), (0, 0), (ph, ph), (0, 0)))
  x_halo = jnp.stack([xp[:, :, t * TH:t * TH + THh, :] for t in range(T)],
                     axis=1)                      # (N, T, C, THh, W)

  alphas = prep['alphas']
  w1 = prep['w1'].reshape(IC, C)                  # bf16, BN folded
  b1 = prep['b1'].reshape(IC, 1)
  w3 = prep['w3'].reshape(C, IC)
  b3 = prep['b3'].reshape(C, 1)

  in_specs_head = [
      pl.BlockSpec(memory_space=pltpu.MemorySpace.SMEM),          # PReLU alphas
      pl.BlockSpec((None, None, C, THh, W),
                   lambda n, t: (n, t, 0, 0, 0)),                 # x (haloed)
  ]
  out_spec = pl.BlockSpec((None, C, TH * W), lambda n, t: (n, 0, t))
  cparams = pltpu.CompilerParams(
      dimension_semantics=("parallel", "parallel"))

  if not asym:
    w2 = jnp.transpose(prep['w2'], (2, 3, 0, 1)).reshape(k * k, IC, IC)
    b2 = prep['b2'].reshape(IC, 1)
    kernel = functools.partial(
        _bottleneck_regular_kernel, C=C, IC=IC, TH=TH, W=W,
        kh=k, kw=k, ph=pad, pw=pad, dh=dil, dw=dil, relu=relu)
    in_specs = in_specs_head + [
        _replicated_spec((IC, C)), _replicated_spec((IC, 1)),
        _replicated_spec((k * k, IC, IC)), _replicated_spec((IC, 1)),
        _replicated_spec((C, IC)), _replicated_spec((C, 1)),
    ]
    scratch = [pltpu.VMEM((IC, THh, W + 2 * pad), jnp.bfloat16)]
    args = (alphas, x_halo, w1, b1, w2, b2, w3, b3)
  else:
    w2a = jnp.transpose(prep['w2a'], (2, 3, 0, 1)).reshape(k, IC, IC)
    b2a = prep['b2a'].reshape(IC, 1)
    w2b = jnp.transpose(prep['w2b'], (2, 3, 0, 1)).reshape(k, IC, IC)
    b2b = prep['b2b'].reshape(IC, 1)
    kernel = functools.partial(
        _bottleneck_asym_kernel, C=C, IC=IC, TH=TH, W=W,
        k=k, ph=pad, pw=pad, dh=dil, dw=dil, relu=relu)
    in_specs = in_specs_head + [
        _replicated_spec((IC, C)), _replicated_spec((IC, 1)),
        _replicated_spec((k, IC, IC)), _replicated_spec((IC, 1)),
        _replicated_spec((k, IC, IC)), _replicated_spec((IC, 1)),
        _replicated_spec((C, IC)), _replicated_spec((C, 1)),
    ]
    scratch = [pltpu.VMEM((IC, THh, W), jnp.bfloat16),
               pltpu.VMEM((IC, TH, W + 2 * pad), jnp.bfloat16)]
    args = (alphas, x_halo, w1, b1, w2a, b2a, w2b, b2b, w3, b3)

  out = pl.pallas_call(
      kernel,
      out_shape=jax.ShapeDtypeStruct((N, C, H * W), jnp.float32),
      grid=(N, T),
      in_specs=in_specs,
      out_specs=out_spec,
      scratch_shapes=scratch,
      compiler_params=cparams,
  )(*args)
  return out.reshape(N, C, H, W)


# ----------------------------------------------------------------------------
# Parameters (PyTorch-like init) + inference prep (BN folding, bf16 cast)
# ----------------------------------------------------------------------------
def init_bottleneck_params(key, cfg):
  C = cfg['channels']
  r = cfg['internal_ratio']
  if r <= 1 or r > C:
    raise RuntimeError('internal_ratio out of range')
  IC = C // r
  k = cfg['kernel_size']
  keys = jax.random.split(key, 4)

  def conv_w(kk, cout, cin, kh, kw):
    bound = 1.0 / math.sqrt(cin * kh * kw)
    return jax.random.uniform(kk, (cout, cin, kh, kw), jnp.float32,
                              -bound, bound)

  def bn(c):
    # eval-mode BatchNorm2d with default statistics
    # TODO(synk): training-mode batch statistics not reproduced.
    return dict(gamma=jnp.ones((c,), jnp.float32),
                beta=jnp.zeros((c,), jnp.float32),
                mean=jnp.zeros((c,), jnp.float32),
                var=jnp.ones((c,), jnp.float32))

  p = dict(conv1_w=conv_w(keys[0], IC, C, 1, 1), bn1=bn(IC),
           conv3_w=conv_w(keys[3], C, IC, 1, 1), bn3=bn(C),
           alphas=jnp.full((8,), 0.25, jnp.float32))   # nn.PReLU() default
  if cfg['asymmetric']:
    p['conv2a_w'] = conv_w(keys[1], IC, IC, k, 1); p['bn2a'] = bn(IC)
    p['conv2b_w'] = conv_w(keys[2], IC, IC, 1, k); p['bn2b'] = bn(IC)
  else:
    p['conv2_w'] = conv_w(keys[1], IC, IC, k, k); p['bn2'] = bn(IC)
  return p


def prepare_inference_params(raw, cfg, eps=1e-5):
  """Fold eval-mode BatchNorm into the conv weights (bf16) and a f32 bias."""
  def fold(w, bn):
    scale = bn['gamma'] / jnp.sqrt(bn['var'] + eps)
    bias = bn['beta'] - bn['mean'] * scale
    wf = (w * scale[:, None, None, None]).astype(jnp.bfloat16)
    return wf, bias.astype(jnp.float32)

  prep = {'alphas': raw['alphas'].astype(jnp.float32)}
  prep['w1'], prep['b1'] = fold(raw['conv1_w'], raw['bn1'])
  if cfg['asymmetric']:
    prep['w2a'], prep['b2a'] = fold(raw['conv2a_w'], raw['bn2a'])
    prep['w2b'], prep['b2b'] = fold(raw['conv2b_w'], raw['bn2b'])
  else:
    prep['w2'], prep['b2'] = fold(raw['conv2_w'], raw['bn2'])
  prep['w3'], prep['b3'] = fold(raw['conv3_w'], raw['bn3'])
  return prep


# ----------------------------------------------------------------------------
# Pure-JAX reference (XLA conv) matching the kernel's bf16/f32 numerics
# ----------------------------------------------------------------------------
def bottleneck_reference(prep, x, cfg):
  relu = cfg['relu']
  alphas = prep['alphas']

  def act(y, i):
    if relu:
      return jnp.maximum(y, 0.0)
    return jnp.where(y >= 0.0, y, alphas[i] * y)

  def conv(h, w, b, pad_hw, dil_hw):
    y = jax.lax.conv_general_dilated(
        h.astype(jnp.bfloat16), w, (1, 1),
        ((pad_hw[0], pad_hw[0]), (pad_hw[1], pad_hw[1])),
        rhs_dilation=dil_hw,
        dimension_numbers=('NCHW', 'OIHW', 'NCHW'),
        preferred_element_type=jnp.float32)
    return y + b[None, :, None, None]

  pad, dil = cfg['padding'], cfg['dilation']
  ext = act(conv(x, prep['w1'], prep['b1'], (0, 0), (1, 1)), 0)
  if cfg['asymmetric']:
    ext = act(conv(ext, prep['w2a'], prep['b2a'], (pad, 0), (dil, dil)), 1)
    ext = act(conv(ext, prep['w2b'], prep['b2b'], (0, pad), (dil, dil)), 2)
    ext = act(conv(ext, prep['w3'], prep['b3'], (0, 0), (1, 1)), 3)
    return act(x + ext, 4)
  ext = act(conv(ext, prep['w2'], prep['b2'], (pad, pad), (dil, dil)), 1)
  ext = act(conv(ext, prep['w3'], prep['b3'], (0, 0), (1, 1)), 2)
  return act(x + ext, 3)


# ----------------------------------------------------------------------------
# Smoke test
# ----------------------------------------------------------------------------
if __name__ == "__main__":
  key = jax.random.PRNGKey(0)
  test_cfgs = [
      # regular 3x3 bottleneck, ReLU (grid exercises 2 row tiles per image)
      dict(channels=32, internal_ratio=4, kernel_size=3, padding=1, dilation=1,
           asymmetric=False, relu=True, shape=(2, 32, 32, 32)),
      # asymmetric 5x1 / 1x5 bottleneck, PReLU
      dict(channels=32, internal_ratio=4, kernel_size=5, padding=2, dilation=1,
           asymmetric=True, relu=False, shape=(2, 32, 16, 16)),
      # dilated 3x3 bottleneck, PReLU
      dict(channels=32, internal_ratio=4, kernel_size=3, padding=4, dilation=4,
           asymmetric=False, relu=False, shape=(2, 32, 16, 16)),
  ]
  for i, cfg in enumerate(test_cfgs):
    kp, kx = jax.random.split(jax.random.fold_in(key, i))
    raw = init_bottleneck_params(kp, cfg)
    prep = prepare_inference_params(raw, cfg)
    x = jax.random.normal(kx, cfg['shape'], jnp.float32)

    fwd = jax.jit(lambda p, xx, c=cfg: bottleneck_forward(p, xx, c))
    out = jax.block_until_ready(fwd(prep, x))

    assert out.shape == x.shape, (out.shape, x.shape)
    assert bool(jnp.all(jnp.isfinite(out)))
    ref = bottleneck_reference(prep, x, cfg)
    err = float(jnp.max(jnp.abs(out - ref)))
    assert err < 3e-2, f"config {i}: max abs err {err}"

  print("KERNEL_OK")
</pallas_src>

<mosaic_0001>
module attributes {stable_mosaic.version = 11 : i64} {
  func.func @_bottleneck_regular_kernel(%arg0: i32, %arg1: i32, %arg2: memref<8xf32, #tpu.memory_space<smem>>, %arg3: memref<1x1x32x18x32xf32, #tpu.memory_space<vmem>>, %arg4: memref<8x32xbf16, #tpu.memory_space<vmem>>, %arg5: memref<8x1xf32, #tpu.memory_space<vmem>>, %arg6: memref<9x8x8xbf16, #tpu.memory_space<vmem>>, %arg7: memref<8x1xf32, #tpu.memory_space<vmem>>, %arg8: memref<32x8xbf16, #tpu.memory_space<vmem>>, %arg9: memref<32x1xf32, #tpu.memory_space<vmem>>, %arg10: memref<1x32x512xf32, #tpu.memory_space<vmem>>, %arg11: memref<8x18x34xbf16, #tpu.memory_space<vmem>>) attributes {dimension_semantics = [#tpu.dimension_semantics<parallel>, #tpu.dimension_semantics<parallel>], iteration_bounds = array<i64: 2, 2>, scalar_prefetch = 0 : i64, scratch_operands = 1 : i64, tpu.core_type = #tpu.core_type<tc>, window_params = [{transform_indices = @transform_0, window_bounds = array<i64: 8>}, {transform_indices = @transform_1, window_bounds = array<i64: 1, 1, 32, 18, 32>}, {pipeline_mode = #tpu.pipeline_mode<synchronous>, transform_indices = @transform_2, window_bounds = array<i64: 8, 32>}, {pipeline_mode = #tpu.pipeline_mode<synchronous>, transform_indices = @transform_3, window_bounds = array<i64: 8, 1>}, {pipeline_mode = #tpu.pipeline_mode<synchronous>, transform_indices = @transform_4, window_bounds = array<i64: 9, 8, 8>}, {pipeline_mode = #tpu.pipeline_mode<synchronous>, transform_indices = @transform_5, window_bounds = array<i64: 8, 1>}, {pipeline_mode = #tpu.pipeline_mode<synchronous>, transform_indices = @transform_6, window_bounds = array<i64: 32, 8>}, {pipeline_mode = #tpu.pipeline_mode<synchronous>, transform_indices = @transform_7, window_bounds = array<i64: 32, 1>}, {transform_indices = @transform_8, window_bounds = array<i64: 1, 32, 512>}]} {
    %c0 = arith.constant 0 : index
    %c0_0 = arith.constant 0 : index
    %c0_1 = arith.constant 0 : index
    %c0_2 = arith.constant 0 : index
    %c0_3 = arith.constant 0 : index
    %0 = vector.load %arg3[%c0, %c0_0, %c0_1, %c0_2, %c0_3] : memref<1x1x32x18x32xf32, #tpu.memory_space<vmem>>, vector<1x1x32x18x32xf32>
    %1 = vector.shape_cast %0 : vector<1x1x32x18x32xf32> to vector<32x18x32xf32>
    %2 = vector.shape_cast %1 : vector<32x18x32xf32> to vector<32x576xf32>
    %c0_4 = arith.constant 0 : index
    %c0_5 = arith.constant 0 : index
    %3 = vector.load %arg4[%c0_4, %c0_5] : memref<8x32xbf16, #tpu.memory_space<vmem>>, vector<8x32xbf16>
    %4 = arith.truncf %2 : vector<32x576xf32> to vector<32x576xbf16>
    %cst = arith.constant dense<0.000000e+00> : vector<8x576xf32>
    %5 = tpu.matmul %3, %4, %cst {dimension_numbers = #tpu.dot_dimension_numbers<[1], [0], [0], [1], [0, 0, 1, 1], [], []>} : vector<8x32xbf16>, vector<32x576xbf16>, vector<8x576xf32> -> vector<8x576xf32>
    %c0_6 = arith.constant 0 : index
    %c0_7 = arith.constant 0 : index
    %6 = vector.load %arg5[%c0_6, %c0_7] : memref<8x1xf32, #tpu.memory_space<vmem>>, vector<8x1xf32>
    %7 = vector.broadcast %6 : vector<8x1xf32> to vector<8x576xf32>
    %8 = arith.addf %5, %7 : vector<8x576xf32>
    %cst_8 = arith.constant 0.000000e+00 : f32
    %9 = vector.broadcast %cst_8 : f32 to vector<8x576xf32>
    %10 = arith.maximumf %8, %9 : vector<8x576xf32>
    %cst_9 = arith.constant 0.000000e+00 : bf16
    %11 = vector.broadcast %cst_9 : bf16 to vector<8x18x34xbf16>
    %c0_10 = arith.constant 0 : index
    %c0_11 = arith.constant 0 : index
    %c0_12 = arith.constant 0 : index
    %12 = vector.load %arg11[%c0_10, %c0_11, %c0_12] : memref<8x18x34xbf16, #tpu.memory_space<vmem>>, vector<8x18x34xbf16>
    tpu.vector_store %arg11[%c0_10, %c0_11, %c0_12], %11 {strides = array<i32>} : memref<8x18x34xbf16, #tpu.memory_space<vmem>>, vector<8x18x34xbf16>,
    %13 = arith.truncf %10 : vector<8x576xf32> to vector<8x576xbf16>
    %14 = vector.shape_cast %13 : vector<8x576xbf16> to vector<8x18x32xbf16>
    %c0_13 = arith.constant 0 : index
    %c0_14 = arith.constant 0 : index
    %c1 = arith.constant 1 : index
    %15 = vector.load %arg11[%c0_13, %c0_14, %c1] : memref<8x18x34xbf16, #tpu.memory_space<vmem>>, vector<8x18x32xbf16>
    tpu.vector_store %arg11[%c0_13, %c0_14, %c1], %14 {strides = array<i32>} : memref<8x18x34xbf16, #tpu.memory_space<vmem>>, vector<8x18x32xbf16>,
    %cst_15 = arith.constant 0.000000e+00 : f32
    %16 = vector.broadcast %cst_15 : f32 to vector<8x512xf32>
    %c0_16 = arith.constant 0 : index
    %c0_17 = arith.constant 0 : index
    %c0_18 = arith.constant 0 : index
    %17 = vector.load %arg11[%c0_16, %c0_17, %c0_18] : memref<8x18x34xbf16, #tpu.memory_space<vmem>>, vector<8x16x32xbf16>
    %c0_19 = arith.constant 0 : index
    %c0_20 = arith.constant 0 : index
    %c0_21 = arith.constant 0 : index
    %18 = vector.load %arg6[%c0_19, %c0_20, %c0_21] : memref<9x8x8xbf16, #tpu.memory_space<vmem>>, vector<1x8x8xbf16>
    %19 = vector.shape_cast %18 : vector<1x8x8xbf16> to vector<8x8xbf16>
    %20 = vector.shape_cast %17 : vector<8x16x32xbf16> to vector<8x512xbf16>
    %cst_22 = arith.constant dense<0.000000e+00> : vector<8x512xf32>
    %21 = tpu.matmul %19, %20, %cst_22 {dimension_numbers = #tpu.dot_dimension_numbers<[1], [0], [0], [1], [0, 0, 1, 1], [], []>} : vector<8x8xbf16>, vector<8x512xbf16>, vector<8x512xf32> -> vector<8x512xf32>
    %22 = arith.addf %16, %21 : vector<8x512xf32>
    %c0_23 = arith.constant 0 : index
    %c0_24 = arith.constant 0 : index
    %c1_25 = arith.constant 1 : index
    %23 = vector.load %arg11[%c0_23, %c0_24, %c1_25] : memref<8x18x34xbf16, #tpu.memory_space<vmem>>, vector<8x16x32xbf16>
    %c1_26 = arith.constant 1 : index
    %c0_27 = arith.constant 0 : index
    %c0_28 = arith.constant 0 : index
    %24 = vector.load %arg6[%c1_26, %c0_27, %c0_28] : memref<9x8x8xbf16, #tpu.memory_space<vmem>>, vector<1x8x8xbf16>
    %25 = vector.shape_cast %24 : vector<1x8x8xbf16> to vector<8x8xbf16>
    %26 = vector.shape_cast %23 : vector<8x16x32xbf16> to vector<8x512xbf16>
    %cst_29 = arith.constant dense<0.000000e+00> : vector<8x512xf32>
    %27 = tpu.matmul %25, %26, %cst_29 {dimension_numbers = #tpu.dot_dimension_numbers<[1], [0], [0], [1], [0, 0, 1, 1], [], []>} : vector<8x8xbf16>, vector<8x512xbf16>, vector<8x512xf32> -> vector<8x512xf32>
    %28 = arith.addf %22, %27 : vector<8x512xf32>
    %c0_30 = arith.constant 0 : index
    %c0_31 = arith.constant 0 : index
    %c2 = arith.constant 2 : index
    %29 = vector.load %arg11[%c0_30, %c0_31, %c2] : memref<8x18x34xbf16, #tpu.memory_space<vmem>>, vector<8x16x32xbf16>
    %c2_32 = arith.constant 2 : index
    %c0_33 = arith.constant 0 : index
    %c0_34 = arith.constant 0 : index
    %30 = vector.load %arg6[%c2_32, %c0_33, %c0_34] : memref<9x8x8xbf16, #tpu.memory_space<vmem>>, vector<1x8x8xbf16>
    %31 = vector.shape_cast %30 : vector<1x8x8xbf16> to vector<8x8xbf16>
    %32 = vector.shape_cast %29 : vector<8x16x32xbf16> to vector<8x512xbf16>
    %cst_35 = arith.constant dense<0.000000e+00> : vector<8x512xf32>
    %33 = tpu.matmul %31, %32, %cst_35 {dimension_numbers = #tpu.dot_dimension_numbers<[1], [0], [0], [1], [0, 0, 1, 1], [], []>} : vector<8x8xbf16>, vector<8x512xbf16>, vector<8x512xf32> -> vector<8x512xf32>
    %34 = arith.addf %28, %33 : vector<8x512xf32>
    %c0_36 = arith.constant 0 : index
    %c1_37 = arith.constant 1 : index
    %c0_38 = arith.constant 0 : index
    %35 = vector.load %arg11[%c0_36, %c1_37, %c0_38] : memref<8x18x34xbf16, #tpu.memory_space<vmem>>, vector<8x16x32xbf16>
    %c3 = arith.constant 3 : index
    %c0_39 = arith.constant 0 : index
    %c0_40 = arith.constant 0 : index
    %36 = vector.load %arg6[%c3, %c0_39, %c0_40] : memref<9x8x8xbf16, #tpu.memory_space<vmem>>, vector<1x8x8xbf16>
    %37 = vector.shape_cast %36 : vector<1x8x8xbf16> to vector<8x8xbf16>
    %38 = vector.shape_cast %35 : vector<8x16x32xbf16> to vector<8x512xbf16>
    %cst_41 = arith.constant dense<0.000000e+00> : vector<8x512xf32>
    %39 = tpu.matmul %37, %38, %cst_41 {dimension_numbers = #tpu.dot_dimension_numbers<[1], [0], [0], [1], [0, 0, 1, 1], [], []>} : vector<8x8xbf16>, vector<8x512xbf16>, vector<8x512xf32> -> vector<8x512xf32>
    %40 = arith.addf %34, %39 : vector<8x512xf32>
    %c0_42 = arith.constant 0 : index
    %c1_43 = arith.constant 1 : index
    %c1_44 = arith.constant 1 : index
    %41 = vector.load %arg11[%c0_42, %c1_43, %c1_44] : memref<8x18x34xbf16, #tpu.memory_space<vmem>>, vector<8x16x32xbf16>
    %c4 = arith.constant 4 : index
    %c0_45 = arith.constant 0 : index
    %c0_46 = arith.constant 0 : index
    %42 = vector.load %arg6[%c4, %c0_45, %c0_46] : memref<9x8x8xbf16, #tpu.memory_space<vmem>>, vector<1x8x8xbf16>
    %43 = vector.shape_cast %42 : vector<1x8x8xbf16> to vector<8x8xbf16>
    %44 = vector.shape_cast %41 : vector<8x16x32xbf16> to vector<8x512xbf16>
    %cst_47 = arith.constant dense<0.000000e+00> : vector<8x512xf32>
    %45 = tpu.matmul %43, %44, %cst_47 {dimension_numbers = #tpu.dot_dimension_numbers<[1], [0], [0], [1], [0, 0, 1, 1], [], []>} : vector<8x8xbf16>, vector<8x512xbf16>, vector<8x512xf32> -> vector<8x512xf32>
    %46 = arith.addf %40, %45 : vector<8x512xf32>
    %c0_48 = arith.constant 0 : index
    %c1_49 = arith.constant 1 : index
    %c2_50 = arith.constant 2 : index
    %47 = vector.load %arg11[%c0_48, %c1_49, %c2_50] : memref<8x18x34xbf16, #tpu.memory_space<vmem>>, vector<8x16x32xbf16>
    %c5 = arith.constant 5 : index
    %c0_51 = arith.constant 0 : index
    %c0_52 = arith.constant 0 : index
    %48 = vector.load %arg6[%c5, %c0_51, %c0_52] : memref<9x8x8xbf16, #tpu.memory_space<vmem>>, vector<1x8x8xbf16>
    %49 = vector.shape_cast %48 : vector<1x8x8xbf16> to vector<8x8xbf16>
    %50 = vector.shape_cast %47 : vector<8x16x32xbf16> to vector<8x512xbf16>
    %cst_53 = arith.constant dense<0.000000e+00> : vector<8x512xf32>
    %51 = tpu.matmul %49, %50, %cst_53 {dimension_numbers = #tpu.dot_dimension_numbers<[1], [0], [0], [1], [0, 0, 1, 1], [], []>} : vector<8x8xbf16>, vector<8x512xbf16>, vector<8x512xf32> -> vector<8x512xf32>
    %52 = arith.addf %46, %51 : vector<8x512xf32>
    %c0_54 = arith.constant 0 : index
    %c2_55 = arith.constant 2 : index
    %c0_56 = arith.constant 0 : index
    %53 = vector.load %arg11[%c0_54, %c2_55, %c0_56] : memref<8x18x34xbf16, #tpu.memory_space<vmem>>, vector<8x16x32xbf16>
    %c6 = arith.constant 6 : index
    %c0_57 = arith.constant 0 : index
    %c0_58 = arith.constant 0 : index
    %54 = vector.load %arg6[%c6, %c0_57, %c0_58] : memref<9x8x8xbf16, #tpu.memory_space<vmem>>, vector<1x8x8xbf16>
    %55 = vector.shape_cast %54 : vector<1x8x8xbf16> to vector<8x8xbf16>
    %56 = vector.shape_cast %53 : vector<8x16x32xbf16> to vector<8x512xbf16>
    %cst_59 = arith.constant dense<0.000000e+00> : vector<8x512xf32>
    %57 = tpu.matmul %55, %56, %cst_59 {dimension_numbers = #tpu.dot_dimension_numbers<[1], [0], [0], [1], [0, 0, 1, 1], [], []>} : vector<8x8xbf16>, vector<8x512xbf16>, vector<8x512xf32> -> vector<8x512xf32>
    %58 = arith.addf %52, %57 : vector<8x512xf32>
    %c0_60 = arith.constant 0 : index
    %c2_61 = arith.constant 2 : index
    %c1_62 = arith.constant 1 : index
    %59 = vector.load %arg11[%c0_60, %c2_61, %c1_62] : memref<8x18x34xbf16, #tpu.memory_space<vmem>>, vector<8x16x32xbf16>
    %c7 = arith.constant 7 : index
    %c0_63 = arith.constant 0 : index
    %c0_64 = arith.constant 0 : index
    %60 = vector.load %arg6[%c7, %c0_63, %c0_64] : memref<9x8x8xbf16, #tpu.memory_space<vmem>>, vector<1x8x8xbf16>
    %61 = vector.shape_cast %60 : vector<1x8x8xbf16> to vector<8x8xbf16>
    %62 = vector.shape_cast %59 : vector<8x16x32xbf16> to vector<8x512xbf16>
    %cst_65 = arith.constant dense<0.000000e+00> : vector<8x512xf32>
    %63 = tpu.matmul %61, %62, %cst_65 {dimension_numbers = #tpu.dot_dimension_numbers<[1], [0], [0], [1], [0, 0, 1, 1], [], []>} : vector<8x8xbf16>, vector<8x512xbf16>, vector<8x512xf32> -> vector<8x512xf32>
    %64 = arith.addf %58, %63 : vector<8x512xf32>
    %c0_66 = arith.constant 0 : index
    %c2_67 = arith.constant 2 : index
    %c2_68 = arith.constant 2 : index
    %65 = vector.load %arg11[%c0_66, %c2_67, %c2_68] : memref<8x18x34xbf16, #tpu.memory_space<vmem>>, vector<8x16x32xbf16>
    %c8 = arith.constant 8 : index
    %c0_69 = arith.constant 0 : index
    %c0_70 = arith.constant 0 : index
    %66 = vector.load %arg6[%c8, %c0_69, %c0_70] : memref<9x8x8xbf16, #tpu.memory_space<vmem>>, vector<1x8x8xbf16>
    %67 = vector.shape_cast %66 : vector<1x8x8xbf16> to vector<8x8xbf16>
    %68 = vector.shape_cast %65 : vector<8x16x32xbf16> to vector<8x512xbf16>
    %cst_71 = arith.constant dense<0.000000e+00> : vector<8x512xf32>
    %69 = tpu.matmul %67, %68, %cst_71 {dimension_numbers = #tpu.dot_dimension_numbers<[1], [0], [0], [1], [0, 0, 1, 1], [], []>} : vector<8x8xbf16>, vector<8x512xbf16>, vector<8x512xf32> -> vector<8x512xf32>
    %70 = arith.addf %64, %69 : vector<8x512xf32>
    %c0_72 = arith.constant 0 : index
    %c0_73 = arith.constant 0 : index
    %71 = vector.load %arg7[%c0_72, %c0_73] : memref<8x1xf32, #tpu.memory_space<vmem>>, vector<8x1xf32>
    %72 = vector.broadcast %71 : vector<8x1xf32> to vector<8x512xf32>
    %73 = arith.addf %70, %72 : vector<8x512xf32>
    %cst_74 = arith.constant 0.000000e+00 : f32
    %74 = vector.broadcast %cst_74 : f32 to vector<8x512xf32>
    %75 = arith.maximumf %73, %74 : vector<8x512xf32>
    %c0_75 = arith.constant 0 : index
    %c0_76 = arith.constant 0 : index
    %76 = vector.load %arg8[%c0_75, %c0_76] : memref<32x8xbf16, #tpu.memory_space<vmem>>, vector<32x8xbf16>
    %77 = arith.truncf %75 : vector<8x512xf32> to vector<8x512xbf16>
    %cst_77 = arith.constant dense<0.000000e+00> : vector<32x512xf32>
    %78 = tpu.matmul %76, %77, %cst_77 {dimension_numbers = #tpu.dot_dimension_numbers<[1], [0], [0], [1], [0, 0, 1, 1], [], []>} : vector<32x8xbf16>, vector<8x512xbf16>, vector<32x512xf32> -> vector<32x512xf32>
    %c0_78 = arith.constant 0 : index
    %c0_79 = arith.constant 0 : index
    %79 = vector.load %arg9[%c0_78, %c0_79] : memref<32x1xf32, #tpu.memory_space<vmem>>, vector<32x1xf32>
    %80 = vector.broadcast %79 : vector<32x1xf32> to vector<32x512xf32>
    %81 = arith.addf %78, %80 : vector<32x512xf32>
    %cst_80 = arith.constant 0.000000e+00 : f32
    %82 = vector.broadcast %cst_80 : f32 to vector<32x512xf32>
    %83 = arith.maximumf %81, %82 : vector<32x512xf32>
    %84 = vector.extract_strided_slice %1 {offsets = [0, 1, 0], sizes = [32, 16, 32], strides = [1, 1, 1]} : vector<32x18x32xf32> to vector<32x16x32xf32>
    %85 = vector.shape_cast %84 : vector<32x16x32xf32> to vector<32x512xf32>
    %86 = arith.addf %85, %83 : vector<32x512xf32>
    %cst_81 = arith.constant 0.000000e+00 : f32
    %87 = vector.broadcast %cst_81 : f32 to vector<32x512xf32>
    %88 = arith.maximumf %86, %87 : vector<32x512xf32>
    %c0_82 = arith.constant 0 : index
    %c0_83 = arith.constant 0 : index
    %c0_84 = arith.constant 0 : index
    %89 = vector.load %arg10[%c0_82, %c0_83, %c0_84] : memref<1x32x512xf32, #tpu.memory_space<vmem>>, vector<1x32x512xf32>
    %90 = vector.shape_cast %89 : vector<1x32x512xf32> to vector<32x512xf32>
    %91 = vector.shape_cast %88 : vector<32x512xf32> to vector<1x32x512xf32>
    tpu.vector_store %arg10[%c0_82, %c0_83, %c0_84], %91 {strides = array<i32>} : memref<1x32x512xf32, #tpu.memory_space<vmem>>, vector<1x32x512xf32>,
    return
  }
  func.func @transform_0(%arg0: i32, %arg1: i32) -> i32 {
    %c0_i32 = arith.constant 0 : i32
    %c0_i32_0 = arith.constant 0 : i32
    return %c0_i32 : i32
  }
  func.func @transform_1(%arg0: i32, %arg1: i32) -> (i32, i32, i32, i32, i32) {
    %c0_i32 = arith.constant 0 : i32
    %c0_i32_0 = arith.constant 0 : i32
    %c0_i32_1 = arith.constant 0 : i32
    %c0_i32_2 = arith.constant 0 : i32
    return %arg0, %arg1, %c0_i32, %c0_i32_0, %c0_i32_1 : i32, i32, i32, i32, i32
  }
  func.func @transform_2(%arg0: i32, %arg1: i32) -> (i32, i32) {
    %c0_i32 = arith.constant 0 : i32
    %c0_i32_0 = arith.constant 0 : i32
    %c0_i32_1 = arith.constant 0 : i32
    return %c0_i32, %c0_i32_0 : i32, i32
  }
  func.func @transform_3(%arg0: i32, %arg1: i32) -> (i32, i32) {
    %c0_i32 = arith.constant 0 : i32
    %c0_i32_0 = arith.constant 0 : i32
    %c0_i32_1 = arith.constant 0 : i32
    return %c0_i32, %c0_i32_0 : i32, i32
  }
  func.func @transform_4(%arg0: i32, %arg1: i32) -> (i32, i32, i32) {
    %c0_i32 = arith.constant 0 : i32
    %c0_i32_0 = arith.constant 0 : i32
    %c0_i32_1 = arith.constant 0 : i32
    %c0_i32_2 = arith.constant 0 : i32
    return %c0_i32, %c0_i32_0, %c0_i32_1 : i32, i32, i32
  }
  func.func @transform_5(%arg0: i32, %arg1: i32) -> (i32, i32) {
    %c0_i32 = arith.constant 0 : i32
    %c0_i32_0 = arith.constant 0 : i32
    %c0_i32_1 = arith.constant 0 : i32
    return %c0_i32, %c0_i32_0 : i32, i32
  }
  func.func @transform_6(%arg0: i32, %arg1: i32) -> (i32, i32) {
    %c0_i32 = arith.constant 0 : i32
    %c0_i32_0 = arith.constant 0 : i32
    %c0_i32_1 = arith.constant 0 : i32
    return %c0_i32, %c0_i32_0 : i32, i32
  }
  func.func @transform_7(%arg0: i32, %arg1: i32) -> (i32, i32) {
    %c0_i32 = arith.constant 0 : i32
    %c0_i32_0 = arith.constant 0 : i32
    %c0_i32_1 = arith.constant 0 : i32
    return %c0_i32, %c0_i32_0 : i32, i32
  }
  func.func @transform_8(%arg0: i32, %arg1: i32) -> (i32, i32, i32) {
    %c0_i32 = arith.constant 0 : i32
    %c0_i32_0 = arith.constant 0 : i32
    return %arg0, %c0_i32, %arg1 : i32, i32, i32
  }
}

</mosaic_0001>

<llo_original>
// kernel: _lambda_.1
$region0: #{_lambda_.1}
  #allocation0 [shape = 'u32[]', space=smem, size = 0x4, offset = 0x4, fixed_abs, tag = 'smem constant byte address 0x4 - core index']
  #allocation1 [shape = 'u32[72,128]{1,0:T(1,128)}', space=vmem, size = 0x9000, scoped, tag = 'internal scratch']
  #allocation2 [shape = 'bf16[8,18,34]{2,1,0:T(8,128)(2,1)}', space=vmem, size = 0xc000, scoped, tag = 'scratch operand']
  %s0 = inlined_call_operand.vmem [shape: f32[8], index: 0, kind: input, shape index: {}]
  %s1 = inlined_call_operand.vmem [shape: f32[2,2,32,18,32], index: 1, kind: input, shape index: {}]
  %s2 = inlined_call_operand.vmem [shape: bf16[8,32], index: 2, kind: input, shape index: {}]
  %s3 = inlined_call_operand.vmem [shape: f32[8,1], index: 3, kind: input, shape index: {}]
  %s4 = inlined_call_operand.vmem [shape: bf16[9,8,8], index: 4, kind: input, shape index: {}]
  %s5 = inlined_call_operand.vmem [shape: f32[8,1], index: 5, kind: input, shape index: {}]
  %s6 = inlined_call_operand.vmem [shape: bf16[32,8], index: 6, kind: input, shape index: {}]
  %s7 = inlined_call_operand.vmem [shape: f32[32,1], index: 7, kind: input, shape index: {}]
  %s8 = inlined_call_operand.vmem [shape: f32[2,32,1024], index: 8, kind: output, shape index: {}]
  %s9 = sld [smem:[#allocation0]]
  $region88: #{_lambda_.1} parent=0
    _
  %s11 = ssub.s32 1, %s9
  %s12 = scalar_select 0, %s11, %s9
  $region1: #{_lambda_.1} parent=0
    #allocation3 [shape = 'u8[512]{0}', space=smem, size = 0x200, scoped, tag = 'input window, operand 0, single buffered']
    #allocation4 [shape = 's32[2]{0}', space=sflag, size = 0x8, scoped, tag = 'scoped memory for _lambda_.1']
    #allocation5 [shape = 'u8[131072]{0}', space=vmem, size = 0x20000, scoped, tag = 'output window, operand 0']
    %13 = vsyncpa [#allocation4], 0
    loop: start=0, step=1, limit=6
    $region2: #{_lambda_.1} parent=1 // loop_pre_header
      _
    $region3: #{_lambda_.1} parent=1 // loop_header
      %s15 = sphi 0, %s19
      %p16 = scmp.ge.s32.totalorder %s15, 6
      %s22 = sphi 0, %s34
      %s23 = sphi 0, %s30
      %s24 = sphi 0, %s22
      %s25 = sphi 0, %s23
      %s26 = sphi 0, %s24
      %s27 = sphi 0, %s25
      %s35 = sphi 0, %s35
      %s37 = sphi 0, %s35
      %s38 = sphi 0, %s37
      %s52 = sphi 0, %s38
      %s60 = sphi 0, %s62
      %s63 = sphi 0, %s60
      %s64 = sphi 0, %s63
      %s80 = sphi 0, %s64
      %s84 = sphi 0, %s84
      %s86 = sphi 0, %s84
      %s87 = sphi 0, %s86
      %s101 = sphi 0, %s87
      %s105 = sphi 0, %s105
      %s107 = sphi 0, %s105
      %s108 = sphi 0, %s107
      %s122 = sphi 0, %s108
      %s126 = sphi 0, %s126
      %s128 = sphi 0, %s126
      %s129 = sphi 0, %s128
      %s143 = sphi 0, %s129
      %s147 = sphi 0, %s147
      %s149 = sphi 0, %s147
      %s150 = sphi 0, %s149
      %s164 = sphi 0, %s150
      %s168 = sphi 0, %s168
      %s170 = sphi 0, %s168
      %s171 = sphi 0, %s170
      %s185 = sphi 0, %s171
      %s189 = sphi 0, %s189
      %s191 = sphi 0, %s189
      %s192 = sphi 0, %s191
      %s206 = sphi 0, %s192
      %s214 = sphi 0, %s216
      %s217 = sphi 0, %s214
      %s218 = sphi 0, %s217
      %s234 = sphi 0, %s218
    $region4: #{_lambda_.1} parent=1 // loop_header_branch
      %18 = sbr.rel (%p16) target = $region8
    $region5: #{_lambda_.1} parent=1 // loop_body
      %s20 = ssub.s32 %s15, 1
      %s21 = ssub.s32 %s15, 2
      %s28 = sadd.s32 1, %s23
      %p29 = scmp.ge.s32.totalorder %s28, 2
      %s30 = scalar_select %p29, 0, %s28
      %s31 = sadd.s32 1, %s22
      %s32 = scalar_select %p29, %s31, %s22
      %p33 = scmp.ge.s32.totalorder %s32, 2
      %s34 = scalar_select %p33, 0, %s32
      %s36 = sadd.s32 %s35, 1
      %p39 = scmp.eq.s32.totalorder %s15, 3
      %p40 = scmp.ne.s32.totalorder %s35, %s37
      %p41 = scmp.eq.s32.totalorder %s15, 0
      %p42 = por %p40, %p41
      %p43 = scmp.ne.s32.totalorder %s35, %s37
      %p44 = scmp.eq.s32.totalorder %s20, 3
      %p45 = por %p43, %p44
      %p46 = scmp.ne.s32.totalorder %s37, %s38
      %p47 = scmp.eq.s32.totalorder %s20, 0
      %p48 = por %p46, %p47
      %p49 = scmp.ne.s32.totalorder %s37, %s38
      %p50 = scmp.eq.s32.totalorder %s21, 3
      %p51 = por %p49, %p50
      %p53 = scmp.ne.s32.totalorder %s38, %s52
      %p54 = scmp.eq.s32.totalorder %s21, 0
      %p55 = por %p53, %p54
      %s56 = ssub.s32 %s22, %s34
      %s57 = ssub.s32 %s23, %s30
      %s58 = sor.u32 %s56, %s57
      %p59 = scmp.eq.s32.totalorder %s58, 0
      %s61 = sadd.s32 %s60, 1
      %s62 = scalar_select %p59, %s60, %s61
      %p65 = pneg %p59
      %p66 = scmp.eq.s32.totalorder %s15, 3
      %p67 = por %p65, %p66
      %p68 = scmp.ne.s32.totalorder %s60, %s63
      %p69 = scmp.eq.s32.totalorder %s15, 0
      %p70 = por %p68, %p69
      %p71 = scmp.ne.s32.totalorder %s60, %s63
      %p72 = scmp.eq.s32.totalorder %s20, 3
      %p73 = por %p71, %p72
      %p74 = scmp.ne.s32.totalorder %s63, %s64
      %p75 = scmp.eq.s32.totalorder %s20, 0
      %p76 = por %p74, %p75
      %p77 = scmp.ne.s32.totalorder %s63, %s64
      %p78 = scmp.eq.s32.totalorder %s21, 3
      %p79 = por %p77, %p78
      %p81 = scmp.ne.s32.totalorder %s64, %s80
      %p82 = scmp.eq.s32.totalorder %s21, 0
      %p83 = por %p81, %p82
      %s85 = sadd.s32 %s84, 1
      %p88 = scmp.eq.s32.totalorder %s15, 3
      %p89 = scmp.ne.s32.totalorder %s84, %s86
      %p90 = scmp.eq.s32.totalorder %s15, 0
      %p91 = por %p89, %p90
      %p92 = scmp.ne.s32.totalorder %s84, %s86
      %p93 = scmp.eq.s32.totalorder %s20, 3
      %p94 = por %p92, %p93
      %p95 = scmp.ne.s32.totalorder %s86, %s87
      %p96 = scmp.eq.s32.totalorder %s20, 0
      %p97 = por %p95, %p96
      %p98 = scmp.ne.s32.totalorder %s86, %s87
      %p99 = scmp.eq.s32.totalorder %s21, 3
      %p100 = por %p98, %p99
      %p102 = scmp.ne.s32.totalorder %s87, %s101
      %p103 = scmp.eq.s32.totalorder %s21, 0
      %p104 = por %p102, %p103
      %s106 = sadd.s32 %s105, 1
      %p109 = scmp.eq.s32.totalorder %s15, 3
      %p110 = scmp.ne.s32.totalorder %s105, %s107
      %p111 = scmp.eq.s32.totalorder %s15, 0
      %p112 = por %p110, %p111
      %p113 = scmp.ne.s32.totalorder %s105, %s107
      %p114 = scmp.eq.s32.totalorder %s20, 3
      %p115 = por %p113, %p114
      %p116 = scmp.ne.s32.totalorder %s107, %s108
      %p117 = scmp.eq.s32.totalorder %s20, 0
      %p118 = por %p116, %p117
      %p119 = scmp.ne.s32.totalorder %s107, %s108
      %p120 = scmp.eq.s32.totalorder %s21, 3
      %p121 = por %p119, %p120
      %p123 = scmp.ne.s32.totalorder %s108, %s122
      %p124 = scmp.eq.s32.totalorder %s21, 0
      %p125 = por %p123, %p124
      %s127 = sadd.s32 %s126, 1
      %p130 = scmp.eq.s32.totalorder %s15, 3
      %p131 = scmp.ne.s32.totalorder %s126, %s128
      %p132 = scmp.eq.s32.totalorder %s15, 0
      %p133 = por %p131, %p132
      %p134 = scmp.ne.s32.totalorder %s126, %s128
      %p135 = scmp.eq.s32.totalorder %s20, 3
      %p136 = por %p134, %p135
      %p137 = scmp.ne.s32.totalorder %s128, %s129
      %p138 = scmp.eq.s32.totalorder %s20, 0
      %p139 = por %p137, %p138
      %p140 = scmp.ne.s32.totalorder %s128, %s129
      %p141 = scmp.eq.s32.totalorder %s21, 3
      %p142 = por %p140, %p141
      %p144 = scmp.ne.s32.totalorder %s129, %s143
      %p145 = scmp.eq.s32.totalorder %s21, 0
      %p146 = por %p144, %p145
      %s148 = sadd.s32 %s147, 1
      %p151 = scmp.eq.s32.totalorder %s15, 3
      %p152 = scmp.ne.s32.totalorder %s147, %s149
      %p153 = scmp.eq.s32.totalorder %s15, 0
      %p154 = por %p152, %p153
      %p155 = scmp.ne.s32.totalorder %s147, %s149
      %p156 = scmp.eq.s32.totalorder %s20, 3
      %p157 = por %p155, %p156
      %p158 = scmp.ne.s32.totalorder %s149, %s150
      %p159 = scmp.eq.s32.totalorder %s20, 0
      %p160 = por %p158, %p159
      %p161 = scmp.ne.s32.totalorder %s149, %s150
      %p162 = scmp.eq.s32.totalorder %s21, 3
      %p163 = por %p161, %p162
      %p165 = scmp.ne.s32.totalorder %s150, %s164
      %p166 = scmp.eq.s32.totalorder %s21, 0
      %p167 = por %p165, %p166
      %s169 = sadd.s32 %s168, 1
      %p172 = scmp.eq.s32.totalorder %s15, 3
      %p173 = scmp.ne.s32.totalorder %s168, %s170
      %p174 = scmp.eq.s32.totalorder %s15, 0
      %p175 = por %p173, %p174
      %p176 = scmp.ne.s32.totalorder %s168, %s170
      %p177 = scmp.eq.s32.totalorder %s20, 3
      %p178 = por %p176, %p177
      %p179 = scmp.ne.s32.totalorder %s170, %s171
      %p180 = scmp.eq.s32.totalorder %s20, 0
      %p181 = por %p179, %p180
      %p182 = scmp.ne.s32.totalorder %s170, %s171
      %p183 = scmp.eq.s32.totalorder %s21, 3
      %p184 = por %p182, %p183
      %p186 = scmp.ne.s32.totalorder %s171, %s185
      %p187 = scmp.eq.s32.totalorder %s21, 0
      %p188 = por %p186, %p187
      %s190 = sadd.s32 %s189, 1
      %p193 = scmp.eq.s32.totalorder %s15, 3
      %p194 = scmp.ne.s32.totalorder %s189, %s191
      %p195 = scmp.eq.s32.totalorder %s15, 0
      %p196 = por %p194, %p195
      %p197 = scmp.ne.s32.totalorder %s189, %s191
      %p198 = scmp.eq.s32.totalorder %s20, 3
      %p199 = por %p197, %p198
      %p200 = scmp.ne.s32.totalorder %s191, %s192
      %p201 = scmp.eq.s32.totalorder %s20, 0
      %p202 = por %p200, %p201
      %p203 = scmp.ne.s32.totalorder %s191, %s192
      %p204 = scmp.eq.s32.totalorder %s21, 3
      %p205 = por %p203, %p204
      %p207 = scmp.ne.s32.totalorder %s192, %s206
      %p208 = scmp.eq.s32.totalorder %s21, 0
      %p209 = por %p207, %p208
      %s210 = ssub.s32 %s22, %s34
      %s211 = ssub.s32 %s23, %s30
      %s212 = sor.u32 %s210, %s211
      %p213 = scmp.eq.s32.totalorder %s212, 0
      %s215 = sadd.s32 %s214, 1
      %s216 = scalar_select %p213, %s214, %s215
      %p219 = pneg %p213
      %p220 = scmp.eq.s32.totalorder %s15, 3
      %p221 = por %p219, %p220
      %p222 = scmp.ne.s32.totalorder %s214, %s217
      %p223 = scmp.eq.s32.totalorder %s15, 0
      %p224 = por %p222, %p223
      %p225 = scmp.ne.s32.totalorder %s214, %s217
      %p226 = scmp.eq.s32.totalorder %s20, 3
      %p227 = por %p225, %p226
      %p228 = scmp.ne.s32.totalorder %s217, %s218
      %p229 = scmp.eq.s32.totalorder %s20, 0
      %p230 = por %p228, %p229
      %p231 = scmp.ne.s32.totalorder %s217, %s218
      %p232 = scmp.eq.s32.totalorder %s21, 3
      %p233 = por %p231, %p232
      %p235 = scmp.ne.s32.totalorder %s218, %s234
      %p236 = scmp.eq.s32.totalorder %s21, 0
      %p237 = por %p235, %p236
      %p238 = scmp.le.s32.totalorder 1, %s15
      %p239 = scmp.lt.s32.totalorder %s15, 5
      %p240 = pnand %p238, %p239
      %p241 = pneg %p240
      // Predicated region
      $region9: #{_lambda_.1} parent=5 // pred_check
        _
      $region10: #{_lambda_.1} parent=5 // pred_check_branch
        %243 = sbr.rel (%p240) target = $region12
      $region11: #{_lambda_.1} parent=5 // pred_region
        %s244 = ssub.s32 %s15, 1
        // Predicated region
        $region13: #{_lambda_.1} parent=11 // pred_check
          %p245 = pneg %p48
        $region14: #{_lambda_.1} parent=11 // pred_check_branch
          %247 = sbr.rel (%p245) target = $region16
        $region15: #{_lambda_.1} parent=11 // pred_region
          %249 = vsyncadd [#allocation4], 0
          %s251 = sshll.u32 %s0, 4
          %s252 = int_to_ptr.vmem [resolvable:$true] %s251
          %254 = dma.vmem_to_smem %s252, 16, [#allocation3], [#allocation4]
        $region16: #{_lambda_.1} parent=11 // pred_fallthru
          _
        // Predicated region
        $region17: #{_lambda_.1} parent=11 // pred_check
          %p255 = pneg %p97
        $region18: #{_lambda_.1} parent=11 // pred_check_branch
          %257 = sbr.rel (%p255) target = $region20
        $region19: #{_lambda_.1} parent=11 // pred_region
          _
        $region20: #{_lambda_.1} parent=11 // pred_fallthru
          _
        // Predicated region
        $region21: #{_lambda_.1} parent=11 // pred_check
          %p258 = pneg %p118
        $region22: #{_lambda_.1} parent=11 // pred_check_branch
          %260 = sbr.rel (%p258) target = $region24
        $region23: #{_lambda_.1} parent=11 // pred_region
          _
        $region24: #{_lambda_.1} parent=11 // pred_fallthru
          _
        // Predicated region
        $region25: #{_lambda_.1} parent=11 // pred_check
          %p261 = pneg %p139
        $region26: #{_lambda_.1} parent=11 // pred_check_branch
          %263 = sbr.rel (%p261) target = $region28
        $region27: #{_lambda_.1} parent=11 // pred_region
          _
        $region28: #{_lambda_.1} parent=11 // pred_fallthru
          _
        // Predicated region
        $region29: #{_lambda_.1} parent=11 // pred_check
          %p264 = pneg %p160
        $region30: #{_lambda_.1} parent=11 // pred_check_branch
          %266 = sbr.rel (%p264) target = $region32
        $region31: #{_lambda_.1} parent=11 // pred_region
          _
        $region32: #{_lambda_.1} parent=11 // pred_fallthru
          _
        // Predicated region
        $region33: #{_lambda_.1} parent=11 // pred_check
          %p267 = pneg %p181
        $region34: #{_lambda_.1} parent=11 // pred_check_branch
          %269 = sbr.rel (%p267) target = $region36
        $region35: #{_lambda_.1} parent=11 // pred_region
          _
        $region36: #{_lambda_.1} parent=11 // pred_fallthru
          _
        // Predicated region
        $region37: #{_lambda_.1} parent=11 // pred_check
          %p270 = pneg %p202
        $region38: #{_lambda_.1} parent=11 // pred_check_branch
          %272 = sbr.rel (%p270) target = $region40
        $region39: #{_lambda_.1} parent=11 // pred_region
          _
        $region40: #{_lambda_.1} parent=11 // pred_fallthru
          _
      $region12: #{_lambda_.1} parent=5 // pred_fallthru
        _
      %p273 = scmp.lt.s32.totalorder %s15, 4
      // Predicated region
      $region41: #{_lambda_.1} parent=5 // pred_check
        %p274 = pneg %p273
      $region42: #{_lambda_.1} parent=5 // pred_check_branch
        %276 = sbr.rel (%p274) target = $region44
      $region43: #{_lambda_.1} parent=5 // pred_region
        // Predicated region
        $region45: #{_lambda_.1} parent=43 // pred_check
          %p277 = pneg %p70
        $region46: #{_lambda_.1} parent=43 // pred_check_branch
          %279 = sbr.rel (%p277) target = $region48
        $region47: #{_lambda_.1} parent=43 // pred_region
          %p280 = scmp.lt.s32.totalorder %s22, 1
          %s281 = scalar_select %p280, %s22, 1
          %p282 = scmp.lt.s32.totalorder %s23, 1
          %s283 = scalar_select %p282, %s23, 1
          %s284 = smul.addr %s283, 96
          %s285 = smul.addr %s281, 192
          %s286 = sadd.s32 %s284, %s285
          %s287 = smul.addr %s286, 8
          %s288 = scalar_lea.vmem %s1, %s287
        $region48: #{_lambda_.1} parent=43 // pred_fallthru
          _
      $region44: #{_lambda_.1} parent=5 // pred_fallthru
        _
      %p289 = scmp.le.s32.totalorder 1, %s15
      %p290 = scmp.lt.s32.totalorder %s15, 5
      %p291 = pnand %p289, %p290
      %p292 = pneg %p291
      // Predicated region
      $region49: #{_lambda_.1} parent=5 // pred_check
        _
      $region50: #{_lambda_.1} parent=5 // pred_check_branch
        %294 = sbr.rel (%p291) target = $region52
      $region51: #{_lambda_.1} parent=5 // pred_region
        %s295 = ssub.s32 %s15, 1
        // Predicated region
        $region53: #{_lambda_.1} parent=51 // pred_check
          %p296 = pneg %p48
        $region54: #{_lambda_.1} parent=51 // pred_check_branch
          %298 = sbr.rel (%p296) target = $region56
        $region55: #{_lambda_.1} parent=51 // pred_region
          %300 = dma.done [#allocation4], 16
        $region56: #{_lambda_.1} parent=51 // pred_fallthru
          _
        %301 = sfence
        %p302 = pneg %p48
        %p303 = pneg %p45
        %p304 = scmp.lt.s32.totalorder %s24, 1
        %s305 = scalar_select %p304, %s24, 1
        %p306 = scmp.lt.s32.totalorder %s25, 1
        %s307 = scalar_select %p306, %s25, 1
        %s308 = smul.addr %s307, 96
        %s309 = smul.addr %s305, 192
        %s310 = sadd.s32 %s308, %s309
        %s311 = smul.addr %s310, 8
        %s312 = scalar_lea.vmem %s1, %s311
        %p313 = pneg %p76
        %p314 = pneg %p73
        %p315 = pneg %p97
        %p316 = pneg %p94
        %p317 = pneg %p118
        %p318 = pneg %p115
        %p319 = pneg %p139
        %p320 = pneg %p136
        %p321 = pneg %p160
        %p322 = pneg %p157
        %p323 = pneg %p181
        %p324 = pneg %p178
        %p325 = pneg %p202
        %p326 = pneg %p199
        %p327 = pneg %p230
        %p328 = pneg %p227
        %s329 = sand.u32 %s217, 1
        %s330 = sand.u32 %s217, 1
        %s331 = smul.addr %s330, 128
        %s332 = scalar_lea.vmem [#allocation5], %s331
        %p333 = scmp.lt.s32.totalorder %s24, 1
        %s334 = scalar_select %p333, %s24, 1
        %p335 = scmp.lt.s32.totalorder %s25, 1
        %s336 = scalar_select %p335, %s25, 1
        %s337 = smul.addr %s336, 96
        %s338 = smul.addr %s334, 192
        %s339 = sadd.s32 %s337, %s338
        %s340 = smul.addr %s339, 8
        %s341 = scalar_lea.vmem %s1, %s340
        %s342 = smul.u32 4, %s25
        %v344 = vld [vmem:[%s341] sm:$0xff]
        %v345 = vld [vmem:[%s341 + $0x8] sm:$0xff]
        %v346 = vld [vmem:[%s341 + $0x10] sm:$0x3]
        %v347 = vld [vmem:[%s341 + $0x18] sm:$0xff]
        %v348 = vld [vmem:[%s341 + $0x20] sm:$0xff]
        %v349 = vld [vmem:[%s341 + $0x28] sm:$0x3]
        %v350 = vld [vmem:[%s341 + $0x30] sm:$0xff]
        %v351 = vld [vmem:[%s341 + $0x38] sm:$0xff]
        %v352 = vld [vmem:[%s341 + $0x40] sm:$0x3]
        %v353 = vld [vmem:[%s341 + $0x48] sm:$0xff]
        %v354 = vld [vmem:[%s341 + $0x50] sm:$0xff]
        %v355 = vld [vmem:[%s341 + $0x58] sm:$0x3]
        %v356 = vld [vmem:[%s341 + $0x60] sm:$0xff]
        %v357 = vld [vmem:[%s341 + $0x68] sm:$0xff]
        %v358 = vld [vmem:[%s341 + $0x70] sm:$0x3]
        %v359 = vld [vmem:[%s341 + $0x78] sm:$0xff]
        %v360 = vld [vmem:[%s341 + $0x80] sm:$0xff]
        %v361 = vld [vmem:[%s341 + $0x88] sm:$0x3]
        %v362 = vld [vmem:[%s341 + $0x90] sm:$0xff]
        %v363 = vld [vmem:[%s341 + $0x98] sm:$0xff]
        %v364 = vld [vmem:[%s341 + $0xa0] sm:$0x3]
        %v365 = vld [vmem:[%s341 + $0xa8] sm:$0xff]
        %v366 = vld [vmem:[%s341 + $0xb0] sm:$0xff]
        %v367 = vld [vmem:[%s341 + $0xb8] sm:$0x3]
        %v368 = vld [vmem:[%s341 + $0xc0] sm:$0xff]
        %v369 = vld [vmem:[%s341 + $0xc8] sm:$0xff]
        %v370 = vld [vmem:[%s341 + $0xd0] sm:$0x3]
        %v371 = vld [vmem:[%s341 + $0xd8] sm:$0xff]
        %v372 = vld [vmem:[%s341 + $0xe0] sm:$0xff]
        %v373 = vld [vmem:[%s341 + $0xe8] sm:$0x3]
        %v374 = vld [vmem:[%s341 + $0xf0] sm:$0xff]
        %v375 = vld [vmem:[%s341 + $0xf8] sm:$0xff]
        %v376 = vld [vmem:[%s341 + $0x100] sm:$0x3]
        %v377 = vld [vmem:[%s341 + $0x108] sm:$0xff]
        %v378 = vld [vmem:[%s341 + $0x110] sm:$0xff]
        %v379 = vld [vmem:[%s341 + $0x118] sm:$0x3]
        %v380 = vld [vmem:[%s341 + $0x120] sm:$0xff]
        %v381 = vld [vmem:[%s341 + $0x128] sm:$0xff]
        %v382 = vld [vmem:[%s341 + $0x130] sm:$0x3]
        %v383 = vld [vmem:[%s341 + $0x138] sm:$0xff]
        %v384 = vld [vmem:[%s341 + $0x140] sm:$0xff]
        %v385 = vld [vmem:[%s341 + $0x148] sm:$0x3]
        %v386 = vld [vmem:[%s341 + $0x150] sm:$0xff]
        %v387 = vld [vmem:[%s341 + $0x158] sm:$0xff]
        %v388 = vld [vmem:[%s341 + $0x160] sm:$0x3]
        %v389 = vld [vmem:[%s341 + $0x168] sm:$0xff]
        %v390 = vld [vmem:[%s341 + $0x170] sm:$0xff]
        %v391 = vld [vmem:[%s341 + $0x178] sm:$0x3]
        %v392 = vld [vmem:[%s341 + $0x180] sm:$0xff]
        %v393 = vld [vmem:[%s341 + $0x188] sm:$0xff]
        %v394 = vld [vmem:[%s341 + $0x190] sm:$0x3]
        %v395 = vld [vmem:[%s341 + $0x198] sm:$0xff]
        %v396 = vld [vmem:[%s341 + $0x1a0] sm:$0xff]
        %v397 = vld [vmem:[%s341 + $0x1a8] sm:$0x3]
        %v398 = vld [vmem:[%s341 + $0x1b0] sm:$0xff]
        %v399 = vld [vmem:[%s341 + $0x1b8] sm:$0xff]
        %v400 = vld [vmem:[%s341 + $0x1c0] sm:$0x3]
        %v401 = vld [vmem:[%s341 + $0x1c8] sm:$0xff]
        %v402 = vld [vmem:[%s341 + $0x1d0] sm:$0xff]
        %v403 = vld [vmem:[%s341 + $0x1d8] sm:$0x3]
        %v404 = vld [vmem:[%s341 + $0x1e0] sm:$0xff]
        %v405 = vld [vmem:[%s341 + $0x1e8] sm:$0xff]
        %v406 = vld [vmem:[%s341 + $0x1f0] sm:$0x3]
        %v407 = vld [vmem:[%s341 + $0x1f8] sm:$0xff]
        %v408 = vld [vmem:[%s341 + $0x200] sm:$0xff]
        %v409 = vld [vmem:[%s341 + $0x208] sm:$0x3]
        %v410 = vld [vmem:[%s341 + $0x210] sm:$0xff]
        %v411 = vld [vmem:[%s341 + $0x218] sm:$0xff]
        %v412 = vld [vmem:[%s341 + $0x220] sm:$0x3]
        %v413 = vld [vmem:[%s341 + $0x228] sm:$0xff]
        %v414 = vld [vmem:[%s341 + $0x230] sm:$0xff]
        %v415 = vld [vmem:[%s341 + $0x238] sm:$0x3]
        %v416 = vld [vmem:[%s341 + $0x240] sm:$0xff]
        %v417 = vld [vmem:[%s341 + $0x248] sm:$0xff]
        %v418 = vld [vmem:[%s341 + $0x250] sm:$0x3]
        %v419 = vld [vmem:[%s341 + $0x258] sm:$0xff]
        %v420 = vld [vmem:[%s341 + $0x260] sm:$0xff]
        %v421 = vld [vmem:[%s341 + $0x268] sm:$0x3]
        %v422 = vld [vmem:[%s341 + $0x270] sm:$0xff]
        %v423 = vld [vmem:[%s341 + $0x278] sm:$0xff]
        %v424 = vld [vmem:[%s341 + $0x280] sm:$0x3]
        %v425 = vld [vmem:[%s341 + $0x288] sm:$0xff]
        %v426 = vld [vmem:[%s341 + $0x290] sm:$0xff]
        %v427 = vld [vmem:[%s341 + $0x298] sm:$0x3]
        %v428 = vld [vmem:[%s341 + $0x2a0] sm:$0xff]
        %v429 = vld [vmem:[%s341 + $0x2a8] sm:$0xff]
        %v430 = vld [vmem:[%s341 + $0x2b0] sm:$0x3]
        %v431 = vld [vmem:[%s341 + $0x2b8] sm:$0xff]
        %v432 = vld [vmem:[%s341 + $0x2c0] sm:$0xff]
        %v433 = vld [vmem:[%s341 + $0x2c8] sm:$0x3]
        %v434 = vld [vmem:[%s341 + $0x2d0] sm:$0xff]
        %v435 = vld [vmem:[%s341 + $0x2d8] sm:$0xff]
        %v436 = vld [vmem:[%s341 + $0x2e0] sm:$0x3]
        %v437 = vld [vmem:[%s341 + $0x2e8] sm:$0xff]
        %v438 = vld [vmem:[%s341 + $0x2f0] sm:$0xff]
        %v439 = vld [vmem:[%s341 + $0x2f8] sm:$0x3]
        %v440 = vrot.slane %v350, 4
        %vm441 = vcmask 1047556
        %v442 = vsel %vm441, %v440, %v344
        %v443 = vrot.slane %v344, 4
        %v444 = vsel %vm441, %v350, %v443
        %v446 = vunpack.c.l.s4 1983009808
        %v447 = vunpack.c.0.s8 %v446
        %v448 = vperm.slane %v442, %v447
        %v450 = vunpack.c.l.s4 1983009808
        %v451 = vunpack.c.0.s8 %v450
        %v452 = vperm.slane %v444, %v451
        %v453 = vrot.slane %v353, 4
        %v454 = vsel %vm441, %v453, %v347
        %v455 = vrot.slane %v347, 4
        %v456 = vsel %vm441, %v353, %v455
        %v458 = vunpack.c.l.s4 1983009808
        %v459 = vunpack.c.0.s8 %v458
        %v460 = vperm.slane %v454, %v459
        %v462 = vunpack.c.l.s4 1983009808
        %v463 = vunpack.c.0.s8 %v462
        %v464 = vperm.slane %v456, %v463
        %v465 = vrot.slane %v362, 4
        %v466 = vsel %vm441, %v465, %v356
        %v467 = vrot.slane %v356, 4
        %v468 = vsel %vm441, %v362, %v467
        %v470 = vunpack.c.l.s4 1983009808
        %v471 = vunpack.c.0.s8 %v470
        %v472 = vperm.slane %v466, %v471
        %v474 = vunpack.c.l.s4 1983009808
        %v475 = vunpack.c.0.s8 %v474
        %v476 = vperm.slane %v468, %v475
        %v477 = vrot.slane %v365, 4
        %v478 = vsel %vm441, %v477, %v359
        %v479 = vrot.slane %v359, 4
        %v480 = vsel %vm441, %v365, %v479
        %v482 = vunpack.c.l.s4 1983009808
        %v483 = vunpack.c.0.s8 %v482
        %v484 = vperm.slane %v478, %v483
        %v486 = vunpack.c.l.s4 1983009808
        %v487 = vunpack.c.0.s8 %v486
        %v488 = vperm.slane %v480, %v487
        %v489 = vrot.slane %v460, 4
        %v490 = vsel %vm441, %v489, %v448
        %v491 = vrot.slane %v448, 4
        %v492 = vsel %vm441, %v460, %v491
        %v494 = vunpack.c.l.s4 1934713408
        %v495 = vunpack.c.0.s8 %v494
        %v496 = vperm.slane %v490, %v495
        %v498 = vunpack.c.l.s4 1934713408
        %v499 = vunpack.c.0.s8 %v498
        %v500 = vperm.slane %v492, %v499
        %v501 = vrot.slane %v464, 4
        %v502 = vsel %vm441, %v501, %v452
        %v503 = vrot.slane %v452, 4
        %v504 = vsel %vm441, %v464, %v503
        %v506 = vunpack.c.l.s4 1934713408
        %v507 = vunpack.c.0.s8 %v506
        %v508 = vperm.slane %v502, %v507
        %v510 = vunpack.c.l.s4 1934713408
        %v511 = vunpack.c.0.s8 %v510
        %v512 = vperm.slane %v504, %v511
        %v513 = vrot.slane %v484, 4
        %v514 = vsel %vm441, %v513, %v472
        %v515 = vrot.slane %v472, 4
        %v516 = vsel %vm441, %v484, %v515
        %v518 = vunpack.c.l.s4 1934713408
        %v519 = vunpack.c.0.s8 %v518
        %v520 = vperm.slane %v514, %v519
        %v522 = vunpack.c.l.s4 1934713408
        %v523 = vunpack.c.0.s8 %v522
        %v524 = vperm.slane %v516, %v523
        %v525 = vrot.slane %v488, 4
        %v526 = vsel %vm441, %v525, %v476
        %v527 = vrot.slane %v476, 4
        %v528 = vsel %vm441, %v488, %v527
        %v530 = vunpack.c.l.s4 1934713408
        %v531 = vunpack.c.0.s8 %v530
        %v532 = vperm.slane %v526, %v531
        %v534 = vunpack.c.l.s4 1934713408
        %v535 = vunpack.c.0.s8 %v534
        %v536 = vperm.slane %v528, %v535
        %v537 = vrot.slane %v520, 4
        %v538 = vsel %vm441, %v537, %v496
        %v539 = vrot.slane %v496, 4
        %v540 = vsel %vm441, %v520, %v539
        %v541 = vrot.slane %v524, 4
        %v542 = vsel %vm441, %v541, %v500
        %v543 = vrot.slane %v500, 4
        %v544 = vsel %vm441, %v524, %v543
        %v545 = vrot.slane %v532, 4
        %v546 = vsel %vm441, %v545, %v508
        %v547 = vrot.slane %v508, 4
        %v548 = vsel %vm441, %v532, %v547
        %v549 = vrot.slane %v536, 4
        %v550 = vsel %vm441, %v549, %v512
        %v551 = vrot.slane %v512, 4
        %v552 = vsel %vm441, %v536, %v551
        %v553 = vrot.slane %v374, 4
        %v554 = vsel %vm441, %v553, %v368
        %v555 = vrot.slane %v368, 4
        %v556 = vsel %vm441, %v374, %v555
        %v558 = vunpack.c.l.s4 1983009808
        %v559 = vunpack.c.0.s8 %v558
        %v560 = vperm.slane %v554, %v559
        %v562 = vunpack.c.l.s4 1983009808
        %v563 = vunpack.c.0.s8 %v562
        %v564 = vperm.slane %v556, %v563
        %v565 = vrot.slane %v377, 4
        %v566 = vsel %vm441, %v565, %v371
        %v567 = vrot.slane %v371, 4
        %v568 = vsel %vm441, %v377, %v567
        %v570 = vunpack.c.l.s4 1983009808
        %v571 = vunpack.c.0.s8 %v570
        %v572 = vperm.slane %v566, %v571
        %v574 = vunpack.c.l.s4 1983009808
        %v575 = vunpack.c.0.s8 %v574
        %v576 = vperm.slane %v568, %v575
        %v577 = vrot.slane %v386, 4
        %v578 = vsel %vm441, %v577, %v380
        %v579 = vrot.slane %v380, 4
        %v580 = vsel %vm441, %v386, %v579
        %v582 = vunpack.c.l.s4 1983009808
        %v583 = vunpack.c.0.s8 %v582
        %v584 = vperm.slane %v578, %v583
        %v586 = vunpack.c.l.s4 1983009808
        %v587 = vunpack.c.0.s8 %v586
        %v588 = vperm.slane %v580, %v587
        %v589 = vrot.slane %v389, 4
        %v590 = vsel %vm441, %v589, %v383
        %v591 = vrot.slane %v383, 4
        %v592 = vsel %vm441, %v389, %v591
        %v594 = vunpack.c.l.s4 1983009808
        %v595 = vunpack.c.0.s8 %v594
        %v596 = vperm.slane %v590, %v595
        %v598 = vunpack.c.l.s4 1983009808
        %v599 = vunpack.c.0.s8 %v598
        %v600 = vperm.slane %v592, %v599
        %v601 = vrot.slane %v572, 4
        %v602 = vsel %vm441, %v601, %v560
        %v603 = vrot.slane %v560, 4
        %v604 = vsel %vm441, %v572, %v603
        %v606 = vunpack.c.l.s4 1934713408
        %v607 = vunpack.c.0.s8 %v606
        %v608 = vperm.slane %v602, %v607
        %v610 = vunpack.c.l.s4 1934713408
        %v611 = vunpack.c.0.s8 %v610
        %v612 = vperm.slane %v604, %v611
        %v613 = vrot.slane %v576, 4
        %v614 = vsel %vm441, %v613, %v564
        %v615 = vrot.slane %v564, 4
        %v616 = vsel %vm441, %v576, %v615
        %v618 = vunpack.c.l.s4 1934713408
        %v619 = vunpack.c.0.s8 %v618
        %v620 = vperm.slane %v614, %v619
        %v622 = vunpack.c.l.s4 1934713408
        %v623 = vunpack.c.0.s8 %v622
        %v624 = vperm.slane %v616, %v623
        %v625 = vrot.slane %v596, 4
        %v626 = vsel %vm441, %v625, %v584
        %v627 = vrot.slane %v584, 4
        %v628 = vsel %vm441, %v596, %v627
        %v630 = vunpack.c.l.s4 1934713408
        %v631 = vunpack.c.0.s8 %v630
        %v632 = vperm.slane %v626, %v631
        %v634 = vunpack.c.l.s4 1934713408
        %v635 = vunpack.c.0.s8 %v634
        %v636 = vperm.slane %v628, %v635
        %v637 = vrot.slane %v600, 4
        %v638 = vsel %vm441, %v637, %v588
        %v639 = vrot.slane %v588, 4
        %v640 = vsel %vm441, %v600, %v639
        %v642 = vunpack.c.l.s4 1934713408
        %v643 = vunpack.c.0.s8 %v642
        %v644 = vperm.slane %v638, %v643
        %v646 = vunpack.c.l.s4 1934713408
        %v647 = vunpack.c.0.s8 %v646
        %v648 = vperm.slane %v640, %v647
        %v649 = vrot.slane %v632, 4
        %v650 = vsel %vm441, %v649, %v608
        %v651 = vrot.slane %v608, 4
        %v652 = vsel %vm441, %v632, %v651
        %v653 = vrot.slane %v636, 4
        %v654 = vsel %vm441, %v653, %v612
        %v655 = vrot.slane %v612, 4
        %v656 = vsel %vm441, %v636, %v655
        %v657 = vrot.slane %v644, 4
        %v658 = vsel %vm441, %v657, %v620
        %v659 = vrot.slane %v620, 4
        %v660 = vsel %vm441, %v644, %v659
        %v661 = vrot.slane %v648, 4
        %v662 = vsel %vm441, %v661, %v624
        %v663 = vrot.slane %v624, 4
        %v664 = vsel %vm441, %v648, %v663
        %v665 = vrot.slane %v398, 4
        %v666 = vsel %vm441, %v665, %v392
        %v667 = vrot.slane %v392, 4
        %v668 = vsel %vm441, %v398, %v667
        %v670 = vunpack.c.l.s4 1983009808
        %v671 = vunpack.c.0.s8 %v670
        %v672 = vperm.slane %v666, %v671
        %v674 = vunpack.c.l.s4 1983009808
        %v675 = vunpack.c.0.s8 %v674
        %v676 = vperm.slane %v668, %v675
        %v677 = vrot.slane %v401, 4
        %v678 = vsel %vm441, %v677, %v395
        %v679 = vrot.slane %v395, 4
        %v680 = vsel %vm441, %v401, %v679
        %v682 = vunpack.c.l.s4 1983009808
        %v683 = vunpack.c.0.s8 %v682
        %v684 = vperm.slane %v678, %v683
        %v686 = vunpack.c.l.s4 1983009808
        %v687 = vunpack.c.0.s8 %v686
        %v688 = vperm.slane %v680, %v687
        %v689 = vrot.slane %v410, 4
        %v690 = vsel %vm441, %v689, %v404
        %v691 = vrot.slane %v404, 4
        %v692 = vsel %vm441, %v410, %v691
        %v694 = vunpack.c.l.s4 1983009808
        %v695 = vunpack.c.0.s8 %v694
        %v696 = vperm.slane %v690, %v695
        %v698 = vunpack.c.l.s4 1983009808
        %v699 = vunpack.c.0.s8 %v698
        %v700 = vperm.slane %v692, %v699
        %v701 = vrot.slane %v413, 4
        %v702 = vsel %vm441, %v701, %v407
        %v703 = vrot.slane %v407, 4
        %v704 = vsel %vm441, %v413, %v703
        %v706 = vunpack.c.l.s4 1983009808
        %v707 = vunpack.c.0.s8 %v706
        %v708 = vperm.slane %v702, %v707
        %v710 = vunpack.c.l.s4 1983009808
        %v711 = vunpack.c.0.s8 %v710
        %v712 = vperm.slane %v704, %v711
        %v713 = vrot.slane %v684, 4
        %v714 = vsel %vm441, %v713, %v672
        %v715 = vrot.slane %v672, 4
        %v716 = vsel %vm441, %v684, %v715
        %v718 = vunpack.c.l.s4 1934713408
        %v719 = vunpack.c.0.s8 %v718
        %v720 = vperm.slane %v714, %v719
        %v722 = vunpack.c.l.s4 1934713408
        %v723 = vunpack.c.0.s8 %v722
        %v724 = vperm.slane %v716, %v723
        %v725 = vrot.slane %v688, 4
        %v726 = vsel %vm441, %v725, %v676
        %v727 = vrot.slane %v676, 4
        %v728 = vsel %vm441, %v688, %v727
        %v730 = vunpack.c.l.s4 1934713408
        %v731 = vunpack.c.0.s8 %v730
        %v732 = vperm.slane %v726, %v731
        %v734 = vunpack.c.l.s4 1934713408
        %v735 = vunpack.c.0.s8 %v734
        %v736 = vperm.slane %v728, %v735
        %v737 = vrot.slane %v708, 4
        %v738 = vsel %vm441, %v737, %v696
        %v739 = vrot.slane %v696, 4
        %v740 = vsel %vm441, %v708, %v739
        %v742 = vunpack.c.l.s4 1934713408
        %v743 = vunpack.c.0.s8 %v742
        %v744 = vperm.slane %v738, %v743
        %v746 = vunpack.c.l.s4 1934713408
        %v747 = vunpack.c.0.s8 %v746
        %v748 = vperm.slane %v740, %v747
        %v749 = vrot.slane %v712, 4
        %v750 = vsel %vm441, %v749, %v700
        %v751 = vrot.slane %v700, 4
        %v752 = vsel %vm441, %v712, %v751
        %v754 = vunpack.c.l.s4 1934713408
        %v755 = vunpack.c.0.s8 %v754
        %v756 = vperm.slane %v750, %v755
        %v758 = vunpack.c.l.s4 1934713408
        %v759 = vunpack.c.0.s8 %v758
        %v760 = vperm.slane %v752, %v759
        %v761 = vrot.slane %v744, 4
        %v762 = vsel %vm441, %v761, %v720
        %v763 = vrot.slane %v720, 4
        %v764 = vsel %vm441, %v744, %v763
        %v765 = vrot.slane %v748, 4
        %v766 = vsel %vm441, %v765, %v724
        %v767 = vrot.slane %v724, 4
        %v768 = vsel %vm441, %v748, %v767
        %v769 = vrot.slane %v756, 4
        %v770 = vsel %vm441, %v769, %v732
        %v771 = vrot.slane %v732, 4
        %v772 = vsel %vm441, %v756, %v771
        %v773 = vrot.slane %v760, 4
        %v774 = vsel %vm441, %v773, %v736
        %v775 = vrot.slane %v736, 4
        %v776 = vsel %vm441, %v760, %v775
        %v777 = vrot.slane %v422, 4
        %v778 = vsel %vm441, %v777, %v416
        %v779 = vrot.slane %v416, 4
        %v780 = vsel %vm441, %v422, %v779
        %v782 = vunpack.c.l.s4 1983009808
        %v783 = vunpack.c.0.s8 %v782
        %v784 = vperm.slane %v778, %v783
        %v786 = vunpack.c.l.s4 1983009808
        %v787 = vunpack.c.0.s8 %v786
        %v788 = vperm.slane %v780, %v787
        %v789 = vrot.slane %v425, 4
        %v790 = vsel %vm441, %v789, %v419
        %v791 = vrot.slane %v419, 4
        %v792 = vsel %vm441, %v425, %v791
        %v794 = vunpack.c.l.s4 1983009808
        %v795 = vunpack.c.0.s8 %v794
        %v796 = vperm.slane %v790, %v795
        %v798 = vunpack.c.l.s4 1983009808
        %v799 = vunpack.c.0.s8 %v798
        %v800 = vperm.slane %v792, %v799
        %v801 = vrot.slane %v434, 4
        %v802 = vsel %vm441, %v801, %v428
        %v803 = vrot.slane %v428, 4
        %v804 = vsel %vm441, %v434, %v803
        %v806 = vunpack.c.l.s4 1983009808
        %v807 = vunpack.c.0.s8 %v806
        %v808 = vperm.slane %v802, %v807
        %v810 = vunpack.c.l.s4 1983009808
        %v811 = vunpack.c.0.s8 %v810
        %v812 = vperm.slane %v804, %v811
        %v813 = vrot.slane %v437, 4
        %v814 = vsel %vm441, %v813, %v431
        %v815 = vrot.slane %v431, 4
        %v816 = vsel %vm441, %v437, %v815
        %v818 = vunpack.c.l.s4 1983009808
        %v819 = vunpack.c.0.s8 %v818
        %v820 = vperm.slane %v814, %v819
        %v822 = vunpack.c.l.s4 1983009808
        %v823 = vunpack.c.0.s8 %v822
        %v824 = vperm.slane %v816, %v823
        %v825 = vrot.slane %v796, 4
        %v826 = vsel %vm441, %v825, %v784
        %v827 = vrot.slane %v784, 4
        %v828 = vsel %vm441, %v796, %v827
        %v830 = vunpack.c.l.s4 1934713408
        %v831 = vunpack.c.0.s8 %v830
        %v832 = vperm.slane %v826, %v831
        %v834 = vunpack.c.l.s4 1934713408
        %v835 = vunpack.c.0.s8 %v834
        %v836 = vperm.slane %v828, %v835
        %v837 = vrot.slane %v800, 4
        %v838 = vsel %vm441, %v837, %v788
        %v839 = vrot.slane %v788, 4
        %v840 = vsel %vm441, %v800, %v839
        %v842 = vunpack.c.l.s4 1934713408
        %v843 = vunpack.c.0.s8 %v842
        %v844 = vperm.slane %v838, %v843
        %v846 = vunpack.c.l.s4 1934713408
        %v847 = vunpack.c.0.s8 %v846
        %v848 = vperm.slane %v840, %v847
        %v849 = vrot.slane %v820, 4
        %v850 = vsel %vm441, %v849, %v808
        %v851 = vrot.slane %v808, 4
        %v852 = vsel %vm441, %v820, %v851
        %v854 = vunpack.c.l.s4 1934713408
        %v855 = vunpack.c.0.s8 %v854
        %v856 = vperm.slane %v850, %v855
        %v858 = vunpack.c.l.s4 1934713408
        %v859 = vunpack.c.0.s8 %v858
        %v860 = vperm.slane %v852, %v859
        %v861 = vrot.slane %v824, 4
        %v862 = vsel %vm441, %v861, %v812
        %v863 = vrot.slane %v812, 4
        %v864 = vsel %vm441, %v824, %v863
        %v866 = vunpack.c.l.s4 1934713408
        %v867 = vunpack.c.0.s8 %v866
        %v868 = vperm.slane %v862, %v867
        %v870 = vunpack.c.l.s4 1934713408
        %v871 = vunpack.c.0.s8 %v870
        %v872 = vperm.slane %v864, %v871
        %v873 = vrot.slane %v856, 4
        %v874 = vsel %vm441, %v873, %v832
        %v875 = vrot.slane %v832, 4
        %v876 = vsel %vm441, %v856, %v875
        %v877 = vrot.slane %v860, 4
        %v878 = vsel %vm441, %v877, %v836
        %v879 = vrot.slane %v836, 4
        %v880 = vsel %vm441, %v860, %v879
        %v881 = vrot.slane %v868, 4
        %v882 = vsel %vm441, %v881, %v844
        %v883 = vrot.slane %v844, 4
        %v884 = vsel %vm441, %v868, %v883
        %v885 = vrot.slane %v872, 4
        %v886 = vsel %vm441, %v885, %v848
        %v887 = vrot.slane %v848, 4
        %v888 = vsel %vm441, %v872, %v887
        %v889 = vrot.slane %v351, 4
        %v890 = vsel %vm441, %v889, %v345
        %v891 = vrot.slane %v345, 4
        %v892 = vsel %vm441, %v351, %v891
        %v894 = vunpack.c.l.s4 1983009808
        %v895 = vunpack.c.0.s8 %v894
        %v896 = vperm.slane %v890, %v895
        %v898 = vunpack.c.l.s4 1983009808
        %v899 = vunpack.c.0.s8 %v898
        %v900 = vperm.slane %v892, %v899
        %v901 = vrot.slane %v354, 4
        %v902 = vsel %vm441, %v901, %v348
        %v903 = vrot.slane %v348, 4
        %v904 = vsel %vm441, %v354, %v903
        %v906 = vunpack.c.l.s4 1983009808
        %v907 = vunpack.c.0.s8 %v906
        %v908 = vperm.slane %v902, %v907
        %v910 = vunpack.c.l.s4 1983009808
        %v911 = vunpack.c.0.s8 %v910
        %v912 = vperm.slane %v904, %v911
        %v913 = vrot.slane %v363, 4
        %v914 = vsel %vm441, %v913, %v357
        %v915 = vrot.slane %v357, 4
        %v916 = vsel %vm441, %v363, %v915
        %v918 = vunpack.c.l.s4 1983009808
        %v919 = vunpack.c.0.s8 %v918
        %v920 = vperm.slane %v914, %v919
        %v922 = vunpack.c.l.s4 1983009808
        %v923 = vunpack.c.0.s8 %v922
        %v924 = vperm.slane %v916, %v923
        %v925 = vrot.slane %v366, 4
        %v926 = vsel %vm441, %v925, %v360
        %v927 = vrot.slane %v360, 4
        %v928 = vsel %vm441, %v366, %v927
        %v930 = vunpack.c.l.s4 1983009808
        %v931 = vunpack.c.0.s8 %v930
        %v932 = vperm.slane %v926, %v931
        %v934 = vunpack.c.l.s4 1983009808
        %v935 = vunpack.c.0.s8 %v934
        %v936 = vperm.slane %v928, %v935
        %v937 = vrot.slane %v908, 4
        %v938 = vsel %vm441, %v937, %v896
        %v939 = vrot.slane %v896, 4
        %v940 = vsel %vm441, %v908, %v939
        %v942 = vunpack.c.l.s4 1934713408
        %v943 = vunpack.c.0.s8 %v942
        %v944 = vperm.slane %v938, %v943
        %v946 = vunpack.c.l.s4 1934713408
        %v947 = vunpack.c.0.s8 %v946
        %v948 = vperm.slane %v940, %v947
        %v949 = vrot.slane %v912, 4
        %v950 = vsel %vm441, %v949, %v900
        %v951 = vrot.slane %v900, 4
        %v952 = vsel %vm441, %v912, %v951
        %v954 = vunpack.c.l.s4 1934713408
        %v955 = vunpack.c.0.s8 %v954
        %v956 = vperm.slane %v950, %v955
        %v958 = vunpack.c.l.s4 1934713408
        %v959 = vunpack.c.0.s8 %v958
        %v960 = vperm.slane %v952, %v959
        %v961 = vrot.slane %v932, 4
        %v962 = vsel %vm441, %v961, %v920
        %v963 = vrot.slane %v920, 4
        %v964 = vsel %vm441, %v932, %v963
        %v966 = vunpack.c.l.s4 1934713408
        %v967 = vunpack.c.0.s8 %v966
        %v968 = vperm.slane %v962, %v967
        %v970 = vunpack.c.l.s4 1934713408
        %v971 = vunpack.c.0.s8 %v970
        %v972 = vperm.slane %v964, %v971
        %v973 = vrot.slane %v936, 4
        %v974 = vsel %vm441, %v973, %v924
        %v975 = vrot.slane %v924, 4
        %v976 = vsel %vm441, %v936, %v975
        %v978 = vunpack.c.l.s4 1934713408
        %v979 = vunpack.c.0.s8 %v978
        %v980 = vperm.slane %v974, %v979
        %v982 = vunpack.c.l.s4 1934713408
        %v983 = vunpack.c.0.s8 %v982
        %v984 = vperm.slane %v976, %v983
        %v985 = vrot.slane %v968, 4
        %v986 = vsel %vm441, %v985, %v944
        %v987 = vrot.slane %v944, 4
        %v988 = vsel %vm441, %v968, %v987
        %v989 = vrot.slane %v972, 4
        %v990 = vsel %vm441, %v989, %v948
        %v991 = vrot.slane %v948, 4
        %v992 = vsel %vm441, %v972, %v991
        %v993 = vrot.slane %v980, 4
        %v994 = vsel %vm441, %v993, %v956
        %v995 = vrot.slane %v956, 4
        %v996 = vsel %vm441, %v980, %v995
        %v997 = vrot.slane %v984, 4
        %v998 = vsel %vm441, %v997, %v960
        %v999 = vrot.slane %v960, 4
        %v1000 = vsel %vm441, %v984, %v999
        %v1001 = vrot.slane %v375, 4
        %v1002 = vsel %vm441, %v1001, %v369
        %v1003 = vrot.slane %v369, 4
        %v1004 = vsel %vm441, %v375, %v1003
        %v1006 = vunpack.c.l.s4 1983009808
        %v1007 = vunpack.c.0.s8 %v1006
        %v1008 = vperm.slane %v1002, %v1007
        %v1010 = vunpack.c.l.s4 1983009808
        %v1011 = vunpack.c.0.s8 %v1010
        %v1012 = vperm.slane %v1004, %v1011
        %v1013 = vrot.slane %v378, 4
        %v1014 = vsel %vm441, %v1013, %v372
        %v1015 = vrot.slane %v372, 4
        %v1016 = vsel %vm441, %v378, %v1015
        %v1018 = vunpack.c.l.s4 1983009808
        %v1019 = vunpack.c.0.s8 %v1018
        %v1020 = vperm.slane %v1014, %v1019
        %v1022 = vunpack.c.l.s4 1983009808
        %v1023 = vunpack.c.0.s8 %v1022
        %v1024 = vperm.slane %v1016, %v1023
        %v1025 = vrot.slane %v387, 4
        %v1026 = vsel %vm441, %v1025, %v381
        %v1027 = vrot.slane %v381, 4
        %v1028 = vsel %vm441, %v387, %v1027
        %v1030 = vunpack.c.l.s4 1983009808
        %v1031 = vunpack.c.0.s8 %v1030
        %v1032 = vperm.slane %v1026, %v1031
        %v1034 = vunpack.c.l.s4 1983009808
        %v1035 = vunpack.c.0.s8 %v1034
        %v1036 = vperm.slane %v1028, %v1035
        %v1037 = vrot.slane %v390, 4
        %v1038 = vsel %vm441, %v1037, %v384
        %v1039 = vrot.slane %v384, 4
        %v1040 = vsel %vm441, %v390, %v1039
        %v1042 = vunpack.c.l.s4 1983009808
        %v1043 = vunpack.c.0.s8 %v1042
        %v1044 = vperm.slane %v1038, %v1043
        %v1046 = vunpack.c.l.s4 1983009808
        %v1047 = vunpack.c.0.s8 %v1046
        %v1048 = vperm.slane %v1040, %v1047
        %v1049 = vrot.slane %v1020, 4
        %v1050 = vsel %vm441, %v1049, %v1008
        %v1051 = vrot.slane %v1008, 4
        %v1052 = vsel %vm441, %v1020, %v1051
        %v1054 = vunpack.c.l.s4 1934713408
        %v1055 = vunpack.c.0.s8 %v1054
        %v1056 = vperm.slane %v1050, %v1055
        %v1058 = vunpack.c.l.s4 1934713408
        %v1059 = vunpack.c.0.s8 %v1058
        %v1060 = vperm.slane %v1052, %v1059
        %v1061 = vrot.slane %v1024, 4
        %v1062 = vsel %vm441, %v1061, %v1012
        %v1063 = vrot.slane %v1012, 4
        %v1064 = vsel %vm441, %v1024, %v1063
        %v1066 = vunpack.c.l.s4 1934713408
        %v1067 = vunpack.c.0.s8 %v1066
        %v1068 = vperm.slane %v1062, %v1067
        %v1070 = vunpack.c.l.s4 1934713408
        %v1071 = vunpack.c.0.s8 %v1070
        %v1072 = vperm.slane %v1064, %v1071
        %v1073 = vrot.slane %v1044, 4
        %v1074 = vsel %vm441, %v1073, %v1032
        %v1075 = vrot.slane %v1032, 4
        %v1076 = vsel %vm441, %v1044, %v1075
        %v1078 = vunpack.c.l.s4 1934713408
        %v1079 = vunpack.c.0.s8 %v1078
        %v1080 = vperm.slane %v1074, %v1079
        %v1082 = vunpack.c.l.s4 1934713408
        %v1083 = vunpack.c.0.s8 %v1082
        %v1084 = vperm.slane %v1076, %v1083
        %v1085 = vrot.slane %v1048, 4
        %v1086 = vsel %vm441, %v1085, %v1036
        %v1087 = vrot.slane %v1036, 4
        %v1088 = vsel %vm441, %v1048, %v1087
        %v1090 = vunpack.c.l.s4 1934713408
        %v1091 = vunpack.c.0.s8 %v1090
        %v1092 = vperm.slane %v1086, %v1091
        %v1094 = vunpack.c.l.s4 1934713408
        %v1095 = vunpack.c.0.s8 %v1094
        %v1096 = vperm.slane %v1088, %v1095
        %v1097 = vrot.slane %v1080, 4
        %v1098 = vsel %vm441, %v1097, %v1056
        %v1099 = vrot.slane %v1056, 4
        %v1100 = vsel %vm441, %v1080, %v1099
        %v1101 = vrot.slane %v1084, 4
        %v1102 = vsel %vm441, %v1101, %v1060
        %v1103 = vrot.slane %v1060, 4
        %v1104 = vsel %vm441, %v1084, %v1103
        %v1105 = vrot.slane %v1092, 4
        %v1106 = vsel %vm441, %v1105, %v1068
        %v1107 = vrot.slane %v1068, 4
        %v1108 = vsel %vm441, %v1092, %v1107
        %v1109 = vrot.slane %v1096, 4
        %v1110 = vsel %vm441, %v1109, %v1072
        %v1111 = vrot.slane %v1072, 4
        %v1112 = vsel %vm441, %v1096, %v1111
        %v1113 = vrot.slane %v399, 4
        %v1114 = vsel %vm441, %v1113, %v393
        %v1115 = vrot.slane %v393, 4
        %v1116 = vsel %vm441, %v399, %v1115
        %v1118 = vunpack.c.l.s4 1983009808
        %v1119 = vunpack.c.0.s8 %v1118
        %v1120 = vperm.slane %v1114, %v1119
        %v1122 = vunpack.c.l.s4 1983009808
        %v1123 = vunpack.c.0.s8 %v1122
        %v1124 = vperm.slane %v1116, %v1123
        %v1125 = vrot.slane %v402, 4
        %v1126 = vsel %vm441, %v1125, %v396
        %v1127 = vrot.slane %v396, 4
        %v1128 = vsel %vm441, %v402, %v1127
        %v1130 = vunpack.c.l.s4 1983009808
        %v1131 = vunpack.c.0.s8 %v1130
        %v1132 = vperm.slane %v1126, %v1131
        %v1134 = vunpack.c.l.s4 1983009808
        %v1135 = vunpack.c.0.s8 %v1134
        %v1136 = vperm.slane %v1128, %v1135
        %v1137 = vrot.slane %v411, 4
        %v1138 = vsel %vm441, %v1137, %v405
        %v1139 = vrot.slane %v405, 4
        %v1140 = vsel %vm441, %v411, %v1139
        %v1142 = vunpack.c.l.s4 1983009808
        %v1143 = vunpack.c.0.s8 %v1142
        %v1144 = vperm.slane %v1138, %v1143
        %v1146 = vunpack.c.l.s4 1983009808
        %v1147 = vunpack.c.0.s8 %v1146
        %v1148 = vperm.slane %v1140, %v1147
        %v1149 = vrot.slane %v414, 4
        %v1150 = vsel %vm441, %v1149, %v408
        %v1151 = vrot.slane %v408, 4
        %v1152 = vsel %vm441, %v414, %v1151
        %v1154 = vunpack.c.l.s4 1983009808
        %v1155 = vunpack.c.0.s8 %v1154
        %v1156 = vperm.slane %v1150, %v1155
        %v1158 = vunpack.c.l.s4 1983009808
        %v1159 = vunpack.c.0.s8 %v1158
        %v1160 = vperm.slane %v1152, %v1159
        %v1161 = vrot.slane %v1132, 4
        %v1162 = vsel %vm441, %v1161, %v1120
        %v1163 = vrot.slane %v1120, 4
        %v1164 = vsel %vm441, %v1132, %v1163
        %v1166 = vunpack.c.l.s4 1934713408
        %v1167 = vunpack.c.0.s8 %v1166
        %v1168 = vperm.slane %v1162, %v1167
        %v1170 = vunpack.c.l.s4 1934713408
        %v1171 = vunpack.c.0.s8 %v1170
        %v1172 = vperm.slane %v1164, %v1171
        %v1173 = vrot.slane %v1136, 4
        %v1174 = vsel %vm441, %v1173, %v1124
        %v1175 = vrot.slane %v1124, 4
        %v1176 = vsel %vm441, %v1136, %v1175
        %v1178 = vunpack.c.l.s4 1934713408
        %v1179 = vunpack.c.0.s8 %v1178
        %v1180 = vperm.slane %v1174, %v1179
        %v1182 = vunpack.c.l.s4 1934713408
        %v1183 = vunpack.c.0.s8 %v1182
        %v1184 = vperm.slane %v1176, %v1183
        %v1185 = vrot.slane %v1156, 4
        %v1186 = vsel %vm441, %v1185, %v1144
        %v1187 = vrot.slane %v1144, 4
        %v1188 = vsel %vm441, %v1156, %v1187
        %v1190 = vunpack.c.l.s4 1934713408
        %v1191 = vunpack.c.0.s8 %v1190
        %v1192 = vperm.slane %v1186, %v1191
        %v1194 = vunpack.c.l.s4 1934713408
        %v1195 = vunpack.c.0.s8 %v1194
        %v1196 = vperm.slane %v1188, %v1195
        %v1197 = vrot.slane %v1160, 4
        %v1198 = vsel %vm441, %v1197, %v1148
        %v1199 = vrot.slane %v1148, 4
        %v1200 = vsel %vm441, %v1160, %v1199
        %v1202 = vunpack.c.l.s4 1934713408
        %v1203 = vunpack.c.0.s8 %v1202
        %v1204 = vperm.slane %v1198, %v1203
        %v1206 = vunpack.c.l.s4 1934713408
        %v1207 = vunpack.c.0.s8 %v1206
        %v1208 = vperm.slane %v1200, %v1207
        %v1209 = vrot.slane %v1192, 4
        %v1210 = vsel %vm441, %v1209, %v1168
        %v1211 = vrot.slane %v1168, 4
        %v1212 = vsel %vm441, %v1192, %v1211
        %v1213 = vrot.slane %v1196, 4
        %v1214 = vsel %vm441, %v1213, %v1172
        %v1215 = vrot.slane %v1172, 4
        %v1216 = vsel %vm441, %v1196, %v1215
        %v1217 = vrot.slane %v1204, 4
        %v1218 = vsel %vm441, %v1217, %v1180
        %v1219 = vrot.slane %v1180, 4
        %v1220 = vsel %vm441, %v1204, %v1219
        %v1221 = vrot.slane %v1208, 4
        %v1222 = vsel %vm441, %v1221, %v1184
        %v1223 = vrot.slane %v1184, 4
        %v1224 = vsel %vm441, %v1208, %v1223
        %v1225 = vrot.slane %v423, 4
        %v1226 = vsel %vm441, %v1225, %v417
        %v1227 = vrot.slane %v417, 4
        %v1228 = vsel %vm441, %v423, %v1227
        %v1230 = vunpack.c.l.s4 1983009808
        %v1231 = vunpack.c.0.s8 %v1230
        %v1232 = vperm.slane %v1226, %v1231
        %v1234 = vunpack.c.l.s4 1983009808
        %v1235 = vunpack.c.0.s8 %v1234
        %v1236 = vperm.slane %v1228, %v1235
        %v1237 = vrot.slane %v426, 4
        %v1238 = vsel %vm441, %v1237, %v420
        %v1239 = vrot.slane %v420, 4
        %v1240 = vsel %vm441, %v426, %v1239
        %v1242 = vunpack.c.l.s4 1983009808
        %v1243 = vunpack.c.0.s8 %v1242
        %v1244 = vperm.slane %v1238, %v1243
        %v1246 = vunpack.c.l.s4 1983009808
        %v1247 = vunpack.c.0.s8 %v1246
        %v1248 = vperm.slane %v1240, %v1247
        %v1249 = vrot.slane %v435, 4
        %v1250 = vsel %vm441, %v1249, %v429
        %v1251 = vrot.slane %v429, 4
        %v1252 = vsel %vm441, %v435, %v1251
        %v1254 = vunpack.c.l.s4 1983009808
        %v1255 = vunpack.c.0.s8 %v1254
        %v1256 = vperm.slane %v1250, %v1255
        %v1258 = vunpack.c.l.s4 1983009808
        %v1259 = vunpack.c.0.s8 %v1258
        %v1260 = vperm.slane %v1252, %v1259
        %v1261 = vrot.slane %v438, 4
        %v1262 = vsel %vm441, %v1261, %v432
        %v1263 = vrot.slane %v432, 4
        %v1264 = vsel %vm441, %v438, %v1263
        %v1266 = vunpack.c.l.s4 1983009808
        %v1267 = vunpack.c.0.s8 %v1266
        %v1268 = vperm.slane %v1262, %v1267
        %v1270 = vunpack.c.l.s4 1983009808
        %v1271 = vunpack.c.0.s8 %v1270
        %v1272 = vperm.slane %v1264, %v1271
        %v1273 = vrot.slane %v1244, 4
        %v1274 = vsel %vm441, %v1273, %v1232
        %v1275 = vrot.slane %v1232, 4
        %v1276 = vsel %vm441, %v1244, %v1275
        %v1278 = vunpack.c.l.s4 1934713408
        %v1279 = vunpack.c.0.s8 %v1278
        %v1280 = vperm.slane %v1274, %v1279
        %v1282 = vunpack.c.l.s4 1934713408
        %v1283 = vunpack.c.0.s8 %v1282
        %v1284 = vperm.slane %v1276, %v1283
        %v1285 = vrot.slane %v1248, 4
        %v1286 = vsel %vm441, %v1285, %v1236
        %v1287 = vrot.slane %v1236, 4
        %v1288 = vsel %vm441, %v1248, %v1287
        %v1290 = vunpack.c.l.s4 1934713408
        %v1291 = vunpack.c.0.s8 %v1290
        %v1292 = vperm.slane %v1286, %v1291
        %v1294 = vunpack.c.l.s4 1934713408
        %v1295 = vunpack.c.0.s8 %v1294
        %v1296 = vperm.slane %v1288, %v1295
        %v1297 = vrot.slane %v1268, 4
        %v1298 = vsel %vm441, %v1297, %v1256
        %v1299 = vrot.slane %v1256, 4
        %v1300 = vsel %vm441, %v1268, %v1299
        %v1302 = vunpack.c.l.s4 1934713408
        %v1303 = vunpack.c.0.s8 %v1302
        %v1304 = vperm.slane %v1298, %v1303
        %v1306 = vunpack.c.l.s4 1934713408
        %v1307 = vunpack.c.0.s8 %v1306
        %v1308 = vperm.slane %v1300, %v1307
        %v1309 = vrot.slane %v1272, 4
        %v1310 = vsel %vm441, %v1309, %v1260
        %v1311 = vrot.slane %v1260, 4
        %v1312 = vsel %vm441, %v1272, %v1311
        %v1314 = vunpack.c.l.s4 1934713408
        %v1315 = vunpack.c.0.s8 %v1314
        %v1316 = vperm.slane %v1310, %v1315
        %v1318 = vunpack.c.l.s4 1934713408
        %v1319 = vunpack.c.0.s8 %v1318
        %v1320 = vperm.slane %v1312, %v1319
        %v1321 = vrot.slane %v1304, 4
        %v1322 = vsel %vm441, %v1321, %v1280
        %v1323 = vrot.slane %v1280, 4
        %v1324 = vsel %vm441, %v1304, %v1323
        %v1325 = vrot.slane %v1308, 4
        %v1326 = vsel %vm441, %v1325, %v1284
        %v1327 = vrot.slane %v1284, 4
        %v1328 = vsel %vm441, %v1308, %v1327
        %v1329 = vrot.slane %v1316, 4
        %v1330 = vsel %vm441, %v1329, %v1292
        %v1331 = vrot.slane %v1292, 4
        %v1332 = vsel %vm441, %v1316, %v1331
        %v1333 = vrot.slane %v1320, 4
        %v1334 = vsel %vm441, %v1333, %v1296
        %v1335 = vrot.slane %v1296, 4
        %v1336 = vsel %vm441, %v1320, %v1335
        %v1337 = vrot.slane %v352, 4
        %v1338 = vsel %vm441, %v1337, %v346
        %v1340 = vunpack.c.l.s4 1983009808
        %v1341 = vunpack.c.0.s8 %v1340
        %v1342 = vperm.slane %v1338, %v1341
        %v1343 = vrot.slane %v355, 4
        %v1344 = vsel %vm441, %v1343, %v349
        %v1346 = vunpack.c.l.s4 1983009808
        %v1347 = vunpack.c.0.s8 %v1346
        %v1348 = vperm.slane %v1344, %v1347
        %v1349 = vrot.slane %v364, 4
        %v1350 = vsel %vm441, %v1349, %v358
        %v1352 = vunpack.c.l.s4 1983009808
        %v1353 = vunpack.c.0.s8 %v1352
        %v1354 = vperm.slane %v1350, %v1353
        %v1355 = vrot.slane %v367, 4
        %v1356 = vsel %vm441, %v1355, %v361
        %v1358 = vunpack.c.l.s4 1983009808
        %v1359 = vunpack.c.0.s8 %v1358
        %v1360 = vperm.slane %v1356, %v1359
        %v1361 = vrot.slane %v1348, 4
        %v1362 = vsel %vm441, %v1361, %v1342
        %v1364 = vunpack.c.l.s4 1934713408
        %v1365 = vunpack.c.0.s8 %v1364
        %v1366 = vperm.slane %v1362, %v1365
        %v1367 = vrot.slane %v1360, 4
        %v1368 = vsel %vm441, %v1367, %v1354
        %v1370 = vunpack.c.l.s4 1934713408
        %v1371 = vunpack.c.0.s8 %v1370
        %v1372 = vperm.slane %v1368, %v1371
        %v1373 = vrot.slane %v1372, 4
        %v1374 = vsel %vm441, %v1373, %v1366
        %v1375 = vrot.slane %v1366, 4
        %v1376 = vsel %vm441, %v1372, %v1375
        %v1377 = vrot.slane %v376, 4
        %v1378 = vsel %vm441, %v1377, %v370
        %v1380 = vunpack.c.l.s4 1983009808
        %v1381 = vunpack.c.0.s8 %v1380
        %v1382 = vperm.slane %v1378, %v1381
        %v1383 = vrot.slane %v379, 4
        %v1384 = vsel %vm441, %v1383, %v373
        %v1386 = vunpack.c.l.s4 1983009808
        %v1387 = vunpack.c.0.s8 %v1386
        %v1388 = vperm.slane %v1384, %v1387
        %v1389 = vrot.slane %v388, 4
        %v1390 = vsel %vm441, %v1389, %v382
        %v1392 = vunpack.c.l.s4 1983009808
        %v1393 = vunpack.c.0.s8 %v1392
        %v1394 = vperm.slane %v1390, %v1393
        %v1395 = vrot.slane %v391, 4
        %v1396 = vsel %vm441, %v1395, %v385
        %v1398 = vunpack.c.l.s4 1983009808
        %v1399 = vunpack.c.0.s8 %v1398
        %v1400 = vperm.slane %v1396, %v1399
        %v1401 = vrot.slane %v1388, 4
        %v1402 = vsel %vm441, %v1401, %v1382
        %v1404 = vunpack.c.l.s4 1934713408
        %v1405 = vunpack.c.0.s8 %v1404
        %v1406 = vperm.slane %v1402, %v1405
        %v1407 = vrot.slane %v1400, 4
        %v1408 = vsel %vm441, %v1407, %v1394
        %v1410 = vunpack.c.l.s4 1934713408
        %v1411 = vunpack.c.0.s8 %v1410
        %v1412 = vperm.slane %v1408, %v1411
        %v1413 = vrot.slane %v1412, 4
        %v1414 = vsel %vm441, %v1413, %v1406
        %v1415 = vrot.slane %v1406, 4
        %v1416 = vsel %vm441, %v1412, %v1415
        %v1417 = vrot.slane %v400, 4
        %v1418 = vsel %vm441, %v1417, %v394
        %v1420 = vunpack.c.l.s4 1983009808
        %v1421 = vunpack.c.0.s8 %v1420
        %v1422 = vperm.slane %v1418, %v1421
        %v1423 = vrot.slane %v403, 4
        %v1424 = vsel %vm441, %v1423, %v397
        %v1426 = vunpack.c.l.s4 1983009808
        %v1427 = vunpack.c.0.s8 %v1426
        %v1428 = vperm.slane %v1424, %v1427
        %v1429 = vrot.slane %v412, 4
        %v1430 = vsel %vm441, %v1429, %v406
        %v1432 = vunpack.c.l.s4 1983009808
        %v1433 = vunpack.c.0.s8 %v1432
        %v1434 = vperm.slane %v1430, %v1433
        %v1435 = vrot.slane %v415, 4
        %v1436 = vsel %vm441, %v1435, %v409
        %v1438 = vunpack.c.l.s4 1983009808
        %v1439 = vunpack.c.0.s8 %v1438
        %v1440 = vperm.slane %v1436, %v1439
        %v1441 = vrot.slane %v1428, 4
        %v1442 = vsel %vm441, %v1441, %v1422
        %v1444 = vunpack.c.l.s4 1934713408
        %v1445 = vunpack.c.0.s8 %v1444
        %v1446 = vperm.slane %v1442, %v1445
        %v1447 = vrot.slane %v1440, 4
        %v1448 = vsel %vm441, %v1447, %v1434
        %v1450 = vunpack.c.l.s4 1934713408
        %v1451 = vunpack.c.0.s8 %v1450
        %v1452 = vperm.slane %v1448, %v1451
        %v1453 = vrot.slane %v1452, 4
        %v1454 = vsel %vm441, %v1453, %v1446
        %v1455 = vrot.slane %v1446, 4
        %v1456 = vsel %vm441, %v1452, %v1455
        %v1457 = vrot.slane %v424, 4
        %v1458 = vsel %vm441, %v1457, %v418
        %v1460 = vunpack.c.l.s4 1983009808
        %v1461 = vunpack.c.0.s8 %v1460
        %v1462 = vperm.slane %v1458, %v1461
        %v1463 = vrot.slane %v427, 4
        %v1464 = vsel %vm441, %v1463, %v421
        %v1466 = vunpack.c.l.s4 1983009808
        %v1467 = vunpack.c.0.s8 %v1466
        %v1468 = vperm.slane %v1464, %v1467
        %v1469 = vrot.slane %v436, 4
        %v1470 = vsel %vm441, %v1469, %v430
        %v1472 = vunpack.c.l.s4 1983009808
        %v1473 = vunpack.c.0.s8 %v1472
        %v1474 = vperm.slane %v1470, %v1473
        %v1475 = vrot.slane %v439, 4
        %v1476 = vsel %vm441, %v1475, %v433
        %v1478 = vunpack.c.l.s4 1983009808
        %v1479 = vunpack.c.0.s8 %v1478
        %v1480 = vperm.slane %v1476, %v1479
        %v1481 = vrot.slane %v1468, 4
        %v1482 = vsel %vm441, %v1481, %v1462
        %v1484 = vunpack.c.l.s4 1934713408
        %v1485 = vunpack.c.0.s8 %v1484
        %v1486 = vperm.slane %v1482, %v1485
        %v1487 = vrot.slane %v1480, 4
        %v1488 = vsel %vm441, %v1487, %v1474
        %v1490 = vunpack.c.l.s4 1934713408
        %v1491 = vunpack.c.0.s8 %v1490
        %v1492 = vperm.slane %v1488, %v1491
        %v1493 = vrot.slane %v1492, 4
        %v1494 = vsel %vm441, %v1493, %v1486
        %v1495 = vrot.slane %v1486, 4
        %v1496 = vsel %vm441, %v1492, %v1495
        %1501 = vrot.lane.b32.xlu0 %v540, 32
        %v1502 = vpop.permute.xlu0 %1501
        %1503 = vrot.lane.b32.xlu0 %v652, 32
        %v1504 = vpop.permute.xlu0 %1503
        %1505 = vrot.lane.b32.xlu0 %v764, 32
        %v1506 = vpop.permute.xlu0 %1505
        %1507 = vrot.lane.b32.xlu0 %v876, 32
        %v1508 = vpop.permute.xlu0 %1507
        %1517 = vrot.lane.b32.xlu0 %v542, 64
        %v1518 = vpop.permute.xlu0 %1517
        %1519 = vrot.lane.b32.xlu0 %v654, 64
        %v1520 = vpop.permute.xlu0 %1519
        %1521 = vrot.lane.b32.xlu0 %v766, 64
        %v1522 = vpop.permute.xlu0 %1521
        %1523 = vrot.lane.b32.xlu0 %v878, 64
        %v1524 = vpop.permute.xlu0 %1523
        %1533 = vrot.lane.b32.xlu0 %v544, 96
        %v1534 = vpop.permute.xlu0 %1533
        %1535 = vrot.lane.b32.xlu0 %v656, 96
        %v1536 = vpop.permute.xlu0 %1535
        %1537 = vrot.lane.b32.xlu0 %v768, 96
        %v1538 = vpop.permute.xlu0 %1537
        %1539 = vrot.lane.b32.xlu0 %v880, 96
        %v1540 = vpop.permute.xlu0 %1539
        %1549 = vrot.lane.b32.xlu0 %v548, 32
        %v1550 = vpop.permute.xlu0 %1549
        %1551 = vrot.lane.b32.xlu0 %v660, 32
        %v1552 = vpop.permute.xlu0 %1551
        %1553 = vrot.lane.b32.xlu0 %v772, 32
        %v1554 = vpop.permute.xlu0 %1553
        %1555 = vrot.lane.b32.xlu0 %v884, 32
        %v1556 = vpop.permute.xlu0 %1555
        %1565 = vrot.lane.b32.xlu0 %v550, 64
        %v1566 = vpop.permute.xlu0 %1565
        %1567 = vrot.lane.b32.xlu0 %v662, 64
        %v1568 = vpop.permute.xlu0 %1567
        %1569 = vrot.lane.b32.xlu0 %v774, 64
        %v1570 = vpop.permute.xlu0 %1569
        %1571 = vrot.lane.b32.xlu0 %v886, 64
        %v1572 = vpop.permute.xlu0 %1571
        %1581 = vrot.lane.b32.xlu0 %v552, 96
        %v1582 = vpop.permute.xlu0 %1581
        %1583 = vrot.lane.b32.xlu0 %v664, 96
        %v1584 = vpop.permute.xlu0 %1583
        %1585 = vrot.lane.b32.xlu0 %v776, 96
        %v1586 = vpop.permute.xlu0 %1585
        %1587 = vrot.lane.b32.xlu0 %v888, 96
        %v1588 = vpop.permute.xlu0 %1587
        %1597 = vrot.lane.b32.xlu0 %v988, 32
        %v1598 = vpop.permute.xlu0 %1597
        %1599 = vrot.lane.b32.xlu0 %v1100, 32
        %v1600 = vpop.permute.xlu0 %1599
        %1601 = vrot.lane.b32.xlu0 %v1212, 32
        %v1602 = vpop.permute.xlu0 %1601
        %1603 = vrot.lane.b32.xlu0 %v1324, 32
        %v1604 = vpop.permute.xlu0 %1603
        %1613 = vrot.lane.b32.xlu0 %v990, 64
        %v1614 = vpop.permute.xlu0 %1613
        %1615 = vrot.lane.b32.xlu0 %v1102, 64
        %v1616 = vpop.permute.xlu0 %1615
        %1617 = vrot.lane.b32.xlu0 %v1214, 64
        %v1618 = vpop.permute.xlu0 %1617
        %1619 = vrot.lane.b32.xlu0 %v1326, 64
        %v1620 = vpop.permute.xlu0 %1619
        %1629 = vrot.lane.b32.xlu0 %v992, 96
        %v1630 = vpop.permute.xlu0 %1629
        %1631 = vrot.lane.b32.xlu0 %v1104, 96
        %v1632 = vpop.permute.xlu0 %1631
        %1633 = vrot.lane.b32.xlu0 %v1216, 96
        %v1634 = vpop.permute.xlu0 %1633
        %1635 = vrot.lane.b32.xlu0 %v1328, 96
        %v1636 = vpop.permute.xlu0 %1635
        %1645 = vrot.lane.b32.xlu0 %v996, 32
        %v1646 = vpop.permute.xlu0 %1645
        %1647 = vrot.lane.b32.xlu0 %v1108, 32
        %v1648 = vpop.permute.xlu0 %1647
        %1649 = vrot.lane.b32.xlu0 %v1220, 32
        %v1650 = vpop.permute.xlu0 %1649
        %1651 = vrot.lane.b32.xlu0 %v1332, 32
        %v1652 = vpop.permute.xlu0 %1651
        %1661 = vrot.lane.b32.xlu0 %v998, 64
        %v1662 = vpop.permute.xlu0 %1661
        %1663 = vrot.lane.b32.xlu0 %v1110, 64
        %v1664 = vpop.permute.xlu0 %1663
        %1665 = vrot.lane.b32.xlu0 %v1222, 64
        %v1666 = vpop.permute.xlu0 %1665
        %1667 = vrot.lane.b32.xlu0 %v1334, 64
        %v1668 = vpop.permute.xlu0 %1667
        %1677 = vrot.lane.b32.xlu0 %v1000, 96
        %v1678 = vpop.permute.xlu0 %1677
        %1679 = vrot.lane.b32.xlu0 %v1112, 96
        %v1680 = vpop.permute.xlu0 %1679
        %1681 = vrot.lane.b32.xlu0 %v1224, 96
        %v1682 = vpop.permute.xlu0 %1681
        %1683 = vrot.lane.b32.xlu0 %v1336, 96
        %v1684 = vpop.permute.xlu0 %1683
        %1693 = vrot.lane.b32.xlu0 %v1376, 32
        %v1694 = vpop.permute.xlu0 %1693
        %1695 = vrot.lane.b32.xlu0 %v1416, 32
        %v1696 = vpop.permute.xlu0 %1695
        %1697 = vrot.lane.b32.xlu0 %v1456, 32
        %v1698 = vpop.permute.xlu0 %1697
        %1699 = vrot.lane.b32.xlu0 %v1496, 32
        %v1700 = vpop.permute.xlu0 %1699
        %vm1705 = vcmask 261120
        %v1706 = vsel %vm1705, %v538, %v1502
        %v1707 = vsel %vm1705, %v650, %v1504
        %v1708 = vsel %vm1705, %v762, %v1506
        %v1709 = vsel %vm1705, %v874, %v1508
        %vm1710 = vcmask 523264
        %v1711 = vsel %vm1710, %v1706, %v1518
        %v1712 = vsel %vm1710, %v1707, %v1520
        %v1713 = vsel %vm1710, %v1708, %v1522
        %v1714 = vsel %vm1710, %v1709, %v1524
        %vm1715 = vcmask 785408
        %v1716 = vsel %vm1715, %v1711, %v1534
        %v1717 = vsel %vm1715, %v1712, %v1536
        %v1718 = vsel %vm1715, %v1713, %v1538
        %v1719 = vsel %vm1715, %v1714, %v1540
        %v1720 = vsel %vm1705, %v546, %v1550
        %v1721 = vsel %vm1705, %v658, %v1552
        %v1722 = vsel %vm1705, %v770, %v1554
        %v1723 = vsel %vm1705, %v882, %v1556
        %v1724 = vsel %vm1710, %v1720, %v1566
        %v1725 = vsel %vm1710, %v1721, %v1568
        %v1726 = vsel %vm1710, %v1722, %v1570
        %v1727 = vsel %vm1710, %v1723, %v1572
        %v1728 = vsel %vm1715, %v1724, %v1582
        %v1729 = vsel %vm1715, %v1725, %v1584
        %v1730 = vsel %vm1715, %v1726, %v1586
        %v1731 = vsel %vm1715, %v1727, %v1588
        %v1732 = vsel %vm1705, %v986, %v1598
        %v1733 = vsel %vm1705, %v1098, %v1600
        %v1734 = vsel %vm1705, %v1210, %v1602
        %v1735 = vsel %vm1705, %v1322, %v1604
        %v1736 = vsel %vm1710, %v1732, %v1614
        %v1737 = vsel %vm1710, %v1733, %v1616
        %v1738 = vsel %vm1710, %v1734, %v1618
        %v1739 = vsel %vm1710, %v1735, %v1620
        %v1740 = vsel %vm1715, %v1736, %v1630
        %v1741 = vsel %vm1715, %v1737, %v1632
        %v1742 = vsel %vm1715, %v1738, %v1634
        %v1743 = vsel %vm1715, %v1739, %v1636
        %v1744 = vsel %vm1705, %v994, %v1646
        %v1745 = vsel %vm1705, %v1106, %v1648
        %v1746 = vsel %vm1705, %v1218, %v1650
        %v1747 = vsel %vm1705, %v1330, %v1652
        %v1748 = vsel %vm1710, %v1744, %v1662
        %v1749 = vsel %vm1710, %v1745, %v1664
        %v1750 = vsel %vm1710, %v1746, %v1666
        %v1751 = vsel %vm1710, %v1747, %v1668
        %v1752 = vsel %vm1715, %v1748, %v1678
        %v1753 = vsel %vm1715, %v1749, %v1680
        %v1754 = vsel %vm1715, %v1750, %v1682
        %v1755 = vsel %vm1715, %v1751, %v1684
        %v1756 = vsel %vm1705, %v1374, %v1694
        %v1757 = vsel %vm1705, %v1414, %v1696
        %v1758 = vsel %vm1705, %v1454, %v1698
        %v1759 = vsel %vm1705, %v1494, %v1700
        %v1760 = vld [vmem:[%s2] sm:$0xf]
        %v1761 = vpack.c.bf16 %v1717, %v1716
        %v1762 = vpack.c.bf16 %v1729, %v1728
        %v1763 = vpack.c.bf16 %v1741, %v1740
        %v1764 = vpack.c.bf16 %v1753, %v1752
        %v1765 = vpack.c.bf16 %v1757, %v1756
        %v1766 = vpack.c.bf16 %v1719, %v1718
        %v1767 = vpack.c.bf16 %v1731, %v1730
        %v1768 = vpack.c.bf16 %v1743, %v1742
        %v1769 = vpack.c.bf16 %v1755, %v1754
        %v1770 = vpack.c.bf16 %v1759, %v1758
        %v1771 = vld [vmem:[%s3] sm:$0xff]
        %1773 = vset.pattern.permute.xlu0 0
        %1774 = vperm.xlu0 %1773, %v1771
        %v1775 = vpop.permute.xlu0 %1774
        %v1778 = vsel %vm1705, %v1760, 0
        %1780 = vmatpush.bf16.msra.mxu0 0
        %1781 = vmatpush.bf16.msra.mxu0 0
        %1782 = vmatpush.bf16.msra.mxu0 0
        %1783 = vmatpush.bf16.msra.mxu0 0
        %1784 = vmatpush.bf16.msra.mxu0 0
        %1785 = vmatpush.bf16.msra.mxu0 0
        %1786 = vmatpush.bf16.msra.mxu0 %v1766
        %1787 = vmatpush.bf16.msra.mxu0 %v1761
        %1788 = vmatmul.bf16.gmra.mxu0 %v1778
        %v1789 = vpop.f32.mrf.mxu0
        %v1790 = vadd.f32 %v1775, %v1789
        %v1791 = vpop.f32.mrf.mxu0
        %1792 = vdwg.mxu0
        %1793 = vmatpush.bf16.msra.mxu0 0
        %1794 = vmatpush.bf16.msra.mxu0 0
        %1795 = vmatpush.bf16.msra.mxu0 0
        %1796 = vmatpush.bf16.msra.mxu0 0
        %1797 = vmatpush.bf16.msra.mxu0 0
        %1798 = vmatpush.bf16.msra.mxu0 0
        %1799 = vmatpush.bf16.msra.mxu0 %v1767
        %1800 = vmatpush.bf16.msra.mxu0 %v1762
        %1801 = vmatmul.bf16.gmra.mxu0 %v1778
        %v1802 = vpop.f32.mrf.mxu0
        %v1803 = vadd.f32 %v1775, %v1802
        %v1804 = vpop.f32.mrf.mxu0
        %1805 = vdwg.mxu0
        %1806 = vmatpush.bf16.msra.mxu0 0
        %1807 = vmatpush.bf16.msra.mxu0 0
        %1808 = vmatpush.bf16.msra.mxu0 0
        %1809 = vmatpush.bf16.msra.mxu0 0
        %1810 = vmatpush.bf16.msra.mxu0 0
        %1811 = vmatpush.bf16.msra.mxu0 0
        %1812 = vmatpush.bf16.msra.mxu0 %v1768
        %1813 = vmatpush.bf16.msra.mxu0 %v1763
        %1814 = vmatmul.bf16.gmra.mxu0 %v1778
        %v1815 = vpop.f32.mrf.mxu0
        %v1816 = vadd.f32 %v1775, %v1815
        %v1817 = vpop.f32.mrf.mxu0
        %1818 = vdwg.mxu0
        %1819 = vmatpush.bf16.msra.mxu0 0
        %1820 = vmatpush.bf16.msra.mxu0 0
        %1821 = vmatpush.bf16.msra.mxu0 0
        %1822 = vmatpush.bf16.msra.mxu0 0
        %1823 = vmatpush.bf16.msra.mxu0 0
        %1824 = vmatpush.bf16.msra.mxu0 0
        %1825 = vmatpush.bf16.msra.mxu0 %v1769
        %1826 = vmatpush.bf16.msra.mxu0 %v1764
        %1827 = vmatmul.bf16.gmra.mxu0 %v1778
        %v1828 = vpop.f32.mrf.mxu0
        %v1829 = vadd.f32 %v1775, %v1828
        %v1830 = vpop.f32.mrf.mxu0
        %1831 = vdwg.mxu0
        %1832 = vmatpush.bf16.msra.mxu0 0
        %1833 = vmatpush.bf16.msra.mxu0 0
        %1834 = vmatpush.bf16.msra.mxu0 0
        %1835 = vmatpush.bf16.msra.mxu0 0
        %1836 = vmatpush.bf16.msra.mxu0 0
        %1837 = vmatpush.bf16.msra.mxu0 0
        %1838 = vmatpush.bf16.msra.mxu0 %v1770
        %1839 = vmatpush.bf16.msra.mxu0 %v1765
        %1840 = vmatmul.bf16.gmra.mxu0 %v1778
        %v1841 = vpop.f32.mrf.mxu0
        %v1842 = vadd.f32 %v1775, %v1841
        %v1843 = vpop.f32.mrf.mxu0
        %1844 = vdwg.mxu0
        %v1845 = vmax.f32 %v1790, 0.0
        %v1846 = vmax.f32 %v1803, 0.0
        %v1847 = vmax.f32 %v1816, 0.0
        %v1848 = vmax.f32 %v1829, 0.0
        %v1849 = vmax.f32 %v1842, 0.0
        %vm1850 = vcmask 273408
        %1851 = vst.msk [vmem:[#allocation2] sm:$0xf] %vm1850, 0
        %1852 = vst.msk [vmem:[#allocation2 + $0x4] sm:$0xf] %vm1850, 0
        %vm1853 = vcmask 270336
        %1854 = vst.msk [vmem:[#allocation2 + $0x8] sm:$0x1] %vm1853, 0
        %1855 = vst.msk [vmem:[#allocation2 + $0xc] sm:$0xf] %vm1850, 0
        %1856 = vst.msk [vmem:[#allocation2 + $0x10] sm:$0xf] %vm1850, 0
        %1857 = vst.msk [vmem:[#allocation2 + $0x14] sm:$0x1] %vm1853, 0
        %1858 = vst.msk [vmem:[#allocation2 + $0x18] sm:$0xf] %vm1850, 0
        %1859 = vst.msk [vmem:[#allocation2 + $0x1c] sm:$0xf] %vm1850, 0
        %1860 = vst.msk [vmem:[#allocation2 + $0x20] sm:$0x1] %vm1853, 0
        %1861 = vst.msk [vmem:[#allocation2 + $0x24] sm:$0xf] %vm1850, 0
        %1862 = vst.msk [vmem:[#allocation2 + $0x28] sm:$0xf] %vm1850, 0
        %1863 = vst.msk [vmem:[#allocation2 + $0x2c] sm:$0x1] %vm1853, 0
        %1864 = vst.msk [vmem:[#allocation2 + $0x30] sm:$0xf] %vm1850, 0
        %1865 = vst.msk [vmem:[#allocation2 + $0x34] sm:$0xf] %vm1850, 0
        %1866 = vst.msk [vmem:[#allocation2 + $0x38] sm:$0x1] %vm1853, 0
        %1867 = vst.msk [vmem:[#allocation2 + $0x3c] sm:$0xf] %vm1850, 0
        %1868 = vst.msk [vmem:[#allocation2 + $0x40] sm:$0xf] %vm1850, 0
        %1869 = vst.msk [vmem:[#allocation2 + $0x44] sm:$0x1] %vm1853, 0
        %1870 = vst.msk [vmem:[#allocation2 + $0x48] sm:$0xf] %vm1850, 0
        %1871 = vst.msk [vmem:[#allocation2 + $0x4c] sm:$0xf] %vm1850, 0
        %1872 = vst.msk [vmem:[#allocation2 + $0x50] sm:$0x1] %vm1853, 0
        %1873 = vst.msk [vmem:[#allocation2 + $0x54] sm:$0xf] %vm1850, 0
        %1874 = vst.msk [vmem:[#allocation2 + $0x58] sm:$0xf] %vm1850, 0
        %1875 = vst.msk [vmem:[#allocation2 + $0x5c] sm:$0x1] %vm1853, 0
        %v1876 = vpack.c.bf16 %v1846, %v1845
        %v1877 = vpack.c.bf16 %v1848, %v1847
        %v1878 = vpack.c.bf16 %v1849, %v1849
        %v1880 = vrot.slane %v1876, 4
        %1881 = vrot.lane.b32.xlu0 %v1876, 96
        %v1882 = vpop.permute.xlu0 %1881
        %v1883 = vrot.slane %v1882, 4
        %1884 = vrot.lane.b32.xlu0 %v1876, 64
        %v1885 = vpop.permute.xlu0 %1884
        %v1886 = vrot.slane %v1885, 4
        %1887 = vrot.lane.b32.xlu0 %v1876, 32
        %v1888 = vpop.permute.xlu0 %1887
        %v1889 = vrot.slane %v1888, 4
        %v1891 = vrot.slane %v1877, 4
        %1892 = vrot.lane.b32.xlu0 %v1877, 96
        %v1893 = vpop.permute.xlu0 %1892
        %v1894 = vrot.slane %v1893, 4
        %1895 = vrot.lane.b32.xlu0 %v1877, 64
        %v1896 = vpop.permute.xlu0 %1895
        %v1897 = vrot.slane %v1896, 4
        %1898 = vrot.lane.b32.xlu0 %v1877, 32
        %v1899 = vpop.permute.xlu0 %1898
        %v1900 = vrot.slane %v1899, 4
        %1902 = vrot.lane.b32.xlu0 %v1878, 96
        %v1903 = vpop.permute.xlu0 %1902
        %v1906 = vpack.i.b16 %v1882, %v1876
        %v1908 = vshrl.u32 %v1876, 16
        %v1909 = vshrl.u32 %v1882, 16
        %v1910 = vpack.i.b16 %v1909, %v1908
        %v1914 = vpack.i.b16 %v1888, %v1885
        %v1916 = vshrl.u32 %v1885, 16
        %v1917 = vshrl.u32 %v1888, 16
        %v1918 = vpack.i.b16 %v1917, %v1916
        %v1922 = vpack.i.b16 %v1883, %v1880
        %v1924 = vshrl.u32 %v1880, 16
        %v1925 = vshrl.u32 %v1883, 16
        %v1926 = vpack.i.b16 %v1925, %v1924
        %v1930 = vpack.i.b16 %v1889, %v1886
        %v1932 = vshrl.u32 %v1886, 16
        %v1933 = vshrl.u32 %v1889, 16
        %v1934 = vpack.i.b16 %v1933, %v1932
        %v1938 = vpack.i.b16 %v1893, %v1877
        %v1940 = vshrl.u32 %v1877, 16
        %v1941 = vshrl.u32 %v1893, 16
        %v1942 = vpack.i.b16 %v1941, %v1940
        %v1946 = vpack.i.b16 %v1899, %v1896
        %v1948 = vshrl.u32 %v1896, 16
        %v1949 = vshrl.u32 %v1899, 16
        %v1950 = vpack.i.b16 %v1949, %v1948
        %v1954 = vpack.i.b16 %v1894, %v1891
        %v1956 = vshrl.u32 %v1891, 16
        %v1957 = vshrl.u32 %v1894, 16
        %v1958 = vpack.i.b16 %v1957, %v1956
        %v1962 = vpack.i.b16 %v1900, %v1897
        %v1964 = vshrl.u32 %v1897, 16
        %v1965 = vshrl.u32 %v1900, 16
        %v1966 = vpack.i.b16 %v1965, %v1964
        %v1970 = vpack.i.b16 %v1903, %v1878
        %v1971 = vshrl.u32 %v1878, 16
        %v1972 = vshrl.u32 %v1903, 16
        %v1973 = vpack.i.b16 %v1972, %v1971
        %v1974 = vrot.slane %v1922, 4
        %vm1975 = vcmask 1047556
        %v1976 = vsel %vm1975, %v1974, %v1906
        %v1978 = vunpack.c.l.s4 1983009808
        %v1979 = vunpack.c.0.s8 %v1978
        %v1980 = vperm.slane %v1976, %v1979
        %v1981 = vrot.slane %v1930, 4
        %v1982 = vsel %vm1975, %v1981, %v1914
        %v1984 = vunpack.c.l.s4 1983009808
        %v1985 = vunpack.c.0.s8 %v1984
        %v1986 = vperm.slane %v1982, %v1985
        %v1987 = vrot.slane %v1986, 4
        %v1988 = vsel %vm1975, %v1987, %v1980
        %v1989 = vrot.slane %v1980, 4
        %v1990 = vsel %vm1975, %v1986, %v1989
        %v1992 = vunpack.c.l.s4 1934713408
        %v1993 = vunpack.c.0.s8 %v1992
        %v1994 = vperm.slane %v1988, %v1993
        %v1996 = vunpack.c.l.s4 1934713408
        %v1997 = vunpack.c.0.s8 %v1996
        %v1998 = vperm.slane %v1990, %v1997
        %v1999 = vrot.slane %v1994, 4
        %v2000 = vsel %vm1975, 0, %v1999
        %v2001 = vrot.slane %v1998, 4
        %v2002 = vsel %vm1975, 0, %v2001
        %v2003 = vrot.slane %v1926, 4
        %v2004 = vsel %vm1975, %v2003, %v1910
        %v2006 = vunpack.c.l.s4 1983009808
        %v2007 = vunpack.c.0.s8 %v2006
        %v2008 = vperm.slane %v2004, %v2007
        %v2009 = vrot.slane %v1934, 4
        %v2010 = vsel %vm1975, %v2009, %v1918
        %v2012 = vunpack.c.l.s4 1983009808
        %v2013 = vunpack.c.0.s8 %v2012
        %v2014 = vperm.slane %v2010, %v2013
        %v2015 = vrot.slane %v2014, 4
        %v2016 = vsel %vm1975, %v2015, %v2008
        %v2017 = vrot.slane %v2008, 4
        %v2018 = vsel %vm1975, %v2014, %v2017
        %v2020 = vunpack.c.l.s4 1934713408
        %v2021 = vunpack.c.0.s8 %v2020
        %v2022 = vperm.slane %v2016, %v2021
        %v2024 = vunpack.c.l.s4 1934713408
        %v2025 = vunpack.c.0.s8 %v2024
        %v2026 = vperm.slane %v2018, %v2025
        %v2027 = vrot.slane %v2022, 4
        %v2028 = vsel %vm1975, 0, %v2027
        %v2029 = vrot.slane %v2026, 4
        %v2030 = vsel %vm1975, 0, %v2029
        %v2031 = vrot.slane %v1954, 4
        %v2032 = vsel %vm1975, %v2031, %v1938
        %v2034 = vunpack.c.l.s4 1983009808
        %v2035 = vunpack.c.0.s8 %v2034
        %v2036 = vperm.slane %v2032, %v2035
        %v2037 = vrot.slane %v1962, 4
        %v2038 = vsel %vm1975, %v2037, %v1946
        %v2040 = vunpack.c.l.s4 1983009808
        %v2041 = vunpack.c.0.s8 %v2040
        %v2042 = vperm.slane %v2038, %v2041
        %v2043 = vrot.slane %v2042, 4
        %v2044 = vsel %vm1975, %v2043, %v2036
        %v2045 = vrot.slane %v2036, 4
        %v2046 = vsel %vm1975, %v2042, %v2045
        %v2048 = vunpack.c.l.s4 1934713408
        %v2049 = vunpack.c.0.s8 %v2048
        %v2050 = vperm.slane %v2044, %v2049
        %v2052 = vunpack.c.l.s4 1934713408
        %v2053 = vunpack.c.0.s8 %v2052
        %v2054 = vperm.slane %v2046, %v2053
        %v2055 = vrot.slane %v2050, 4
        %v2056 = vsel %vm1975, 0, %v2055
        %v2057 = vrot.slane %v2054, 4
        %v2058 = vsel %vm1975, 0, %v2057
        %v2059 = vrot.slane %v1958, 4
        %v2060 = vsel %vm1975, %v2059, %v1942
        %v2062 = vunpack.c.l.s4 1983009808
        %v2063 = vunpack.c.0.s8 %v2062
        %v2064 = vperm.slane %v2060, %v2063
        %v2065 = vrot.slane %v1966, 4
        %v2066 = vsel %vm1975, %v2065, %v1950
        %v2068 = vunpack.c.l.s4 1983009808
        %v2069 = vunpack.c.0.s8 %v2068
        %v2070 = vperm.slane %v2066, %v2069
        %v2071 = vrot.slane %v2070, 4
        %v2072 = vsel %vm1975, %v2071, %v2064
        %v2073 = vrot.slane %v2064, 4
        %v2074 = vsel %vm1975, %v2070, %v2073
        %v2076 = vunpack.c.l.s4 1934713408
        %v2077 = vunpack.c.0.s8 %v2076
        %v2078 = vperm.slane %v2072, %v2077
        %v2080 = vunpack.c.l.s4 1934713408
        %v2081 = vunpack.c.0.s8 %v2080
        %v2082 = vperm.slane %v2074, %v2081
        %v2083 = vrot.slane %v2078, 4
        %v2084 = vsel %vm1975, 0, %v2083
        %v2085 = vrot.slane %v2082, 4
        %v2086 = vsel %vm1975, 0, %v2085
        %v2089 = vunpack.c.l.s4 1983009808
        %v2090 = vunpack.c.0.s8 %v2089
        %v2091 = vperm.slane %v1970, %v2090
        %v2092 = vrot.slane %v2091, 4
        %v2093 = vsel %vm1975, 0, %v2092
        %v2095 = vunpack.c.l.s4 1934713408
        %v2096 = vunpack.c.0.s8 %v2095
        %v2097 = vperm.slane %v2091, %v2096
        %v2099 = vunpack.c.l.s4 1934713408
        %v2100 = vunpack.c.0.s8 %v2099
        %v2101 = vperm.slane %v2093, %v2100
        %v2102 = vrot.slane %v2097, 4
        %v2103 = vsel %vm1975, 0, %v2102
        %v2104 = vrot.slane %v2101, 4
        %v2105 = vsel %vm1975, 0, %v2104
        %v2108 = vunpack.c.l.s4 1983009808
        %v2109 = vunpack.c.0.s8 %v2108
        %v2110 = vperm.slane %v1973, %v2109
        %v2111 = vrot.slane %v2110, 4
        %v2112 = vsel %vm1975, 0, %v2111
        %v2114 = vunpack.c.l.s4 1934713408
        %v2115 = vunpack.c.0.s8 %v2114
        %v2116 = vperm.slane %v2110, %v2115
        %v2118 = vunpack.c.l.s4 1934713408
        %v2119 = vunpack.c.0.s8 %v2118
        %v2120 = vperm.slane %v2112, %v2119
        %v2121 = vrot.slane %v2116, 4
        %v2122 = vsel %vm1975, 0, %v2121
        %v2123 = vrot.slane %v2120, 4
        %v2124 = vsel %vm1975, 0, %v2123
        %2149 = vrot.lane.b32.xlu0 %v1994, 1
        %v2150 = vpop.permute.xlu0 %2149
        %2151 = vrot.lane.b32.xlu0 %v2050, 1
        %v2152 = vpop.permute.xlu0 %2151
        %2153 = vrot.lane.b32.xlu0 %v2097, 1
        %v2154 = vpop.permute.xlu0 %2153
        %2155 = vrot.lane.b32.xlu0 %v2022, 1
        %v2156 = vpop.permute.xlu0 %2155
        %2157 = vrot.lane.b32.xlu0 %v2078, 1
        %v2158 = vpop.permute.xlu0 %2157
        %2159 = vrot.lane.b32.xlu0 %v2116, 1
        %v2160 = vpop.permute.xlu0 %2159
        %2161 = vrot.lane.b32.xlu0 %v2000, 1
        %v2162 = vpop.permute.xlu0 %2161
        %2163 = vrot.lane.b32.xlu0 %v2056, 1
        %v2164 = vpop.permute.xlu0 %2163
        %2165 = vrot.lane.b32.xlu0 %v2103, 1
        %v2166 = vpop.permute.xlu0 %2165
        %2167 = vrot.lane.b32.xlu0 %v2028, 1
        %v2168 = vpop.permute.xlu0 %2167
        %2169 = vrot.lane.b32.xlu0 %v2084, 1
        %v2170 = vpop.permute.xlu0 %2169
        %2171 = vrot.lane.b32.xlu0 %v2122, 1
        %v2172 = vpop.permute.xlu0 %2171
        %2173 = vrot.lane.b32.xlu0 %v1998, 1
        %v2174 = vpop.permute.xlu0 %2173
        %2175 = vrot.lane.b32.xlu0 %v2054, 1
        %v2176 = vpop.permute.xlu0 %2175
        %2177 = vrot.lane.b32.xlu0 %v2101, 1
        %v2178 = vpop.permute.xlu0 %2177
        %2179 = vrot.lane.b32.xlu0 %v2026, 1
        %v2180 = vpop.permute.xlu0 %2179
        %2181 = vrot.lane.b32.xlu0 %v2082, 1
        %v2182 = vpop.permute.xlu0 %2181
        %2183 = vrot.lane.b32.xlu0 %v2120, 1
        %v2184 = vpop.permute.xlu0 %2183
        %2185 = vrot.lane.b32.xlu0 %v2002, 1
        %v2186 = vpop.permute.xlu0 %2185
        %2187 = vrot.lane.b32.xlu0 %v2058, 1
        %v2188 = vpop.permute.xlu0 %2187
        %2189 = vrot.lane.b32.xlu0 %v2105, 1
        %v2190 = vpop.permute.xlu0 %2189
        %2191 = vrot.lane.b32.xlu0 %v2030, 1
        %v2192 = vpop.permute.xlu0 %2191
        %2193 = vrot.lane.b32.xlu0 %v2086, 1
        %v2194 = vpop.permute.xlu0 %2193
        %2195 = vrot.lane.b32.xlu0 %v2124, 1
        %v2196 = vpop.permute.xlu0 %2195
        %vm2221 = vcmask 265224
        %2222 = vst.msk [vmem:[#allocation2] sm:$0xf] %vm2221, %v2150
        %2223 = vst.msk [vmem:[#allocation2 + $0x4] sm:$0xf] %vm2221, %v2152
        %vm2224 = vcmask 262152
        %2225 = vst.msk [vmem:[#allocation2 + $0x8] sm:$0x1] %vm2224, %v2154
        %2226 = vst.msk [vmem:[#allocation2 + $0xc] sm:$0xf] %vm2221, %v2156
        %2227 = vst.msk [vmem:[#allocation2 + $0x10] sm:$0xf] %vm2221, %v2158
        %2228 = vst.msk [vmem:[#allocation2 + $0x14] sm:$0x1] %vm2224, %v2160
        %2229 = vst.msk [vmem:[#allocation2 + $0x18] sm:$0xf] %vm2221, %v2162
        %2230 = vst.msk [vmem:[#allocation2 + $0x1c] sm:$0xf] %vm2221, %v2164
        %2231 = vst.msk [vmem:[#allocation2 + $0x20] sm:$0x1] %vm2224, %v2166
        %2232 = vst.msk [vmem:[#allocation2 + $0x24] sm:$0xf] %vm2221, %v2168
        %2233 = vst.msk [vmem:[#allocation2 + $0x28] sm:$0xf] %vm2221, %v2170
        %2234 = vst.msk [vmem:[#allocation2 + $0x2c] sm:$0x1] %vm2224, %v2172
        %2235 = vst.msk [vmem:[#allocation2 + $0x30] sm:$0xf] %vm2221, %v2174
        %2236 = vst.msk [vmem:[#allocation2 + $0x34] sm:$0xf] %vm2221, %v2176
        %2237 = vst.msk [vmem:[#allocation2 + $0x38] sm:$0x1] %vm2224, %v2178
        %2238 = vst.msk [vmem:[#allocation2 + $0x3c] sm:$0xf] %vm2221, %v2180
        %2239 = vst.msk [vmem:[#allocation2 + $0x40] sm:$0xf] %vm2221, %v2182
        %2240 = vst.msk [vmem:[#allocation2 + $0x44] sm:$0x1] %vm2224, %v2184
        %2241 = vst.msk [vmem:[#allocation2 + $0x48] sm:$0xf] %vm2221, %v2186
        %2242 = vst.msk [vmem:[#allocation2 + $0x4c] sm:$0xf] %vm2221, %v2188
        %2243 = vst.msk [vmem:[#allocation2 + $0x50] sm:$0x1] %vm2224, %v2190
        %2244 = vst.msk [vmem:[#allocation2 + $0x54] sm:$0xf] %vm2221, %v2192
        %2245 = vst.msk [vmem:[#allocation2 + $0x58] sm:$0xf] %vm2221, %v2194
        %2246 = vst.msk [vmem:[#allocation2 + $0x5c] sm:$0x1] %vm2224, %v2196
        %v2247 = vld [vmem:[#allocation2] sm:$0xf]
        %v2248 = vld [vmem:[#allocation2 + $0x4] sm:$0xf]
        %v2249 = vld [vmem:[#allocation2 + $0xc] sm:$0xf]
        %v2250 = vld [vmem:[#allocation2 + $0x10] sm:$0xf]
        %v2251 = vld [vmem:[#allocation2 + $0x18] sm:$0xf]
        %v2252 = vld [vmem:[#allocation2 + $0x1c] sm:$0xf]
        %v2253 = vld [vmem:[#allocation2 + $0x24] sm:$0xf]
        %v2254 = vld [vmem:[#allocation2 + $0x28] sm:$0xf]
        %v2255 = vld [vmem:[#allocation2 + $0x30] sm:$0xf]
        %v2256 = vld [vmem:[#allocation2 + $0x34] sm:$0xf]
        %v2257 = vld [vmem:[#allocation2 + $0x3c] sm:$0xf]
        %v2258 = vld [vmem:[#allocation2 + $0x40] sm:$0xf]
        %v2259 = vld [vmem:[#allocation2 + $0x48] sm:$0xf]
        %v2260 = vld [vmem:[#allocation2 + $0x4c] sm:$0xf]
        %v2261 = vld [vmem:[#allocation2 + $0x54] sm:$0xf]
        %v2262 = vld [vmem:[#allocation2 + $0x58] sm:$0xf]
        %v2263 = vld [vmem:[%s4] sm:$0xf]
        %v2264 = vrot.slane %v2255, 4
        %v2265 = vsel %vm1975, %v2264, %v2247
        %v2267 = vunpack.c.l.s4 1983009808
        %v2268 = vunpack.c.0.s8 %v2267
        %v2269 = vperm.slane %v2265, %v2268
        %v2270 = vrot.slane %v2259, 4
        %v2271 = vsel %vm1975, %v2270, %v2251
        %v2273 = vunpack.c.l.s4 1983009808
        %v2274 = vunpack.c.0.s8 %v2273
        %v2275 = vperm.slane %v2271, %v2274
        %v2276 = vrot.slane %v2275, 4
        %v2277 = vsel %vm1975, %v2276, %v2269
        %v2278 = vrot.slane %v2269, 4
        %v2279 = vsel %vm1975, %v2275, %v2278
        %v2281 = vunpack.c.l.s4 1934713408
        %v2282 = vunpack.c.0.s8 %v2281
        %v2283 = vperm.slane %v2277, %v2282
        %v2285 = vunpack.c.l.s4 1934713408
        %v2286 = vunpack.c.0.s8 %v2285
        %v2287 = vperm.slane %v2279, %v2286
        %v2288 = vrot.slane %v2283, 4
        %v2289 = vsel %vm1975, 0, %v2288
        %v2290 = vrot.slane %v2287, 4
        %v2291 = vsel %vm1975, 0, %v2290
        %v2292 = vrot.slane %v2257, 4
        %v2293 = vsel %vm1975, %v2292, %v2249
        %v2295 = vunpack.c.l.s4 1983009808
        %v2296 = vunpack.c.0.s8 %v2295
        %v2297 = vperm.slane %v2293, %v2296
        %v2298 = vrot.slane %v2261, 4
        %v2299 = vsel %vm1975, %v2298, %v2253
        %v2301 = vunpack.c.l.s4 1983009808
        %v2302 = vunpack.c.0.s8 %v2301
        %v2303 = vperm.slane %v2299, %v2302
        %v2304 = vrot.slane %v2303, 4
        %v2305 = vsel %vm1975, %v2304, %v2297
        %v2306 = vrot.slane %v2297, 4
        %v2307 = vsel %vm1975, %v2303, %v2306
        %v2309 = vunpack.c.l.s4 1934713408
        %v2310 = vunpack.c.0.s8 %v2309
        %v2311 = vperm.slane %v2305, %v2310
        %v2313 = vunpack.c.l.s4 1934713408
        %v2314 = vunpack.c.0.s8 %v2313
        %v2315 = vperm.slane %v2307, %v2314
        %v2316 = vrot.slane %v2311, 4
        %v2317 = vsel %vm1975, 0, %v2316
        %v2318 = vrot.slane %v2315, 4
        %v2319 = vsel %vm1975, 0, %v2318
        %v2320 = vrot.slane %v2256, 4
        %v2321 = vsel %vm1975, %v2320, %v2248
        %v2323 = vunpack.c.l.s4 1983009808
        %v2324 = vunpack.c.0.s8 %v2323
        %v2325 = vperm.slane %v2321, %v2324
        %v2326 = vrot.slane %v2260, 4
        %v2327 = vsel %vm1975, %v2326, %v2252
        %v2329 = vunpack.c.l.s4 1983009808
        %v2330 = vunpack.c.0.s8 %v2329
        %v2331 = vperm.slane %v2327, %v2330
        %v2332 = vrot.slane %v2331, 4
        %v2333 = vsel %vm1975, %v2332, %v2325
        %v2334 = vrot.slane %v2325, 4
        %v2335 = vsel %vm1975, %v2331, %v2334
        %v2337 = vunpack.c.l.s4 1934713408
        %v2338 = vunpack.c.0.s8 %v2337
        %v2339 = vperm.slane %v2333, %v2338
        %v2341 = vunpack.c.l.s4 1934713408
        %v2342 = vunpack.c.0.s8 %v2341
        %v2343 = vperm.slane %v2335, %v2342
        %v2344 = vrot.slane %v2339, 4
        %v2345 = vsel %vm1975, 0, %v2344
        %v2346 = vrot.slane %v2343, 4
        %v2347 = vsel %vm1975, 0, %v2346
        %v2348 = vrot.slane %v2258, 4
        %v2349 = vsel %vm1975, %v2348, %v2250
        %v2351 = vunpack.c.l.s4 1983009808
        %v2352 = vunpack.c.0.s8 %v2351
        %v2353 = vperm.slane %v2349, %v2352
        %v2354 = vrot.slane %v2262, 4
        %v2355 = vsel %vm1975, %v2354, %v2254
        %v2357 = vunpack.c.l.s4 1983009808
        %v2358 = vunpack.c.0.s8 %v2357
        %v2359 = vperm.slane %v2355, %v2358
        %v2360 = vrot.slane %v2359, 4
        %v2361 = vsel %vm1975, %v2360, %v2353
        %v2362 = vrot.slane %v2353, 4
        %v2363 = vsel %vm1975, %v2359, %v2362
        %v2365 = vunpack.c.l.s4 1934713408
        %v2366 = vunpack.c.0.s8 %v2365
        %v2367 = vperm.slane %v2361, %v2366
        %v2369 = vunpack.c.l.s4 1934713408
        %v2370 = vunpack.c.0.s8 %v2369
        %v2371 = vperm.slane %v2363, %v2370
        %v2372 = vrot.slane %v2367, 4
        %v2373 = vsel %vm1975, 0, %v2372
        %v2374 = vrot.slane %v2371, 4
        %v2375 = vsel %vm1975, 0, %v2374
        %v2378 = vpack.i.b16 %v2311, %v2283
        %v2379 = vshrl.u32 %v2283, 16
        %v2380 = vshrl.u32 %v2311, 16
        %v2381 = vpack.i.b16 %v2380, %v2379
        %v2384 = vpack.i.b16 %v2317, %v2289
        %v2385 = vshrl.u32 %v2289, 16
        %v2386 = vshrl.u32 %v2317, 16
        %v2387 = vpack.i.b16 %v2386, %v2385
        %v2390 = vpack.i.b16 %v2315, %v2287
        %v2391 = vshrl.u32 %v2287, 16
        %v2392 = vshrl.u32 %v2315, 16
        %v2393 = vpack.i.b16 %v2392, %v2391
        %v2396 = vpack.i.b16 %v2319, %v2291
        %v2397 = vshrl.u32 %v2291, 16
        %v2398 = vshrl.u32 %v2319, 16
        %v2399 = vpack.i.b16 %v2398, %v2397
        %v2402 = vpack.i.b16 %v2367, %v2339
        %v2403 = vshrl.u32 %v2339, 16
        %v2404 = vshrl.u32 %v2367, 16
        %v2405 = vpack.i.b16 %v2404, %v2403
        %v2408 = vpack.i.b16 %v2373, %v2345
        %v2409 = vshrl.u32 %v2345, 16
        %v2410 = vshrl.u32 %v2373, 16
        %v2411 = vpack.i.b16 %v2410, %v2409
        %v2414 = vpack.i.b16 %v2371, %v2343
        %v2415 = vshrl.u32 %v2343, 16
        %v2416 = vshrl.u32 %v2371, 16
        %v2417 = vpack.i.b16 %v2416, %v2415
        %v2420 = vpack.i.b16 %v2375, %v2347
        %v2421 = vshrl.u32 %v2347, 16
        %v2422 = vshrl.u32 %v2375, 16
        %v2423 = vpack.i.b16 %v2422, %v2421
        %v2424 = vunpack.c.l.b16 %v2381
        %v2425 = vpack.c.b16 %v2424, %v2424
        %2426 = vrot.lane.b32.xlu0 %v2425, 32
        %v2427 = vpop.permute.xlu0 %2426
        %v2428 = vunpack.c.l.b16 %v2384
        %v2429 = vpack.c.b16 %v2428, %v2428
        %2430 = vrot.lane.b32.xlu0 %v2429, 64
        %v2431 = vpop.permute.xlu0 %2430
        %v2432 = vunpack.c.l.b16 %v2387
        %v2433 = vpack.c.b16 %v2432, %v2432
        %2434 = vrot.lane.b32.xlu0 %v2433, 96
        %v2435 = vpop.permute.xlu0 %2434
        %v2436 = vunpack.c.l.b16 %v2393
        %v2437 = vpack.c.b16 %v2436, %v2436
        %2438 = vrot.lane.b32.xlu0 %v2437, 32
        %v2439 = vpop.permute.xlu0 %2438
        %v2440 = vunpack.c.l.b16 %v2396
        %v2441 = vpack.c.b16 %v2440, %v2440
        %2442 = vrot.lane.b32.xlu0 %v2441, 64
        %v2443 = vpop.permute.xlu0 %2442
        %v2444 = vunpack.c.l.b16 %v2399
        %v2445 = vpack.c.b16 %v2444, %v2444
        %2446 = vrot.lane.b32.xlu0 %v2445, 96
        %v2447 = vpop.permute.xlu0 %2446
        %v2448 = vunpack.c.l.b16 %v2405
        %v2449 = vpack.c.b16 %v2448, %v2448
        %2450 = vrot.lane.b32.xlu0 %v2449, 32
        %v2451 = vpop.permute.xlu0 %2450
        %v2452 = vunpack.c.l.b16 %v2408
        %v2453 = vpack.c.b16 %v2452, %v2452
        %2454 = vrot.lane.b32.xlu0 %v2453, 64
        %v2455 = vpop.permute.xlu0 %2454
        %v2456 = vunpack.c.l.b16 %v2411
        %v2457 = vpack.c.b16 %v2456, %v2456
        %2458 = vrot.lane.b32.xlu0 %v2457, 96
        %v2459 = vpop.permute.xlu0 %2458
        %v2460 = vunpack.c.l.b16 %v2417
        %v2461 = vpack.c.b16 %v2460, %v2460
        %2462 = vrot.lane.b32.xlu0 %v2461, 32
        %v2463 = vpop.permute.xlu0 %2462
        %v2464 = vunpack.c.l.b16 %v2420
        %v2465 = vpack.c.b16 %v2464, %v2464
        %2466 = vrot.lane.b32.xlu0 %v2465, 64
        %v2467 = vpop.permute.xlu0 %2466
        %v2468 = vunpack.c.l.b16 %v2423
        %v2469 = vpack.c.b16 %v2468, %v2468
        %2470 = vrot.lane.b32.xlu0 %v2469, 96
        %v2471 = vpop.permute.xlu0 %2470
        %v2474 = vsel %vm1705, %v2378, %v2427
        %v2476 = vsel %vm1710, %v2474, %v2431
        %v2478 = vsel %vm1715, %v2476, %v2435
        %v2481 = vsel %vm1705, %v2390, %v2439
        %v2483 = vsel %vm1710, %v2481, %v2443
        %v2485 = vsel %vm1715, %v2483, %v2447
        %v2488 = vsel %vm1705, %v2402, %v2451
        %v2490 = vsel %vm1710, %v2488, %v2455
        %v2492 = vsel %vm1715, %v2490, %v2459
        %v2495 = vsel %vm1705, %v2414, %v2463
        %v2497 = vsel %vm1710, %v2495, %v2467
        %v2499 = vsel %vm1715, %v2497, %v2471
        %s2500 = scalar_lea.vmem %s4, 4
        %v2501 = vld [vmem:[%s2500] sm:$0xf]
        %2518 = vrot.lane.b32.xlu0 %v2247, 127
        %v2519 = vpop.permute.xlu0 %2518
        %2520 = vrot.lane.b32.xlu0 %v2248, 127
        %v2521 = vpop.permute.xlu0 %2520
        %2522 = vrot.lane.b32.xlu0 %v2249, 127
        %v2523 = vpop.permute.xlu0 %2522
        %2524 = vrot.lane.b32.xlu0 %v2250, 127
        %v2525 = vpop.permute.xlu0 %2524
        %2526 = vrot.lane.b32.xlu0 %v2251, 127
        %v2527 = vpop.permute.xlu0 %2526
        %2528 = vrot.lane.b32.xlu0 %v2252, 127
        %v2529 = vpop.permute.xlu0 %2528
        %2530 = vrot.lane.b32.xlu0 %v2253, 127
        %v2531 = vpop.permute.xlu0 %2530
        %2532 = vrot.lane.b32.xlu0 %v2254, 127
        %v2533 = vpop.permute.xlu0 %2532
        %2534 = vrot.lane.b32.xlu0 %v2255, 127
        %v2535 = vpop.permute.xlu0 %2534
        %2536 = vrot.lane.b32.xlu0 %v2256, 127
        %v2537 = vpop.permute.xlu0 %2536
        %2538 = vrot.lane.b32.xlu0 %v2257, 127
        %v2539 = vpop.permute.xlu0 %2538
        %2540 = vrot.lane.b32.xlu0 %v2258, 127
        %v2541 = vpop.permute.xlu0 %2540
        %2542 = vrot.lane.b32.xlu0 %v2259, 127
        %v2543 = vpop.permute.xlu0 %2542
        %2544 = vrot.lane.b32.xlu0 %v2260, 127
        %v2545 = vpop.permute.xlu0 %2544
        %2546 = vrot.lane.b32.xlu0 %v2261, 127
        %v2547 = vpop.permute.xlu0 %2546
        %2548 = vrot.lane.b32.xlu0 %v2262, 127
        %v2549 = vpop.permute.xlu0 %2548
        %v2566 = vrot.slane %v2535, 4
        %v2567 = vsel %vm1975, %v2566, %v2519
        %v2569 = vunpack.c.l.s4 1983009808
        %v2570 = vunpack.c.0.s8 %v2569
        %v2571 = vperm.slane %v2567, %v2570
        %v2572 = vrot.slane %v2543, 4
        %v2573 = vsel %vm1975, %v2572, %v2527
        %v2575 = vunpack.c.l.s4 1983009808
        %v2576 = vunpack.c.0.s8 %v2575
        %v2577 = vperm.slane %v2573, %v2576
        %v2578 = vrot.slane %v2577, 4
        %v2579 = vsel %vm1975, %v2578, %v2571
        %v2580 = vrot.slane %v2571, 4
        %v2581 = vsel %vm1975, %v2577, %v2580
        %v2583 = vunpack.c.l.s4 1934713408
        %v2584 = vunpack.c.0.s8 %v2583
        %v2585 = vperm.slane %v2579, %v2584
        %v2587 = vunpack.c.l.s4 1934713408
        %v2588 = vunpack.c.0.s8 %v2587
        %v2589 = vperm.slane %v2581, %v2588
        %v2590 = vrot.slane %v2585, 4
        %v2591 = vsel %vm1975, 0, %v2590
        %v2592 = vrot.slane %v2589, 4
        %v2593 = vsel %vm1975, 0, %v2592
        %v2594 = vrot.slane %v2539, 4
        %v2595 = vsel %vm1975, %v2594, %v2523
        %v2597 = vunpack.c.l.s4 1983009808
        %v2598 = vunpack.c.0.s8 %v2597
        %v2599 = vperm.slane %v2595, %v2598
        %v2600 = vrot.slane %v2547, 4
        %v2601 = vsel %vm1975, %v2600, %v2531
        %v2603 = vunpack.c.l.s4 1983009808
        %v2604 = vunpack.c.0.s8 %v2603
        %v2605 = vperm.slane %v2601, %v2604
        %v2606 = vrot.slane %v2605, 4
        %v2607 = vsel %vm1975, %v2606, %v2599
        %v2608 = vrot.slane %v2599, 4
        %v2609 = vsel %vm1975, %v2605, %v2608
        %v2611 = vunpack.c.l.s4 1934713408
        %v2612 = vunpack.c.0.s8 %v2611
        %v2613 = vperm.slane %v2607, %v2612
        %v2615 = vunpack.c.l.s4 1934713408
        %v2616 = vunpack.c.0.s8 %v2615
        %v2617 = vperm.slane %v2609, %v2616
        %v2618 = vrot.slane %v2613, 4
        %v2619 = vsel %vm1975, 0, %v2618
        %v2620 = vrot.slane %v2617, 4
        %v2621 = vsel %vm1975, 0, %v2620
        %v2622 = vrot.slane %v2537, 4
        %v2623 = vsel %vm1975, %v2622, %v2521
        %v2625 = vunpack.c.l.s4 1983009808
        %v2626 = vunpack.c.0.s8 %v2625
        %v2627 = vperm.slane %v2623, %v2626
        %v2628 = vrot.slane %v2545, 4
        %v2629 = vsel %vm1975, %v2628, %v2529
        %v2631 = vunpack.c.l.s4 1983009808
        %v2632 = vunpack.c.0.s8 %v2631
        %v2633 = vperm.slane %v2629, %v2632
        %v2634 = vrot.slane %v2633, 4
        %v2635 = vsel %vm1975, %v2634, %v2627
        %v2636 = vrot.slane %v2627, 4
        %v2637 = vsel %vm1975, %v2633, %v2636
        %v2639 = vunpack.c.l.s4 1934713408
        %v2640 = vunpack.c.0.s8 %v2639
        %v2641 = vperm.slane %v2635, %v2640
        %v2643 = vunpack.c.l.s4 1934713408
        %v2644 = vunpack.c.0.s8 %v2643
        %v2645 = vperm.slane %v2637, %v2644
        %v2646 = vrot.slane %v2641, 4
        %v2647 = vsel %vm1975, 0, %v2646
        %v2648 = vrot.slane %v2645, 4
        %v2649 = vsel %vm1975, 0, %v2648
        %v2650 = vrot.slane %v2541, 4
        %v2651 = vsel %vm1975, %v2650, %v2525
        %v2653 = vunpack.c.l.s4 1983009808
        %v2654 = vunpack.c.0.s8 %v2653
        %v2655 = vperm.slane %v2651, %v2654
        %v2656 = vrot.slane %v2549, 4
        %v2657 = vsel %vm1975, %v2656, %v2533
        %v2659 = vunpack.c.l.s4 1983009808
        %v2660 = vunpack.c.0.s8 %v2659
        %v2661 = vperm.slane %v2657, %v2660
        %v2662 = vrot.slane %v2661, 4
        %v2663 = vsel %vm1975, %v2662, %v2655
        %v2664 = vrot.slane %v2655, 4
        %v2665 = vsel %vm1975, %v2661, %v2664
        %v2667 = vunpack.c.l.s4 1934713408
        %v2668 = vunpack.c.0.s8 %v2667
        %v2669 = vperm.slane %v2663, %v2668
        %v2671 = vunpack.c.l.s4 1934713408
        %v2672 = vunpack.c.0.s8 %v2671
        %v2673 = vperm.slane %v2665, %v2672
        %v2674 = vrot.slane %v2669, 4
        %v2675 = vsel %vm1975, 0, %v2674
        %v2676 = vrot.slane %v2673, 4
        %v2677 = vsel %vm1975, 0, %v2676
        %v2680 = vpack.i.b16 %v2613, %v2585
        %v2681 = vshrl.u32 %v2585, 16
        %v2682 = vshrl.u32 %v2613, 16
        %v2683 = vpack.i.b16 %v2682, %v2681
        %v2686 = vpack.i.b16 %v2619, %v2591
        %v2687 = vshrl.u32 %v2591, 16
        %v2688 = vshrl.u32 %v2619, 16
        %v2689 = vpack.i.b16 %v2688, %v2687
        %v2692 = vpack.i.b16 %v2617, %v2589
        %v2693 = vshrl.u32 %v2589, 16
        %v2694 = vshrl.u32 %v2617, 16
        %v2695 = vpack.i.b16 %v2694, %v2693
        %v2698 = vpack.i.b16 %v2621, %v2593
        %v2699 = vshrl.u32 %v2593, 16
        %v2700 = vshrl.u32 %v2621, 16
        %v2701 = vpack.i.b16 %v2700, %v2699
        %v2704 = vpack.i.b16 %v2669, %v2641
        %v2705 = vshrl.u32 %v2641, 16
        %v2706 = vshrl.u32 %v2669, 16
        %v2707 = vpack.i.b16 %v2706, %v2705
        %v2710 = vpack.i.b16 %v2675, %v2647
        %v2711 = vshrl.u32 %v2647, 16
        %v2712 = vshrl.u32 %v2675, 16
        %v2713 = vpack.i.b16 %v2712, %v2711
        %v2716 = vpack.i.b16 %v2673, %v2645
        %v2717 = vshrl.u32 %v2645, 16
        %v2718 = vshrl.u32 %v2673, 16
        %v2719 = vpack.i.b16 %v2718, %v2717
        %v2722 = vpack.i.b16 %v2677, %v2649
        %v2723 = vshrl.u32 %v2649, 16
        %v2724 = vshrl.u32 %v2677, 16
        %v2725 = vpack.i.b16 %v2724, %v2723
        %v2726 = vunpack.c.l.b16 %v2683
        %v2727 = vpack.c.b16 %v2726, %v2726
        %2728 = vrot.lane.b32.xlu0 %v2727, 32
        %v2729 = vpop.permute.xlu0 %2728
        %v2730 = vunpack.c.l.b16 %v2686
        %v2731 = vpack.c.b16 %v2730, %v2730
        %2732 = vrot.lane.b32.xlu0 %v2731, 64
        %v2733 = vpop.permute.xlu0 %2732
        %v2734 = vunpack.c.l.b16 %v2689
        %v2735 = vpack.c.b16 %v2734, %v2734
        %2736 = vrot.lane.b32.xlu0 %v2735, 96
        %v2737 = vpop.permute.xlu0 %2736
        %v2738 = vunpack.c.l.b16 %v2695
        %v2739 = vpack.c.b16 %v2738, %v2738
        %2740 = vrot.lane.b32.xlu0 %v2739, 32
        %v2741 = vpop.permute.xlu0 %2740
        %v2742 = vunpack.c.l.b16 %v2698
        %v2743 = vpack.c.b16 %v2742, %v2742
        %2744 = vrot.lane.b32.xlu0 %v2743, 64
        %v2745 = vpop.permute.xlu0 %2744
        %v2746 = vunpack.c.l.b16 %v2701
        %v2747 = vpack.c.b16 %v2746, %v2746
        %2748 = vrot.lane.b32.xlu0 %v2747, 96
        %v2749 = vpop.permute.xlu0 %2748
        %v2750 = vunpack.c.l.b16 %v2707
        %v2751 = vpack.c.b16 %v2750, %v2750
        %2752 = vrot.lane.b32.xlu0 %v2751, 32
        %v2753 = vpop.permute.xlu0 %2752
        %v2754 = vunpack.c.l.b16 %v2710
        %v2755 = vpack.c.b16 %v2754, %v2754
        %2756 = vrot.lane.b32.xlu0 %v2755, 64
        %v2757 = vpop.permute.xlu0 %2756
        %v2758 = vunpack.c.l.b16 %v2713
        %v2759 = vpack.c.b16 %v2758, %v2758
        %2760 = vrot.lane.b32.xlu0 %v2759, 96
        %v2761 = vpop.permute.xlu0 %2760
        %v2762 = vunpack.c.l.b16 %v2719
        %v2763 = vpack.c.b16 %v2762, %v2762
        %2764 = vrot.lane.b32.xlu0 %v2763, 32
        %v2765 = vpop.permute.xlu0 %2764
        %v2766 = vunpack.c.l.b16 %v2722
        %v2767 = vpack.c.b16 %v2766, %v2766
        %2768 = vrot.lane.b32.xlu0 %v2767, 64
        %v2769 = vpop.permute.xlu0 %2768
        %v2770 = vunpack.c.l.b16 %v2725
        %v2771 = vpack.c.b16 %v2770, %v2770
        %2772 = vrot.lane.b32.xlu0 %v2771, 96
        %v2773 = vpop.permute.xlu0 %2772
        %v2776 = vsel %vm1705, %v2680, %v2729
        %v2778 = vsel %vm1710, %v2776, %v2733
        %v2780 = vsel %vm1715, %v2778, %v2737
        %v2783 = vsel %vm1705, %v2692, %v2741
        %v2785 = vsel %vm1710, %v2783, %v2745
        %v2787 = vsel %vm1715, %v2785, %v2749
        %v2790 = vsel %vm1705, %v2704, %v2753
        %v2792 = vsel %vm1710, %v2790, %v2757
        %v2794 = vsel %vm1715, %v2792, %v2761
        %v2797 = vsel %vm1705, %v2716, %v2765
        %v2799 = vsel %vm1710, %v2797, %v2769
        %v2801 = vsel %vm1715, %v2799, %v2773
        %vm2802 = vcmask 64512
        %v2804 = vsel %vm2802, %v2501, 0
        %vm2806 = vcmask 1043456
        %v2807 = vsel %vm2806, %v2780, 0
        %v2809 = vsel %vm2806, %v2787, 0
        %v2811 = vsel %vm2806, %v2794, 0
        %v2813 = vsel %vm2806, %v2801, 0
        %2815 = vmatpush.bf16.msra.mxu0 0
        %2816 = vmatpush.bf16.msra.mxu0 0
        %2817 = vmatpush.bf16.msra.mxu0 0
        %2818 = vmatpush.bf16.msra.mxu0 0
        %2819 = vmatpush.bf16.msra.mxu0 0
        %2820 = vmatpush.bf16.msra.mxu0 0
        %2821 = vmatpush.bf16.msra.mxu0 0
        %2822 = vmatpush.bf16.msra.mxu0 %v2807
        %2823 = vmatmul.bf16.gmra.mxu0 %v2804
        %v2824 = vpop.f32.mrf.mxu0
        %v2825 = vadd.f32 0.0, %v2824
        %v2826 = vpop.f32.mrf.mxu0
        %2827 = vdwg.mxu0
        %2828 = vmatpush.bf16.msra.mxu0 0
        %2829 = vmatpush.bf16.msra.mxu0 0
        %2830 = vmatpush.bf16.msra.mxu0 0
        %2831 = vmatpush.bf16.msra.mxu0 0
        %2832 = vmatpush.bf16.msra.mxu0 0
        %2833 = vmatpush.bf16.msra.mxu0 0
        %2834 = vmatpush.bf16.msra.mxu0 0
        %2835 = vmatpush.bf16.msra.mxu0 %v2809
        %2836 = vmatmul.bf16.gmra.mxu0 %v2804
        %v2837 = vpop.f32.mrf.mxu0
        %v2838 = vadd.f32 0.0, %v2837
        %v2839 = vpop.f32.mrf.mxu0
        %2840 = vdwg.mxu0
        %2841 = vmatpush.bf16.msra.mxu0 0
        %2842 = vmatpush.bf16.msra.mxu0 0
        %2843 = vmatpush.bf16.msra.mxu0 0
        %2844 = vmatpush.bf16.msra.mxu0 0
        %2845 = vmatpush.bf16.msra.mxu0 0
        %2846 = vmatpush.bf16.msra.mxu0 0
        %2847 = vmatpush.bf16.msra.mxu0 0
        %2848 = vmatpush.bf16.msra.mxu0 %v2811
        %2849 = vmatmul.bf16.gmra.mxu0 %v2804
        %v2850 = vpop.f32.mrf.mxu0
        %v2851 = vadd.f32 0.0, %v2850
        %v2852 = vpop.f32.mrf.mxu0
        %2853 = vdwg.mxu0
        %2854 = vmatpush.bf16.msra.mxu0 0
        %2855 = vmatpush.bf16.msra.mxu0 0
        %2856 = vmatpush.bf16.msra.mxu0 0
        %2857 = vmatpush.bf16.msra.mxu0 0
        %2858 = vmatpush.bf16.msra.mxu0 0
        %2859 = vmatpush.bf16.msra.mxu0 0
        %2860 = vmatpush.bf16.msra.mxu0 0
        %2861 = vmatpush.bf16.msra.mxu0 %v2813
        %2862 = vmatmul.bf16.gmra.mxu0 %v2804
        %v2863 = vpop.f32.mrf.mxu0
        %v2864 = vadd.f32 0.0, %v2863
        %v2865 = vpop.f32.mrf.mxu0
        %2866 = vdwg.mxu0
        %v2868 = vsel %vm2802, %v2263, 0
        %v2870 = vsel %vm2806, %v2478, 0
        %v2872 = vsel %vm2806, %v2485, 0
        %v2874 = vsel %vm2806, %v2492, 0
        %v2876 = vsel %vm2806, %v2499, 0
        %2878 = vmatpush.bf16.msra.mxu0 0
        %2879 = vmatpush.bf16.msra.mxu0 0
        %2880 = vmatpush.bf16.msra.mxu0 0
        %2881 = vmatpush.bf16.msra.mxu0 0
        %2882 = vmatpush.bf16.msra.mxu0 0
        %2883 = vmatpush.bf16.msra.mxu0 0
        %2884 = vmatpush.bf16.msra.mxu0 0
        %2885 = vmatpush.bf16.msra.mxu0 %v2870
        %2886 = vmatmul.bf16.gmra.mxu0 %v2868
        %v2887 = vpop.f32.mrf.mxu0
        %v2888 = vadd.f32 %v2825, %v2887
        %v2889 = vpop.f32.mrf.mxu0
        %2890 = vdwg.mxu0
        %2891 = vmatpush.bf16.msra.mxu0 0
        %2892 = vmatpush.bf16.msra.mxu0 0
        %2893 = vmatpush.bf16.msra.mxu0 0
        %2894 = vmatpush.bf16.msra.mxu0 0
        %2895 = vmatpush.bf16.msra.mxu0 0
        %2896 = vmatpush.bf16.msra.mxu0 0
        %2897 = vmatpush.bf16.msra.mxu0 0
        %2898 = vmatpush.bf16.msra.mxu0 %v2872
        %2899 = vmatmul.bf16.gmra.mxu0 %v2868
        %v2900 = vpop.f32.mrf.mxu0
        %v2901 = vadd.f32 %v2838, %v2900
        %v2902 = vpop.f32.mrf.mxu0
        %2903 = vdwg.mxu0
        %2904 = vmatpush.bf16.msra.mxu0 0
        %2905 = vmatpush.bf16.msra.mxu0 0
        %2906 = vmatpush.bf16.msra.mxu0 0
        %2907 = vmatpush.bf16.msra.mxu0 0
        %2908 = vmatpush.bf16.msra.mxu0 0
        %2909 = vmatpush.bf16.msra.mxu0 0
        %2910 = vmatpush.bf16.msra.mxu0 0
        %2911 = vmatpush.bf16.msra.mxu0 %v2874
        %2912 = vmatmul.bf16.gmra.mxu0 %v2868
        %v2913 = vpop.f32.mrf.mxu0
        %v2914 = vadd.f32 %v2851, %v2913
        %v2915 = vpop.f32.mrf.mxu0
        %2916 = vdwg.mxu0
        %2917 = vmatpush.bf16.msra.mxu0 0
        %2918 = vmatpush.bf16.msra.mxu0 0
        %2919 = vmatpush.bf16.msra.mxu0 0
        %2920 = vmatpush.bf16.msra.mxu0 0
        %2921 = vmatpush.bf16.msra.mxu0 0
        %2922 = vmatpush.bf16.msra.mxu0 0
        %2923 = vmatpush.bf16.msra.mxu0 0
        %2924 = vmatpush.bf16.msra.mxu0 %v2876
        %2925 = vmatmul.bf16.gmra.mxu0 %v2868
        %v2926 = vpop.f32.mrf.mxu0
        %v2927 = vadd.f32 %v2864, %v2926
        %v2928 = vpop.f32.mrf.mxu0
        %2929 = vdwg.mxu0
        %v2930 = vld [vmem:[#allocation2] sm:$0xf]
        %v2931 = vld [vmem:[#allocation2 + $0x4] sm:$0xf]
        %v2932 = vld [vmem:[#allocation2 + $0xc] sm:$0xf]
        %v2933 = vld [vmem:[#allocation2 + $0x10] sm:$0xf]
        %v2934 = vld [vmem:[#allocation2 + $0x18] sm:$0xf]
        %v2935 = vld [vmem:[#allocation2 + $0x1c] sm:$0xf]
        %v2936 = vld [vmem:[#allocation2 + $0x24] sm:$0xf]
        %v2937 = vld [vmem:[#allocation2 + $0x28] sm:$0xf]
        %v2938 = vld [vmem:[#allocation2 + $0x30] sm:$0xf]
        %v2939 = vld [vmem:[#allocation2 + $0x34] sm:$0xf]
        %v2940 = vld [vmem:[#allocation2 + $0x3c] sm:$0xf]
        %v2941 = vld [vmem:[#allocation2 + $0x40] sm:$0xf]
        %v2942 = vld [vmem:[#allocation2 + $0x48] sm:$0xf]
        %v2943 = vld [vmem:[#allocation2 + $0x4c] sm:$0xf]
        %v2944 = vld [vmem:[#allocation2 + $0x54] sm:$0xf]
        %v2945 = vld [vmem:[#allocation2 + $0x58] sm:$0xf]
        %s2946 = scalar_lea.vmem %s4, 8
        %v2947 = vld [vmem:[%s2946] sm:$0xf]
        %2964 = vrot.lane.b32.xlu0 %v2930, 126
        %v2965 = vpop.permute.xlu0 %2964
        %2966 = vrot.lane.b32.xlu0 %v2931, 126
        %v2967 = vpop.permute.xlu0 %2966
        %2968 = vrot.lane.b32.xlu0 %v2932, 126
        %v2969 = vpop.permute.xlu0 %2968
        %2970 = vrot.lane.b32.xlu0 %v2933, 126
        %v2971 = vpop.permute.xlu0 %2970
        %2972 = vrot.lane.b32.xlu0 %v2934, 126
        %v2973 = vpop.permute.xlu0 %2972
        %2974 = vrot.lane.b32.xlu0 %v2935, 126
        %v2975 = vpop.permute.xlu0 %2974
        %2976 = vrot.lane.b32.xlu0 %v2936, 126
        %v2977 = vpop.permute.xlu0 %2976
        %2978 = vrot.lane.b32.xlu0 %v2937, 126
        %v2979 = vpop.permute.xlu0 %2978
        %2980 = vrot.lane.b32.xlu0 %v2938, 126
        %v2981 = vpop.permute.xlu0 %2980
        %2982 = vrot.lane.b32.xlu0 %v2939, 126
        %v2983 = vpop.permute.xlu0 %2982
        %2984 = vrot.lane.b32.xlu0 %v2940, 126
        %v2985 = vpop.permute.xlu0 %2984
        %2986 = vrot.lane.b32.xlu0 %v2941, 126
        %v2987 = vpop.permute.xlu0 %2986
        %2988 = vrot.lane.b32.xlu0 %v2942, 126
        %v2989 = vpop.permute.xlu0 %2988
        %2990 = vrot.lane.b32.xlu0 %v2943, 126
        %v2991 = vpop.permute.xlu0 %2990
        %2992 = vrot.lane.b32.xlu0 %v2944, 126
        %v2993 = vpop.permute.xlu0 %2992
        %2994 = vrot.lane.b32.xlu0 %v2945, 126
        %v2995 = vpop.permute.xlu0 %2994
        %v3012 = vrot.slane %v2981, 4
        %v3013 = vsel %vm1975, %v3012, %v2965
        %v3015 = vunpack.c.l.s4 1983009808
        %v3016 = vunpack.c.0.s8 %v3015
        %v3017 = vperm.slane %v3013, %v3016
        %v3018 = vrot.slane %v2989, 4
        %v3019 = vsel %vm1975, %v3018, %v2973
        %v3021 = vunpack.c.l.s4 1983009808
        %v3022 = vunpack.c.0.s8 %v3021
        %v3023 = vperm.slane %v3019, %v3022
        %v3024 = vrot.slane %v3023, 4
        %v3025 = vsel %vm1975, %v3024, %v3017
        %v3026 = vrot.slane %v3017, 4
        %v3027 = vsel %vm1975, %v3023, %v3026
        %v3029 = vunpack.c.l.s4 1934713408
        %v3030 = vunpack.c.0.s8 %v3029
        %v3031 = vperm.slane %v3025, %v3030
        %v3033 = vunpack.c.l.s4 1934713408
        %v3034 = vunpack.c.0.s8 %v3033
        %v3035 = vperm.slane %v3027, %v3034
        %v3036 = vrot.slane %v3031, 4
        %v3037 = vsel %vm1975, 0, %v3036
        %v3038 = vrot.slane %v3035, 4
        %v3039 = vsel %vm1975, 0, %v3038
        %v3040 = vrot.slane %v2985, 4
        %v3041 = vsel %vm1975, %v3040, %v2969
        %v3043 = vunpack.c.l.s4 1983009808
        %v3044 = vunpack.c.0.s8 %v3043
        %v3045 = vperm.slane %v3041, %v3044
        %v3046 = vrot.slane %v2993, 4
        %v3047 = vsel %vm1975, %v3046, %v2977
        %v3049 = vunpack.c.l.s4 1983009808
        %v3050 = vunpack.c.0.s8 %v3049
        %v3051 = vperm.slane %v3047, %v3050
        %v3052 = vrot.slane %v3051, 4
        %v3053 = vsel %vm1975, %v3052, %v3045
        %v3054 = vrot.slane %v3045, 4
        %v3055 = vsel %vm1975, %v3051, %v3054
        %v3057 = vunpack.c.l.s4 1934713408
        %v3058 = vunpack.c.0.s8 %v3057
        %v3059 = vperm.slane %v3053, %v3058
        %v3061 = vunpack.c.l.s4 1934713408
        %v3062 = vunpack.c.0.s8 %v3061
        %v3063 = vperm.slane %v3055, %v3062
        %v3064 = vrot.slane %v3059, 4
        %v3065 = vsel %vm1975, 0, %v3064
        %v3066 = vrot.slane %v3063, 4
        %v3067 = vsel %vm1975, 0, %v3066
        %v3068 = vrot.slane %v2983, 4
        %v3069 = vsel %vm1975, %v3068, %v2967
        %v3071 = vunpack.c.l.s4 1983009808
        %v3072 = vunpack.c.0.s8 %v3071
        %v3073 = vperm.slane %v3069, %v3072
        %v3074 = vrot.slane %v2991, 4
        %v3075 = vsel %vm1975, %v3074, %v2975
        %v3077 = vunpack.c.l.s4 1983009808
        %v3078 = vunpack.c.0.s8 %v3077
        %v3079 = vperm.slane %v3075, %v3078
        %v3080 = vrot.slane %v3079, 4
        %v3081 = vsel %vm1975, %v3080, %v3073
        %v3082 = vrot.slane %v3073, 4
        %v3083 = vsel %vm1975, %v3079, %v3082
        %v3085 = vunpack.c.l.s4 1934713408
        %v3086 = vunpack.c.0.s8 %v3085
        %v3087 = vperm.slane %v3081, %v3086
        %v3089 = vunpack.c.l.s4 1934713408
        %v3090 = vunpack.c.0.s8 %v3089
        %v3091 = vperm.slane %v3083, %v3090
        %v3092 = vrot.slane %v3087, 4
        %v3093 = vsel %vm1975, 0, %v3092
        %v3094 = vrot.slane %v3091, 4
        %v3095 = vsel %vm1975, 0, %v3094
        %v3096 = vrot.slane %v2987, 4
        %v3097 = vsel %vm1975, %v3096, %v2971
        %v3099 = vunpack.c.l.s4 1983009808
        %v3100 = vunpack.c.0.s8 %v3099
        %v3101 = vperm.slane %v3097, %v3100
        %v3102 = vrot.slane %v2995, 4
        %v3103 = vsel %vm1975, %v3102, %v2979
        %v3105 = vunpack.c.l.s4 1983009808
        %v3106 = vunpack.c.0.s8 %v3105
        %v3107 = vperm.slane %v3103, %v3106
        %v3108 = vrot.slane %v3107, 4
        %v3109 = vsel %vm1975, %v3108, %v3101
        %v3110 = vrot.slane %v3101, 4
        %v3111 = vsel %vm1975, %v3107, %v3110
        %v3113 = vunpack.c.l.s4 1934713408
        %v3114 = vunpack.c.0.s8 %v3113
        %v3115 = vperm.slane %v3109, %v3114
        %v3117 = vunpack.c.l.s4 1934713408
        %v3118 = vunpack.c.0.s8 %v3117
        %v3119 = vperm.slane %v3111, %v3118
        %v3120 = vrot.slane %v3115, 4
        %v3121 = vsel %vm1975, 0, %v3120
        %v3122 = vrot.slane %v3119, 4
        %v3123 = vsel %vm1975, 0, %v3122
        %v3126 = vpack.i.b16 %v3059, %v3031
        %v3127 = vshrl.u32 %v3031, 16
        %v3128 = vshrl.u32 %v3059, 16
        %v3129 = vpack.i.b16 %v3128, %v3127
        %v3132 = vpack.i.b16 %v3065, %v3037
        %v3133 = vshrl.u32 %v3037, 16
        %v3134 = vshrl.u32 %v3065, 16
        %v3135 = vpack.i.b16 %v3134, %v3133
        %v3138 = vpack.i.b16 %v3063, %v3035
        %v3139 = vshrl.u32 %v3035, 16
        %v3140 = vshrl.u32 %v3063, 16
        %v3141 = vpack.i.b16 %v3140, %v3139
        %v3144 = vpack.i.b16 %v3067, %v3039
        %v3145 = vshrl.u32 %v3039, 16
        %v3146 = vshrl.u32 %v3067, 16
        %v3147 = vpack.i.b16 %v3146, %v3145
        %v3150 = vpack.i.b16 %v3115, %v3087
        %v3151 = vshrl.u32 %v3087, 16
        %v3152 = vshrl.u32 %v3115, 16
        %v3153 = vpack.i.b16 %v3152, %v3151
        %v3156 = vpack.i.b16 %v3121, %v3093
        %v3157 = vshrl.u32 %v3093, 16
        %v3158 = vshrl.u32 %v3121, 16
        %v3159 = vpack.i.b16 %v3158, %v3157
        %v3162 = vpack.i.b16 %v3119, %v3091
        %v3163 = vshrl.u32 %v3091, 16
        %v3164 = vshrl.u32 %v3119, 16
        %v3165 = vpack.i.b16 %v3164, %v3163
        %v3168 = vpack.i.b16 %v3123, %v3095
        %v3169 = vshrl.u32 %v3095, 16
        %v3170 = vshrl.u32 %v3123, 16
        %v3171 = vpack.i.b16 %v3170, %v3169
        %v3172 = vunpack.c.l.b16 %v3129
        %v3173 = vpack.c.b16 %v3172, %v3172
        %3174 = vrot.lane.b32.xlu0 %v3173, 32
        %v3175 = vpop.permute.xlu0 %3174
        %v3176 = vunpack.c.l.b16 %v3132
        %v3177 = vpack.c.b16 %v3176, %v3176
        %3178 = vrot.lane.b32.xlu0 %v3177, 64
        %v3179 = vpop.permute.xlu0 %3178
        %v3180 = vunpack.c.l.b16 %v3135
        %v3181 = vpack.c.b16 %v3180, %v3180
        %3182 = vrot.lane.b32.xlu0 %v3181, 96
        %v3183 = vpop.permute.xlu0 %3182
        %v3184 = vunpack.c.l.b16 %v3141
        %v3185 = vpack.c.b16 %v3184, %v3184
        %3186 = vrot.lane.b32.xlu0 %v3185, 32
        %v3187 = vpop.permute.xlu0 %3186
        %v3188 = vunpack.c.l.b16 %v3144
        %v3189 = vpack.c.b16 %v3188, %v3188
        %3190 = vrot.lane.b32.xlu0 %v3189, 64
        %v3191 = vpop.permute.xlu0 %3190
        %v3192 = vunpack.c.l.b16 %v3147
        %v3193 = vpack.c.b16 %v3192, %v3192
        %3194 = vrot.lane.b32.xlu0 %v3193, 96
        %v3195 = vpop.permute.xlu0 %3194
        %v3196 = vunpack.c.l.b16 %v3153
        %v3197 = vpack.c.b16 %v3196, %v3196
        %3198 = vrot.lane.b32.xlu0 %v3197, 32
        %v3199 = vpop.permute.xlu0 %3198
        %v3200 = vunpack.c.l.b16 %v3156
        %v3201 = vpack.c.b16 %v3200, %v3200
        %3202 = vrot.lane.b32.xlu0 %v3201, 64
        %v3203 = vpop.permute.xlu0 %3202
        %v3204 = vunpack.c.l.b16 %v3159
        %v3205 = vpack.c.b16 %v3204, %v3204
        %3206 = vrot.lane.b32.xlu0 %v3205, 96
        %v3207 = vpop.permute.xlu0 %3206
        %v3208 = vunpack.c.l.b16 %v3165
        %v3209 = vpack.c.b16 %v3208, %v3208
        %3210 = vrot.lane.b32.xlu0 %v3209, 32
        %v3211 = vpop.permute.xlu0 %3210
        %v3212 = vunpack.c.l.b16 %v3168
        %v3213 = vpack.c.b16 %v3212, %v3212
        %3214 = vrot.lane.b32.xlu0 %v3213, 64
        %v3215 = vpop.permute.xlu0 %3214
        %v3216 = vunpack.c.l.b16 %v3171
        %v3217 = vpack.c.b16 %v3216, %v3216
        %3218 = vrot.lane.b32.xlu0 %v3217, 96
        %v3219 = vpop.permute.xlu0 %3218
        %v3222 = vsel %vm1705, %v3126, %v3175
        %v3224 = vsel %vm1710, %v3222, %v3179
        %v3226 = vsel %vm1715, %v3224, %v3183
        %v3229 = vsel %vm1705, %v3138, %v3187
        %v3231 = vsel %vm1710, %v3229, %v3191
        %v3233 = vsel %vm1715, %v3231, %v3195
        %v3236 = vsel %vm1705, %v3150, %v3199
        %v3238 = vsel %vm1710, %v3236, %v3203
        %v3240 = vsel %vm1715, %v3238, %v3207
        %v3243 = vsel %vm1705, %v3162, %v3211
        %v3245 = vsel %vm1710, %v3243, %v3215
        %v3247 = vsel %vm1715, %v3245, %v3219
        %v3249 = vsel %vm2802, %v2947, 0
        %v3251 = vsel %vm2806, %v3226, 0
        %v3253 = vsel %vm2806, %v3233, 0
        %v3255 = vsel %vm2806, %v3240, 0
        %v3257 = vsel %vm2806, %v3247, 0
        %3259 = vmatpush.bf16.msra.mxu0 0
        %3260 = vmatpush.bf16.msra.mxu0 0
        %3261 = vmatpush.bf16.msra.mxu0 0
        %3262 = vmatpush.bf16.msra.mxu0 0
        %3263 = vmatpush.bf16.msra.mxu0 0
        %3264 = vmatpush.bf16.msra.mxu0 0
        %3265 = vmatpush.bf16.msra.mxu0 0
        %3266 = vmatpush.bf16.msra.mxu0 %v3251
        %3267 = vmatmul.bf16.gmra.mxu0 %v3249
        %v3268 = vpop.f32.mrf.mxu0
        %v3269 = vadd.f32 0.0, %v3268
        %v3270 = vpop.f32.mrf.mxu0
        %3271 = vdwg.mxu0
        %3272 = vmatpush.bf16.msra.mxu0 0
        %3273 = vmatpush.bf16.msra.mxu0 0
        %3274 = vmatpush.bf16.msra.mxu0 0
        %3275 = vmatpush.bf16.msra.mxu0 0
        %3276 = vmatpush.bf16.msra.mxu0 0
        %3277 = vmatpush.bf16.msra.mxu0 0
        %3278 = vmatpush.bf16.msra.mxu0 0
        %3279 = vmatpush.bf16.msra.mxu0 %v3253
        %3280 = vmatmul.bf16.gmra.mxu0 %v3249
        %v3281 = vpop.f32.mrf.mxu0
        %v3282 = vadd.f32 0.0, %v3281
        %v3283 = vpop.f32.mrf.mxu0
        %3284 = vdwg.mxu0
        %3285 = vmatpush.bf16.msra.mxu0 0
        %3286 = vmatpush.bf16.msra.mxu0 0
        %3287 = vmatpush.bf16.msra.mxu0 0
        %3288 = vmatpush.bf16.msra.mxu0 0
        %3289 = vmatpush.bf16.msra.mxu0 0
        %3290 = vmatpush.bf16.msra.mxu0 0
        %3291 = vmatpush.bf16.msra.mxu0 0
        %3292 = vmatpush.bf16.msra.mxu0 %v3255
        %3293 = vmatmul.bf16.gmra.mxu0 %v3249
        %v3294 = vpop.f32.mrf.mxu0
        %v3295 = vadd.f32 0.0, %v3294
        %v3296 = vpop.f32.mrf.mxu0
        %3297 = vdwg.mxu0
        %3298 = vmatpush.bf16.msra.mxu0 0
        %3299 = vmatpush.bf16.msra.mxu0 0
        %3300 = vmatpush.bf16.msra.mxu0 0
        %3301 = vmatpush.bf16.msra.mxu0 0
        %3302 = vmatpush.bf16.msra.mxu0 0
        %3303 = vmatpush.bf16.msra.mxu0 0
        %3304 = vmatpush.bf16.msra.mxu0 0
        %3305 = vmatpush.bf16.msra.mxu0 %v3257
        %3306 = vmatmul.bf16.gmra.mxu0 %v3249
        %v3307 = vpop.f32.mrf.mxu0
        %v3308 = vadd.f32 0.0, %v3307
        %v3309 = vpop.f32.mrf.mxu0
        %3310 = vdwg.mxu0
        %v3311 = vadd.f32 %v2888, %v3269
        %v3312 = vadd.f32 %v2901, %v3282
        %v3313 = vadd.f32 %v2914, %v3295
        %v3314 = vadd.f32 %v2927, %v3308
        %v3315 = vld [vmem:[#allocation2] sm:$0xf]
        %v3316 = vld [vmem:[#allocation2 + $0x4] sm:$0xf]
        %v3317 = vld [vmem:[#allocation2 + $0x8] sm:$0x1]
        %v3318 = vld [vmem:[#allocation2 + $0xc] sm:$0xf]
        %v3319 = vld [vmem:[#allocation2 + $0x10] sm:$0xf]
        %v3320 = vld [vmem:[#allocation2 + $0x14] sm:$0x1]
        %v3321 = vld [vmem:[#allocation2 + $0x18] sm:$0xf]
        %v3322 = vld [vmem:[#allocation2 + $0x1c] sm:$0xf]
        %v3323 = vld [vmem:[#allocation2 + $0x20] sm:$0x1]
        %v3324 = vld [vmem:[#allocation2 + $0x24] sm:$0xf]
        %v3325 = vld [vmem:[#allocation2 + $0x28] sm:$0xf]
        %v3326 = vld [vmem:[#allocation2 + $0x2c] sm:$0x1]
        %v3327 = vld [vmem:[#allocation2 + $0x30] sm:$0xf]
        %v3328 = vld [vmem:[#allocation2 + $0x34] sm:$0xf]
        %v3329 = vld [vmem:[#allocation2 + $0x38] sm:$0x1]
        %v3330 = vld [vmem:[#allocation2 + $0x3c] sm:$0xf]
        %v3331 = vld [vmem:[#allocation2 + $0x40] sm:$0xf]
        %v3332 = vld [vmem:[#allocation2 + $0x44] sm:$0x1]
        %v3333 = vld [vmem:[#allocation2 + $0x48] sm:$0xf]
        %v3334 = vld [vmem:[#allocation2 + $0x4c] sm:$0xf]
        %v3335 = vld [vmem:[#allocation2 + $0x50] sm:$0x1]
        %v3336 = vld [vmem:[#allocation2 + $0x54] sm:$0xf]
        %v3337 = vld [vmem:[#allocation2 + $0x58] sm:$0xf]
        %v3338 = vld [vmem:[#allocation2 + $0x5c] sm:$0x1]
        %s3339 = scalar_lea.vmem %s4, 12
        %v3340 = vld [vmem:[%s3339] sm:$0xf]
        %vm3341 = vsmask.f32 3328
        %vm3342 = vsmask.f32 7440
        %vm3343 = vmor %vm3341, %vm3342
        %v3345 = vshrl.u32 %v3315, 16
        %v3347 = vrot.slane %v3345, 4
        %v3348 = vshll.u32 %v3315, 16
        %v3350 = vrot.slane %v3348, 5
        %v3351 = vor.u32 %v3347, %v3350
        %v3352 = vrot.slane %v3351, 4
        %v3354 = vshll.u32 %v3316, 16
        %v3356 = vrot.slane %v3354, 5
        %v3357 = vsel %vm3343, %v3352, %v3356
        %v3358 = vshrl.u32 %v3316, 16
        %v3360 = vrot.slane %v3358, 4
        %v3361 = vor.u32 %v3360, %v3356
        %v3362 = vrot.slane %v3361, 4
        %v3364 = vshll.u32 %v3317, 16
        %v3366 = vrot.slane %v3364, 5
        %v3367 = vsel %vm3343, %v3362, %v3366
        %v3369 = vshrl.u32 %v3318, 16
        %v3371 = vrot.slane %v3369, 4
        %v3372 = vshll.u32 %v3318, 16
        %v3374 = vrot.slane %v3372, 5
        %v3375 = vor.u32 %v3371, %v3374
        %v3376 = vrot.slane %v3375, 4
        %v3378 = vshll.u32 %v3319, 16
        %v3380 = vrot.slane %v3378, 5
        %v3381 = vsel %vm3343, %v3376, %v3380
        %v3382 = vshrl.u32 %v3319, 16
        %v3384 = vrot.slane %v3382, 4
        %v3385 = vor.u32 %v3384, %v3380
        %v3386 = vrot.slane %v3385, 4
        %v3388 = vshll.u32 %v3320, 16
        %v3390 = vrot.slane %v3388, 5
        %v3391 = vsel %vm3343, %v3386, %v3390
        %v3393 = vshrl.u32 %v3321, 16
        %v3395 = vrot.slane %v3393, 4
        %v3396 = vshll.u32 %v3321, 16
        %v3398 = vrot.slane %v3396, 5
        %v3399 = vor.u32 %v3395, %v3398
        %v3400 = vrot.slane %v3399, 4
        %v3402 = vshll.u32 %v3322, 16
        %v3404 = vrot.slane %v3402, 5
        %v3405 = vsel %vm3343, %v3400, %v3404
        %v3406 = vshrl.u32 %v3322, 16
        %v3408 = vrot.slane %v3406, 4
        %v3409 = vor.u32 %v3408, %v3404
        %v3410 = vrot.slane %v3409, 4
        %v3412 = vshll.u32 %v3323, 16
        %v3414 = vrot.slane %v3412, 5
        %v3415 = vsel %vm3343, %v3410, %v3414
        %v3417 = vshrl.u32 %v3324, 16
        %v3419 = vrot.slane %v3417, 4
        %v3420 = vshll.u32 %v3324, 16
        %v3422 = vrot.slane %v3420, 5
        %v3423 = vor.u32 %v3419, %v3422
        %v3424 = vrot.slane %v3423, 4
        %v3426 = vshll.u32 %v3325, 16
        %v3428 = vrot.slane %v3426, 5
        %v3429 = vsel %vm3343, %v3424, %v3428
        %v3430 = vshrl.u32 %v3325, 16
        %v3432 = vrot.slane %v3430, 4
        %v3433 = vor.u32 %v3432, %v3428
        %v3434 = vrot.slane %v3433, 4
        %v3436 = vshll.u32 %v3326, 16
        %v3438 = vrot.slane %v3436, 5
        %v3439 = vsel %vm3343, %v3434, %v3438
        %v3441 = vshrl.u32 %v3327, 16
        %v3443 = vrot.slane %v3441, 4
        %v3444 = vshll.u32 %v3327, 16
        %v3446 = vrot.slane %v3444, 5
        %v3447 = vor.u32 %v3443, %v3446
        %v3448 = vrot.slane %v3447, 4
        %v3450 = vshll.u32 %v3328, 16
        %v3452 = vrot.slane %v3450, 5
        %v3453 = vsel %vm3343, %v3448, %v3452
        %v3454 = vshrl.u32 %v3328, 16
        %v3456 = vrot.slane %v3454, 4
        %v3457 = vor.u32 %v3456, %v3452
        %v3458 = vrot.slane %v3457, 4
        %v3460 = vshll.u32 %v3329, 16
        %v3462 = vrot.slane %v3460, 5
        %v3463 = vsel %vm3343, %v3458, %v3462
        %v3465 = vshrl.u32 %v3330, 16
        %v3467 = vrot.slane %v3465, 4
        %v3468 = vshll.u32 %v3330, 16
        %v3470 = vrot.slane %v3468, 5
        %v3471 = vor.u32 %v3467, %v3470
        %v3472 = vrot.slane %v3471, 4
        %v3474 = vshll.u32 %v3331, 16
        %v3476 = vrot.slane %v3474, 5
        %v3477 = vsel %vm3343, %v3472, %v3476
        %v3478 = vshrl.u32 %v3331, 16
        %v3480 = vrot.slane %v3478, 4
        %v3481 = vor.u32 %v3480, %v3476
        %v3482 = vrot.slane %v3481, 4
        %v3484 = vshll.u32 %v3332, 16
        %v3486 = vrot.slane %v3484, 5
        %v3487 = vsel %vm3343, %v3482, %v3486
        %v3489 = vshrl.u32 %v3333, 16
        %v3491 = vrot.slane %v3489, 4
        %v3492 = vshll.u32 %v3333, 16
        %v3494 = vrot.slane %v3492, 5
        %v3495 = vor.u32 %v3491, %v3494
        %v3496 = vrot.slane %v3495, 4
        %v3498 = vshll.u32 %v3334, 16
        %v3500 = vrot.slane %v3498, 5
        %v3501 = vsel %vm3343, %v3496, %v3500
        %v3502 = vshrl.u32 %v3334, 16
        %v3504 = vrot.slane %v3502, 4
        %v3505 = vor.u32 %v3504, %v3500
        %v3506 = vrot.slane %v3505, 4
        %v3508 = vshll.u32 %v3335, 16
        %v3510 = vrot.slane %v3508, 5
        %v3511 = vsel %vm3343, %v3506, %v3510
        %v3513 = vshrl.u32 %v3336, 16
        %v3515 = vrot.slane %v3513, 4
        %v3516 = vshll.u32 %v3336, 16
        %v3518 = vrot.slane %v3516, 5
        %v3519 = vor.u32 %v3515, %v3518
        %v3520 = vrot.slane %v3519, 4
        %v3522 = vshll.u32 %v3337, 16
        %v3524 = vrot.slane %v3522, 5
        %v3525 = vsel %vm3343, %v3520, %v3524
        %v3526 = vshrl.u32 %v3337, 16
        %v3528 = vrot.slane %v3526, 4
        %v3529 = vor.u32 %v3528, %v3524
        %v3530 = vrot.slane %v3529, 4
        %v3532 = vshll.u32 %v3338, 16
        %v3534 = vrot.slane %v3532, 5
        %v3535 = vsel %vm3343, %v3530, %v3534
        %v3552 = vrot.slane %v3453, 4
        %v3553 = vsel %vm1975, %v3552, %v3357
        %v3555 = vunpack.c.l.s4 1983009808
        %v3556 = vunpack.c.0.s8 %v3555
        %v3557 = vperm.slane %v3553, %v3556
        %v3558 = vrot.slane %v3501, 4
        %v3559 = vsel %vm1975, %v3558, %v3405
        %v3561 = vunpack.c.l.s4 1983009808
        %v3562 = vunpack.c.0.s8 %v3561
        %v3563 = vperm.slane %v3559, %v3562
        %v3564 = vrot.slane %v3563, 4
        %v3565 = vsel %vm1975, %v3564, %v3557
        %v3566 = vrot.slane %v3557, 4
        %v3567 = vsel %vm1975, %v3563, %v3566
        %v3569 = vunpack.c.l.s4 1934713408
        %v3570 = vunpack.c.0.s8 %v3569
        %v3571 = vperm.slane %v3565, %v3570
        %v3573 = vunpack.c.l.s4 1934713408
        %v3574 = vunpack.c.0.s8 %v3573
        %v3575 = vperm.slane %v3567, %v3574
        %v3576 = vrot.slane %v3571, 4
        %v3577 = vsel %vm1975, 0, %v3576
        %v3578 = vrot.slane %v3575, 4
        %v3579 = vsel %vm1975, 0, %v3578
        %v3580 = vrot.slane %v3477, 4
        %v3581 = vsel %vm1975, %v3580, %v3381
        %v3583 = vunpack.c.l.s4 1983009808
        %v3584 = vunpack.c.0.s8 %v3583
        %v3585 = vperm.slane %v3581, %v3584
        %v3586 = vrot.slane %v3525, 4
        %v3587 = vsel %vm1975, %v3586, %v3429
        %v3589 = vunpack.c.l.s4 1983009808
        %v3590 = vunpack.c.0.s8 %v3589
        %v3591 = vperm.slane %v3587, %v3590
        %v3592 = vrot.slane %v3591, 4
        %v3593 = vsel %vm1975, %v3592, %v3585
        %v3594 = vrot.slane %v3585, 4
        %v3595 = vsel %vm1975, %v3591, %v3594
        %v3597 = vunpack.c.l.s4 1934713408
        %v3598 = vunpack.c.0.s8 %v3597
        %v3599 = vperm.slane %v3593, %v3598
        %v3601 = vunpack.c.l.s4 1934713408
        %v3602 = vunpack.c.0.s8 %v3601
        %v3603 = vperm.slane %v3595, %v3602
        %v3604 = vrot.slane %v3599, 4
        %v3605 = vsel %vm1975, 0, %v3604
        %v3606 = vrot.slane %v3603, 4
        %v3607 = vsel %vm1975, 0, %v3606
        %v3608 = vrot.slane %v3463, 4
        %v3609 = vsel %vm1975, %v3608, %v3367
        %v3611 = vunpack.c.l.s4 1983009808
        %v3612 = vunpack.c.0.s8 %v3611
        %v3613 = vperm.slane %v3609, %v3612
        %v3614 = vrot.slane %v3511, 4
        %v3615 = vsel %vm1975, %v3614, %v3415
        %v3617 = vunpack.c.l.s4 1983009808
        %v3618 = vunpack.c.0.s8 %v3617
        %v3619 = vperm.slane %v3615, %v3618
        %v3620 = vrot.slane %v3619, 4
        %v3621 = vsel %vm1975, %v3620, %v3613
        %v3622 = vrot.slane %v3613, 4
        %v3623 = vsel %vm1975, %v3619, %v3622
        %v3625 = vunpack.c.l.s4 1934713408
        %v3626 = vunpack.c.0.s8 %v3625
        %v3627 = vperm.slane %v3621, %v3626
        %v3629 = vunpack.c.l.s4 1934713408
        %v3630 = vunpack.c.0.s8 %v3629
        %v3631 = vperm.slane %v3623, %v3630
        %v3632 = vrot.slane %v3627, 4
        %v3633 = vsel %vm1975, 0, %v3632
        %v3634 = vrot.slane %v3631, 4
        %v3635 = vsel %vm1975, 0, %v3634
        %v3636 = vrot.slane %v3487, 4
        %v3637 = vsel %vm1975, %v3636, %v3391
        %v3639 = vunpack.c.l.s4 1983009808
        %v3640 = vunpack.c.0.s8 %v3639
        %v3641 = vperm.slane %v3637, %v3640
        %v3642 = vrot.slane %v3535, 4
        %v3643 = vsel %vm1975, %v3642, %v3439
        %v3645 = vunpack.c.l.s4 1983009808
        %v3646 = vunpack.c.0.s8 %v3645
        %v3647 = vperm.slane %v3643, %v3646
        %v3648 = vrot.slane %v3647, 4
        %v3649 = vsel %vm1975, %v3648, %v3641
        %v3650 = vrot.slane %v3641, 4
        %v3651 = vsel %vm1975, %v3647, %v3650
        %v3653 = vunpack.c.l.s4 1934713408
        %v3654 = vunpack.c.0.s8 %v3653
        %v3655 = vperm.slane %v3649, %v3654
        %v3657 = vunpack.c.l.s4 1934713408
        %v3658 = vunpack.c.0.s8 %v3657
        %v3659 = vperm.slane %v3651, %v3658
        %v3660 = vrot.slane %v3655, 4
        %v3661 = vsel %vm1975, 0, %v3660
        %v3662 = vrot.slane %v3659, 4
        %v3663 = vsel %vm1975, 0, %v3662
        %v3666 = vpack.i.b16 %v3599, %v3571
        %v3667 = vshrl.u32 %v3571, 16
        %v3668 = vshrl.u32 %v3599, 16
        %v3669 = vpack.i.b16 %v3668, %v3667
        %v3672 = vpack.i.b16 %v3605, %v3577
        %v3673 = vshrl.u32 %v3577, 16
        %v3674 = vshrl.u32 %v3605, 16
        %v3675 = vpack.i.b16 %v3674, %v3673
        %v3678 = vpack.i.b16 %v3603, %v3575
        %v3679 = vshrl.u32 %v3575, 16
        %v3680 = vshrl.u32 %v3603, 16
        %v3681 = vpack.i.b16 %v3680, %v3679
        %v3684 = vpack.i.b16 %v3607, %v3579
        %v3685 = vshrl.u32 %v3579, 16
        %v3686 = vshrl.u32 %v3607, 16
        %v3687 = vpack.i.b16 %v3686, %v3685
        %v3690 = vpack.i.b16 %v3655, %v3627
        %v3691 = vshrl.u32 %v3627, 16
        %v3692 = vshrl.u32 %v3655, 16
        %v3693 = vpack.i.b16 %v3692, %v3691
        %v3696 = vpack.i.b16 %v3661, %v3633
        %v3697 = vshrl.u32 %v3633, 16
        %v3698 = vshrl.u32 %v3661, 16
        %v3699 = vpack.i.b16 %v3698, %v3697
        %v3702 = vpack.i.b16 %v3659, %v3631
        %v3703 = vshrl.u32 %v3631, 16
        %v3704 = vshrl.u32 %v3659, 16
        %v3705 = vpack.i.b16 %v3704, %v3703
        %v3708 = vpack.i.b16 %v3663, %v3635
        %v3709 = vshrl.u32 %v3635, 16
        %v3710 = vshrl.u32 %v3663, 16
        %v3711 = vpack.i.b16 %v3710, %v3709
        %v3712 = vunpack.c.l.b16 %v3669
        %v3713 = vpack.c.b16 %v3712, %v3712
        %3714 = vrot.lane.b32.xlu0 %v3713, 32
        %v3715 = vpop.permute.xlu0 %3714
        %v3716 = vunpack.c.l.b16 %v3672
        %v3717 = vpack.c.b16 %v3716, %v3716
        %3718 = vrot.lane.b32.xlu0 %v3717, 64
        %v3719 = vpop.permute.xlu0 %3718
        %v3720 = vunpack.c.l.b16 %v3675
        %v3721 = vpack.c.b16 %v3720, %v3720
        %3722 = vrot.lane.b32.xlu0 %v3721, 96
        %v3723 = vpop.permute.xlu0 %3722
        %v3724 = vunpack.c.l.b16 %v3681
        %v3725 = vpack.c.b16 %v3724, %v3724
        %3726 = vrot.lane.b32.xlu0 %v3725, 32
        %v3727 = vpop.permute.xlu0 %3726
        %v3728 = vunpack.c.l.b16 %v3684
        %v3729 = vpack.c.b16 %v3728, %v3728
        %3730 = vrot.lane.b32.xlu0 %v3729, 64
        %v3731 = vpop.permute.xlu0 %3730
        %v3732 = vunpack.c.l.b16 %v3687
        %v3733 = vpack.c.b16 %v3732, %v3732
        %3734 = vrot.lane.b32.xlu0 %v3733, 96
        %v3735 = vpop.permute.xlu0 %3734
        %v3736 = vunpack.c.l.b16 %v3693
        %v3737 = vpack.c.b16 %v3736, %v3736
        %3738 = vrot.lane.b32.xlu0 %v3737, 32
        %v3739 = vpop.permute.xlu0 %3738
        %v3740 = vunpack.c.l.b16 %v3696
        %v3741 = vpack.c.b16 %v3740, %v3740
        %3742 = vrot.lane.b32.xlu0 %v3741, 64
        %v3743 = vpop.permute.xlu0 %3742
        %v3744 = vunpack.c.l.b16 %v3699
        %v3745 = vpack.c.b16 %v3744, %v3744
        %3746 = vrot.lane.b32.xlu0 %v3745, 96
        %v3747 = vpop.permute.xlu0 %3746
        %v3748 = vunpack.c.l.b16 %v3705
        %v3749 = vpack.c.b16 %v3748, %v3748
        %3750 = vrot.lane.b32.xlu0 %v3749, 32
        %v3751 = vpop.permute.xlu0 %3750
        %v3752 = vunpack.c.l.b16 %v3708
        %v3753 = vpack.c.b16 %v3752, %v3752
        %3754 = vrot.lane.b32.xlu0 %v3753, 64
        %v3755 = vpop.permute.xlu0 %3754
        %v3756 = vunpack.c.l.b16 %v3711
        %v3757 = vpack.c.b16 %v3756, %v3756
        %3758 = vrot.lane.b32.xlu0 %v3757, 96
        %v3759 = vpop.permute.xlu0 %3758
        %v3762 = vsel %vm1705, %v3666, %v3715
        %v3764 = vsel %vm1710, %v3762, %v3719
        %v3766 = vsel %vm1715, %v3764, %v3723
        %v3769 = vsel %vm1705, %v3678, %v3727
        %v3771 = vsel %vm1710, %v3769, %v3731
        %v3773 = vsel %vm1715, %v3771, %v3735
        %v3776 = vsel %vm1705, %v3690, %v3739
        %v3778 = vsel %vm1710, %v3776, %v3743
        %v3780 = vsel %vm1715, %v3778, %v3747
        %v3783 = vsel %vm1705, %v3702, %v3751
        %v3785 = vsel %vm1710, %v3783, %v3755
        %v3787 = vsel %vm1715, %v3785, %v3759
        %v3789 = vsel %vm2802, %v3340, 0
        %v3791 = vsel %vm2806, %v3766, 0
        %v3793 = vsel %vm2806, %v3773, 0
        %v3795 = vsel %vm2806, %v3780, 0
        %v3797 = vsel %vm2806, %v3787, 0
        %3799 = vmatpush.bf16.msra.mxu0 0
        %3800 = vmatpush.bf16.msra.mxu0 0
        %3801 = vmatpush.bf16.msra.mxu0 0
        %3802 = vmatpush.bf16.msra.mxu0 0
        %3803 = vmatpush.bf16.msra.mxu0 0
        %3804 = vmatpush.bf16.msra.mxu0 0
        %3805 = vmatpush.bf16.msra.mxu0 0
        %3806 = vmatpush.bf16.msra.mxu0 %v3791
        %3807 = vmatmul.bf16.gmra.mxu0 %v3789
        %v3808 = vpop.f32.mrf.mxu0
        %v3809 = vadd.f32 0.0, %v3808
        %v3810 = vpop.f32.mrf.mxu0
        %3811 = vdwg.mxu0
        %3812 = vmatpush.bf16.msra.mxu0 0
        %3813 = vmatpush.bf16.msra.mxu0 0
        %3814 = vmatpush.bf16.msra.mxu0 0
        %3815 = vmatpush.bf16.msra.mxu0 0
        %3816 = vmatpush.bf16.msra.mxu0 0
        %3817 = vmatpush.bf16.msra.mxu0 0
        %3818 = vmatpush.bf16.msra.mxu0 0
        %3819 = vmatpush.bf16.msra.mxu0 %v3793
        %3820 = vmatmul.bf16.gmra.mxu0 %v3789
        %v3821 = vpop.f32.mrf.mxu0
        %v3822 = vadd.f32 0.0, %v3821
        %v3823 = vpop.f32.mrf.mxu0
        %3824 = vdwg.mxu0
        %3825 = vmatpush.bf16.msra.mxu0 0
        %3826 = vmatpush.bf16.msra.mxu0 0
        %3827 = vmatpush.bf16.msra.mxu0 0
        %3828 = vmatpush.bf16.msra.mxu0 0
        %3829 = vmatpush.bf16.msra.mxu0 0
        %3830 = vmatpush.bf16.msra.mxu0 0
        %3831 = vmatpush.bf16.msra.mxu0 0
        %3832 = vmatpush.bf16.msra.mxu0 %v3795
        %3833 = vmatmul.bf16.gmra.mxu0 %v3789
        %v3834 = vpop.f32.mrf.mxu0
        %v3835 = vadd.f32 0.0, %v3834
        %v3836 = vpop.f32.mrf.mxu0
        %3837 = vdwg.mxu0
        %3838 = vmatpush.bf16.msra.mxu0 0
        %3839 = vmatpush.bf16.msra.mxu0 0
        %3840 = vmatpush.bf16.msra.mxu0 0
        %3841 = vmatpush.bf16.msra.mxu0 0
        %3842 = vmatpush.bf16.msra.mxu0 0
        %3843 = vmatpush.bf16.msra.mxu0 0
        %3844 = vmatpush.bf16.msra.mxu0 0
        %3845 = vmatpush.bf16.msra.mxu0 %v3797
        %3846 = vmatmul.bf16.gmra.mxu0 %v3789
        %v3847 = vpop.f32.mrf.mxu0
        %v3848 = vadd.f32 0.0, %v3847
        %v3849 = vpop.f32.mrf.mxu0
        %3850 = vdwg.mxu0
        %v3851 = vadd.f32 %v3311, %v3809
        %v3852 = vadd.f32 %v3312, %v3822
        %v3853 = vadd.f32 %v3313, %v3835
        %v3854 = vadd.f32 %v3314, %v3848
        %v3855 = vld [vmem:[#allocation2] sm:$0xf]
        %v3856 = vld [vmem:[#allocation2 + $0x4] sm:$0xf]
        %v3857 = vld [vmem:[#allocation2 + $0x8] sm:$0x1]
        %v3858 = vld [vmem:[#allocation2 + $0xc] sm:$0xf]
        %v3859 = vld [vmem:[#allocation2 + $0x10] sm:$0xf]
        %v3860 = vld [vmem:[#allocation2 + $0x14] sm:$0x1]
        %v3861 = vld [vmem:[#allocation2 + $0x18] sm:$0xf]
        %v3862 = vld [vmem:[#allocation2 + $0x1c] sm:$0xf]
        %v3863 = vld [vmem:[#allocation2 + $0x20] sm:$0x1]
        %v3864 = vld [vmem:[#allocation2 + $0x24] sm:$0xf]
        %v3865 = vld [vmem:[#allocation2 + $0x28] sm:$0xf]
        %v3866 = vld [vmem:[#allocation2 + $0x2c] sm:$0x1]
        %v3867 = vld [vmem:[#allocation2 + $0x30] sm:$0xf]
        %v3868 = vld [vmem:[#allocation2 + $0x34] sm:$0xf]
        %v3869 = vld [vmem:[#allocation2 + $0x38] sm:$0x1]
        %v3870 = vld [vmem:[#allocation2 + $0x3c] sm:$0xf]
        %v3871 = vld [vmem:[#allocation2 + $0x40] sm:$0xf]
        %v3872 = vld [vmem:[#allocation2 + $0x44] sm:$0x1]
        %v3873 = vld [vmem:[#allocation2 + $0x48] sm:$0xf]
        %v3874 = vld [vmem:[#allocation2 + $0x4c] sm:$0xf]
        %v3875 = vld [vmem:[#allocation2 + $0x50] sm:$0x1]
        %v3876 = vld [vmem:[#allocation2 + $0x54] sm:$0xf]
        %v3877 = vld [vmem:[#allocation2 + $0x58] sm:$0xf]
        %v3878 = vld [vmem:[#allocation2 + $0x5c] sm:$0x1]
        %s3879 = scalar_lea.vmem %s4, 16
        %v3880 = vld [vmem:[%s3879] sm:$0xf]
        %v3882 = vshrl.u32 %v3855, 16
        %v3884 = vrot.slane %v3882, 4
        %v3885 = vshll.u32 %v3855, 16
        %v3887 = vrot.slane %v3885, 5
        %v3888 = vor.u32 %v3884, %v3887
        %v3889 = vrot.slane %v3888, 4
        %v3891 = vshll.u32 %v3856, 16
        %v3893 = vrot.slane %v3891, 5
        %v3894 = vsel %vm3343, %v3889, %v3893
        %v3895 = vshrl.u32 %v3856, 16
        %v3897 = vrot.slane %v3895, 4
        %v3898 = vor.u32 %v3897, %v3893
        %v3899 = vrot.slane %v3898, 4
        %v3901 = vshll.u32 %v3857, 16
        %v3903 = vrot.slane %v3901, 5
        %v3904 = vsel %vm3343, %v3899, %v3903
        %v3906 = vshrl.u32 %v3858, 16
        %v3908 = vrot.slane %v3906, 4
        %v3909 = vshll.u32 %v3858, 16
        %v3911 = vrot.slane %v3909, 5
        %v3912 = vor.u32 %v3908, %v3911
        %v3913 = vrot.slane %v3912, 4
        %v3915 = vshll.u32 %v3859, 16
        %v3917 = vrot.slane %v3915, 5
        %v3918 = vsel %vm3343, %v3913, %v3917
        %v3919 = vshrl.u32 %v3859, 16
        %v3921 = vrot.slane %v3919, 4
        %v3922 = vor.u32 %v3921, %v3917
        %v3923 = vrot.slane %v3922, 4
        %v3925 = vshll.u32 %v3860, 16
        %v3927 = vrot.slane %v3925, 5
        %v3928 = vsel %vm3343, %v3923, %v3927
        %v3930 = vshrl.u32 %v3861, 16
        %v3932 = vrot.slane %v3930, 4
        %v3933 = vshll.u32 %v3861, 16
        %v3935 = vrot.slane %v3933, 5
        %v3936 = vor.u32 %v3932, %v3935
        %v3937 = vrot.slane %v3936, 4
        %v3939 = vshll.u32 %v3862, 16
        %v3941 = vrot.slane %v3939, 5
        %v3942 = vsel %vm3343, %v3937, %v3941
        %v3943 = vshrl.u32 %v3862, 16
        %v3945 = vrot.slane %v3943, 4
        %v3946 = vor.u32 %v3945, %v3941
        %v3947 = vrot.slane %v3946, 4
        %v3949 = vshll.u32 %v3863, 16
        %v3951 = vrot.slane %v3949, 5
        %v3952 = vsel %vm3343, %v3947, %v3951
        %v3954 = vshrl.u32 %v3864, 16
        %v3956 = vrot.slane %v3954, 4
        %v3957 = vshll.u32 %v3864, 16
        %v3959 = vrot.slane %v3957, 5
        %v3960 = vor.u32 %v3956, %v3959
        %v3961 = vrot.slane %v3960, 4
        %v3963 = vshll.u32 %v3865, 16
        %v3965 = vrot.slane %v3963, 5
        %v3966 = vsel %vm3343, %v3961, %v3965
        %v3967 = vshrl.u32 %v3865, 16
        %v3969 = vrot.slane %v3967, 4
        %v3970 = vor.u32 %v3969, %v3965
        %v3971 = vrot.slane %v3970, 4
        %v3973 = vshll.u32 %v3866, 16
        %v3975 = vrot.slane %v3973, 5
        %v3976 = vsel %vm3343, %v3971, %v3975
        %v3978 = vshrl.u32 %v3867, 16
        %v3980 = vrot.slane %v3978, 4
        %v3981 = vshll.u32 %v3867, 16
        %v3983 = vrot.slane %v3981, 5
        %v3984 = vor.u32 %v3980, %v3983
        %v3985 = vrot.slane %v3984, 4
        %v3987 = vshll.u32 %v3868, 16
        %v3989 = vrot.slane %v3987, 5
        %v3990 = vsel %vm3343, %v3985, %v3989
        %v3991 = vshrl.u32 %v3868, 16
        %v3993 = vrot.slane %v3991, 4
        %v3994 = vor.u32 %v3993, %v3989
        %v3995 = vrot.slane %v3994, 4
        %v3997 = vshll.u32 %v3869, 16
        %v3999 = vrot.slane %v3997, 5
        %v4000 = vsel %vm3343, %v3995, %v3999
        %v4002 = vshrl.u32 %v3870, 16
        %v4004 = vrot.slane %v4002, 4
        %v4005 = vshll.u32 %v3870, 16
        %v4007 = vrot.slane %v4005, 5
        %v4008 = vor.u32 %v4004, %v4007
        %v4009 = vrot.slane %v4008, 4
        %v4011 = vshll.u32 %v3871, 16
        %v4013 = vrot.slane %v4011, 5
        %v4014 = vsel %vm3343, %v4009, %v4013
        %v4015 = vshrl.u32 %v3871, 16
        %v4017 = vrot.slane %v4015, 4
        %v4018 = vor.u32 %v4017, %v4013
        %v4019 = vrot.slane %v4018, 4
        %v4021 = vshll.u32 %v3872, 16
        %v4023 = vrot.slane %v4021, 5
        %v4024 = vsel %vm3343, %v4019, %v4023
        %v4026 = vshrl.u32 %v3873, 16
        %v4028 = vrot.slane %v4026, 4
        %v4029 = vshll.u32 %v3873, 16
        %v4031 = vrot.slane %v4029, 5
        %v4032 = vor.u32 %v4028, %v4031
        %v4033 = vrot.slane %v4032, 4
        %v4035 = vshll.u32 %v3874, 16
        %v4037 = vrot.slane %v4035, 5
        %v4038 = vsel %vm3343, %v4033, %v4037
        %v4039 = vshrl.u32 %v3874, 16
        %v4041 = vrot.slane %v4039, 4
        %v4042 = vor.u32 %v4041, %v4037
        %v4043 = vrot.slane %v4042, 4
        %v4045 = vshll.u32 %v3875, 16
        %v4047 = vrot.slane %v4045, 5
        %v4048 = vsel %vm3343, %v4043, %v4047
        %v4050 = vshrl.u32 %v3876, 16
        %v4052 = vrot.slane %v4050, 4
        %v4053 = vshll.u32 %v3876, 16
        %v4055 = vrot.slane %v4053, 5
        %v4056 = vor.u32 %v4052, %v4055
        %v4057 = vrot.slane %v4056, 4
        %v4059 = vshll.u32 %v3877, 16
        %v4061 = vrot.slane %v4059, 5
        %v4062 = vsel %vm3343, %v4057, %v4061
        %v4063 = vshrl.u32 %v3877, 16
        %v4065 = vrot.slane %v4063, 4
        %v4066 = vor.u32 %v4065, %v4061
        %v4067 = vrot.slane %v4066, 4
        %v4069 = vshll.u32 %v3878, 16
        %v4071 = vrot.slane %v4069, 5
        %v4072 = vsel %vm3343, %v4067, %v4071
        %4073 = vrot.lane.b32.xlu0 %v3894, 127
        %v4074 = vpop.permute.xlu0 %4073
        %4075 = vrot.lane.b32.xlu0 %v3904, 127
        %v4076 = vpop.permute.xlu0 %4075
        %4077 = vrot.lane.b32.xlu0 %v3918, 127
        %v4078 = vpop.permute.xlu0 %4077
        %4079 = vrot.lane.b32.xlu0 %v3928, 127
        %v4080 = vpop.permute.xlu0 %4079
        %4081 = vrot.lane.b32.xlu0 %v3942, 127
        %v4082 = vpop.permute.xlu0 %4081
        %4083 = vrot.lane.b32.xlu0 %v3952, 127
        %v4084 = vpop.permute.xlu0 %4083
        %4085 = vrot.lane.b32.xlu0 %v3966, 127
        %v4086 = vpop.permute.xlu0 %4085
        %4087 = vrot.lane.b32.xlu0 %v3976, 127
        %v4088 = vpop.permute.xlu0 %4087
        %4089 = vrot.lane.b32.xlu0 %v3990, 127
        %v4090 = vpop.permute.xlu0 %4089
        %4091 = vrot.lane.b32.xlu0 %v4000, 127
        %v4092 = vpop.permute.xlu0 %4091
        %4093 = vrot.lane.b32.xlu0 %v4014, 127
        %v4094 = vpop.permute.xlu0 %4093
        %4095 = vrot.lane.b32.xlu0 %v4024, 127
        %v4096 = vpop.permute.xlu0 %4095
        %4097 = vrot.lane.b32.xlu0 %v4038, 127
        %v4098 = vpop.permute.xlu0 %4097
        %4099 = vrot.lane.b32.xlu0 %v4048, 127
        %v4100 = vpop.permute.xlu0 %4099
        %4101 = vrot.lane.b32.xlu0 %v4062, 127
        %v4102 = vpop.permute.xlu0 %4101
        %4103 = vrot.lane.b32.xlu0 %v4072, 127
        %v4104 = vpop.permute.xlu0 %4103
        %v4121 = vrot.slane %v4090, 4
        %v4122 = vsel %vm1975, %v4121, %v4074
        %v4124 = vunpack.c.l.s4 1983009808
        %v4125 = vunpack.c.0.s8 %v4124
        %v4126 = vperm.slane %v4122, %v4125
        %v4127 = vrot.slane %v4098, 4
        %v4128 = vsel %vm1975, %v4127, %v4082
        %v4130 = vunpack.c.l.s4 1983009808
        %v4131 = vunpack.c.0.s8 %v4130
        %v4132 = vperm.slane %v4128, %v4131
        %v4133 = vrot.slane %v4132, 4
        %v4134 = vsel %vm1975, %v4133, %v4126
        %v4135 = vrot.slane %v4126, 4
        %v4136 = vsel %vm1975, %v4132, %v4135
        %v4138 = vunpack.c.l.s4 1934713408
        %v4139 = vunpack.c.0.s8 %v4138
        %v4140 = vperm.slane %v4134, %v4139
        %v4142 = vunpack.c.l.s4 1934713408
        %v4143 = vunpack.c.0.s8 %v4142
        %v4144 = vperm.slane %v4136, %v4143
        %v4145 = vrot.slane %v4140, 4
        %v4146 = vsel %vm1975, 0, %v4145
        %v4147 = vrot.slane %v4144, 4
        %v4148 = vsel %vm1975, 0, %v4147
        %v4149 = vrot.slane %v4094, 4
        %v4150 = vsel %vm1975, %v4149, %v4078
        %v4152 = vunpack.c.l.s4 1983009808
        %v4153 = vunpack.c.0.s8 %v4152
        %v4154 = vperm.slane %v4150, %v4153
        %v4155 = vrot.slane %v4102, 4
        %v4156 = vsel %vm1975, %v4155, %v4086
        %v4158 = vunpack.c.l.s4 1983009808
        %v4159 = vunpack.c.0.s8 %v4158
        %v4160 = vperm.slane %v4156, %v4159
        %v4161 = vrot.slane %v4160, 4
        %v4162 = vsel %vm1975, %v4161, %v4154
        %v4163 = vrot.slane %v4154, 4
        %v4164 = vsel %vm1975, %v4160, %v4163
        %v4166 = vunpack.c.l.s4 1934713408
        %v4167 = vunpack.c.0.s8 %v4166
        %v4168 = vperm.slane %v4162, %v4167
        %v4170 = vunpack.c.l.s4 1934713408
        %v4171 = vunpack.c.0.s8 %v4170
        %v4172 = vperm.slane %v4164, %v4171
        %v4173 = vrot.slane %v4168, 4
        %v4174 = vsel %vm1975, 0, %v4173
        %v4175 = vrot.slane %v4172, 4
        %v4176 = vsel %vm1975, 0, %v4175
        %v4177 = vrot.slane %v4092, 4
        %v4178 = vsel %vm1975, %v4177, %v4076
        %v4180 = vunpack.c.l.s4 1983009808
        %v4181 = vunpack.c.0.s8 %v4180
        %v4182 = vperm.slane %v4178, %v4181
        %v4183 = vrot.slane %v4100, 4
        %v4184 = vsel %vm1975, %v4183, %v4084
        %v4186 = vunpack.c.l.s4 1983009808
        %v4187 = vunpack.c.0.s8 %v4186
        %v4188 = vperm.slane %v4184, %v4187
        %v4189 = vrot.slane %v4188, 4
        %v4190 = vsel %vm1975, %v4189, %v4182
        %v4191 = vrot.slane %v4182, 4
        %v4192 = vsel %vm1975, %v4188, %v4191
        %v4194 = vunpack.c.l.s4 1934713408
        %v4195 = vunpack.c.0.s8 %v4194
        %v4196 = vperm.slane %v4190, %v4195
        %v4198 = vunpack.c.l.s4 1934713408
        %v4199 = vunpack.c.0.s8 %v4198
        %v4200 = vperm.slane %v4192, %v4199
        %v4201 = vrot.slane %v4196, 4
        %v4202 = vsel %vm1975, 0, %v4201
        %v4203 = vrot.slane %v4200, 4
        %v4204 = vsel %vm1975, 0, %v4203
        %v4205 = vrot.slane %v4096, 4
        %v4206 = vsel %vm1975, %v4205, %v4080
        %v4208 = vunpack.c.l.s4 1983009808
        %v4209 = vunpack.c.0.s8 %v4208
        %v4210 = vperm.slane %v4206, %v4209
        %v4211 = vrot.slane %v4104, 4
        %v4212 = vsel %vm1975, %v4211, %v4088
        %v4214 = vunpack.c.l.s4 1983009808
        %v4215 = vunpack.c.0.s8 %v4214
        %v4216 = vperm.slane %v4212, %v4215
        %v4217 = vrot.slane %v4216, 4
        %v4218 = vsel %vm1975, %v4217, %v4210
        %v4219 = vrot.slane %v4210, 4
        %v4220 = vsel %vm1975, %v4216, %v4219
        %v4222 = vunpack.c.l.s4 1934713408
        %v4223 = vunpack.c.0.s8 %v4222
        %v4224 = vperm.slane %v4218, %v4223
        %v4226 = vunpack.c.l.s4 1934713408
        %v4227 = vunpack.c.0.s8 %v4226
        %v4228 = vperm.slane %v4220, %v4227
        %v4229 = vrot.slane %v4224, 4
        %v4230 = vsel %vm1975, 0, %v4229
        %v4231 = vrot.slane %v4228, 4
        %v4232 = vsel %vm1975, 0, %v4231
        %v4235 = vpack.i.b16 %v4168, %v4140
        %v4236 = vshrl.u32 %v4140, 16
        %v4237 = vshrl.u32 %v4168, 16
        %v4238 = vpack.i.b16 %v4237, %v4236
        %v4241 = vpack.i.b16 %v4174, %v4146
        %v4242 = vshrl.u32 %v4146, 16
        %v4243 = vshrl.u32 %v4174, 16
        %v4244 = vpack.i.b16 %v4243, %v4242
        %v4247 = vpack.i.b16 %v4172, %v4144
        %v4248 = vshrl.u32 %v4144, 16
        %v4249 = vshrl.u32 %v4172, 16
        %v4250 = vpack.i.b16 %v4249, %v4248
        %v4253 = vpack.i.b16 %v4176, %v4148
        %v4254 = vshrl.u32 %v4148, 16
        %v4255 = vshrl.u32 %v4176, 16
        %v4256 = vpack.i.b16 %v4255, %v4254
        %v4259 = vpack.i.b16 %v4224, %v4196
        %v4260 = vshrl.u32 %v4196, 16
        %v4261 = vshrl.u32 %v4224, 16
        %v4262 = vpack.i.b16 %v4261, %v4260
        %v4265 = vpack.i.b16 %v4230, %v4202
        %v4266 = vshrl.u32 %v4202, 16
        %v4267 = vshrl.u32 %v4230, 16
        %v4268 = vpack.i.b16 %v4267, %v4266
        %v4271 = vpack.i.b16 %v4228, %v4200
        %v4272 = vshrl.u32 %v4200, 16
        %v4273 = vshrl.u32 %v4228, 16
        %v4274 = vpack.i.b16 %v4273, %v4272
        %v4277 = vpack.i.b16 %v4232, %v4204
        %v4278 = vshrl.u32 %v4204, 16
        %v4279 = vshrl.u32 %v4232, 16
        %v4280 = vpack.i.b16 %v4279, %v4278
        %v4281 = vunpack.c.l.b16 %v4238
        %v4282 = vpack.c.b16 %v4281, %v4281
        %4283 = vrot.lane.b32.xlu0 %v4282, 32
        %v4284 = vpop.permute.xlu0 %4283
        %v4285 = vunpack.c.l.b16 %v4241
        %v4286 = vpack.c.b16 %v4285, %v4285
        %4287 = vrot.lane.b32.xlu0 %v4286, 64
        %v4288 = vpop.permute.xlu0 %4287
        %v4289 = vunpack.c.l.b16 %v4244
        %v4290 = vpack.c.b16 %v4289, %v4289
        %4291 = vrot.lane.b32.xlu0 %v4290, 96
        %v4292 = vpop.permute.xlu0 %4291
        %v4293 = vunpack.c.l.b16 %v4250
        %v4294 = vpack.c.b16 %v4293, %v4293
        %4295 = vrot.lane.b32.xlu0 %v4294, 32
        %v4296 = vpop.permute.xlu0 %4295
        %v4297 = vunpack.c.l.b16 %v4253
        %v4298 = vpack.c.b16 %v4297, %v4297
        %4299 = vrot.lane.b32.xlu0 %v4298, 64
        %v4300 = vpop.permute.xlu0 %4299
        %v4301 = vunpack.c.l.b16 %v4256
        %v4302 = vpack.c.b16 %v4301, %v4301
        %4303 = vrot.lane.b32.xlu0 %v4302, 96
        %v4304 = vpop.permute.xlu0 %4303
        %v4305 = vunpack.c.l.b16 %v4262
        %v4306 = vpack.c.b16 %v4305, %v4305
        %4307 = vrot.lane.b32.xlu0 %v4306, 32
        %v4308 = vpop.permute.xlu0 %4307
        %v4309 = vunpack.c.l.b16 %v4265
        %v4310 = vpack.c.b16 %v4309, %v4309
        %4311 = vrot.lane.b32.xlu0 %v4310, 64
        %v4312 = vpop.permute.xlu0 %4311
        %v4313 = vunpack.c.l.b16 %v4268
        %v4314 = vpack.c.b16 %v4313, %v4313
        %4315 = vrot.lane.b32.xlu0 %v4314, 96
        %v4316 = vpop.permute.xlu0 %4315
        %v4317 = vunpack.c.l.b16 %v4274
        %v4318 = vpack.c.b16 %v4317, %v4317
        %4319 = vrot.lane.b32.xlu0 %v4318, 32
        %v4320 = vpop.permute.xlu0 %4319
        %v4321 = vunpack.c.l.b16 %v4277
        %v4322 = vpack.c.b16 %v4321, %v4321
        %4323 = vrot.lane.b32.xlu0 %v4322, 64
        %v4324 = vpop.permute.xlu0 %4323
        %v4325 = vunpack.c.l.b16 %v4280
        %v4326 = vpack.c.b16 %v4325, %v4325
        %4327 = vrot.lane.b32.xlu0 %v4326, 96
        %v4328 = vpop.permute.xlu0 %4327
        %v4331 = vsel %vm1705, %v4235, %v4284
        %v4333 = vsel %vm1710, %v4331, %v4288
        %v4335 = vsel %vm1715, %v4333, %v4292
        %v4338 = vsel %vm1705, %v4247, %v4296
        %v4340 = vsel %vm1710, %v4338, %v4300
        %v4342 = vsel %vm1715, %v4340, %v4304
        %v4345 = vsel %vm1705, %v4259, %v4308
        %v4347 = vsel %vm1710, %v4345, %v4312
        %v4349 = vsel %vm1715, %v4347, %v4316
        %v4352 = vsel %vm1705, %v4271, %v4320
        %v4354 = vsel %vm1710, %v4352, %v4324
        %v4356 = vsel %vm1715, %v4354, %v4328
        %v4358 = vsel %vm2802, %v3880, 0
        %v4360 = vsel %vm2806, %v4335, 0
        %v4362 = vsel %vm2806, %v4342, 0
        %v4364 = vsel %vm2806, %v4349, 0
        %v4366 = vsel %vm2806, %v4356, 0
        %4368 = vmatpush.bf16.msra.mxu0 0
        %4369 = vmatpush.bf16.msra.mxu0 0
        %4370 = vmatpush.bf16.msra.mxu0 0
        %4371 = vmatpush.bf16.msra.mxu0 0
        %4372 = vmatpush.bf16.msra.mxu0 0
        %4373 = vmatpush.bf16.msra.mxu0 0
        %4374 = vmatpush.bf16.msra.mxu0 0
        %4375 = vmatpush.bf16.msra.mxu0 %v4360
        %4376 = vmatmul.bf16.gmra.mxu0 %v4358
        %v4377 = vpop.f32.mrf.mxu0
        %v4378 = vadd.f32 0.0, %v4377
        %v4379 = vpop.f32.mrf.mxu0
        %4380 = vdwg.mxu0
        %4381 = vmatpush.bf16.msra.mxu0 0
        %4382 = vmatpush.bf16.msra.mxu0 0
        %4383 = vmatpush.bf16.msra.mxu0 0
        %4384 = vmatpush.bf16.msra.mxu0 0
        %4385 = vmatpush.bf16.msra.mxu0 0
        %4386 = vmatpush.bf16.msra.mxu0 0
        %4387 = vmatpush.bf16.msra.mxu0 0
        %4388 = vmatpush.bf16.msra.mxu0 %v4362
        %4389 = vmatmul.bf16.gmra.mxu0 %v4358
        %v4390 = vpop.f32.mrf.mxu0
        %v4391 = vadd.f32 0.0, %v4390
        %v4392 = vpop.f32.mrf.mxu0
        %4393 = vdwg.mxu0
        %4394 = vmatpush.bf16.msra.mxu0 0
        %4395 = vmatpush.bf16.msra.mxu0 0
        %4396 = vmatpush.bf16.msra.mxu0 0
        %4397 = vmatpush.bf16.msra.mxu0 0
        %4398 = vmatpush.bf16.msra.mxu0 0
        %4399 = vmatpush.bf16.msra.mxu0 0
        %4400 = vmatpush.bf16.msra.mxu0 0
        %4401 = vmatpush.bf16.msra.mxu0 %v4364
        %4402 = vmatmul.bf16.gmra.mxu0 %v4358
        %v4403 = vpop.f32.mrf.mxu0
        %v4404 = vadd.f32 0.0, %v4403
        %v4405 = vpop.f32.mrf.mxu0
        %4406 = vdwg.mxu0
        %4407 = vmatpush.bf16.msra.mxu0 0
        %4408 = vmatpush.bf16.msra.mxu0 0
        %4409 = vmatpush.bf16.msra.mxu0 0
        %4410 = vmatpush.bf16.msra.mxu0 0
        %4411 = vmatpush.bf16.msra.mxu0 0
        %4412 = vmatpush.bf16.msra.mxu0 0
        %4413 = vmatpush.bf16.msra.mxu0 0
        %4414 = vmatpush.bf16.msra.mxu0 %v4366
        %4415 = vmatmul.bf16.gmra.mxu0 %v4358
        %v4416 = vpop.f32.mrf.mxu0
        %v4417 = vadd.f32 0.0, %v4416
        %v4418 = vpop.f32.mrf.mxu0
        %4419 = vdwg.mxu0
        %v4420 = vadd.f32 %v3851, %v4378
        %v4421 = vadd.f32 %v3852, %v4391
        %v4422 = vadd.f32 %v3853, %v4404
        %v4423 = vadd.f32 %v3854, %v4417
        %v4424 = vld [vmem:[#allocation2] sm:$0xf]
        %v4425 = vld [vmem:[#allocation2 + $0x4] sm:$0xf]
        %v4426 = vld [vmem:[#allocation2 + $0x8] sm:$0x1]
        %v4427 = vld [vmem:[#allocation2 + $0xc] sm:$0xf]
        %v4428 = vld [vmem:[#allocation2 + $0x10] sm:$0xf]
        %v4429 = vld [vmem:[#allocation2 + $0x14] sm:$0x1]
        %v4430 = vld [vmem:[#allocation2 + $0x18] sm:$0xf]
        %v4431 = vld [vmem:[#allocation2 + $0x1c] sm:$0xf]
        %v4432 = vld [vmem:[#allocation2 + $0x20] sm:$0x1]
        %v4433 = vld [vmem:[#allocation2 + $0x24] sm:$0xf]
        %v4434 = vld [vmem:[#allocation2 + $0x28] sm:$0xf]
        %v4435 = vld [vmem:[#allocation2 + $0x2c] sm:$0x1]
        %v4436 = vld [vmem:[#allocation2 + $0x30] sm:$0xf]
        %v4437 = vld [vmem:[#allocation2 + $0x34] sm:$0xf]
        %v4438 = vld [vmem:[#allocation2 + $0x38] sm:$0x1]
        %v4439 = vld [vmem:[#allocation2 + $0x3c] sm:$0xf]
        %v4440 = vld [vmem:[#allocation2 + $0x40] sm:$0xf]
        %v4441 = vld [vmem:[#allocation2 + $0x44] sm:$0x1]
        %v4442 = vld [vmem:[#allocation2 + $0x48] sm:$0xf]
        %v4443 = vld [vmem:[#allocation2 + $0x4c] sm:$0xf]
        %v4444 = vld [vmem:[#allocation2 + $0x50] sm:$0x1]
        %v4445 = vld [vmem:[#allocation2 + $0x54] sm:$0xf]
        %v4446 = vld [vmem:[#allocation2 + $0x58] sm:$0xf]
        %v4447 = vld [vmem:[#allocation2 + $0x5c] sm:$0x1]
        %s4448 = scalar_lea.vmem %s4, 20
        %v4449 = vld [vmem:[%s4448] sm:$0xf]
        %v4451 = vshrl.u32 %v4424, 16
        %v4453 = vrot.slane %v4451, 4
        %v4454 = vshll.u32 %v4424, 16
        %v4456 = vrot.slane %v4454, 5
        %v4457 = vor.u32 %v4453, %v4456
        %v4458 = vrot.slane %v4457, 4
        %v4460 = vshll.u32 %v4425, 16
        %v4462 = vrot.slane %v4460, 5
        %v4463 = vsel %vm3343, %v4458, %v4462
        %v4464 = vshrl.u32 %v4425, 16
        %v4466 = vrot.slane %v4464, 4
        %v4467 = vor.u32 %v4466, %v4462
        %v4468 = vrot.slane %v4467, 4
        %v4470 = vshll.u32 %v4426, 16
        %v4472 = vrot.slane %v4470, 5
        %v4473 = vsel %vm3343, %v4468, %v4472
        %v4475 = vshrl.u32 %v4427, 16
        %v4477 = vrot.slane %v4475, 4
        %v4478 = vshll.u32 %v4427, 16
        %v4480 = vrot.slane %v4478, 5
        %v4481 = vor.u32 %v4477, %v4480
        %v4482 = vrot.slane %v4481, 4
        %v4484 = vshll.u32 %v4428, 16
        %v4486 = vrot.slane %v4484, 5
        %v4487 = vsel %vm3343, %v4482, %v4486
        %v4488 = vshrl.u32 %v4428, 16
        %v4490 = vrot.slane %v4488, 4
        %v4491 = vor.u32 %v4490, %v4486
        %v4492 = vrot.slane %v4491, 4
        %v4494 = vshll.u32 %v4429, 16
        %v4496 = vrot.slane %v4494, 5
        %v4497 = vsel %vm3343, %v4492, %v4496
        %v4499 = vshrl.u32 %v4430, 16
        %v4501 = vrot.slane %v4499, 4
        %v4502 = vshll.u32 %v4430, 16
        %v4504 = vrot.slane %v4502, 5
        %v4505 = vor.u32 %v4501, %v4504
        %v4506 = vrot.slane %v4505, 4
        %v4508 = vshll.u32 %v4431, 16
        %v4510 = vrot.slane %v4508, 5
        %v4511 = vsel %vm3343, %v4506, %v4510
        %v4512 = vshrl.u32 %v4431, 16
        %v4514 = vrot.slane %v4512, 4
        %v4515 = vor.u32 %v4514, %v4510
        %v4516 = vrot.slane %v4515, 4
        %v4518 = vshll.u32 %v4432, 16
        %v4520 = vrot.slane %v4518, 5
        %v4521 = vsel %vm3343, %v4516, %v4520
        %v4523 = vshrl.u32 %v4433, 16
        %v4525 = vrot.slane %v4523, 4
        %v4526 = vshll.u32 %v4433, 16
        %v4528 = vrot.slane %v4526, 5
        %v4529 = vor.u32 %v4525, %v4528
        %v4530 = vrot.slane %v4529, 4
        %v4532 = vshll.u32 %v4434, 16
        %v4534 = vrot.slane %v4532, 5
        %v4535 = vsel %vm3343, %v4530, %v4534
        %v4536 = vshrl.u32 %v4434, 16
        %v4538 = vrot.slane %v4536, 4
        %v4539 = vor.u32 %v4538, %v4534
        %v4540 = vrot.slane %v4539, 4
        %v4542 = vshll.u32 %v4435, 16
        %v4544 = vrot.slane %v4542, 5
        %v4545 = vsel %vm3343, %v4540, %v4544
        %v4547 = vshrl.u32 %v4436, 16
        %v4549 = vrot.slane %v4547, 4
        %v4550 = vshll.u32 %v4436, 16
        %v4552 = vrot.slane %v4550, 5
        %v4553 = vor.u32 %v4549, %v4552
        %v4554 = vrot.slane %v4553, 4
        %v4556 = vshll.u32 %v4437, 16
        %v4558 = vrot.slane %v4556, 5
        %v4559 = vsel %vm3343, %v4554, %v4558
        %v4560 = vshrl.u32 %v4437, 16
        %v4562 = vrot.slane %v4560, 4
        %v4563 = vor.u32 %v4562, %v4558
        %v4564 = vrot.slane %v4563, 4
        %v4566 = vshll.u32 %v4438, 16
        %v4568 = vrot.slane %v4566, 5
        %v4569 = vsel %vm3343, %v4564, %v4568
        %v4571 = vshrl.u32 %v4439, 16
        %v4573 = vrot.slane %v4571, 4
        %v4574 = vshll.u32 %v4439, 16
        %v4576 = vrot.slane %v4574, 5
        %v4577 = vor.u32 %v4573, %v4576
        %v4578 = vrot.slane %v4577, 4
        %v4580 = vshll.u32 %v4440, 16
        %v4582 = vrot.slane %v4580, 5
        %v4583 = vsel %vm3343, %v4578, %v4582
        %v4584 = vshrl.u32 %v4440, 16
        %v4586 = vrot.slane %v4584, 4
        %v4587 = vor.u32 %v4586, %v4582
        %v4588 = vrot.slane %v4587, 4
        %v4590 = vshll.u32 %v4441, 16
        %v4592 = vrot.slane %v4590, 5
        %v4593 = vsel %vm3343, %v4588, %v4592
        %v4595 = vshrl.u32 %v4442, 16
        %v4597 = vrot.slane %v4595, 4
        %v4598 = vshll.u32 %v4442, 16
        %v4600 = vrot.slane %v4598, 5
        %v4601 = vor.u32 %v4597, %v4600
        %v4602 = vrot.slane %v4601, 4
        %v4604 = vshll.u32 %v4443, 16
        %v4606 = vrot.slane %v4604, 5
        %v4607 = vsel %vm3343, %v4602, %v4606
        %v4608 = vshrl.u32 %v4443, 16
        %v4610 = vrot.slane %v4608, 4
        %v4611 = vor.u32 %v4610, %v4606
        %v4612 = vrot.slane %v4611, 4
        %v4614 = vshll.u32 %v4444, 16
        %v4616 = vrot.slane %v4614, 5
        %v4617 = vsel %vm3343, %v4612, %v4616
        %v4619 = vshrl.u32 %v4445, 16
        %v4621 = vrot.slane %v4619, 4
        %v4622 = vshll.u32 %v4445, 16
        %v4624 = vrot.slane %v4622, 5
        %v4625 = vor.u32 %v4621, %v4624
        %v4626 = vrot.slane %v4625, 4
        %v4628 = vshll.u32 %v4446, 16
        %v4630 = vrot.slane %v4628, 5
        %v4631 = vsel %vm3343, %v4626, %v4630
        %v4632 = vshrl.u32 %v4446, 16
        %v4634 = vrot.slane %v4632, 4
        %v4635 = vor.u32 %v4634, %v4630
        %v4636 = vrot.slane %v4635, 4
        %v4638 = vshll.u32 %v4447, 16
        %v4640 = vrot.slane %v4638, 5
        %v4641 = vsel %vm3343, %v4636, %v4640
        %4642 = vrot.lane.b32.xlu0 %v4463, 126
        %v4643 = vpop.permute.xlu0 %4642
        %4644 = vrot.lane.b32.xlu0 %v4473, 126
        %v4645 = vpop.permute.xlu0 %4644
        %4646 = vrot.lane.b32.xlu0 %v4487, 126
        %v4647 = vpop.permute.xlu0 %4646
        %4648 = vrot.lane.b32.xlu0 %v4497, 126
        %v4649 = vpop.permute.xlu0 %4648
        %4650 = vrot.lane.b32.xlu0 %v4511, 126
        %v4651 = vpop.permute.xlu0 %4650
        %4652 = vrot.lane.b32.xlu0 %v4521, 126
        %v4653 = vpop.permute.xlu0 %4652
        %4654 = vrot.lane.b32.xlu0 %v4535, 126
        %v4655 = vpop.permute.xlu0 %4654
        %4656 = vrot.lane.b32.xlu0 %v4545, 126
        %v4657 = vpop.permute.xlu0 %4656
        %4658 = vrot.lane.b32.xlu0 %v4559, 126
        %v4659 = vpop.permute.xlu0 %4658
        %4660 = vrot.lane.b32.xlu0 %v4569, 126
        %v4661 = vpop.permute.xlu0 %4660
        %4662 = vrot.lane.b32.xlu0 %v4583, 126
        %v4663 = vpop.permute.xlu0 %4662
        %4664 = vrot.lane.b32.xlu0 %v4593, 126
        %v4665 = vpop.permute.xlu0 %4664
        %4666 = vrot.lane.b32.xlu0 %v4607, 126
        %v4667 = vpop.permute.xlu0 %4666
        %4668 = vrot.lane.b32.xlu0 %v4617, 126
        %v4669 = vpop.permute.xlu0 %4668
        %4670 = vrot.lane.b32.xlu0 %v4631, 126
        %v4671 = vpop.permute.xlu0 %4670
        %4672 = vrot.lane.b32.xlu0 %v4641, 126
        %v4673 = vpop.permute.xlu0 %4672
        %v4690 = vrot.slane %v4659, 4
        %v4691 = vsel %vm1975, %v4690, %v4643
        %v4693 = vunpack.c.l.s4 1983009808
        %v4694 = vunpack.c.0.s8 %v4693
        %v4695 = vperm.slane %v4691, %v4694
        %v4696 = vrot.slane %v4667, 4
        %v4697 = vsel %vm1975, %v4696, %v4651
        %v4699 = vunpack.c.l.s4 1983009808
        %v4700 = vunpack.c.0.s8 %v4699
        %v4701 = vperm.slane %v4697, %v4700
        %v4702 = vrot.slane %v4701, 4
        %v4703 = vsel %vm1975, %v4702, %v4695
        %v4704 = vrot.slane %v4695, 4
        %v4705 = vsel %vm1975, %v4701, %v4704
        %v4707 = vunpack.c.l.s4 1934713408
        %v4708 = vunpack.c.0.s8 %v4707
        %v4709 = vperm.slane %v4703, %v4708
        %v4711 = vunpack.c.l.s4 1934713408
        %v4712 = vunpack.c.0.s8 %v4711
        %v4713 = vperm.slane %v4705, %v4712
        %v4714 = vrot.slane %v4709, 4
        %v4715 = vsel %vm1975, 0, %v4714
        %v4716 = vrot.slane %v4713, 4
        %v4717 = vsel %vm1975, 0, %v4716
        %v4718 = vrot.slane %v4663, 4
        %v4719 = vsel %vm1975, %v4718, %v4647
        %v4721 = vunpack.c.l.s4 1983009808
        %v4722 = vunpack.c.0.s8 %v4721
        %v4723 = vperm.slane %v4719, %v4722
        %v4724 = vrot.slane %v4671, 4
        %v4725 = vsel %vm1975, %v4724, %v4655
        %v4727 = vunpack.c.l.s4 1983009808
        %v4728 = vunpack.c.0.s8 %v4727
        %v4729 = vperm.slane %v4725, %v4728
        %v4730 = vrot.slane %v4729, 4
        %v4731 = vsel %vm1975, %v4730, %v4723
        %v4732 = vrot.slane %v4723, 4
        %v4733 = vsel %vm1975, %v4729, %v4732
        %v4735 = vunpack.c.l.s4 1934713408
        %v4736 = vunpack.c.0.s8 %v4735
        %v4737 = vperm.slane %v4731, %v4736
        %v4739 = vunpack.c.l.s4 1934713408
        %v4740 = vunpack.c.0.s8 %v4739
        %v4741 = vperm.slane %v4733, %v4740
        %v4742 = vrot.slane %v4737, 4
        %v4743 = vsel %vm1975, 0, %v4742
        %v4744 = vrot.slane %v4741, 4
        %v4745 = vsel %vm1975, 0, %v4744
        %v4746 = vrot.slane %v4661, 4
        %v4747 = vsel %vm1975, %v4746, %v4645
        %v4749 = vunpack.c.l.s4 1983009808
        %v4750 = vunpack.c.0.s8 %v4749
        %v4751 = vperm.slane %v4747, %v4750
        %v4752 = vrot.slane %v4669, 4
        %v4753 = vsel %vm1975, %v4752, %v4653
        %v4755 = vunpack.c.l.s4 1983009808
        %v4756 = vunpack.c.0.s8 %v4755
        %v4757 = vperm.slane %v4753, %v4756
        %v4758 = vrot.slane %v4757, 4
        %v4759 = vsel %vm1975, %v4758, %v4751
        %v4760 = vrot.slane %v4751, 4
        %v4761 = vsel %vm1975, %v4757, %v4760
        %v4763 = vunpack.c.l.s4 1934713408
        %v4764 = vunpack.c.0.s8 %v4763
        %v4765 = vperm.slane %v4759, %v4764
        %v4767 = vunpack.c.l.s4 1934713408
        %v4768 = vunpack.c.0.s8 %v4767
        %v4769 = vperm.slane %v4761, %v4768
        %v4770 = vrot.slane %v4765, 4
        %v4771 = vsel %vm1975, 0, %v4770
        %v4772 = vrot.slane %v4769, 4
        %v4773 = vsel %vm1975, 0, %v4772
        %v4774 = vrot.slane %v4665, 4
        %v4775 = vsel %vm1975, %v4774, %v4649
        %v4777 = vunpack.c.l.s4 1983009808
        %v4778 = vunpack.c.0.s8 %v4777
        %v4779 = vperm.slane %v4775, %v4778
        %v4780 = vrot.slane %v4673, 4
        %v4781 = vsel %vm1975, %v4780, %v4657
        %v4783 = vunpack.c.l.s4 1983009808
        %v4784 = vunpack.c.0.s8 %v4783
        %v4785 = vperm.slane %v4781, %v4784
        %v4786 = vrot.slane %v4785, 4
        %v4787 = vsel %vm1975, %v4786, %v4779
        %v4788 = vrot.slane %v4779, 4
        %v4789 = vsel %vm1975, %v4785, %v4788
        %v4791 = vunpack.c.l.s4 1934713408
        %v4792 = vunpack.c.0.s8 %v4791
        %v4793 = vperm.slane %v4787, %v4792
        %v4795 = vunpack.c.l.s4 1934713408
        %v4796 = vunpack.c.0.s8 %v4795
        %v4797 = vperm.slane %v4789, %v4796
        %v4798 = vrot.slane %v4793, 4
        %v4799 = vsel %vm1975, 0, %v4798
        %v4800 = vrot.slane %v4797, 4
        %v4801 = vsel %vm1975, 0, %v4800
        %v4804 = vpack.i.b16 %v4737, %v4709
        %v4805 = vshrl.u32 %v4709, 16
        %v4806 = vshrl.u32 %v4737, 16
        %v4807 = vpack.i.b16 %v4806, %v4805
        %v4810 = vpack.i.b16 %v4743, %v4715
        %v4811 = vshrl.u32 %v4715, 16
        %v4812 = vshrl.u32 %v4743, 16
        %v4813 = vpack.i.b16 %v4812, %v4811
        %v4816 = vpack.i.b16 %v4741, %v4713
        %v4817 = vshrl.u32 %v4713, 16
        %v4818 = vshrl.u32 %v4741, 16
        %v4819 = vpack.i.b16 %v4818, %v4817
        %v4822 = vpack.i.b16 %v4745, %v4717
        %v4823 = vshrl.u32 %v4717, 16
        %v4824 = vshrl.u32 %v4745, 16
        %v4825 = vpack.i.b16 %v4824, %v4823
        %v4828 = vpack.i.b16 %v4793, %v4765
        %v4829 = vshrl.u32 %v4765, 16
        %v4830 = vshrl.u32 %v4793, 16
        %v4831 = vpack.i.b16 %v4830, %v4829
        %v4834 = vpack.i.b16 %v4799, %v4771
        %v4835 = vshrl.u32 %v4771, 16
        %v4836 = vshrl.u32 %v4799, 16
        %v4837 = vpack.i.b16 %v4836, %v4835
        %v4840 = vpack.i.b16 %v4797, %v4769
        %v4841 = vshrl.u32 %v4769, 16
        %v4842 = vshrl.u32 %v4797, 16
        %v4843 = vpack.i.b16 %v4842, %v4841
        %v4846 = vpack.i.b16 %v4801, %v4773
        %v4847 = vshrl.u32 %v4773, 16
        %v4848 = vshrl.u32 %v4801, 16
        %v4849 = vpack.i.b16 %v4848, %v4847
        %v4850 = vunpack.c.l.b16 %v4807
        %v4851 = vpack.c.b16 %v4850, %v4850
        %4852 = vrot.lane.b32.xlu0 %v4851, 32
        %v4853 = vpop.permute.xlu0 %4852
        %v4854 = vunpack.c.l.b16 %v4810
        %v4855 = vpack.c.b16 %v4854, %v4854
        %4856 = vrot.lane.b32.xlu0 %v4855, 64
        %v4857 = vpop.permute.xlu0 %4856
        %v4858 = vunpack.c.l.b16 %v4813
        %v4859 = vpack.c.b16 %v4858, %v4858
        %4860 = vrot.lane.b32.xlu0 %v4859, 96
        %v4861 = vpop.permute.xlu0 %4860
        %v4862 = vunpack.c.l.b16 %v4819
        %v4863 = vpack.c.b16 %v4862, %v4862
        %4864 = vrot.lane.b32.xlu0 %v4863, 32
        %v4865 = vpop.permute.xlu0 %4864
        %v4866 = vunpack.c.l.b16 %v4822
        %v4867 = vpack.c.b16 %v4866, %v4866
        %4868 = vrot.lane.b32.xlu0 %v4867, 64
        %v4869 = vpop.permute.xlu0 %4868
        %v4870 = vunpack.c.l.b16 %v4825
        %v4871 = vpack.c.b16 %v4870, %v4870
        %4872 = vrot.lane.b32.xlu0 %v4871, 96
        %v4873 = vpop.permute.xlu0 %4872
        %v4874 = vunpack.c.l.b16 %v4831
        %v4875 = vpack.c.b16 %v4874, %v4874
        %4876 = vrot.lane.b32.xlu0 %v4875, 32
        %v4877 = vpop.permute.xlu0 %4876
        %v4878 = vunpack.c.l.b16 %v4834
        %v4879 = vpack.c.b16 %v4878, %v4878
        %4880 = vrot.lane.b32.xlu0 %v4879, 64
        %v4881 = vpop.permute.xlu0 %4880
        %v4882 = vunpack.c.l.b16 %v4837
        %v4883 = vpack.c.b16 %v4882, %v4882
        %4884 = vrot.lane.b32.xlu0 %v4883, 96
        %v4885 = vpop.permute.xlu0 %4884
        %v4886 = vunpack.c.l.b16 %v4843
        %v4887 = vpack.c.b16 %v4886, %v4886
        %4888 = vrot.lane.b32.xlu0 %v4887, 32
        %v4889 = vpop.permute.xlu0 %4888
        %v4890 = vunpack.c.l.b16 %v4846
        %v4891 = vpack.c.b16 %v4890, %v4890
        %4892 = vrot.lane.b32.xlu0 %v4891, 64
        %v4893 = vpop.permute.xlu0 %4892
        %v4894 = vunpack.c.l.b16 %v4849
        %v4895 = vpack.c.b16 %v4894, %v4894
        %4896 = vrot.lane.b32.xlu0 %v4895, 96
        %v4897 = vpop.permute.xlu0 %4896
        %v4900 = vsel %vm1705, %v4804, %v4853
        %v4902 = vsel %vm1710, %v4900, %v4857
        %v4904 = vsel %vm1715, %v4902, %v4861
        %v4907 = vsel %vm1705, %v4816, %v4865
        %v4909 = vsel %vm1710, %v4907, %v4869
        %v4911 = vsel %vm1715, %v4909, %v4873
        %v4914 = vsel %vm1705, %v4828, %v4877
        %v4916 = vsel %vm1710, %v4914, %v4881
        %v4918 = vsel %vm1715, %v4916, %v4885
        %v4921 = vsel %vm1705, %v4840, %v4889
        %v4923 = vsel %vm1710, %v4921, %v4893
        %v4925 = vsel %vm1715, %v4923, %v4897
        %v4927 = vsel %vm2802, %v4449, 0
        %v4929 = vsel %vm2806, %v4904, 0
        %v4931 = vsel %vm2806, %v4911, 0
        %v4933 = vsel %vm2806, %v4918, 0
        %v4935 = vsel %vm2806, %v4925, 0
        %4937 = vmatpush.bf16.msra.mxu0 0
        %4938 = vmatpush.bf16.msra.mxu0 0
        %4939 = vmatpush.bf16.msra.mxu0 0
        %4940 = vmatpush.bf16.msra.mxu0 0
        %4941 = vmatpush.bf16.msra.mxu0 0
        %4942 = vmatpush.bf16.msra.mxu0 0
        %4943 = vmatpush.bf16.msra.mxu0 0
        %4944 = vmatpush.bf16.msra.mxu0 %v4929
        %4945 = vmatmul.bf16.gmra.mxu0 %v4927
        %v4946 = vpop.f32.mrf.mxu0
        %v4947 = vadd.f32 0.0, %v4946
        %v4948 = vpop.f32.mrf.mxu0
        %4949 = vdwg.mxu0
        %4950 = vmatpush.bf16.msra.mxu0 0
        %4951 = vmatpush.bf16.msra.mxu0 0
        %4952 = vmatpush.bf16.msra.mxu0 0
        %4953 = vmatpush.bf16.msra.mxu0 0
        %4954 = vmatpush.bf16.msra.mxu0 0
        %4955 = vmatpush.bf16.msra.mxu0 0
        %4956 = vmatpush.bf16.msra.mxu0 0
        %4957 = vmatpush.bf16.msra.mxu0 %v4931
        %4958 = vmatmul.bf16.gmra.mxu0 %v4927
        %v4959 = vpop.f32.mrf.mxu0
        %v4960 = vadd.f32 0.0, %v4959
        %v4961 = vpop.f32.mrf.mxu0
        %4962 = vdwg.mxu0
        %4963 = vmatpush.bf16.msra.mxu0 0
        %4964 = vmatpush.bf16.msra.mxu0 0
        %4965 = vmatpush.bf16.msra.mxu0 0
        %4966 = vmatpush.bf16.msra.mxu0 0
        %4967 = vmatpush.bf16.msra.mxu0 0
        %4968 = vmatpush.bf16.msra.mxu0 0
        %4969 = vmatpush.bf16.msra.mxu0 0
        %4970 = vmatpush.bf16.msra.mxu0 %v4933
        %4971 = vmatmul.bf16.gmra.mxu0 %v4927
        %v4972 = vpop.f32.mrf.mxu0
        %v4973 = vadd.f32 0.0, %v4972
        %v4974 = vpop.f32.mrf.mxu0
        %4975 = vdwg.mxu0
        %4976 = vmatpush.bf16.msra.mxu0 0
        %4977 = vmatpush.bf16.msra.mxu0 0
        %4978 = vmatpush.bf16.msra.mxu0 0
        %4979 = vmatpush.bf16.msra.mxu0 0
        %4980 = vmatpush.bf16.msra.mxu0 0
        %4981 = vmatpush.bf16.msra.mxu0 0
        %4982 = vmatpush.bf16.msra.mxu0 0
        %4983 = vmatpush.bf16.msra.mxu0 %v4935
        %4984 = vmatmul.bf16.gmra.mxu0 %v4927
        %v4985 = vpop.f32.mrf.mxu0
        %v4986 = vadd.f32 0.0, %v4985
        %v4987 = vpop.f32.mrf.mxu0
        %4988 = vdwg.mxu0
        %v4989 = vadd.f32 %v4420, %v4947
        %v4990 = vadd.f32 %v4421, %v4960
        %v4991 = vadd.f32 %v4422, %v4973
        %v4992 = vadd.f32 %v4423, %v4986
        %v4993 = vld [vmem:[#allocation2] sm:$0xe]
        %v4994 = vld [vmem:[#allocation2 + $0x4] sm:$0xf]
        %v4995 = vld [vmem:[#allocation2 + $0x8] sm:$0x1]
        %v4996 = vld [vmem:[#allocation2 + $0xc] sm:$0xe]
        %v4997 = vld [vmem:[#allocation2 + $0x10] sm:$0xf]
        %v4998 = vld [vmem:[#allocation2 + $0x14] sm:$0x1]
        %v4999 = vld [vmem:[#allocation2 + $0x18] sm:$0xe]
        %v5000 = vld [vmem:[#allocation2 + $0x1c] sm:$0xf]
        %v5001 = vld [vmem:[#allocation2 + $0x20] sm:$0x1]
        %v5002 = vld [vmem:[#allocation2 + $0x24] sm:$0xe]
        %v5003 = vld [vmem:[#allocation2 + $0x28] sm:$0xf]
        %v5004 = vld [vmem:[#allocation2 + $0x2c] sm:$0x1]
        %v5005 = vld [vmem:[#allocation2 + $0x30] sm:$0xe]
        %v5006 = vld [vmem:[#allocation2 + $0x34] sm:$0xf]
        %v5007 = vld [vmem:[#allocation2 + $0x38] sm:$0x1]
        %v5008 = vld [vmem:[#allocation2 + $0x3c] sm:$0xe]
        %v5009 = vld [vmem:[#allocation2 + $0x40] sm:$0xf]
        %v5010 = vld [vmem:[#allocation2 + $0x44] sm:$0x1]
        %v5011 = vld [vmem:[#allocation2 + $0x48] sm:$0xe]
        %v5012 = vld [vmem:[#allocation2 + $0x4c] sm:$0xf]
        %v5013 = vld [vmem:[#allocation2 + $0x50] sm:$0x1]
        %v5014 = vld [vmem:[#allocation2 + $0x54] sm:$0xe]
        %v5015 = vld [vmem:[#allocation2 + $0x58] sm:$0xf]
        %v5016 = vld [vmem:[#allocation2 + $0x5c] sm:$0x1]
        %s5017 = scalar_lea.vmem %s4, 24
        %v5018 = vld [vmem:[%s5017] sm:$0xf]
        %vm5043 = vcmask 1042432
        %vm5044 = vcmask 1046532
        %vm5045 = vmor %vm5043, %vm5044
        %v5046 = vrot.slane %v4993, 5
        %v5047 = vrot.slane %v5046, 4
        %v5048 = vrot.slane %v4994, 5
        %v5049 = vsel %vm5045, %v5047, %v5048
        %v5050 = vrot.slane %v5048, 4
        %v5051 = vrot.slane %v4995, 5
        %v5052 = vsel %vm5045, %v5050, %v5051
        %v5053 = vrot.slane %v4996, 5
        %v5054 = vrot.slane %v5053, 4
        %v5055 = vrot.slane %v4997, 5
        %v5056 = vsel %vm5045, %v5054, %v5055
        %v5057 = vrot.slane %v5055, 4
        %v5058 = vrot.slane %v4998, 5
        %v5059 = vsel %vm5045, %v5057, %v5058
        %v5060 = vrot.slane %v4999, 5
        %v5061 = vrot.slane %v5060, 4
        %v5062 = vrot.slane %v5000, 5
        %v5063 = vsel %vm5045, %v5061, %v5062
        %v5064 = vrot.slane %v5062, 4
        %v5065 = vrot.slane %v5001, 5
        %v5066 = vsel %vm5045, %v5064, %v5065
        %v5067 = vrot.slane %v5002, 5
        %v5068 = vrot.slane %v5067, 4
        %v5069 = vrot.slane %v5003, 5
        %v5070 = vsel %vm5045, %v5068, %v5069
        %v5071 = vrot.slane %v5069, 4
        %v5072 = vrot.slane %v5004, 5
        %v5073 = vsel %vm5045, %v5071, %v5072
        %v5074 = vrot.slane %v5005, 5
        %v5075 = vrot.slane %v5074, 4
        %v5076 = vrot.slane %v5006, 5
        %v5077 = vsel %vm5045, %v5075, %v5076
        %v5078 = vrot.slane %v5076, 4
        %v5079 = vrot.slane %v5007, 5
        %v5080 = vsel %vm5045, %v5078, %v5079
        %v5081 = vrot.slane %v5008, 5
        %v5082 = vrot.slane %v5081, 4
        %v5083 = vrot.slane %v5009, 5
        %v5084 = vsel %vm5045, %v5082, %v5083
        %v5085 = vrot.slane %v5083, 4
        %v5086 = vrot.slane %v5010, 5
        %v5087 = vsel %vm5045, %v5085, %v5086
        %v5088 = vrot.slane %v5011, 5
        %v5089 = vrot.slane %v5088, 4
        %v5090 = vrot.slane %v5012, 5
        %v5091 = vsel %vm5045, %v5089, %v5090
        %v5092 = vrot.slane %v5090, 4
        %v5093 = vrot.slane %v5013, 5
        %v5094 = vsel %vm5045, %v5092, %v5093
        %v5095 = vrot.slane %v5014, 5
        %v5096 = vrot.slane %v5095, 4
        %v5097 = vrot.slane %v5015, 5
        %v5098 = vsel %vm5045, %v5096, %v5097
        %v5099 = vrot.slane %v5097, 4
        %v5100 = vrot.slane %v5016, 5
        %v5101 = vsel %vm5045, %v5099, %v5100
        %v5118 = vrot.slane %v5077, 4
        %v5119 = vsel %vm1975, %v5118, %v5049
        %v5121 = vunpack.c.l.s4 1983009808
        %v5122 = vunpack.c.0.s8 %v5121
        %v5123 = vperm.slane %v5119, %v5122
        %v5124 = vrot.slane %v5091, 4
        %v5125 = vsel %vm1975, %v5124, %v5063
        %v5127 = vunpack.c.l.s4 1983009808
        %v5128 = vunpack.c.0.s8 %v5127
        %v5129 = vperm.slane %v5125, %v5128
        %v5130 = vrot.slane %v5129, 4
        %v5131 = vsel %vm1975, %v5130, %v5123
        %v5132 = vrot.slane %v5123, 4
        %v5133 = vsel %vm1975, %v5129, %v5132
        %v5135 = vunpack.c.l.s4 1934713408
        %v5136 = vunpack.c.0.s8 %v5135
        %v5137 = vperm.slane %v5131, %v5136
        %v5139 = vunpack.c.l.s4 1934713408
        %v5140 = vunpack.c.0.s8 %v5139
        %v5141 = vperm.slane %v5133, %v5140
        %v5142 = vrot.slane %v5137, 4
        %v5143 = vsel %vm1975, 0, %v5142
        %v5144 = vrot.slane %v5141, 4
        %v5145 = vsel %vm1975, 0, %v5144
        %v5146 = vrot.slane %v5084, 4
        %v5147 = vsel %vm1975, %v5146, %v5056
        %v5149 = vunpack.c.l.s4 1983009808
        %v5150 = vunpack.c.0.s8 %v5149
        %v5151 = vperm.slane %v5147, %v5150
        %v5152 = vrot.slane %v5098, 4
        %v5153 = vsel %vm1975, %v5152, %v5070
        %v5155 = vunpack.c.l.s4 1983009808
        %v5156 = vunpack.c.0.s8 %v5155
        %v5157 = vperm.slane %v5153, %v5156
        %v5158 = vrot.slane %v5157, 4
        %v5159 = vsel %vm1975, %v5158, %v5151
        %v5160 = vrot.slane %v5151, 4
        %v5161 = vsel %vm1975, %v5157, %v5160
        %v5163 = vunpack.c.l.s4 1934713408
        %v5164 = vunpack.c.0.s8 %v5163
        %v5165 = vperm.slane %v5159, %v5164
        %v5167 = vunpack.c.l.s4 1934713408
        %v5168 = vunpack.c.0.s8 %v5167
        %v5169 = vperm.slane %v5161, %v5168
        %v5170 = vrot.slane %v5165, 4
        %v5171 = vsel %vm1975, 0, %v5170
        %v5172 = vrot.slane %v5169, 4
        %v5173 = vsel %vm1975, 0, %v5172
        %v5174 = vrot.slane %v5080, 4
        %v5175 = vsel %vm1975, %v5174, %v5052
        %v5177 = vunpack.c.l.s4 1983009808
        %v5178 = vunpack.c.0.s8 %v5177
        %v5179 = vperm.slane %v5175, %v5178
        %v5180 = vrot.slane %v5094, 4
        %v5181 = vsel %vm1975, %v5180, %v5066
        %v5183 = vunpack.c.l.s4 1983009808
        %v5184 = vunpack.c.0.s8 %v5183
        %v5185 = vperm.slane %v5181, %v5184
        %v5186 = vrot.slane %v5185, 4
        %v5187 = vsel %vm1975, %v5186, %v5179
        %v5188 = vrot.slane %v5179, 4
        %v5189 = vsel %vm1975, %v5185, %v5188
        %v5191 = vunpack.c.l.s4 1934713408
        %v5192 = vunpack.c.0.s8 %v5191
        %v5193 = vperm.slane %v5187, %v5192
        %v5195 = vunpack.c.l.s4 1934713408
        %v5196 = vunpack.c.0.s8 %v5195
        %v5197 = vperm.slane %v5189, %v5196
        %v5198 = vrot.slane %v5193, 4
        %v5199 = vsel %vm1975, 0, %v5198
        %v5200 = vrot.slane %v5197, 4
        %v5201 = vsel %vm1975, 0, %v5200
        %v5202 = vrot.slane %v5087, 4
        %v5203 = vsel %vm1975, %v5202, %v5059
        %v5205 = vunpack.c.l.s4 1983009808
        %v5206 = vunpack.c.0.s8 %v5205
        %v5207 = vperm.slane %v5203, %v5206
        %v5208 = vrot.slane %v5101, 4
        %v5209 = vsel %vm1975, %v5208, %v5073
        %v5211 = vunpack.c.l.s4 1983009808
        %v5212 = vunpack.c.0.s8 %v5211
        %v5213 = vperm.slane %v5209, %v5212
        %v5214 = vrot.slane %v5213, 4
        %v5215 = vsel %vm1975, %v5214, %v5207
        %v5216 = vrot.slane %v5207, 4
        %v5217 = vsel %vm1975, %v5213, %v5216
        %v5219 = vunpack.c.l.s4 1934713408
        %v5220 = vunpack.c.0.s8 %v5219
        %v5221 = vperm.slane %v5215, %v5220
        %v5223 = vunpack.c.l.s4 1934713408
        %v5224 = vunpack.c.0.s8 %v5223
        %v5225 = vperm.slane %v5217, %v5224
        %v5226 = vrot.slane %v5221, 4
        %v5227 = vsel %vm1975, 0, %v5226
        %v5228 = vrot.slane %v5225, 4
        %v5229 = vsel %vm1975, 0, %v5228
        %v5232 = vpack.i.b16 %v5165, %v5137
        %v5233 = vshrl.u32 %v5137, 16
        %v5234 = vshrl.u32 %v5165, 16
        %v5235 = vpack.i.b16 %v5234, %v5233
        %v5238 = vpack.i.b16 %v5171, %v5143
        %v5239 = vshrl.u32 %v5143, 16
        %v5240 = vshrl.u32 %v5171, 16
        %v5241 = vpack.i.b16 %v5240, %v5239
        %v5244 = vpack.i.b16 %v5169, %v5141
        %v5245 = vshrl.u32 %v5141, 16
        %v5246 = vshrl.u32 %v5169, 16
        %v5247 = vpack.i.b16 %v5246, %v5245
        %v5250 = vpack.i.b16 %v5173, %v5145
        %v5251 = vshrl.u32 %v5145, 16
        %v5252 = vshrl.u32 %v5173, 16
        %v5253 = vpack.i.b16 %v5252, %v5251
        %v5256 = vpack.i.b16 %v5221, %v5193
        %v5257 = vshrl.u32 %v5193, 16
        %v5258 = vshrl.u32 %v5221, 16
        %v5259 = vpack.i.b16 %v5258, %v5257
        %v5262 = vpack.i.b16 %v5227, %v5199
        %v5263 = vshrl.u32 %v5199, 16
        %v5264 = vshrl.u32 %v5227, 16
        %v5265 = vpack.i.b16 %v5264, %v5263
        %v5268 = vpack.i.b16 %v5225, %v5197
        %v5269 = vshrl.u32 %v5197, 16
        %v5270 = vshrl.u32 %v5225, 16
        %v5271 = vpack.i.b16 %v5270, %v5269
        %v5274 = vpack.i.b16 %v5229, %v5201
        %v5275 = vshrl.u32 %v5201, 16
        %v5276 = vshrl.u32 %v5229, 16
        %v5277 = vpack.i.b16 %v5276, %v5275
        %v5278 = vunpack.c.l.b16 %v5235
        %v5279 = vpack.c.b16 %v5278, %v5278
        %5280 = vrot.lane.b32.xlu0 %v5279, 32
        %v5281 = vpop.permute.xlu0 %5280
        %v5282 = vunpack.c.l.b16 %v5238
        %v5283 = vpack.c.b16 %v5282, %v5282
        %5284 = vrot.lane.b32.xlu0 %v5283, 64
        %v5285 = vpop.permute.xlu0 %5284
        %v5286 = vunpack.c.l.b16 %v5241
        %v5287 = vpack.c.b16 %v5286, %v5286
        %5288 = vrot.lane.b32.xlu0 %v5287, 96
        %v5289 = vpop.permute.xlu0 %5288
        %v5290 = vunpack.c.l.b16 %v5247
        %v5291 = vpack.c.b16 %v5290, %v5290
        %5292 = vrot.lane.b32.xlu0 %v5291, 32
        %v5293 = vpop.permute.xlu0 %5292
        %v5294 = vunpack.c.l.b16 %v5250
        %v5295 = vpack.c.b16 %v5294, %v5294
        %5296 = vrot.lane.b32.xlu0 %v5295, 64
        %v5297 = vpop.permute.xlu0 %5296
        %v5298 = vunpack.c.l.b16 %v5253
        %v5299 = vpack.c.b16 %v5298, %v5298
        %5300 = vrot.lane.b32.xlu0 %v5299, 96
        %v5301 = vpop.permute.xlu0 %5300
        %v5302 = vunpack.c.l.b16 %v5259
        %v5303 = vpack.c.b16 %v5302, %v5302
        %5304 = vrot.lane.b32.xlu0 %v5303, 32
        %v5305 = vpop.permute.xlu0 %5304
        %v5306 = vunpack.c.l.b16 %v5262
        %v5307 = vpack.c.b16 %v5306, %v5306
        %5308 = vrot.lane.b32.xlu0 %v5307, 64
        %v5309 = vpop.permute.xlu0 %5308
        %v5310 = vunpack.c.l.b16 %v5265
        %v5311 = vpack.c.b16 %v5310, %v5310
        %5312 = vrot.lane.b32.xlu0 %v5311, 96
        %v5313 = vpop.permute.xlu0 %5312
        %v5314 = vunpack.c.l.b16 %v5271
        %v5315 = vpack.c.b16 %v5314, %v5314
        %5316 = vrot.lane.b32.xlu0 %v5315, 32
        %v5317 = vpop.permute.xlu0 %5316
        %v5318 = vunpack.c.l.b16 %v5274
        %v5319 = vpack.c.b16 %v5318, %v5318
        %5320 = vrot.lane.b32.xlu0 %v5319, 64
        %v5321 = vpop.permute.xlu0 %5320
        %v5322 = vunpack.c.l.b16 %v5277
        %v5323 = vpack.c.b16 %v5322, %v5322
        %5324 = vrot.lane.b32.xlu0 %v5323, 96
        %v5325 = vpop.permute.xlu0 %5324
        %v5328 = vsel %vm1705, %v5232, %v5281
        %v5330 = vsel %vm1710, %v5328, %v5285
        %v5332 = vsel %vm1715, %v5330, %v5289
        %v5335 = vsel %vm1705, %v5244, %v5293
        %v5337 = vsel %vm1710, %v5335, %v5297
        %v5339 = vsel %vm1715, %v5337, %v5301
        %v5342 = vsel %vm1705, %v5256, %v5305
        %v5344 = vsel %vm1710, %v5342, %v5309
        %v5346 = vsel %vm1715, %v5344, %v5313
        %v5349 = vsel %vm1705, %v5268, %v5317
        %v5351 = vsel %vm1710, %v5349, %v5321
        %v5353 = vsel %vm1715, %v5351, %v5325
        %v5355 = vsel %vm2802, %v5018, 0
        %v5357 = vsel %vm2806, %v5332, 0
        %v5359 = vsel %vm2806, %v5339, 0
        %v5361 = vsel %vm2806, %v5346, 0
        %v5363 = vsel %vm2806, %v5353, 0
        %5365 = vmatpush.bf16.msra.mxu0 0
        %5366 = vmatpush.bf16.msra.mxu0 0
        %5367 = vmatpush.bf16.msra.mxu0 0
        %5368 = vmatpush.bf16.msra.mxu0 0
        %5369 = vmatpush.bf16.msra.mxu0 0
        %5370 = vmatpush.bf16.msra.mxu0 0
        %5371 = vmatpush.bf16.msra.mxu0 0
        %5372 = vmatpush.bf16.msra.mxu0 %v5357
        %5373 = vmatmul.bf16.gmra.mxu0 %v5355
        %v5374 = vpop.f32.mrf.mxu0
        %v5375 = vadd.f32 0.0, %v5374
        %v5376 = vpop.f32.mrf.mxu0
        %5377 = vdwg.mxu0
        %5378 = vmatpush.bf16.msra.mxu0 0
        %5379 = vmatpush.bf16.msra.mxu0 0
        %5380 = vmatpush.bf16.msra.mxu0 0
        %5381 = vmatpush.bf16.msra.mxu0 0
        %5382 = vmatpush.bf16.msra.mxu0 0
        %5383 = vmatpush.bf16.msra.mxu0 0
        %5384 = vmatpush.bf16.msra.mxu0 0
        %5385 = vmatpush.bf16.msra.mxu0 %v5359
        %5386 = vmatmul.bf16.gmra.mxu0 %v5355
        %v5387 = vpop.f32.mrf.mxu0
        %v5388 = vadd.f32 0.0, %v5387
        %v5389 = vpop.f32.mrf.mxu0
        %5390 = vdwg.mxu0
        %5391 = vmatpush.bf16.msra.mxu0 0
        %5392 = vmatpush.bf16.msra.mxu0 0
        %5393 = vmatpush.bf16.msra.mxu0 0
        %5394 = vmatpush.bf16.msra.mxu0 0
        %5395 = vmatpush.bf16.msra.mxu0 0
        %5396 = vmatpush.bf16.msra.mxu0 0
        %5397 = vmatpush.bf16.msra.mxu0 0
        %5398 = vmatpush.bf16.msra.mxu0 %v5361
        %5399 = vmatmul.bf16.gmra.mxu0 %v5355
        %v5400 = vpop.f32.mrf.mxu0
        %v5401 = vadd.f32 0.0, %v5400
        %v5402 = vpop.f32.mrf.mxu0
        %5403 = vdwg.mxu0
        %5404 = vmatpush.bf16.msra.mxu0 0
        %5405 = vmatpush.bf16.msra.mxu0 0
        %5406 = vmatpush.bf16.msra.mxu0 0
        %5407 = vmatpush.bf16.msra.mxu0 0
        %5408 = vmatpush.bf16.msra.mxu0 0
        %5409 = vmatpush.bf16.msra.mxu0 0
        %5410 = vmatpush.bf16.msra.mxu0 0
        %5411 = vmatpush.bf16.msra.mxu0 %v5363
        %5412 = vmatmul.bf16.gmra.mxu0 %v5355
        %v5413 = vpop.f32.mrf.mxu0
        %v5414 = vadd.f32 0.0, %v5413
        %v5415 = vpop.f32.mrf.mxu0
        %5416 = vdwg.mxu0
        %v5417 = vadd.f32 %v4989, %v5375
        %v5418 = vadd.f32 %v4990, %v5388
        %v5419 = vadd.f32 %v4991, %v5401
        %v5420 = vadd.f32 %v4992, %v5414
        %v5421 = vld [vmem:[#allocation2] sm:$0xe]
        %v5422 = vld [vmem:[#allocation2 + $0x4] sm:$0xf]
        %v5423 = vld [vmem:[#allocation2 + $0x8] sm:$0x1]
        %v5424 = vld [vmem:[#allocation2 + $0xc] sm:$0xe]
        %v5425 = vld [vmem:[#allocation2 + $0x10] sm:$0xf]
        %v5426 = vld [vmem:[#allocation2 + $0x14] sm:$0x1]
        %v5427 = vld [vmem:[#allocation2 + $0x18] sm:$0xe]
        %v5428 = vld [vmem:[#allocation2 + $0x1c] sm:$0xf]
        %v5429 = vld [vmem:[#allocation2 + $0x20] sm:$0x1]
        %v5430 = vld [vmem:[#allocation2 + $0x24] sm:$0xe]
        %v5431 = vld [vmem:[#allocation2 + $0x28] sm:$0xf]
        %v5432 = vld [vmem:[#allocation2 + $0x2c] sm:$0x1]
        %v5433 = vld [vmem:[#allocation2 + $0x30] sm:$0xe]
        %v5434 = vld [vmem:[#allocation2 + $0x34] sm:$0xf]
        %v5435 = vld [vmem:[#allocation2 + $0x38] sm:$0x1]
        %v5436 = vld [vmem:[#allocation2 + $0x3c] sm:$0xe]
        %v5437 = vld [vmem:[#allocation2 + $0x40] sm:$0xf]
        %v5438 = vld [vmem:[#allocation2 + $0x44] sm:$0x1]
        %v5439 = vld [vmem:[#allocation2 + $0x48] sm:$0xe]
        %v5440 = vld [vmem:[#allocation2 + $0x4c] sm:$0xf]
        %v5441 = vld [vmem:[#allocation2 + $0x50] sm:$0x1]
        %v5442 = vld [vmem:[#allocation2 + $0x54] sm:$0xe]
        %v5443 = vld [vmem:[#allocation2 + $0x58] sm:$0xf]
        %v5444 = vld [vmem:[#allocation2 + $0x5c] sm:$0x1]
        %s5445 = scalar_lea.vmem %s4, 28
        %v5446 = vld [vmem:[%s5445] sm:$0xf]
        %v5471 = vrot.slane %v5421, 5
        %v5472 = vrot.slane %v5471, 4
        %v5473 = vrot.slane %v5422, 5
        %v5474 = vsel %vm5045, %v5472, %v5473
        %v5475 = vrot.slane %v5473, 4
        %v5476 = vrot.slane %v5423, 5
        %v5477 = vsel %vm5045, %v5475, %v5476
        %v5478 = vrot.slane %v5424, 5
        %v5479 = vrot.slane %v5478, 4
        %v5480 = vrot.slane %v5425, 5
        %v5481 = vsel %vm5045, %v5479, %v5480
        %v5482 = vrot.slane %v5480, 4
        %v5483 = vrot.slane %v5426, 5
        %v5484 = vsel %vm5045, %v5482, %v5483
        %v5485 = vrot.slane %v5427, 5
        %v5486 = vrot.slane %v5485, 4
        %v5487 = vrot.slane %v5428, 5
        %v5488 = vsel %vm5045, %v5486, %v5487
        %v5489 = vrot.slane %v5487, 4
        %v5490 = vrot.slane %v5429, 5
        %v5491 = vsel %vm5045, %v5489, %v5490
        %v5492 = vrot.slane %v5430, 5
        %v5493 = vrot.slane %v5492, 4
        %v5494 = vrot.slane %v5431, 5
        %v5495 = vsel %vm5045, %v5493, %v5494
        %v5496 = vrot.slane %v5494, 4
        %v5497 = vrot.slane %v5432, 5
        %v5498 = vsel %vm5045, %v5496, %v5497
        %v5499 = vrot.slane %v5433, 5
        %v5500 = vrot.slane %v5499, 4
        %v5501 = vrot.slane %v5434, 5
        %v5502 = vsel %vm5045, %v5500, %v5501
        %v5503 = vrot.slane %v5501, 4
        %v5504 = vrot.slane %v5435, 5
        %v5505 = vsel %vm5045, %v5503, %v5504
        %v5506 = vrot.slane %v5436, 5
        %v5507 = vrot.slane %v5506, 4
        %v5508 = vrot.slane %v5437, 5
        %v5509 = vsel %vm5045, %v5507, %v5508
        %v5510 = vrot.slane %v5508, 4
        %v5511 = vrot.slane %v5438, 5
        %v5512 = vsel %vm5045, %v5510, %v5511
        %v5513 = vrot.slane %v5439, 5
        %v5514 = vrot.slane %v5513, 4
        %v5515 = vrot.slane %v5440, 5
        %v5516 = vsel %vm5045, %v5514, %v5515
        %v5517 = vrot.slane %v5515, 4
        %v5518 = vrot.slane %v5441, 5
        %v5519 = vsel %vm5045, %v5517, %v5518
        %v5520 = vrot.slane %v5442, 5
        %v5521 = vrot.slane %v5520, 4
        %v5522 = vrot.slane %v5443, 5
        %v5523 = vsel %vm5045, %v5521, %v5522
        %v5524 = vrot.slane %v5522, 4
        %v5525 = vrot.slane %v5444, 5
        %v5526 = vsel %vm5045, %v5524, %v5525
        %5527 = vrot.lane.b32.xlu0 %v5474, 127
        %v5528 = vpop.permute.xlu0 %5527
        %5529 = vrot.lane.b32.xlu0 %v5477, 127
        %v5530 = vpop.permute.xlu0 %5529
        %5531 = vrot.lane.b32.xlu0 %v5481, 127
        %v5532 = vpop.permute.xlu0 %5531
        %5533 = vrot.lane.b32.xlu0 %v5484, 127
        %v5534 = vpop.permute.xlu0 %5533
        %5535 = vrot.lane.b32.xlu0 %v5488, 127
        %v5536 = vpop.permute.xlu0 %5535
        %5537 = vrot.lane.b32.xlu0 %v5491, 127
        %v5538 = vpop.permute.xlu0 %5537
        %5539 = vrot.lane.b32.xlu0 %v5495, 127
        %v5540 = vpop.permute.xlu0 %5539
        %5541 = vrot.lane.b32.xlu0 %v5498, 127
        %v5542 = vpop.permute.xlu0 %5541
        %5543 = vrot.lane.b32.xlu0 %v5502, 127
        %v5544 = vpop.permute.xlu0 %5543
        %5545 = vrot.lane.b32.xlu0 %v5505, 127
        %v5546 = vpop.permute.xlu0 %5545
        %5547 = vrot.lane.b32.xlu0 %v5509, 127
        %v5548 = vpop.permute.xlu0 %5547
        %5549 = vrot.lane.b32.xlu0 %v5512, 127
        %v5550 = vpop.permute.xlu0 %5549
        %5551 = vrot.lane.b32.xlu0 %v5516, 127
        %v5552 = vpop.permute.xlu0 %5551
        %5553 = vrot.lane.b32.xlu0 %v5519, 127
        %v5554 = vpop.permute.xlu0 %5553
        %5555 = vrot.lane.b32.xlu0 %v5523, 127
        %v5556 = vpop.permute.xlu0 %5555
        %5557 = vrot.lane.b32.xlu0 %v5526, 127
        %v5558 = vpop.permute.xlu0 %5557
        %v5575 = vrot.slane %v5544, 4
        %v5576 = vsel %vm1975, %v5575, %v5528
        %v5578 = vunpack.c.l.s4 1983009808
        %v5579 = vunpack.c.0.s8 %v5578
        %v5580 = vperm.slane %v5576, %v5579
        %v5581 = vrot.slane %v5552, 4
        %v5582 = vsel %vm1975, %v5581, %v5536
        %v5584 = vunpack.c.l.s4 1983009808
        %v5585 = vunpack.c.0.s8 %v5584
        %v5586 = vperm.slane %v5582, %v5585
        %v5587 = vrot.slane %v5586, 4
        %v5588 = vsel %vm1975, %v5587, %v5580
        %v5589 = vrot.slane %v5580, 4
        %v5590 = vsel %vm1975, %v5586, %v5589
        %v5592 = vunpack.c.l.s4 1934713408
        %v5593 = vunpack.c.0.s8 %v5592
        %v5594 = vperm.slane %v5588, %v5593
        %v5596 = vunpack.c.l.s4 1934713408
        %v5597 = vunpack.c.0.s8 %v5596
        %v5598 = vperm.slane %v5590, %v5597
        %v5599 = vrot.slane %v5594, 4
        %v5600 = vsel %vm1975, 0, %v5599
        %v5601 = vrot.slane %v5598, 4
        %v5602 = vsel %vm1975, 0, %v5601
        %v5603 = vrot.slane %v5548, 4
        %v5604 = vsel %vm1975, %v5603, %v5532
        %v5606 = vunpack.c.l.s4 1983009808
        %v5607 = vunpack.c.0.s8 %v5606
        %v5608 = vperm.slane %v5604, %v5607
        %v5609 = vrot.slane %v5556, 4
        %v5610 = vsel %vm1975, %v5609, %v5540
        %v5612 = vunpack.c.l.s4 1983009808
        %v5613 = vunpack.c.0.s8 %v5612
        %v5614 = vperm.slane %v5610, %v5613
        %v5615 = vrot.slane %v5614, 4
        %v5616 = vsel %vm1975, %v5615, %v5608
        %v5617 = vrot.slane %v5608, 4
        %v5618 = vsel %vm1975, %v5614, %v5617
        %v5620 = vunpack.c.l.s4 1934713408
        %v5621 = vunpack.c.0.s8 %v5620
        %v5622 = vperm.slane %v5616, %v5621
        %v5624 = vunpack.c.l.s4 1934713408
        %v5625 = vunpack.c.0.s8 %v5624
        %v5626 = vperm.slane %v5618, %v5625
        %v5627 = vrot.slane %v5622, 4
        %v5628 = vsel %vm1975, 0, %v5627
        %v5629 = vrot.slane %v5626, 4
        %v5630 = vsel %vm1975, 0, %v5629
        %v5631 = vrot.slane %v5546, 4
        %v5632 = vsel %vm1975, %v5631, %v5530
        %v5634 = vunpack.c.l.s4 1983009808
        %v5635 = vunpack.c.0.s8 %v5634
        %v5636 = vperm.slane %v5632, %v5635
        %v5637 = vrot.slane %v5554, 4
        %v5638 = vsel %vm1975, %v5637, %v5538
        %v5640 = vunpack.c.l.s4 1983009808
        %v5641 = vunpack.c.0.s8 %v5640
        %v5642 = vperm.slane %v5638, %v5641
        %v5643 = vrot.slane %v5642, 4
        %v5644 = vsel %vm1975, %v5643, %v5636
        %v5645 = vrot.slane %v5636, 4
        %v5646 = vsel %vm1975, %v5642, %v5645
        %v5648 = vunpack.c.l.s4 1934713408
        %v5649 = vunpack.c.0.s8 %v5648
        %v5650 = vperm.slane %v5644, %v5649
        %v5652 = vunpack.c.l.s4 1934713408
        %v5653 = vunpack.c.0.s8 %v5652
        %v5654 = vperm.slane %v5646, %v5653
        %v5655 = vrot.slane %v5650, 4
        %v5656 = vsel %vm1975, 0, %v5655
        %v5657 = vrot.slane %v5654, 4
        %v5658 = vsel %vm1975, 0, %v5657
        %v5659 = vrot.slane %v5550, 4
        %v5660 = vsel %vm1975, %v5659, %v5534
        %v5662 = vunpack.c.l.s4 1983009808
        %v5663 = vunpack.c.0.s8 %v5662
        %v5664 = vperm.slane %v5660, %v5663
        %v5665 = vrot.slane %v5558, 4
        %v5666 = vsel %vm1975, %v5665, %v5542
        %v5668 = vunpack.c.l.s4 1983009808
        %v5669 = vunpack.c.0.s8 %v5668
        %v5670 = vperm.slane %v5666, %v5669
        %v5671 = vrot.slane %v5670, 4
        %v5672 = vsel %vm1975, %v5671, %v5664
        %v5673 = vrot.slane %v5664, 4
        %v5674 = vsel %vm1975, %v5670, %v5673
        %v5676 = vunpack.c.l.s4 1934713408
        %v5677 = vunpack.c.0.s8 %v5676
        %v5678 = vperm.slane %v5672, %v5677
        %v5680 = vunpack.c.l.s4 1934713408
        %v5681 = vunpack.c.0.s8 %v5680
        %v5682 = vperm.slane %v5674, %v5681
        %v5683 = vrot.slane %v5678, 4
        %v5684 = vsel %vm1975, 0, %v5683
        %v5685 = vrot.slane %v5682, 4
        %v5686 = vsel %vm1975, 0, %v5685
        %v5689 = vpack.i.b16 %v5622, %v5594
        %v5690 = vshrl.u32 %v5594, 16
        %v5691 = vshrl.u32 %v5622, 16
        %v5692 = vpack.i.b16 %v5691, %v5690
        %v5695 = vpack.i.b16 %v5628, %v5600
        %v5696 = vshrl.u32 %v5600, 16
        %v5697 = vshrl.u32 %v5628, 16
        %v5698 = vpack.i.b16 %v5697, %v5696
        %v5701 = vpack.i.b16 %v5626, %v5598
        %v5702 = vshrl.u32 %v5598, 16
        %v5703 = vshrl.u32 %v5626, 16
        %v5704 = vpack.i.b16 %v5703, %v5702
        %v5707 = vpack.i.b16 %v5630, %v5602
        %v5708 = vshrl.u32 %v5602, 16
        %v5709 = vshrl.u32 %v5630, 16
        %v5710 = vpack.i.b16 %v5709, %v5708
        %v5713 = vpack.i.b16 %v5678, %v5650
        %v5714 = vshrl.u32 %v5650, 16
        %v5715 = vshrl.u32 %v5678, 16
        %v5716 = vpack.i.b16 %v5715, %v5714
        %v5719 = vpack.i.b16 %v5684, %v5656
        %v5720 = vshrl.u32 %v5656, 16
        %v5721 = vshrl.u32 %v5684, 16
        %v5722 = vpack.i.b16 %v5721, %v5720
        %v5725 = vpack.i.b16 %v5682, %v5654
        %v5726 = vshrl.u32 %v5654, 16
        %v5727 = vshrl.u32 %v5682, 16
        %v5728 = vpack.i.b16 %v5727, %v5726
        %v5731 = vpack.i.b16 %v5686, %v5658
        %v5732 = vshrl.u32 %v5658, 16
        %v5733 = vshrl.u32 %v5686, 16
        %v5734 = vpack.i.b16 %v5733, %v5732
        %v5735 = vunpack.c.l.b16 %v5692
        %v5736 = vpack.c.b16 %v5735, %v5735
        %5737 = vrot.lane.b32.xlu0 %v5736, 32
        %v5738 = vpop.permute.xlu0 %5737
        %v5739 = vunpack.c.l.b16 %v5695
        %v5740 = vpack.c.b16 %v5739, %v5739
        %5741 = vrot.lane.b32.xlu0 %v5740, 64
        %v5742 = vpop.permute.xlu0 %5741
        %v5743 = vunpack.c.l.b16 %v5698
        %v5744 = vpack.c.b16 %v5743, %v5743
        %5745 = vrot.lane.b32.xlu0 %v5744, 96
        %v5746 = vpop.permute.xlu0 %5745
        %v5747 = vunpack.c.l.b16 %v5704
        %v5748 = vpack.c.b16 %v5747, %v5747
        %5749 = vrot.lane.b32.xlu0 %v5748, 32
        %v5750 = vpop.permute.xlu0 %5749
        %v5751 = vunpack.c.l.b16 %v5707
        %v5752 = vpack.c.b16 %v5751, %v5751
        %5753 = vrot.lane.b32.xlu0 %v5752, 64
        %v5754 = vpop.permute.xlu0 %5753
        %v5755 = vunpack.c.l.b16 %v5710
        %v5756 = vpack.c.b16 %v5755, %v5755
        %5757 = vrot.lane.b32.xlu0 %v5756, 96
        %v5758 = vpop.permute.xlu0 %5757
        %v5759 = vunpack.c.l.b16 %v5716
        %v5760 = vpack.c.b16 %v5759, %v5759
        %5761 = vrot.lane.b32.xlu0 %v5760, 32
        %v5762 = vpop.permute.xlu0 %5761
        %v5763 = vunpack.c.l.b16 %v5719
        %v5764 = vpack.c.b16 %v5763, %v5763
        %5765 = vrot.lane.b32.xlu0 %v5764, 64
        %v5766 = vpop.permute.xlu0 %5765
        %v5767 = vunpack.c.l.b16 %v5722
        %v5768 = vpack.c.b16 %v5767, %v5767
        %5769 = vrot.lane.b32.xlu0 %v5768, 96
        %v5770 = vpop.permute.xlu0 %5769
        %v5771 = vunpack.c.l.b16 %v5728
        %v5772 = vpack.c.b16 %v5771, %v5771
        %5773 = vrot.lane.b32.xlu0 %v5772, 32
        %v5774 = vpop.permute.xlu0 %5773
        %v5775 = vunpack.c.l.b16 %v5731
        %v5776 = vpack.c.b16 %v5775, %v5775
        %5777 = vrot.lane.b32.xlu0 %v5776, 64
        %v5778 = vpop.permute.xlu0 %5777
        %v5779 = vunpack.c.l.b16 %v5734
        %v5780 = vpack.c.b16 %v5779, %v5779
        %5781 = vrot.lane.b32.xlu0 %v5780, 96
        %v5782 = vpop.permute.xlu0 %5781
        %v5785 = vsel %vm1705, %v5689, %v5738
        %v5787 = vsel %vm1710, %v5785, %v5742
        %v5789 = vsel %vm1715, %v5787, %v5746
        %v5792 = vsel %vm1705, %v5701, %v5750
        %v5794 = vsel %vm1710, %v5792, %v5754
        %v5796 = vsel %vm1715, %v5794, %v5758
        %v5799 = vsel %vm1705, %v5713, %v5762
        %v5801 = vsel %vm1710, %v5799, %v5766
        %v5803 = vsel %vm1715, %v5801, %v5770
        %v5806 = vsel %vm1705, %v5725, %v5774
        %v5808 = vsel %vm1710, %v5806, %v5778
        %v5810 = vsel %vm1715, %v5808, %v5782
        %v5812 = vsel %vm2802, %v5446, 0
        %v5814 = vsel %vm2806, %v5789, 0
        %v5816 = vsel %vm2806, %v5796, 0
        %v5818 = vsel %vm2806, %v5803, 0
        %v5820 = vsel %vm2806, %v5810, 0
        %5822 = vmatpush.bf16.msra.mxu0 0
        %5823 = vmatpush.bf16.msra.mxu0 0
        %5824 = vmatpush.bf16.msra.mxu0 0
        %5825 = vmatpush.bf16.msra.mxu0 0
        %5826 = vmatpush.bf16.msra.mxu0 0
        %5827 = vmatpush.bf16.msra.mxu0 0
        %5828 = vmatpush.bf16.msra.mxu0 0
        %5829 = vmatpush.bf16.msra.mxu0 %v5814
        %5830 = vmatmul.bf16.gmra.mxu0 %v5812
        %v5831 = vpop.f32.mrf.mxu0
        %v5832 = vadd.f32 0.0, %v5831
        %v5833 = vpop.f32.mrf.mxu0
        %5834 = vdwg.mxu0
        %5835 = vmatpush.bf16.msra.mxu0 0
        %5836 = vmatpush.bf16.msra.mxu0 0
        %5837 = vmatpush.bf16.msra.mxu0 0
        %5838 = vmatpush.bf16.msra.mxu0 0
        %5839 = vmatpush.bf16.msra.mxu0 0
        %5840 = vmatpush.bf16.msra.mxu0 0
        %5841 = vmatpush.bf16.msra.mxu0 0
        %5842 = vmatpush.bf16.msra.mxu0 %v5816
        %5843 = vmatmul.bf16.gmra.mxu0 %v5812
        %v5844 = vpop.f32.mrf.mxu0
        %v5845 = vadd.f32 0.0, %v5844
        %v5846 = vpop.f32.mrf.mxu0
        %5847 = vdwg.mxu0
        %5848 = vmatpush.bf16.msra.mxu0 0
        %5849 = vmatpush.bf16.msra.mxu0 0
        %5850 = vmatpush.bf16.msra.mxu0 0
        %5851 = vmatpush.bf16.msra.mxu0 0
        %5852 = vmatpush.bf16.msra.mxu0 0
        %5853 = vmatpush.bf16.msra.mxu0 0
        %5854 = vmatpush.bf16.msra.mxu0 0
        %5855 = vmatpush.bf16.msra.mxu0 %v5818
        %5856 = vmatmul.bf16.gmra.mxu0 %v5812
        %v5857 = vpop.f32.mrf.mxu0
        %v5858 = vadd.f32 0.0, %v5857
        %v5859 = vpop.f32.mrf.mxu0
        %5860 = vdwg.mxu0
        %5861 = vmatpush.bf16.msra.mxu0 0
        %5862 = vmatpush.bf16.msra.mxu0 0
        %5863 = vmatpush.bf16.msra.mxu0 0
        %5864 = vmatpush.bf16.msra.mxu0 0
        %5865 = vmatpush.bf16.msra.mxu0 0
        %5866 = vmatpush.bf16.msra.mxu0 0
        %5867 = vmatpush.bf16.msra.mxu0 0
        %5868 = vmatpush.bf16.msra.mxu0 %v5820
        %5869 = vmatmul.bf16.gmra.mxu0 %v5812
        %v5870 = vpop.f32.mrf.mxu0
        %v5871 = vadd.f32 0.0, %v5870
        %v5872 = vpop.f32.mrf.mxu0
        %5873 = vdwg.mxu0
        %v5874 = vadd.f32 %v5417, %v5832
        %v5875 = vadd.f32 %v5418, %v5845
        %v5876 = vadd.f32 %v5419, %v5858
        %v5877 = vadd.f32 %v5420, %v5871
        %v5878 = vld [vmem:[#allocation2] sm:$0xe]
        %v5879 = vld [vmem:[#allocation2 + $0x4] sm:$0xf]
        %v5880 = vld [vmem:[#allocation2 + $0x8] sm:$0x1]
        %v5881 = vld [vmem:[#allocation2 + $0xc] sm:$0xe]
        %v5882 = vld [vmem:[#allocation2 + $0x10] sm:$0xf]
        %v5883 = vld [vmem:[#allocation2 + $0x14] sm:$0x1]
        %v5884 = vld [vmem:[#allocation2 + $0x18] sm:$0xe]
        %v5885 = vld [vmem:[#allocation2 + $0x1c] sm:$0xf]
        %v5886 = vld [vmem:[#allocation2 + $0x20] sm:$0x1]
        %v5887 = vld [vmem:[#allocation2 + $0x24] sm:$0xe]
        %v5888 = vld [vmem:[#allocation2 + $0x28] sm:$0xf]
        %v5889 = vld [vmem:[#allocation2 + $0x2c] sm:$0x1]
        %v5890 = vld [vmem:[#allocation2 + $0x30] sm:$0xe]
        %v5891 = vld [vmem:[#allocation2 + $0x34] sm:$0xf]
        %v5892 = vld [vmem:[#allocation2 + $0x38] sm:$0x1]
        %v5893 = vld [vmem:[#allocation2 + $0x3c] sm:$0xe]
        %v5894 = vld [vmem:[#allocation2 + $0x40] sm:$0xf]
        %v5895 = vld [vmem:[#allocation2 + $0x44] sm:$0x1]
        %v5896 = vld [vmem:[#allocation2 + $0x48] sm:$0xe]
        %v5897 = vld [vmem:[#allocation2 + $0x4c] sm:$0xf]
        %v5898 = vld [vmem:[#allocation2 + $0x50] sm:$0x1]
        %v5899 = vld [vmem:[#allocation2 + $0x54] sm:$0xe]
        %v5900 = vld [vmem:[#allocation2 + $0x58] sm:$0xf]
        %v5901 = vld [vmem:[#allocation2 + $0x5c] sm:$0x1]
        %s5902 = scalar_lea.vmem %s4, 32
        %v5903 = vld [vmem:[%s5902] sm:$0xf]
        %v5928 = vrot.slane %v5878, 5
        %v5929 = vrot.slane %v5928, 4
        %v5930 = vrot.slane %v5879, 5
        %v5931 = vsel %vm5045, %v5929, %v5930
        %v5932 = vrot.slane %v5930, 4
        %v5933 = vrot.slane %v5880, 5
        %v5934 = vsel %vm5045, %v5932, %v5933
        %v5935 = vrot.slane %v5881, 5
        %v5936 = vrot.slane %v5935, 4
        %v5937 = vrot.slane %v5882, 5
        %v5938 = vsel %vm5045, %v5936, %v5937
        %v5939 = vrot.slane %v5937, 4
        %v5940 = vrot.slane %v5883, 5
        %v5941 = vsel %vm5045, %v5939, %v5940
        %v5942 = vrot.slane %v5884, 5
        %v5943 = vrot.slane %v5942, 4
        %v5944 = vrot.slane %v5885, 5
        %v5945 = vsel %vm5045, %v5943, %v5944
        %v5946 = vrot.slane %v5944, 4
        %v5947 = vrot.slane %v5886, 5
        %v5948 = vsel %vm5045, %v5946, %v5947
        %v5949 = vrot.slane %v5887, 5
        %v5950 = vrot.slane %v5949, 4
        %v5951 = vrot.slane %v5888, 5
        %v5952 = vsel %vm5045, %v5950, %v5951
        %v5953 = vrot.slane %v5951, 4
        %v5954 = vrot.slane %v5889, 5
        %v5955 = vsel %vm5045, %v5953, %v5954
        %v5956 = vrot.slane %v5890, 5
        %v5957 = vrot.slane %v5956, 4
        %v5958 = vrot.slane %v5891, 5
        %v5959 = vsel %vm5045, %v5957, %v5958
        %v5960 = vrot.slane %v5958, 4
        %v5961 = vrot.slane %v5892, 5
        %v5962 = vsel %vm5045, %v5960, %v5961
        %v5963 = vrot.slane %v5893, 5
        %v5964 = vrot.slane %v5963, 4
        %v5965 = vrot.slane %v5894, 5
        %v5966 = vsel %vm5045, %v5964, %v5965
        %v5967 = vrot.slane %v5965, 4
        %v5968 = vrot.slane %v5895, 5
        %v5969 = vsel %vm5045, %v5967, %v5968
        %v5970 = vrot.slane %v5896, 5
        %v5971 = vrot.slane %v5970, 4
        %v5972 = vrot.slane %v5897, 5
        %v5973 = vsel %vm5045, %v5971, %v5972
        %v5974 = vrot.slane %v5972, 4
        %v5975 = vrot.slane %v5898, 5
        %v5976 = vsel %vm5045, %v5974, %v5975
        %v5977 = vrot.slane %v5899, 5
        %v5978 = vrot.slane %v5977, 4
        %v5979 = vrot.slane %v5900, 5
        %v5980 = vsel %vm5045, %v5978, %v5979
        %v5981 = vrot.slane %v5979, 4
        %v5982 = vrot.slane %v5901, 5
        %v5983 = vsel %vm5045, %v5981, %v5982
        %5984 = vrot.lane.b32.xlu0 %v5931, 126
        %v5985 = vpop.permute.xlu0 %5984
        %5986 = vrot.lane.b32.xlu0 %v5934, 126
        %v5987 = vpop.permute.xlu0 %5986
        %5988 = vrot.lane.b32.xlu0 %v5938, 126
        %v5989 = vpop.permute.xlu0 %5988
        %5990 = vrot.lane.b32.xlu0 %v5941, 126
        %v5991 = vpop.permute.xlu0 %5990
        %5992 = vrot.lane.b32.xlu0 %v5945, 126
        %v5993 = vpop.permute.xlu0 %5992
        %5994 = vrot.lane.b32.xlu0 %v5948, 126
        %v5995 = vpop.permute.xlu0 %5994
        %5996 = vrot.lane.b32.xlu0 %v5952, 126
        %v5997 = vpop.permute.xlu0 %5996
        %5998 = vrot.lane.b32.xlu0 %v5955, 126
        %v5999 = vpop.permute.xlu0 %5998
        %6000 = vrot.lane.b32.xlu0 %v5959, 126
        %v6001 = vpop.permute.xlu0 %6000
        %6002 = vrot.lane.b32.xlu0 %v5962, 126
        %v6003 = vpop.permute.xlu0 %6002
        %6004 = vrot.lane.b32.xlu0 %v5966, 126
        %v6005 = vpop.permute.xlu0 %6004
        %6006 = vrot.lane.b32.xlu0 %v5969, 126
        %v6007 = vpop.permute.xlu0 %6006
        %6008 = vrot.lane.b32.xlu0 %v5973, 126
        %v6009 = vpop.permute.xlu0 %6008
        %6010 = vrot.lane.b32.xlu0 %v5976, 126
        %v6011 = vpop.permute.xlu0 %6010
        %6012 = vrot.lane.b32.xlu0 %v5980, 126
        %v6013 = vpop.permute.xlu0 %6012
        %6014 = vrot.lane.b32.xlu0 %v5983, 126
        %v6015 = vpop.permute.xlu0 %6014
        %v6032 = vrot.slane %v6001, 4
        %v6033 = vsel %vm1975, %v6032, %v5985
        %v6035 = vunpack.c.l.s4 1983009808
        %v6036 = vunpack.c.0.s8 %v6035
        %v6037 = vperm.slane %v6033, %v6036
        %v6038 = vrot.slane %v6009, 4
        %v6039 = vsel %vm1975, %v6038, %v5993
        %v6041 = vunpack.c.l.s4 1983009808
        %v6042 = vunpack.c.0.s8 %v6041
        %v6043 = vperm.slane %v6039, %v6042
        %v6044 = vrot.slane %v6043, 4
        %v6045 = vsel %vm1975, %v6044, %v6037
        %v6046 = vrot.slane %v6037, 4
        %v6047 = vsel %vm1975, %v6043, %v6046
        %v6049 = vunpack.c.l.s4 1934713408
        %v6050 = vunpack.c.0.s8 %v6049
        %v6051 = vperm.slane %v6045, %v6050
        %v6053 = vunpack.c.l.s4 1934713408
        %v6054 = vunpack.c.0.s8 %v6053
        %v6055 = vperm.slane %v6047, %v6054
        %v6056 = vrot.slane %v6051, 4
        %v6057 = vsel %vm1975, 0, %v6056
        %v6058 = vrot.slane %v6055, 4
        %v6059 = vsel %vm1975, 0, %v6058
        %v6060 = vrot.slane %v6005, 4
        %v6061 = vsel %vm1975, %v6060, %v5989
        %v6063 = vunpack.c.l.s4 1983009808
        %v6064 = vunpack.c.0.s8 %v6063
        %v6065 = vperm.slane %v6061, %v6064
        %v6066 = vrot.slane %v6013, 4
        %v6067 = vsel %vm1975, %v6066, %v5997
        %v6069 = vunpack.c.l.s4 1983009808
        %v6070 = vunpack.c.0.s8 %v6069
        %v6071 = vperm.slane %v6067, %v6070
        %v6072 = vrot.slane %v6071, 4
        %v6073 = vsel %vm1975, %v6072, %v6065
        %v6074 = vrot.slane %v6065, 4
        %v6075 = vsel %vm1975, %v6071, %v6074
        %v6077 = vunpack.c.l.s4 1934713408
        %v6078 = vunpack.c.0.s8 %v6077
        %v6079 = vperm.slane %v6073, %v6078
        %v6081 = vunpack.c.l.s4 1934713408
        %v6082 = vunpack.c.0.s8 %v6081
        %v6083 = vperm.slane %v6075, %v6082
        %v6084 = vrot.slane %v6079, 4
        %v6085 = vsel %vm1975, 0, %v6084
        %v6086 = vrot.slane %v6083, 4
        %v6087 = vsel %vm1975, 0, %v6086
        %v6088 = vrot.slane %v6003, 4
        %v6089 = vsel %vm1975, %v6088, %v5987
        %v6091 = vunpack.c.l.s4 1983009808
        %v6092 = vunpack.c.0.s8 %v6091
        %v6093 = vperm.slane %v6089, %v6092
        %v6094 = vrot.slane %v6011, 4
        %v6095 = vsel %vm1975, %v6094, %v5995
        %v6097 = vunpack.c.l.s4 1983009808
        %v6098 = vunpack.c.0.s8 %v6097
        %v6099 = vperm.slane %v6095, %v6098
        %v6100 = vrot.slane %v6099, 4
        %v6101 = vsel %vm1975, %v6100, %v6093
        %v6102 = vrot.slane %v6093, 4
        %v6103 = vsel %vm1975, %v6099, %v6102
        %v6105 = vunpack.c.l.s4 1934713408
        %v6106 = vunpack.c.0.s8 %v6105
        %v6107 = vperm.slane %v6101, %v6106
        %v6109 = vunpack.c.l.s4 1934713408
        %v6110 = vunpack.c.0.s8 %v6109
        %v6111 = vperm.slane %v6103, %v6110
        %v6112 = vrot.slane %v6107, 4
        %v6113 = vsel %vm1975, 0, %v6112
        %v6114 = vrot.slane %v6111, 4
        %v6115 = vsel %vm1975, 0, %v6114
        %v6116 = vrot.slane %v6007, 4
        %v6117 = vsel %vm1975, %v6116, %v5991
        %v6119 = vunpack.c.l.s4 1983009808
        %v6120 = vunpack.c.0.s8 %v6119
        %v6121 = vperm.slane %v6117, %v6120
        %v6122 = vrot.slane %v6015, 4
        %v6123 = vsel %vm1975, %v6122, %v5999
        %v6125 = vunpack.c.l.s4 1983009808
        %v6126 = vunpack.c.0.s8 %v6125
        %v6127 = vperm.slane %v6123, %v6126
        %v6128 = vrot.slane %v6127, 4
        %v6129 = vsel %vm1975, %v6128, %v6121
        %v6130 = vrot.slane %v6121, 4
        %v6131 = vsel %vm1975, %v6127, %v6130
        %v6133 = vunpack.c.l.s4 1934713408
        %v6134 = vunpack.c.0.s8 %v6133
        %v6135 = vperm.slane %v6129, %v6134
        %v6137 = vunpack.c.l.s4 1934713408
        %v6138 = vunpack.c.0.s8 %v6137
        %v6139 = vperm.slane %v6131, %v6138
        %v6140 = vrot.slane %v6135, 4
        %v6141 = vsel %vm1975, 0, %v6140
        %v6142 = vrot.slane %v6139, 4
        %v6143 = vsel %vm1975, 0, %v6142
        %v6146 = vpack.i.b16 %v6079, %v6051
        %v6147 = vshrl.u32 %v6051, 16
        %v6148 = vshrl.u32 %v6079, 16
        %v6149 = vpack.i.b16 %v6148, %v6147
        %v6152 = vpack.i.b16 %v6085, %v6057
        %v6153 = vshrl.u32 %v6057, 16
        %v6154 = vshrl.u32 %v6085, 16
        %v6155 = vpack.i.b16 %v6154, %v6153
        %v6158 = vpack.i.b16 %v6083, %v6055
        %v6159 = vshrl.u32 %v6055, 16
        %v6160 = vshrl.u32 %v6083, 16
        %v6161 = vpack.i.b16 %v6160, %v6159
        %v6164 = vpack.i.b16 %v6087, %v6059
        %v6165 = vshrl.u32 %v6059, 16
        %v6166 = vshrl.u32 %v6087, 16
        %v6167 = vpack.i.b16 %v6166, %v6165
        %v6170 = vpack.i.b16 %v6135, %v6107
        %v6171 = vshrl.u32 %v6107, 16
        %v6172 = vshrl.u32 %v6135, 16
        %v6173 = vpack.i.b16 %v6172, %v6171
        %v6176 = vpack.i.b16 %v6141, %v6113
        %v6177 = vshrl.u32 %v6113, 16
        %v6178 = vshrl.u32 %v6141, 16
        %v6179 = vpack.i.b16 %v6178, %v6177
        %v6182 = vpack.i.b16 %v6139, %v6111
        %v6183 = vshrl.u32 %v6111, 16
        %v6184 = vshrl.u32 %v6139, 16
        %v6185 = vpack.i.b16 %v6184, %v6183
        %v6188 = vpack.i.b16 %v6143, %v6115
        %v6189 = vshrl.u32 %v6115, 16
        %v6190 = vshrl.u32 %v6143, 16
        %v6191 = vpack.i.b16 %v6190, %v6189
        %v6192 = vunpack.c.l.b16 %v6149
        %v6193 = vpack.c.b16 %v6192, %v6192
        %6194 = vrot.lane.b32.xlu0 %v6193, 32
        %v6195 = vpop.permute.xlu0 %6194
        %v6196 = vunpack.c.l.b16 %v6152
        %v6197 = vpack.c.b16 %v6196, %v6196
        %6198 = vrot.lane.b32.xlu0 %v6197, 64
        %v6199 = vpop.permute.xlu0 %6198
        %v6200 = vunpack.c.l.b16 %v6155
        %v6201 = vpack.c.b16 %v6200, %v6200
        %6202 = vrot.lane.b32.xlu0 %v6201, 96
        %v6203 = vpop.permute.xlu0 %6202
        %v6204 = vunpack.c.l.b16 %v6161
        %v6205 = vpack.c.b16 %v6204, %v6204
        %6206 = vrot.lane.b32.xlu0 %v6205, 32
        %v6207 = vpop.permute.xlu0 %6206
        %v6208 = vunpack.c.l.b16 %v6164
        %v6209 = vpack.c.b16 %v6208, %v6208
        %6210 = vrot.lane.b32.xlu0 %v6209, 64
        %v6211 = vpop.permute.xlu0 %6210
        %v6212 = vunpack.c.l.b16 %v6167
        %v6213 = vpack.c.b16 %v6212, %v6212
        %6214 = vrot.lane.b32.xlu0 %v6213, 96
        %v6215 = vpop.permute.xlu0 %6214
        %v6216 = vunpack.c.l.b16 %v6173
        %v6217 = vpack.c.b16 %v6216, %v6216
        %6218 = vrot.lane.b32.xlu0 %v6217, 32
        %v6219 = vpop.permute.xlu0 %6218
        %v6220 = vunpack.c.l.b16 %v6176
        %v6221 = vpack.c.b16 %v6220, %v6220
        %6222 = vrot.lane.b32.xlu0 %v6221, 64
        %v6223 = vpop.permute.xlu0 %6222
        %v6224 = vunpack.c.l.b16 %v6179
        %v6225 = vpack.c.b16 %v6224, %v6224
        %6226 = vrot.lane.b32.xlu0 %v6225, 96
        %v6227 = vpop.permute.xlu0 %6226
        %v6228 = vunpack.c.l.b16 %v6185
        %v6229 = vpack.c.b16 %v6228, %v6228
        %6230 = vrot.lane.b32.xlu0 %v6229, 32
        %v6231 = vpop.permute.xlu0 %6230
        %v6232 = vunpack.c.l.b16 %v6188
        %v6233 = vpack.c.b16 %v6232, %v6232
        %6234 = vrot.lane.b32.xlu0 %v6233, 64
        %v6235 = vpop.permute.xlu0 %6234
        %v6236 = vunpack.c.l.b16 %v6191
        %v6237 = vpack.c.b16 %v6236, %v6236
        %6238 = vrot.lane.b32.xlu0 %v6237, 96
        %v6239 = vpop.permute.xlu0 %6238
        %v6242 = vsel %vm1705, %v6146, %v6195
        %v6244 = vsel %vm1710, %v6242, %v6199
        %v6246 = vsel %vm1715, %v6244, %v6203
        %v6249 = vsel %vm1705, %v6158, %v6207
        %v6251 = vsel %vm1710, %v6249, %v6211
        %v6253 = vsel %vm1715, %v6251, %v6215
        %v6256 = vsel %vm1705, %v6170, %v6219
        %v6258 = vsel %vm1710, %v6256, %v6223
        %v6260 = vsel %vm1715, %v6258, %v6227
        %v6263 = vsel %vm1705, %v6182, %v6231
        %v6265 = vsel %vm1710, %v6263, %v6235
        %v6267 = vsel %vm1715, %v6265, %v6239
        %v6269 = vsel %vm2802, %v5903, 0
        %v6271 = vsel %vm2806, %v6246, 0
        %v6273 = vsel %vm2806, %v6253, 0
        %v6275 = vsel %vm2806, %v6260, 0
        %v6277 = vsel %vm2806, %v6267, 0
        %6279 = vmatpush.bf16.msra.mxu0 0
        %6280 = vmatpush.bf16.msra.mxu0 0
        %6281 = vmatpush.bf16.msra.mxu0 0
        %6282 = vmatpush.bf16.msra.mxu0 0
        %6283 = vmatpush.bf16.msra.mxu0 0
        %6284 = vmatpush.bf16.msra.mxu0 0
        %6285 = vmatpush.bf16.msra.mxu0 0
        %6286 = vmatpush.bf16.msra.mxu0 %v6271
        %6287 = vmatmul.bf16.gmra.mxu0 %v6269
        %v6288 = vpop.f32.mrf.mxu0
        %v6289 = vadd.f32 0.0, %v6288
        %v6290 = vpop.f32.mrf.mxu0
        %6291 = vdwg.mxu0
        %6292 = vmatpush.bf16.msra.mxu0 0
        %6293 = vmatpush.bf16.msra.mxu0 0
        %6294 = vmatpush.bf16.msra.mxu0 0
        %6295 = vmatpush.bf16.msra.mxu0 0
        %6296 = vmatpush.bf16.msra.mxu0 0
        %6297 = vmatpush.bf16.msra.mxu0 0
        %6298 = vmatpush.bf16.msra.mxu0 0
        %6299 = vmatpush.bf16.msra.mxu0 %v6273
        %6300 = vmatmul.bf16.gmra.mxu0 %v6269
        %v6301 = vpop.f32.mrf.mxu0
        %v6302 = vadd.f32 0.0, %v6301
        %v6303 = vpop.f32.mrf.mxu0
        %6304 = vdwg.mxu0
        %6305 = vmatpush.bf16.msra.mxu0 0
        %6306 = vmatpush.bf16.msra.mxu0 0
        %6307 = vmatpush.bf16.msra.mxu0 0
        %6308 = vmatpush.bf16.msra.mxu0 0
        %6309 = vmatpush.bf16.msra.mxu0 0
        %6310 = vmatpush.bf16.msra.mxu0 0
        %6311 = vmatpush.bf16.msra.mxu0 0
        %6312 = vmatpush.bf16.msra.mxu0 %v6275
        %6313 = vmatmul.bf16.gmra.mxu0 %v6269
        %v6314 = vpop.f32.mrf.mxu0
        %v6315 = vadd.f32 0.0, %v6314
        %v6316 = vpop.f32.mrf.mxu0
        %6317 = vdwg.mxu0
        %6318 = vmatpush.bf16.msra.mxu0 0
        %6319 = vmatpush.bf16.msra.mxu0 0
        %6320 = vmatpush.bf16.msra.mxu0 0
        %6321 = vmatpush.bf16.msra.mxu0 0
        %6322 = vmatpush.bf16.msra.mxu0 0
        %6323 = vmatpush.bf16.msra.mxu0 0
        %6324 = vmatpush.bf16.msra.mxu0 0
        %6325 = vmatpush.bf16.msra.mxu0 %v6277
        %6326 = vmatmul.bf16.gmra.mxu0 %v6269
        %v6327 = vpop.f32.mrf.mxu0
        %v6328 = vadd.f32 0.0, %v6327
        %v6329 = vpop.f32.mrf.mxu0
        %6330 = vdwg.mxu0
        %v6331 = vadd.f32 %v5874, %v6289
        %v6332 = vadd.f32 %v5875, %v6302
        %v6333 = vadd.f32 %v5876, %v6315
        %v6334 = vadd.f32 %v5877, %v6328
        %v6335 = vld [vmem:[%s5] sm:$0xff]
        %6337 = vset.pattern.permute.xlu0 0
        %6338 = vperm.xlu0 %6337, %v6335
        %v6339 = vpop.permute.xlu0 %6338
        %v6341 = vadd.f32 %v6331, %v6339
        %v6342 = vadd.f32 %v6332, %v6339
        %v6343 = vadd.f32 %v6333, %v6339
        %v6344 = vadd.f32 %v6334, %v6339
        %v6345 = vmax.f32 %v6341, 0.0
        %v6346 = vmax.f32 %v6342, 0.0
        %v6347 = vmax.f32 %v6343, 0.0
        %v6348 = vmax.f32 %v6344, 0.0
        %v6349 = vld [vmem:[%s6] sm:$0xf]
        %v6350 = vld [vmem:[%s6 + $0x4] sm:$0xf]
        %v6351 = vld [vmem:[%s6 + $0x8] sm:$0xf]
        %v6352 = vld [vmem:[%s6 + $0xc] sm:$0xf]
        %v6353 = vpack.c.bf16 %v6345, %v6345
        %v6354 = vpack.c.bf16 %v6346, %v6346
        %v6355 = vpack.c.bf16 %v6347, %v6347
        %v6356 = vpack.c.bf16 %v6348, %v6348
        %v6357 = vld [vmem:[%s7] sm:$0xff]
        %v6358 = vld [vmem:[%s7 + $0x8] sm:$0xff]
        %v6359 = vld [vmem:[%s7 + $0x10] sm:$0xff]
        %v6360 = vld [vmem:[%s7 + $0x18] sm:$0xff]
        %6362 = vset.pattern.permute.xlu0 0
        %6363 = vperm.xlu0 %6362, %v6357
        %v6364 = vpop.permute.xlu0 %6363
        %6367 = vset.pattern.permute.xlu0 0
        %6368 = vperm.xlu0 %6367, %v6358
        %v6369 = vpop.permute.xlu0 %6368
        %6372 = vset.pattern.permute.xlu0 0
        %6373 = vperm.xlu0 %6372, %v6359
        %v6374 = vpop.permute.xlu0 %6373
        %6377 = vset.pattern.permute.xlu0 0
        %6378 = vperm.xlu0 %6377, %v6360
        %v6379 = vpop.permute.xlu0 %6378
        %v6385 = vunpack.c.l.b16 %v6349
        %v6386 = vunpack.c.l.b16 %v6350
        %v6387 = vunpack.c.l.b16 %v6351
        %v6388 = vunpack.c.l.b16 %v6352
        %v6389 = vpack.c.b16 %v6386, %v6385
        %v6390 = vpack.c.b16 %v6388, %v6387
        %v6392 = vsel %vm2802, %v6389, 0
        %v6395 = vsel %vm2802, %v6390, 0
        %v6398 = vsel %vm2806, %v6353, 0
        %v6401 = vsel %vm2806, %v6354, 0
        %v6404 = vsel %vm2806, %v6355, 0
        %v6407 = vsel %vm2806, %v6356, 0
        %6409 = vmatpush.bf16.msra.mxu0 0
        %6410 = vmatpush.bf16.msra.mxu0 0
        %6411 = vmatpush.bf16.msra.mxu0 0
        %6412 = vmatpush.bf16.msra.mxu0 0
        %6413 = vmatpush.bf16.msra.mxu0 0
        %6414 = vmatpush.bf16.msra.mxu0 0
        %6415 = vmatpush.bf16.msra.mxu0 0
        %6416 = vmatpush.bf16.msra.mxu0 %v6398
        %6417 = vmatmul.bf16.gmra.mxu0 %v6392
        %v6418 = vpop.f32.mrf.mxu0
        %v6419 = vadd.f32 %v6364, %v6418
        %v6420 = vpop.f32.mrf.mxu0
        %v6421 = vadd.f32 %v6369, %v6420
        %6422 = vmatmul.bf16.gmra.mxu0 %v6395
        %v6423 = vpop.f32.mrf.mxu0
        %v6424 = vadd.f32 %v6374, %v6423
        %v6425 = vpop.f32.mrf.mxu0
        %v6426 = vadd.f32 %v6379, %v6425
        %6427 = vdwg.mxu0
        %6428 = vmatpush.bf16.msra.mxu0 0
        %6429 = vmatpush.bf16.msra.mxu0 0
        %6430 = vmatpush.bf16.msra.mxu0 0
        %6431 = vmatpush.bf16.msra.mxu0 0
        %6432 = vmatpush.bf16.msra.mxu0 0
        %6433 = vmatpush.bf16.msra.mxu0 0
        %6434 = vmatpush.bf16.msra.mxu0 0
        %6435 = vmatpush.bf16.msra.mxu0 %v6401
        %6436 = vmatmul.bf16.gmra.mxu0 %v6392
        %v6437 = vpop.f32.mrf.mxu0
        %v6438 = vadd.f32 %v6364, %v6437
        %v6439 = vpop.f32.mrf.mxu0
        %v6440 = vadd.f32 %v6369, %v6439
        %6441 = vmatmul.bf16.gmra.mxu0 %v6395
        %v6442 = vpop.f32.mrf.mxu0
        %v6443 = vadd.f32 %v6374, %v6442
        %v6444 = vpop.f32.mrf.mxu0
        %v6445 = vadd.f32 %v6379, %v6444
        %6446 = vdwg.mxu0
        %6447 = vmatpush.bf16.msra.mxu0 0
        %6448 = vmatpush.bf16.msra.mxu0 0
        %6449 = vmatpush.bf16.msra.mxu0 0
        %6450 = vmatpush.bf16.msra.mxu0 0
        %6451 = vmatpush.bf16.msra.mxu0 0
        %6452 = vmatpush.bf16.msra.mxu0 0
        %6453 = vmatpush.bf16.msra.mxu0 0
        %6454 = vmatpush.bf16.msra.mxu0 %v6404
        %6455 = vmatmul.bf16.gmra.mxu0 %v6392
        %v6456 = vpop.f32.mrf.mxu0
        %v6457 = vadd.f32 %v6364, %v6456
        %v6458 = vpop.f32.mrf.mxu0
        %v6459 = vadd.f32 %v6369, %v6458
        %6460 = vmatmul.bf16.gmra.mxu0 %v6395
        %v6461 = vpop.f32.mrf.mxu0
        %v6462 = vadd.f32 %v6374, %v6461
        %v6463 = vpop.f32.mrf.mxu0
        %v6464 = vadd.f32 %v6379, %v6463
        %6465 = vdwg.mxu0
        %6466 = vmatpush.bf16.msra.mxu0 0
        %6467 = vmatpush.bf16.msra.mxu0 0
        %6468 = vmatpush.bf16.msra.mxu0 0
        %6469 = vmatpush.bf16.msra.mxu0 0
        %6470 = vmatpush.bf16.msra.mxu0 0
        %6471 = vmatpush.bf16.msra.mxu0 0
        %6472 = vmatpush.bf16.msra.mxu0 0
        %6473 = vmatpush.bf16.msra.mxu0 %v6407
        %6474 = vmatmul.bf16.gmra.mxu0 %v6392
        %v6475 = vpop.f32.mrf.mxu0
        %v6476 = vadd.f32 %v6364, %v6475
        %v6477 = vpop.f32.mrf.mxu0
        %v6478 = vadd.f32 %v6369, %v6477
        %6479 = vmatmul.bf16.gmra.mxu0 %v6395
        %v6480 = vpop.f32.mrf.mxu0
        %v6481 = vadd.f32 %v6374, %v6480
        %v6482 = vpop.f32.mrf.mxu0
        %v6483 = vadd.f32 %v6379, %v6482
        %6484 = vdwg.mxu0
        %v6485 = vmax.f32 %v6419, 0.0
        %v6486 = vmax.f32 %v6438, 0.0
        %v6487 = vmax.f32 %v6457, 0.0
        %v6488 = vmax.f32 %v6476, 0.0
        %v6489 = vmax.f32 %v6421, 0.0
        %v6490 = vmax.f32 %v6440, 0.0
        %v6491 = vmax.f32 %v6459, 0.0
        %v6492 = vmax.f32 %v6478, 0.0
        %v6493 = vmax.f32 %v6424, 0.0
        %v6494 = vmax.f32 %v6443, 0.0
        %v6495 = vmax.f32 %v6462, 0.0
        %v6496 = vmax.f32 %v6481, 0.0
        %v6497 = vmax.f32 %v6426, 0.0
        %v6498 = vmax.f32 %v6445, 0.0
        %v6499 = vmax.f32 %v6464, 0.0
        %v6500 = vmax.f32 %v6483, 0.0
        %vm6597 = vcmask 1046528
        %v6598 = vrot.slane %v344, 1
        %v6599 = vrot.slane %v345, 1
        %v6600 = vsel %vm6597, %v6598, %v6599
        %v6601 = vrot.slane %v346, 1
        %v6602 = vsel %vm6597, %v6599, %v6601
        %v6603 = vrot.slane %v347, 1
        %v6604 = vrot.slane %v348, 1
        %v6605 = vsel %vm6597, %v6603, %v6604
        %v6606 = vrot.slane %v349, 1
        %v6607 = vsel %vm6597, %v6604, %v6606
        %v6608 = vrot.slane %v350, 1
        %v6609 = vrot.slane %v351, 1
        %v6610 = vsel %vm6597, %v6608, %v6609
        %v6611 = vrot.slane %v352, 1
        %v6612 = vsel %vm6597, %v6609, %v6611
        %v6613 = vrot.slane %v353, 1
        %v6614 = vrot.slane %v354, 1
        %v6615 = vsel %vm6597, %v6613, %v6614
        %v6616 = vrot.slane %v355, 1
        %v6617 = vsel %vm6597, %v6614, %v6616
        %v6618 = vrot.slane %v356, 1
        %v6619 = vrot.slane %v357, 1
        %v6620 = vsel %vm6597, %v6618, %v6619
        %v6621 = vrot.slane %v358, 1
        %v6622 = vsel %vm6597, %v6619, %v6621
        %v6623 = vrot.slane %v359, 1
        %v6624 = vrot.slane %v360, 1
        %v6625 = vsel %vm6597, %v6623, %v6624
        %v6626 = vrot.slane %v361, 1
        %v6627 = vsel %vm6597, %v6624, %v6626
        %v6628 = vrot.slane %v362, 1
        %v6629 = vrot.slane %v363, 1
        %v6630 = vsel %vm6597, %v6628, %v6629
        %v6631 = vrot.slane %v364, 1
        %v6632 = vsel %vm6597, %v6629, %v6631
        %v6633 = vrot.slane %v365, 1
        %v6634 = vrot.slane %v366, 1
        %v6635 = vsel %vm6597, %v6633, %v6634
        %v6636 = vrot.slane %v367, 1
        %v6637 = vsel %vm6597, %v6634, %v6636
        %v6638 = vrot.slane %v368, 1
        %v6639 = vrot.slane %v369, 1
        %v6640 = vsel %vm6597, %v6638, %v6639
        %v6641 = vrot.slane %v370, 1
        %v6642 = vsel %vm6597, %v6639, %v6641
        %v6643 = vrot.slane %v371, 1
        %v6644 = vrot.slane %v372, 1
        %v6645 = vsel %vm6597, %v6643, %v6644
        %v6646 = vrot.slane %v373, 1
        %v6647 = vsel %vm6597, %v6644, %v6646
        %v6648 = vrot.slane %v374, 1
        %v6649 = vrot.slane %v375, 1
        %v6650 = vsel %vm6597, %v6648, %v6649
        %v6651 = vrot.slane %v376, 1
        %v6652 = vsel %vm6597, %v6649, %v6651
        %v6653 = vrot.slane %v377, 1
        %v6654 = vrot.slane %v378, 1
        %v6655 = vsel %vm6597, %v6653, %v6654
        %v6656 = vrot.slane %v379, 1
        %v6657 = vsel %vm6597, %v6654, %v6656
        %v6658 = vrot.slane %v380, 1
        %v6659 = vrot.slane %v381, 1
        %v6660 = vsel %vm6597, %v6658, %v6659
        %v6661 = vrot.slane %v382, 1
        %v6662 = vsel %vm6597, %v6659, %v6661
        %v6663 = vrot.slane %v383, 1
        %v6664 = vrot.slane %v384, 1
        %v6665 = vsel %vm6597, %v6663, %v6664
        %v6666 = vrot.slane %v385, 1
        %v6667 = vsel %vm6597, %v6664, %v6666
        %v6668 = vrot.slane %v386, 1
        %v6669 = vrot.slane %v387, 1
        %v6670 = vsel %vm6597, %v6668, %v6669
        %v6671 = vrot.slane %v388, 1
        %v6672 = vsel %vm6597, %v6669, %v6671
        %v6673 = vrot.slane %v389, 1
        %v6674 = vrot.slane %v390, 1
        %v6675 = vsel %vm6597, %v6673, %v6674
        %v6676 = vrot.slane %v391, 1
        %v6677 = vsel %vm6597, %v6674, %v6676
        %v6678 = vrot.slane %v392, 1
        %v6679 = vrot.slane %v393, 1
        %v6680 = vsel %vm6597, %v6678, %v6679
        %v6681 = vrot.slane %v394, 1
        %v6682 = vsel %vm6597, %v6679, %v6681
        %v6683 = vrot.slane %v395, 1
        %v6684 = vrot.slane %v396, 1
        %v6685 = vsel %vm6597, %v6683, %v6684
        %v6686 = vrot.slane %v397, 1
        %v6687 = vsel %vm6597, %v6684, %v6686
        %v6688 = vrot.slane %v398, 1
        %v6689 = vrot.slane %v399, 1
        %v6690 = vsel %vm6597, %v6688, %v6689
        %v6691 = vrot.slane %v400, 1
        %v6692 = vsel %vm6597, %v6689, %v6691
        %v6693 = vrot.slane %v401, 1
        %v6694 = vrot.slane %v402, 1
        %v6695 = vsel %vm6597, %v6693, %v6694
        %v6696 = vrot.slane %v403, 1
        %v6697 = vsel %vm6597, %v6694, %v6696
        %v6698 = vrot.slane %v404, 1
        %v6699 = vrot.slane %v405, 1
        %v6700 = vsel %vm6597, %v6698, %v6699
        %v6701 = vrot.slane %v406, 1
        %v6702 = vsel %vm6597, %v6699, %v6701
        %v6703 = vrot.slane %v407, 1
        %v6704 = vrot.slane %v408, 1
        %v6705 = vsel %vm6597, %v6703, %v6704
        %v6706 = vrot.slane %v409, 1
        %v6707 = vsel %vm6597, %v6704, %v6706
        %v6708 = vrot.slane %v410, 1
        %v6709 = vrot.slane %v411, 1
        %v6710 = vsel %vm6597, %v6708, %v6709
        %v6711 = vrot.slane %v412, 1
        %v6712 = vsel %vm6597, %v6709, %v6711
        %v6713 = vrot.slane %v413, 1
        %v6714 = vrot.slane %v414, 1
        %v6715 = vsel %vm6597, %v6713, %v6714
        %v6716 = vrot.slane %v415, 1
        %v6717 = vsel %vm6597, %v6714, %v6716
        %v6718 = vrot.slane %v416, 1
        %v6719 = vrot.slane %v417, 1
        %v6720 = vsel %vm6597, %v6718, %v6719
        %v6721 = vrot.slane %v418, 1
        %v6722 = vsel %vm6597, %v6719, %v6721
        %v6723 = vrot.slane %v419, 1
        %v6724 = vrot.slane %v420, 1
        %v6725 = vsel %vm6597, %v6723, %v6724
        %v6726 = vrot.slane %v421, 1
        %v6727 = vsel %vm6597, %v6724, %v6726
        %v6728 = vrot.slane %v422, 1
        %v6729 = vrot.slane %v423, 1
        %v6730 = vsel %vm6597, %v6728, %v6729
        %v6731 = vrot.slane %v424, 1
        %v6732 = vsel %vm6597, %v6729, %v6731
        %v6733 = vrot.slane %v425, 1
        %v6734 = vrot.slane %v426, 1
        %v6735 = vsel %vm6597, %v6733, %v6734
        %v6736 = vrot.slane %v427, 1
        %v6737 = vsel %vm6597, %v6734, %v6736
        %v6738 = vrot.slane %v428, 1
        %v6739 = vrot.slane %v429, 1
        %v6740 = vsel %vm6597, %v6738, %v6739
        %v6741 = vrot.slane %v430, 1
        %v6742 = vsel %vm6597, %v6739, %v6741
        %v6743 = vrot.slane %v431, 1
        %v6744 = vrot.slane %v432, 1
        %v6745 = vsel %vm6597, %v6743, %v6744
        %v6746 = vrot.slane %v433, 1
        %v6747 = vsel %vm6597, %v6744, %v6746
        %v6748 = vrot.slane %v434, 1
        %v6749 = vrot.slane %v435, 1
        %v6750 = vsel %vm6597, %v6748, %v6749
        %v6751 = vrot.slane %v436, 1
        %v6752 = vsel %vm6597, %v6749, %v6751
        %v6753 = vrot.slane %v437, 1
        %v6754 = vrot.slane %v438, 1
        %v6755 = vsel %vm6597, %v6753, %v6754
        %v6756 = vrot.slane %v439, 1
        %v6757 = vsel %vm6597, %v6754, %v6756
        %v6822 = vrot.slane %v6610, 4
        %v6823 = vsel %vm441, %v6822, %v6600
        %v6824 = vrot.slane %v6600, 4
        %v6825 = vsel %vm441, %v6610, %v6824
        %v6827 = vunpack.c.l.s4 1983009808
        %v6828 = vunpack.c.0.s8 %v6827
        %v6829 = vperm.slane %v6823, %v6828
        %v6831 = vunpack.c.l.s4 1983009808
        %v6832 = vunpack.c.0.s8 %v6831
        %v6833 = vperm.slane %v6825, %v6832
        %v6834 = vrot.slane %v6615, 4
        %v6835 = vsel %vm441, %v6834, %v6605
        %v6836 = vrot.slane %v6605, 4
        %v6837 = vsel %vm441, %v6615, %v6836
        %v6839 = vunpack.c.l.s4 1983009808
        %v6840 = vunpack.c.0.s8 %v6839
        %v6841 = vperm.slane %v6835, %v6840
        %v6843 = vunpack.c.l.s4 1983009808
        %v6844 = vunpack.c.0.s8 %v6843
        %v6845 = vperm.slane %v6837, %v6844
        %v6846 = vrot.slane %v6630, 4
        %v6847 = vsel %vm441, %v6846, %v6620
        %v6848 = vrot.slane %v6620, 4
        %v6849 = vsel %vm441, %v6630, %v6848
        %v6851 = vunpack.c.l.s4 1983009808
        %v6852 = vunpack.c.0.s8 %v6851
        %v6853 = vperm.slane %v6847, %v6852
        %v6855 = vunpack.c.l.s4 1983009808
        %v6856 = vunpack.c.0.s8 %v6855
        %v6857 = vperm.slane %v6849, %v6856
        %v6858 = vrot.slane %v6635, 4
        %v6859 = vsel %vm441, %v6858, %v6625
        %v6860 = vrot.slane %v6625, 4
        %v6861 = vsel %vm441, %v6635, %v6860
        %v6863 = vunpack.c.l.s4 1983009808
        %v6864 = vunpack.c.0.s8 %v6863
        %v6865 = vperm.slane %v6859, %v6864
        %v6867 = vunpack.c.l.s4 1983009808
        %v6868 = vunpack.c.0.s8 %v6867
        %v6869 = vperm.slane %v6861, %v6868
        %v6870 = vrot.slane %v6841, 4
        %v6871 = vsel %vm441, %v6870, %v6829
        %v6872 = vrot.slane %v6829, 4
        %v6873 = vsel %vm441, %v6841, %v6872
        %v6875 = vunpack.c.l.s4 1934713408
        %v6876 = vunpack.c.0.s8 %v6875
        %v6877 = vperm.slane %v6871, %v6876
        %v6879 = vunpack.c.l.s4 1934713408
        %v6880 = vunpack.c.0.s8 %v6879
        %v6881 = vperm.slane %v6873, %v6880
        %v6882 = vrot.slane %v6845, 4
        %v6883 = vsel %vm441, %v6882, %v6833
        %v6884 = vrot.slane %v6833, 4
        %v6885 = vsel %vm441, %v6845, %v6884
        %v6887 = vunpack.c.l.s4 1934713408
        %v6888 = vunpack.c.0.s8 %v6887
        %v6889 = vperm.slane %v6883, %v6888
        %v6891 = vunpack.c.l.s4 1934713408
        %v6892 = vunpack.c.0.s8 %v6891
        %v6893 = vperm.slane %v6885, %v6892
        %v6894 = vrot.slane %v6865, 4
        %v6895 = vsel %vm441, %v6894, %v6853
        %v6896 = vrot.slane %v6853, 4
        %v6897 = vsel %vm441, %v6865, %v6896
        %v6899 = vunpack.c.l.s4 1934713408
        %v6900 = vunpack.c.0.s8 %v6899
        %v6901 = vperm.slane %v6895, %v6900
        %v6903 = vunpack.c.l.s4 1934713408
        %v6904 = vunpack.c.0.s8 %v6903
        %v6905 = vperm.slane %v6897, %v6904
        %v6906 = vrot.slane %v6869, 4
        %v6907 = vsel %vm441, %v6906, %v6857
        %v6908 = vrot.slane %v6857, 4
        %v6909 = vsel %vm441, %v6869, %v6908
        %v6911 = vunpack.c.l.s4 1934713408
        %v6912 = vunpack.c.0.s8 %v6911
        %v6913 = vperm.slane %v6907, %v6912
        %v6915 = vunpack.c.l.s4 1934713408
        %v6916 = vunpack.c.0.s8 %v6915
        %v6917 = vperm.slane %v6909, %v6916
        %v6918 = vrot.slane %v6901, 4
        %v6919 = vsel %vm441, %v6918, %v6877
        %v6920 = vrot.slane %v6877, 4
        %v6921 = vsel %vm441, %v6901, %v6920
        %v6922 = vrot.slane %v6905, 4
        %v6923 = vsel %vm441, %v6922, %v6881
        %v6924 = vrot.slane %v6881, 4
        %v6925 = vsel %vm441, %v6905, %v6924
        %v6926 = vrot.slane %v6913, 4
        %v6927 = vsel %vm441, %v6926, %v6889
        %v6928 = vrot.slane %v6889, 4
        %v6929 = vsel %vm441, %v6913, %v6928
        %v6930 = vrot.slane %v6917, 4
        %v6931 = vsel %vm441, %v6930, %v6893
        %v6932 = vrot.slane %v6893, 4
        %v6933 = vsel %vm441, %v6917, %v6932
        %v6934 = vrot.slane %v6650, 4
        %v6935 = vsel %vm441, %v6934, %v6640
        %v6936 = vrot.slane %v6640, 4
        %v6937 = vsel %vm441, %v6650, %v6936
        %v6939 = vunpack.c.l.s4 1983009808
        %v6940 = vunpack.c.0.s8 %v6939
        %v6941 = vperm.slane %v6935, %v6940
        %v6943 = vunpack.c.l.s4 1983009808
        %v6944 = vunpack.c.0.s8 %v6943
        %v6945 = vperm.slane %v6937, %v6944
        %v6946 = vrot.slane %v6655, 4
        %v6947 = vsel %vm441, %v6946, %v6645
        %v6948 = vrot.slane %v6645, 4
        %v6949 = vsel %vm441, %v6655, %v6948
        %v6951 = vunpack.c.l.s4 1983009808
        %v6952 = vunpack.c.0.s8 %v6951
        %v6953 = vperm.slane %v6947, %v6952
        %v6955 = vunpack.c.l.s4 1983009808
        %v6956 = vunpack.c.0.s8 %v6955
        %v6957 = vperm.slane %v6949, %v6956
        %v6958 = vrot.slane %v6670, 4
        %v6959 = vsel %vm441, %v6958, %v6660
        %v6960 = vrot.slane %v6660, 4
        %v6961 = vsel %vm441, %v6670, %v6960
        %v6963 = vunpack.c.l.s4 1983009808
        %v6964 = vunpack.c.0.s8 %v6963
        %v6965 = vperm.slane %v6959, %v6964
        %v6967 = vunpack.c.l.s4 1983009808
        %v6968 = vunpack.c.0.s8 %v6967
        %v6969 = vperm.slane %v6961, %v6968
        %v6970 = vrot.slane %v6675, 4
        %v6971 = vsel %vm441, %v6970, %v6665
        %v6972 = vrot.slane %v6665, 4
        %v6973 = vsel %vm441, %v6675, %v6972
        %v6975 = vunpack.c.l.s4 1983009808
        %v6976 = vunpack.c.0.s8 %v6975
        %v6977 = vperm.slane %v6971, %v6976
        %v6979 = vunpack.c.l.s4 1983009808
        %v6980 = vunpack.c.0.s8 %v6979
        %v6981 = vperm.slane %v6973, %v6980
        %v6982 = vrot.slane %v6953, 4
        %v6983 = vsel %vm441, %v6982, %v6941
        %v6984 = vrot.slane %v6941, 4
        %v6985 = vsel %vm441, %v6953, %v6984
        %v6987 = vunpack.c.l.s4 1934713408
        %v6988 = vunpack.c.0.s8 %v6987
        %v6989 = vperm.slane %v6983, %v6988
        %v6991 = vunpack.c.l.s4 1934713408
        %v6992 = vunpack.c.0.s8 %v6991
        %v6993 = vperm.slane %v6985, %v6992
        %v6994 = vrot.slane %v6957, 4
        %v6995 = vsel %vm441, %v6994, %v6945
        %v6996 = vrot.slane %v6945, 4
        %v6997 = vsel %vm441, %v6957, %v6996
        %v6999 = vunpack.c.l.s4 1934713408
        %v7000 = vunpack.c.0.s8 %v6999
        %v7001 = vperm.slane %v6995, %v7000
        %v7003 = vunpack.c.l.s4 1934713408
        %v7004 = vunpack.c.0.s8 %v7003
        %v7005 = vperm.slane %v6997, %v7004
        %v7006 = vrot.slane %v6977, 4
        %v7007 = vsel %vm441, %v7006, %v6965
        %v7008 = vrot.slane %v6965, 4
        %v7009 = vsel %vm441, %v6977, %v7008
        %v7011 = vunpack.c.l.s4 1934713408
        %v7012 = vunpack.c.0.s8 %v7011
        %v7013 = vperm.slane %v7007, %v7012
        %v7015 = vunpack.c.l.s4 1934713408
        %v7016 = vunpack.c.0.s8 %v7015
        %v7017 = vperm.slane %v7009, %v7016
        %v7018 = vrot.slane %v6981, 4
        %v7019 = vsel %vm441, %v7018, %v6969
        %v7020 = vrot.slane %v6969, 4
        %v7021 = vsel %vm441, %v6981, %v7020
        %v7023 = vunpack.c.l.s4 1934713408
        %v7024 = vunpack.c.0.s8 %v7023
        %v7025 = vperm.slane %v7019, %v7024
        %v7027 = vunpack.c.l.s4 1934713408
        %v7028 = vunpack.c.0.s8 %v7027
        %v7029 = vperm.slane %v7021, %v7028
        %v7030 = vrot.slane %v7013, 4
        %v7031 = vsel %vm441, %v7030, %v6989
        %v7032 = vrot.slane %v6989, 4
        %v7033 = vsel %vm441, %v7013, %v7032
        %v7034 = vrot.slane %v7017, 4
        %v7035 = vsel %vm441, %v7034, %v6993
        %v7036 = vrot.slane %v6993, 4
        %v7037 = vsel %vm441, %v7017, %v7036
        %v7038 = vrot.slane %v7025, 4
        %v7039 = vsel %vm441, %v7038, %v7001
        %v7040 = vrot.slane %v7001, 4
        %v7041 = vsel %vm441, %v7025, %v7040
        %v7042 = vrot.slane %v7029, 4
        %v7043 = vsel %vm441, %v7042, %v7005
        %v7044 = vrot.slane %v7005, 4
        %v7045 = vsel %vm441, %v7029, %v7044
        %v7046 = vrot.slane %v6690, 4
        %v7047 = vsel %vm441, %v7046, %v6680
        %v7048 = vrot.slane %v6680, 4
        %v7049 = vsel %vm441, %v6690, %v7048
        %v7051 = vunpack.c.l.s4 1983009808
        %v7052 = vunpack.c.0.s8 %v7051
        %v7053 = vperm.slane %v7047, %v7052
        %v7055 = vunpack.c.l.s4 1983009808
        %v7056 = vunpack.c.0.s8 %v7055
        %v7057 = vperm.slane %v7049, %v7056
        %v7058 = vrot.slane %v6695, 4
        %v7059 = vsel %vm441, %v7058, %v6685
        %v7060 = vrot.slane %v6685, 4
        %v7061 = vsel %vm441, %v6695, %v7060
        %v7063 = vunpack.c.l.s4 1983009808
        %v7064 = vunpack.c.0.s8 %v7063
        %v7065 = vperm.slane %v7059, %v7064
        %v7067 = vunpack.c.l.s4 1983009808
        %v7068 = vunpack.c.0.s8 %v7067
        %v7069 = vperm.slane %v7061, %v7068
        %v7070 = vrot.slane %v6710, 4
        %v7071 = vsel %vm441, %v7070, %v6700
        %v7072 = vrot.slane %v6700, 4
        %v7073 = vsel %vm441, %v6710, %v7072
        %v7075 = vunpack.c.l.s4 1983009808
        %v7076 = vunpack.c.0.s8 %v7075
        %v7077 = vperm.slane %v7071, %v7076
        %v7079 = vunpack.c.l.s4 1983009808
        %v7080 = vunpack.c.0.s8 %v7079
        %v7081 = vperm.slane %v7073, %v7080
        %v7082 = vrot.slane %v6715, 4
        %v7083 = vsel %vm441, %v7082, %v6705
        %v7084 = vrot.slane %v6705, 4
        %v7085 = vsel %vm441, %v6715, %v7084
        %v7087 = vunpack.c.l.s4 1983009808
        %v7088 = vunpack.c.0.s8 %v7087
        %v7089 = vperm.slane %v7083, %v7088
        %v7091 = vunpack.c.l.s4 1983009808
        %v7092 = vunpack.c.0.s8 %v7091
        %v7093 = vperm.slane %v7085, %v7092
        %v7094 = vrot.slane %v7065, 4
        %v7095 = vsel %vm441, %v7094, %v7053
        %v7096 = vrot.slane %v7053, 4
        %v7097 = vsel %vm441, %v7065, %v7096
        %v7099 = vunpack.c.l.s4 1934713408
        %v7100 = vunpack.c.0.s8 %v7099
        %v7101 = vperm.slane %v7095, %v7100
        %v7103 = vunpack.c.l.s4 1934713408
        %v7104 = vunpack.c.0.s8 %v7103
        %v7105 = vperm.slane %v7097, %v7104
        %v7106 = vrot.slane %v7069, 4
        %v7107 = vsel %vm441, %v7106, %v7057
        %v7108 = vrot.slane %v7057, 4
        %v7109 = vsel %vm441, %v7069, %v7108
        %v7111 = vunpack.c.l.s4 1934713408
        %v7112 = vunpack.c.0.s8 %v7111
        %v7113 = vperm.slane %v7107, %v7112
        %v7115 = vunpack.c.l.s4 1934713408
        %v7116 = vunpack.c.0.s8 %v7115
        %v7117 = vperm.slane %v7109, %v7116
        %v7118 = vrot.slane %v7089, 4
        %v7119 = vsel %vm441, %v7118, %v7077
        %v7120 = vrot.slane %v7077, 4
        %v7121 = vsel %vm441, %v7089, %v7120
        %v7123 = vunpack.c.l.s4 1934713408
        %v7124 = vunpack.c.0.s8 %v7123
        %v7125 = vperm.slane %v7119, %v7124
        %v7127 = vunpack.c.l.s4 1934713408
        %v7128 = vunpack.c.0.s8 %v7127
        %v7129 = vperm.slane %v7121, %v7128
        %v7130 = vrot.slane %v7093, 4
        %v7131 = vsel %vm441, %v7130, %v7081
        %v7132 = vrot.slane %v7081, 4
        %v7133 = vsel %vm441, %v7093, %v7132
        %v7135 = vunpack.c.l.s4 1934713408
        %v7136 = vunpack.c.0.s8 %v7135
        %v7137 = vperm.slane %v7131, %v7136
        %v7139 = vunpack.c.l.s4 1934713408
        %v7140 = vunpack.c.0.s8 %v7139
        %v7141 = vperm.slane %v7133, %v7140
        %v7142 = vrot.slane %v7125, 4
        %v7143 = vsel %vm441, %v7142, %v7101
        %v7144 = vrot.slane %v7101, 4
        %v7145 = vsel %vm441, %v7125, %v7144
        %v7146 = vrot.slane %v7129, 4
        %v7147 = vsel %vm441, %v7146, %v7105
        %v7148 = vrot.slane %v7105, 4
        %v7149 = vsel %vm441, %v7129, %v7148
        %v7150 = vrot.slane %v7137, 4
        %v7151 = vsel %vm441, %v7150, %v7113
        %v7152 = vrot.slane %v7113, 4
        %v7153 = vsel %vm441, %v7137, %v7152
        %v7154 = vrot.slane %v7141, 4
        %v7155 = vsel %vm441, %v7154, %v7117
        %v7156 = vrot.slane %v7117, 4
        %v7157 = vsel %vm441, %v7141, %v7156
        %v7158 = vrot.slane %v6730, 4
        %v7159 = vsel %vm441, %v7158, %v6720
        %v7160 = vrot.slane %v6720, 4
        %v7161 = vsel %vm441, %v6730, %v7160
        %v7163 = vunpack.c.l.s4 1983009808
        %v7164 = vunpack.c.0.s8 %v7163
        %v7165 = vperm.slane %v7159, %v7164
        %v7167 = vunpack.c.l.s4 1983009808
        %v7168 = vunpack.c.0.s8 %v7167
        %v7169 = vperm.slane %v7161, %v7168
        %v7170 = vrot.slane %v6735, 4
        %v7171 = vsel %vm441, %v7170, %v6725
        %v7172 = vrot.slane %v6725, 4
        %v7173 = vsel %vm441, %v6735, %v7172
        %v7175 = vunpack.c.l.s4 1983009808
        %v7176 = vunpack.c.0.s8 %v7175
        %v7177 = vperm.slane %v7171, %v7176
        %v7179 = vunpack.c.l.s4 1983009808
        %v7180 = vunpack.c.0.s8 %v7179
        %v7181 = vperm.slane %v7173, %v7180
        %v7182 = vrot.slane %v6750, 4
        %v7183 = vsel %vm441, %v7182, %v6740
        %v7184 = vrot.slane %v6740, 4
        %v7185 = vsel %vm441, %v6750, %v7184
        %v7187 = vunpack.c.l.s4 1983009808
        %v7188 = vunpack.c.0.s8 %v7187
        %v7189 = vperm.slane %v7183, %v7188
        %v7191 = vunpack.c.l.s4 1983009808
        %v7192 = vunpack.c.0.s8 %v7191
        %v7193 = vperm.slane %v7185, %v7192
        %v7194 = vrot.slane %v6755, 4
        %v7195 = vsel %vm441, %v7194, %v6745
        %v7196 = vrot.slane %v6745, 4
        %v7197 = vsel %vm441, %v6755, %v7196
        %v7199 = vunpack.c.l.s4 1983009808
        %v7200 = vunpack.c.0.s8 %v7199
        %v7201 = vperm.slane %v7195, %v7200
        %v7203 = vunpack.c.l.s4 1983009808
        %v7204 = vunpack.c.0.s8 %v7203
        %v7205 = vperm.slane %v7197, %v7204
        %v7206 = vrot.slane %v7177, 4
        %v7207 = vsel %vm441, %v7206, %v7165
        %v7208 = vrot.slane %v7165, 4
        %v7209 = vsel %vm441, %v7177, %v7208
        %v7211 = vunpack.c.l.s4 1934713408
        %v7212 = vunpack.c.0.s8 %v7211
        %v7213 = vperm.slane %v7207, %v7212
        %v7215 = vunpack.c.l.s4 1934713408
        %v7216 = vunpack.c.0.s8 %v7215
        %v7217 = vperm.slane %v7209, %v7216
        %v7218 = vrot.slane %v7181, 4
        %v7219 = vsel %vm441, %v7218, %v7169
        %v7220 = vrot.slane %v7169, 4
        %v7221 = vsel %vm441, %v7181, %v7220
        %v7223 = vunpack.c.l.s4 1934713408
        %v7224 = vunpack.c.0.s8 %v7223
        %v7225 = vperm.slane %v7219, %v7224
        %v7227 = vunpack.c.l.s4 1934713408
        %v7228 = vunpack.c.0.s8 %v7227
        %v7229 = vperm.slane %v7221, %v7228
        %v7230 = vrot.slane %v7201, 4
        %v7231 = vsel %vm441, %v7230, %v7189
        %v7232 = vrot.slane %v7189, 4
        %v7233 = vsel %vm441, %v7201, %v7232
        %v7235 = vunpack.c.l.s4 1934713408
        %v7236 = vunpack.c.0.s8 %v7235
        %v7237 = vperm.slane %v7231, %v7236
        %v7239 = vunpack.c.l.s4 1934713408
        %v7240 = vunpack.c.0.s8 %v7239
        %v7241 = vperm.slane %v7233, %v7240
        %v7242 = vrot.slane %v7205, 4
        %v7243 = vsel %vm441, %v7242, %v7193
        %v7244 = vrot.slane %v7193, 4
        %v7245 = vsel %vm441, %v7205, %v7244
        %v7247 = vunpack.c.l.s4 1934713408
        %v7248 = vunpack.c.0.s8 %v7247
        %v7249 = vperm.slane %v7243, %v7248
        %v7251 = vunpack.c.l.s4 1934713408
        %v7252 = vunpack.c.0.s8 %v7251
        %v7253 = vperm.slane %v7245, %v7252
        %v7254 = vrot.slane %v7237, 4
        %v7255 = vsel %vm441, %v7254, %v7213
        %v7256 = vrot.slane %v7213, 4
        %v7257 = vsel %vm441, %v7237, %v7256
        %v7258 = vrot.slane %v7241, 4
        %v7259 = vsel %vm441, %v7258, %v7217
        %v7260 = vrot.slane %v7217, 4
        %v7261 = vsel %vm441, %v7241, %v7260
        %v7262 = vrot.slane %v7249, 4
        %v7263 = vsel %vm441, %v7262, %v7225
        %v7264 = vrot.slane %v7225, 4
        %v7265 = vsel %vm441, %v7249, %v7264
        %v7266 = vrot.slane %v7253, 4
        %v7267 = vsel %vm441, %v7266, %v7229
        %v7268 = vrot.slane %v7229, 4
        %v7269 = vsel %vm441, %v7253, %v7268
        %v7270 = vrot.slane %v6612, 4
        %v7271 = vsel %vm441, %v7270, %v6602
        %v7272 = vrot.slane %v6602, 4
        %v7273 = vsel %vm441, %v6612, %v7272
        %v7275 = vunpack.c.l.s4 1983009808
        %v7276 = vunpack.c.0.s8 %v7275
        %v7277 = vperm.slane %v7271, %v7276
        %v7279 = vunpack.c.l.s4 1983009808
        %v7280 = vunpack.c.0.s8 %v7279
        %v7281 = vperm.slane %v7273, %v7280
        %v7282 = vrot.slane %v6617, 4
        %v7283 = vsel %vm441, %v7282, %v6607
        %v7284 = vrot.slane %v6607, 4
        %v7285 = vsel %vm441, %v6617, %v7284
        %v7287 = vunpack.c.l.s4 1983009808
        %v7288 = vunpack.c.0.s8 %v7287
        %v7289 = vperm.slane %v7283, %v7288
        %v7291 = vunpack.c.l.s4 1983009808
        %v7292 = vunpack.c.0.s8 %v7291
        %v7293 = vperm.slane %v7285, %v7292
        %v7294 = vrot.slane %v6632, 4
        %v7295 = vsel %vm441, %v7294, %v6622
        %v7296 = vrot.slane %v6622, 4
        %v7297 = vsel %vm441, %v6632, %v7296
        %v7299 = vunpack.c.l.s4 1983009808
        %v7300 = vunpack.c.0.s8 %v7299
        %v7301 = vperm.slane %v7295, %v7300
        %v7303 = vunpack.c.l.s4 1983009808
        %v7304 = vunpack.c.0.s8 %v7303
        %v7305 = vperm.slane %v7297, %v7304
        %v7306 = vrot.slane %v6637, 4
        %v7307 = vsel %vm441, %v7306, %v6627
        %v7308 = vrot.slane %v6627, 4
        %v7309 = vsel %vm441, %v6637, %v7308
        %v7311 = vunpack.c.l.s4 1983009808
        %v7312 = vunpack.c.0.s8 %v7311
        %v7313 = vperm.slane %v7307, %v7312
        %v7315 = vunpack.c.l.s4 1983009808
        %v7316 = vunpack.c.0.s8 %v7315
        %v7317 = vperm.slane %v7309, %v7316
        %v7318 = vrot.slane %v7289, 4
        %v7319 = vsel %vm441, %v7318, %v7277
        %v7320 = vrot.slane %v7277, 4
        %v7321 = vsel %vm441, %v7289, %v7320
        %v7323 = vunpack.c.l.s4 1934713408
        %v7324 = vunpack.c.0.s8 %v7323
        %v7325 = vperm.slane %v7319, %v7324
        %v7327 = vunpack.c.l.s4 1934713408
        %v7328 = vunpack.c.0.s8 %v7327
        %v7329 = vperm.slane %v7321, %v7328
        %v7330 = vrot.slane %v7293, 4
        %v7331 = vsel %vm441, %v7330, %v7281
        %v7332 = vrot.slane %v7281, 4
        %v7333 = vsel %vm441, %v7293, %v7332
        %v7335 = vunpack.c.l.s4 1934713408
        %v7336 = vunpack.c.0.s8 %v7335
        %v7337 = vperm.slane %v7331, %v7336
        %v7339 = vunpack.c.l.s4 1934713408
        %v7340 = vunpack.c.0.s8 %v7339
        %v7341 = vperm.slane %v7333, %v7340
        %v7342 = vrot.slane %v7313, 4
        %v7343 = vsel %vm441, %v7342, %v7301
        %v7344 = vrot.slane %v7301, 4
        %v7345 = vsel %vm441, %v7313, %v7344
        %v7347 = vunpack.c.l.s4 1934713408
        %v7348 = vunpack.c.0.s8 %v7347
        %v7349 = vperm.slane %v7343, %v7348
        %v7351 = vunpack.c.l.s4 1934713408
        %v7352 = vunpack.c.0.s8 %v7351
        %v7353 = vperm.slane %v7345, %v7352
        %v7354 = vrot.slane %v7317, 4
        %v7355 = vsel %vm441, %v7354, %v7305
        %v7356 = vrot.slane %v7305, 4
        %v7357 = vsel %vm441, %v7317, %v7356
        %v7359 = vunpack.c.l.s4 1934713408
        %v7360 = vunpack.c.0.s8 %v7359
        %v7361 = vperm.slane %v7355, %v7360
        %v7363 = vunpack.c.l.s4 1934713408
        %v7364 = vunpack.c.0.s8 %v7363
        %v7365 = vperm.slane %v7357, %v7364
        %v7366 = vrot.slane %v7349, 4
        %v7367 = vsel %vm441, %v7366, %v7325
        %v7368 = vrot.slane %v7325, 4
        %v7369 = vsel %vm441, %v7349, %v7368
        %v7370 = vrot.slane %v7353, 4
        %v7371 = vsel %vm441, %v7370, %v7329
        %v7372 = vrot.slane %v7329, 4
        %v7373 = vsel %vm441, %v7353, %v7372
        %v7374 = vrot.slane %v7361, 4
        %v7375 = vsel %vm441, %v7374, %v7337
        %v7376 = vrot.slane %v7337, 4
        %v7377 = vsel %vm441, %v7361, %v7376
        %v7378 = vrot.slane %v7365, 4
        %v7379 = vsel %vm441, %v7378, %v7341
        %v7380 = vrot.slane %v7341, 4
        %v7381 = vsel %vm441, %v7365, %v7380
        %v7382 = vrot.slane %v6652, 4
        %v7383 = vsel %vm441, %v7382, %v6642
        %v7384 = vrot.slane %v6642, 4
        %v7385 = vsel %vm441, %v6652, %v7384
        %v7387 = vunpack.c.l.s4 1983009808
        %v7388 = vunpack.c.0.s8 %v7387
        %v7389 = vperm.slane %v7383, %v7388
        %v7391 = vunpack.c.l.s4 1983009808
        %v7392 = vunpack.c.0.s8 %v7391
        %v7393 = vperm.slane %v7385, %v7392
        %v7394 = vrot.slane %v6657, 4
        %v7395 = vsel %vm441, %v7394, %v6647
        %v7396 = vrot.slane %v6647, 4
        %v7397 = vsel %vm441, %v6657, %v7396
        %v7399 = vunpack.c.l.s4 1983009808
        %v7400 = vunpack.c.0.s8 %v7399
        %v7401 = vperm.slane %v7395, %v7400
        %v7403 = vunpack.c.l.s4 1983009808
        %v7404 = vunpack.c.0.s8 %v7403
        %v7405 = vperm.slane %v7397, %v7404
        %v7406 = vrot.slane %v6672, 4
        %v7407 = vsel %vm441, %v7406, %v6662
        %v7408 = vrot.slane %v6662, 4
        %v7409 = vsel %vm441, %v6672, %v7408
        %v7411 = vunpack.c.l.s4 1983009808
        %v7412 = vunpack.c.0.s8 %v7411
        %v7413 = vperm.slane %v7407, %v7412
        %v7415 = vunpack.c.l.s4 1983009808
        %v7416 = vunpack.c.0.s8 %v7415
        %v7417 = vperm.slane %v7409, %v7416
        %v7418 = vrot.slane %v6677, 4
        %v7419 = vsel %vm441, %v7418, %v6667
        %v7420 = vrot.slane %v6667, 4
        %v7421 = vsel %vm441, %v6677, %v7420
        %v7423 = vunpack.c.l.s4 1983009808
        %v7424 = vunpack.c.0.s8 %v7423
        %v7425 = vperm.slane %v7419, %v7424
        %v7427 = vunpack.c.l.s4 1983009808
        %v7428 = vunpack.c.0.s8 %v7427
        %v7429 = vperm.slane %v7421, %v7428
        %v7430 = vrot.slane %v7401, 4
        %v7431 = vsel %vm441, %v7430, %v7389
        %v7432 = vrot.slane %v7389, 4
        %v7433 = vsel %vm441, %v7401, %v7432
        %v7435 = vunpack.c.l.s4 1934713408
        %v7436 = vunpack.c.0.s8 %v7435
        %v7437 = vperm.slane %v7431, %v7436
        %v7439 = vunpack.c.l.s4 1934713408
        %v7440 = vunpack.c.0.s8 %v7439
        %v7441 = vperm.slane %v7433, %v7440
        %v7442 = vrot.slane %v7405, 4
        %v7443 = vsel %vm441, %v7442, %v7393
        %v7444 = vrot.slane %v7393, 4
        %v7445 = vsel %vm441, %v7405, %v7444
        %v7447 = vunpack.c.l.s4 1934713408
        %v7448 = vunpack.c.0.s8 %v7447
        %v7449 = vperm.slane %v7443, %v7448
        %v7451 = vunpack.c.l.s4 1934713408
        %v7452 = vunpack.c.0.s8 %v7451
        %v7453 = vperm.slane %v7445, %v7452
        %v7454 = vrot.slane %v7425, 4
        %v7455 = vsel %vm441, %v7454, %v7413
        %v7456 = vrot.slane %v7413, 4
        %v7457 = vsel %vm441, %v7425, %v7456
        %v7459 = vunpack.c.l.s4 1934713408
        %v7460 = vunpack.c.0.s8 %v7459
        %v7461 = vperm.slane %v7455, %v7460
        %v7463 = vunpack.c.l.s4 1934713408
        %v7464 = vunpack.c.0.s8 %v7463
        %v7465 = vperm.slane %v7457, %v7464
        %v7466 = vrot.slane %v7429, 4
        %v7467 = vsel %vm441, %v7466, %v7417
        %v7468 = vrot.slane %v7417, 4
        %v7469 = vsel %vm441, %v7429, %v7468
        %v7471 = vunpack.c.l.s4 1934713408
        %v7472 = vunpack.c.0.s8 %v7471
        %v7473 = vperm.slane %v7467, %v7472
        %v7475 = vunpack.c.l.s4 1934713408
        %v7476 = vunpack.c.0.s8 %v7475
        %v7477 = vperm.slane %v7469, %v7476
        %v7478 = vrot.slane %v7461, 4
        %v7479 = vsel %vm441, %v7478, %v7437
        %v7480 = vrot.slane %v7437, 4
        %v7481 = vsel %vm441, %v7461, %v7480
        %v7482 = vrot.slane %v7465, 4
        %v7483 = vsel %vm441, %v7482, %v7441
        %v7484 = vrot.slane %v7441, 4
        %v7485 = vsel %vm441, %v7465, %v7484
        %v7486 = vrot.slane %v7473, 4
        %v7487 = vsel %vm441, %v7486, %v7449
        %v7488 = vrot.slane %v7449, 4
        %v7489 = vsel %vm441, %v7473, %v7488
        %v7490 = vrot.slane %v7477, 4
        %v7491 = vsel %vm441, %v7490, %v7453
        %v7492 = vrot.slane %v7453, 4
        %v7493 = vsel %vm441, %v7477, %v7492
        %v7494 = vrot.slane %v6692, 4
        %v7495 = vsel %vm441, %v7494, %v6682
        %v7496 = vrot.slane %v6682, 4
        %v7497 = vsel %vm441, %v6692, %v7496
        %v7499 = vunpack.c.l.s4 1983009808
        %v7500 = vunpack.c.0.s8 %v7499
        %v7501 = vperm.slane %v7495, %v7500
        %v7503 = vunpack.c.l.s4 1983009808
        %v7504 = vunpack.c.0.s8 %v7503
        %v7505 = vperm.slane %v7497, %v7504
        %v7506 = vrot.slane %v6697, 4
        %v7507 = vsel %vm441, %v7506, %v6687
        %v7508 = vrot.slane %v6687, 4
        %v7509 = vsel %vm441, %v6697, %v7508
        %v7511 = vunpack.c.l.s4 1983009808
        %v7512 = vunpack.c.0.s8 %v7511
        %v7513 = vperm.slane %v7507, %v7512
        %v7515 = vunpack.c.l.s4 1983009808
        %v7516 = vunpack.c.0.s8 %v7515
        %v7517 = vperm.slane %v7509, %v7516
        %v7518 = vrot.slane %v6712, 4
        %v7519 = vsel %vm441, %v7518, %v6702
        %v7520 = vrot.slane %v6702, 4
        %v7521 = vsel %vm441, %v6712, %v7520
        %v7523 = vunpack.c.l.s4 1983009808
        %v7524 = vunpack.c.0.s8 %v7523
        %v7525 = vperm.slane %v7519, %v7524
        %v7527 = vunpack.c.l.s4 1983009808
        %v7528 = vunpack.c.0.s8 %v7527
        %v7529 = vperm.slane %v7521, %v7528
        %v7530 = vrot.slane %v6717, 4
        %v7531 = vsel %vm441, %v7530, %v6707
        %v7532 = vrot.slane %v6707, 4
        %v7533 = vsel %vm441, %v6717, %v7532
        %v7535 = vunpack.c.l.s4 1983009808
        %v7536 = vunpack.c.0.s8 %v7535
        %v7537 = vperm.slane %v7531, %v7536
        %v7539 = vunpack.c.l.s4 1983009808
        %v7540 = vunpack.c.0.s8 %v7539
        %v7541 = vperm.slane %v7533, %v7540
        %v7542 = vrot.slane %v7513, 4
        %v7543 = vsel %vm441, %v7542, %v7501
        %v7544 = vrot.slane %v7501, 4
        %v7545 = vsel %vm441, %v7513, %v7544
        %v7547 = vunpack.c.l.s4 1934713408
        %v7548 = vunpack.c.0.s8 %v7547
        %v7549 = vperm.slane %v7543, %v7548
        %v7551 = vunpack.c.l.s4 1934713408
        %v7552 = vunpack.c.0.s8 %v7551
        %v7553 = vperm.slane %v7545, %v7552
        %v7554 = vrot.slane %v7517, 4
        %v7555 = vsel %vm441, %v7554, %v7505
        %v7556 = vrot.slane %v7505, 4
        %v7557 = vsel %vm441, %v7517, %v7556
        %v7559 = vunpack.c.l.s4 1934713408
        %v7560 = vunpack.c.0.s8 %v7559
        %v7561 = vperm.slane %v7555, %v7560
        %v7563 = vunpack.c.l.s4 1934713408
        %v7564 = vunpack.c.0.s8 %v7563
        %v7565 = vperm.slane %v7557, %v7564
        %v7566 = vrot.slane %v7537, 4
        %v7567 = vsel %vm441, %v7566, %v7525
        %v7568 = vrot.slane %v7525, 4
        %v7569 = vsel %vm441, %v7537, %v7568
        %v7571 = vunpack.c.l.s4 1934713408
        %v7572 = vunpack.c.0.s8 %v7571
        %v7573 = vperm.slane %v7567, %v7572
        %v7575 = vunpack.c.l.s4 1934713408
        %v7576 = vunpack.c.0.s8 %v7575
        %v7577 = vperm.slane %v7569, %v7576
        %v7578 = vrot.slane %v7541, 4
        %v7579 = vsel %vm441, %v7578, %v7529
        %v7580 = vrot.slane %v7529, 4
        %v7581 = vsel %vm441, %v7541, %v7580
        %v7583 = vunpack.c.l.s4 1934713408
        %v7584 = vunpack.c.0.s8 %v7583
        %v7585 = vperm.slane %v7579, %v7584
        %v7587 = vunpack.c.l.s4 1934713408
        %v7588 = vunpack.c.0.s8 %v7587
        %v7589 = vperm.slane %v7581, %v7588
        %v7590 = vrot.slane %v7573, 4
        %v7591 = vsel %vm441, %v7590, %v7549
        %v7592 = vrot.slane %v7549, 4
        %v7593 = vsel %vm441, %v7573, %v7592
        %v7594 = vrot.slane %v7577, 4
        %v7595 = vsel %vm441, %v7594, %v7553
        %v7596 = vrot.slane %v7553, 4
        %v7597 = vsel %vm441, %v7577, %v7596
        %v7598 = vrot.slane %v7585, 4
        %v7599 = vsel %vm441, %v7598, %v7561
        %v7600 = vrot.slane %v7561, 4
        %v7601 = vsel %vm441, %v7585, %v7600
        %v7602 = vrot.slane %v7589, 4
        %v7603 = vsel %vm441, %v7602, %v7565
        %v7604 = vrot.slane %v7565, 4
        %v7605 = vsel %vm441, %v7589, %v7604
        %v7606 = vrot.slane %v6732, 4
        %v7607 = vsel %vm441, %v7606, %v6722
        %v7608 = vrot.slane %v6722, 4
        %v7609 = vsel %vm441, %v6732, %v7608
        %v7611 = vunpack.c.l.s4 1983009808
        %v7612 = vunpack.c.0.s8 %v7611
        %v7613 = vperm.slane %v7607, %v7612
        %v7615 = vunpack.c.l.s4 1983009808
        %v7616 = vunpack.c.0.s8 %v7615
        %v7617 = vperm.slane %v7609, %v7616
        %v7618 = vrot.slane %v6737, 4
        %v7619 = vsel %vm441, %v7618, %v6727
        %v7620 = vrot.slane %v6727, 4
        %v7621 = vsel %vm441, %v6737, %v7620
        %v7623 = vunpack.c.l.s4 1983009808
        %v7624 = vunpack.c.0.s8 %v7623
        %v7625 = vperm.slane %v7619, %v7624
        %v7627 = vunpack.c.l.s4 1983009808
        %v7628 = vunpack.c.0.s8 %v7627
        %v7629 = vperm.slane %v7621, %v7628
        %v7630 = vrot.slane %v6752, 4
        %v7631 = vsel %vm441, %v7630, %v6742
        %v7632 = vrot.slane %v6742, 4
        %v7633 = vsel %vm441, %v6752, %v7632
        %v7635 = vunpack.c.l.s4 1983009808
        %v7636 = vunpack.c.0.s8 %v7635
        %v7637 = vperm.slane %v7631, %v7636
        %v7639 = vunpack.c.l.s4 1983009808
        %v7640 = vunpack.c.0.s8 %v7639
        %v7641 = vperm.slane %v7633, %v7640
        %v7642 = vrot.slane %v6757, 4
        %v7643 = vsel %vm441, %v7642, %v6747
        %v7644 = vrot.slane %v6747, 4
        %v7645 = vsel %vm441, %v6757, %v7644
        %v7647 = vunpack.c.l.s4 1983009808
        %v7648 = vunpack.c.0.s8 %v7647
        %v7649 = vperm.slane %v7643, %v7648
        %v7651 = vunpack.c.l.s4 1983009808
        %v7652 = vunpack.c.0.s8 %v7651
        %v7653 = vperm.slane %v7645, %v7652
        %v7654 = vrot.slane %v7625, 4
        %v7655 = vsel %vm441, %v7654, %v7613
        %v7656 = vrot.slane %v7613, 4
        %v7657 = vsel %vm441, %v7625, %v7656
        %v7659 = vunpack.c.l.s4 1934713408
        %v7660 = vunpack.c.0.s8 %v7659
        %v7661 = vperm.slane %v7655, %v7660
        %v7663 = vunpack.c.l.s4 1934713408
        %v7664 = vunpack.c.0.s8 %v7663
        %v7665 = vperm.slane %v7657, %v7664
        %v7666 = vrot.slane %v7629, 4
        %v7667 = vsel %vm441, %v7666, %v7617
        %v7668 = vrot.slane %v7617, 4
        %v7669 = vsel %vm441, %v7629, %v7668
        %v7671 = vunpack.c.l.s4 1934713408
        %v7672 = vunpack.c.0.s8 %v7671
        %v7673 = vperm.slane %v7667, %v7672
        %v7675 = vunpack.c.l.s4 1934713408
        %v7676 = vunpack.c.0.s8 %v7675
        %v7677 = vperm.slane %v7669, %v7676
        %v7678 = vrot.slane %v7649, 4
        %v7679 = vsel %vm441, %v7678, %v7637
        %v7680 = vrot.slane %v7637, 4
        %v7681 = vsel %vm441, %v7649, %v7680
        %v7683 = vunpack.c.l.s4 1934713408
        %v7684 = vunpack.c.0.s8 %v7683
        %v7685 = vperm.slane %v7679, %v7684
        %v7687 = vunpack.c.l.s4 1934713408
        %v7688 = vunpack.c.0.s8 %v7687
        %v7689 = vperm.slane %v7681, %v7688
        %v7690 = vrot.slane %v7653, 4
        %v7691 = vsel %vm441, %v7690, %v7641
        %v7692 = vrot.slane %v7641, 4
        %v7693 = vsel %vm441, %v7653, %v7692
        %v7695 = vunpack.c.l.s4 1934713408
        %v7696 = vunpack.c.0.s8 %v7695
        %v7697 = vperm.slane %v7691, %v7696
        %v7699 = vunpack.c.l.s4 1934713408
        %v7700 = vunpack.c.0.s8 %v7699
        %v7701 = vperm.slane %v7693, %v7700
        %v7702 = vrot.slane %v7685, 4
        %v7703 = vsel %vm441, %v7702, %v7661
        %v7704 = vrot.slane %v7661, 4
        %v7705 = vsel %vm441, %v7685, %v7704
        %v7706 = vrot.slane %v7689, 4
        %v7707 = vsel %vm441, %v7706, %v7665
        %v7708 = vrot.slane %v7665, 4
        %v7709 = vsel %vm441, %v7689, %v7708
        %v7710 = vrot.slane %v7697, 4
        %v7711 = vsel %vm441, %v7710, %v7673
        %v7712 = vrot.slane %v7673, 4
        %v7713 = vsel %vm441, %v7697, %v7712
        %v7714 = vrot.slane %v7701, 4
        %v7715 = vsel %vm441, %v7714, %v7677
        %v7716 = vrot.slane %v7677, 4
        %v7717 = vsel %vm441, %v7701, %v7716
        %7722 = vrot.lane.b32.xlu0 %v6921, 32
        %v7723 = vpop.permute.xlu0 %7722
        %7724 = vrot.lane.b32.xlu0 %v7033, 32
        %v7725 = vpop.permute.xlu0 %7724
        %7726 = vrot.lane.b32.xlu0 %v7145, 32
        %v7727 = vpop.permute.xlu0 %7726
        %7728 = vrot.lane.b32.xlu0 %v7257, 32
        %v7729 = vpop.permute.xlu0 %7728
        %7738 = vrot.lane.b32.xlu0 %v6923, 64
        %v7739 = vpop.permute.xlu0 %7738
        %7740 = vrot.lane.b32.xlu0 %v7035, 64
        %v7741 = vpop.permute.xlu0 %7740
        %7742 = vrot.lane.b32.xlu0 %v7147, 64
        %v7743 = vpop.permute.xlu0 %7742
        %7744 = vrot.lane.b32.xlu0 %v7259, 64
        %v7745 = vpop.permute.xlu0 %7744
        %7754 = vrot.lane.b32.xlu0 %v6925, 96
        %v7755 = vpop.permute.xlu0 %7754
        %7756 = vrot.lane.b32.xlu0 %v7037, 96
        %v7757 = vpop.permute.xlu0 %7756
        %7758 = vrot.lane.b32.xlu0 %v7149, 96
        %v7759 = vpop.permute.xlu0 %7758
        %7760 = vrot.lane.b32.xlu0 %v7261, 96
        %v7761 = vpop.permute.xlu0 %7760
        %7770 = vrot.lane.b32.xlu0 %v6929, 32
        %v7771 = vpop.permute.xlu0 %7770
        %7772 = vrot.lane.b32.xlu0 %v7041, 32
        %v7773 = vpop.permute.xlu0 %7772
        %7774 = vrot.lane.b32.xlu0 %v7153, 32
        %v7775 = vpop.permute.xlu0 %7774
        %7776 = vrot.lane.b32.xlu0 %v7265, 32
        %v7777 = vpop.permute.xlu0 %7776
        %7786 = vrot.lane.b32.xlu0 %v6931, 64
        %v7787 = vpop.permute.xlu0 %7786
        %7788 = vrot.lane.b32.xlu0 %v7043, 64
        %v7789 = vpop.permute.xlu0 %7788
        %7790 = vrot.lane.b32.xlu0 %v7155, 64
        %v7791 = vpop.permute.xlu0 %7790
        %7792 = vrot.lane.b32.xlu0 %v7267, 64
        %v7793 = vpop.permute.xlu0 %7792
        %7802 = vrot.lane.b32.xlu0 %v6933, 96
        %v7803 = vpop.permute.xlu0 %7802
        %7804 = vrot.lane.b32.xlu0 %v7045, 96
        %v7805 = vpop.permute.xlu0 %7804
        %7806 = vrot.lane.b32.xlu0 %v7157, 96
        %v7807 = vpop.permute.xlu0 %7806
        %7808 = vrot.lane.b32.xlu0 %v7269, 96
        %v7809 = vpop.permute.xlu0 %7808
        %7818 = vrot.lane.b32.xlu0 %v7369, 32
        %v7819 = vpop.permute.xlu0 %7818
        %7820 = vrot.lane.b32.xlu0 %v7481, 32
        %v7821 = vpop.permute.xlu0 %7820
        %7822 = vrot.lane.b32.xlu0 %v7593, 32
        %v7823 = vpop.permute.xlu0 %7822
        %7824 = vrot.lane.b32.xlu0 %v7705, 32
        %v7825 = vpop.permute.xlu0 %7824
        %7834 = vrot.lane.b32.xlu0 %v7371, 64
        %v7835 = vpop.permute.xlu0 %7834
        %7836 = vrot.lane.b32.xlu0 %v7483, 64
        %v7837 = vpop.permute.xlu0 %7836
        %7838 = vrot.lane.b32.xlu0 %v7595, 64
        %v7839 = vpop.permute.xlu0 %7838
        %7840 = vrot.lane.b32.xlu0 %v7707, 64
        %v7841 = vpop.permute.xlu0 %7840
        %7850 = vrot.lane.b32.xlu0 %v7373, 96
        %v7851 = vpop.permute.xlu0 %7850
        %7852 = vrot.lane.b32.xlu0 %v7485, 96
        %v7853 = vpop.permute.xlu0 %7852
        %7854 = vrot.lane.b32.xlu0 %v7597, 96
        %v7855 = vpop.permute.xlu0 %7854
        %7856 = vrot.lane.b32.xlu0 %v7709, 96
        %v7857 = vpop.permute.xlu0 %7856
        %7866 = vrot.lane.b32.xlu0 %v7377, 32
        %v7867 = vpop.permute.xlu0 %7866
        %7868 = vrot.lane.b32.xlu0 %v7489, 32
        %v7869 = vpop.permute.xlu0 %7868
        %7870 = vrot.lane.b32.xlu0 %v7601, 32
        %v7871 = vpop.permute.xlu0 %7870
        %7872 = vrot.lane.b32.xlu0 %v7713, 32
        %v7873 = vpop.permute.xlu0 %7872
        %7882 = vrot.lane.b32.xlu0 %v7379, 64
        %v7883 = vpop.permute.xlu0 %7882
        %7884 = vrot.lane.b32.xlu0 %v7491, 64
        %v7885 = vpop.permute.xlu0 %7884
        %7886 = vrot.lane.b32.xlu0 %v7603, 64
        %v7887 = vpop.permute.xlu0 %7886
        %7888 = vrot.lane.b32.xlu0 %v7715, 64
        %v7889 = vpop.permute.xlu0 %7888
        %7898 = vrot.lane.b32.xlu0 %v7381, 96
        %v7899 = vpop.permute.xlu0 %7898
        %7900 = vrot.lane.b32.xlu0 %v7493, 96
        %v7901 = vpop.permute.xlu0 %7900
        %7902 = vrot.lane.b32.xlu0 %v7605, 96
        %v7903 = vpop.permute.xlu0 %7902
        %7904 = vrot.lane.b32.xlu0 %v7717, 96
        %v7905 = vpop.permute.xlu0 %7904
        %v7910 = vsel %vm1705, %v6919, %v7723
        %v7911 = vsel %vm1705, %v7031, %v7725
        %v7912 = vsel %vm1705, %v7143, %v7727
        %v7913 = vsel %vm1705, %v7255, %v7729
        %v7914 = vsel %vm1710, %v7910, %v7739
        %v7915 = vsel %vm1710, %v7911, %v7741
        %v7916 = vsel %vm1710, %v7912, %v7743
        %v7917 = vsel %vm1710, %v7913, %v7745
        %v7918 = vsel %vm1715, %v7914, %v7755
        %v7919 = vsel %vm1715, %v7915, %v7757
        %v7920 = vsel %vm1715, %v7916, %v7759
        %v7921 = vsel %vm1715, %v7917, %v7761
        %v7922 = vsel %vm1705, %v6927, %v7771
        %v7923 = vsel %vm1705, %v7039, %v7773
        %v7924 = vsel %vm1705, %v7151, %v7775
        %v7925 = vsel %vm1705, %v7263, %v7777
        %v7926 = vsel %vm1710, %v7922, %v7787
        %v7927 = vsel %vm1710, %v7923, %v7789
        %v7928 = vsel %vm1710, %v7924, %v7791
        %v7929 = vsel %vm1710, %v7925, %v7793
        %v7930 = vsel %vm1715, %v7926, %v7803
        %v7931 = vsel %vm1715, %v7927, %v7805
        %v7932 = vsel %vm1715, %v7928, %v7807
        %v7933 = vsel %vm1715, %v7929, %v7809
        %v7934 = vsel %vm1705, %v7367, %v7819
        %v7935 = vsel %vm1705, %v7479, %v7821
        %v7936 = vsel %vm1705, %v7591, %v7823
        %v7937 = vsel %vm1705, %v7703, %v7825
        %v7938 = vsel %vm1710, %v7934, %v7835
        %v7939 = vsel %vm1710, %v7935, %v7837
        %v7940 = vsel %vm1710, %v7936, %v7839
        %v7941 = vsel %vm1710, %v7937, %v7841
        %v7942 = vsel %vm1715, %v7938, %v7851
        %v7943 = vsel %vm1715, %v7939, %v7853
        %v7944 = vsel %vm1715, %v7940, %v7855
        %v7945 = vsel %vm1715, %v7941, %v7857
        %v7946 = vsel %vm1705, %v7375, %v7867
        %v7947 = vsel %vm1705, %v7487, %v7869
        %v7948 = vsel %vm1705, %v7599, %v7871
        %v7949 = vsel %vm1705, %v7711, %v7873
        %v7950 = vsel %vm1710, %v7946, %v7883
        %v7951 = vsel %vm1710, %v7947, %v7885
        %v7952 = vsel %vm1710, %v7948, %v7887
        %v7953 = vsel %vm1710, %v7949, %v7889
        %v7954 = vsel %vm1715, %v7950, %v7899
        %v7955 = vsel %vm1715, %v7951, %v7901
        %v7956 = vsel %vm1715, %v7952, %v7903
        %v7957 = vsel %vm1715, %v7953, %v7905
        %v7958 = vadd.f32 %v7918, %v6485
        %v7959 = vadd.f32 %v7930, %v6486
        %v7960 = vadd.f32 %v7942, %v6487
        %v7961 = vadd.f32 %v7954, %v6488
        %v7962 = vadd.f32 %v7919, %v6489
        %v7963 = vadd.f32 %v7931, %v6490
        %v7964 = vadd.f32 %v7943, %v6491
        %v7965 = vadd.f32 %v7955, %v6492
        %v7966 = vadd.f32 %v7920, %v6493
        %v7967 = vadd.f32 %v7932, %v6494
        %v7968 = vadd.f32 %v7944, %v6495
        %v7969 = vadd.f32 %v7956, %v6496
        %v7970 = vadd.f32 %v7921, %v6497
        %v7971 = vadd.f32 %v7933, %v6498
        %v7972 = vadd.f32 %v7945, %v6499
        %v7973 = vadd.f32 %v7957, %v6500
        %v7974 = vmax.f32 %v7958, 0.0
        %v7975 = vmax.f32 %v7959, 0.0
        %v7976 = vmax.f32 %v7960, 0.0
        %v7977 = vmax.f32 %v7961, 0.0
        %v7978 = vmax.f32 %v7962, 0.0
        %v7979 = vmax.f32 %v7963, 0.0
        %v7980 = vmax.f32 %v7964, 0.0
        %v7981 = vmax.f32 %v7965, 0.0
        %v7982 = vmax.f32 %v7966, 0.0
        %v7983 = vmax.f32 %v7967, 0.0
        %v7984 = vmax.f32 %v7968, 0.0
        %v7985 = vmax.f32 %v7969, 0.0
        %v7986 = vmax.f32 %v7970, 0.0
        %v7987 = vmax.f32 %v7971, 0.0
        %v7988 = vmax.f32 %v7972, 0.0
        %v7989 = vmax.f32 %v7973, 0.0
        %7990 = vst [vmem:[%s332] sm:$0xff] %v7974
        %7991 = vst [vmem:[%s332 + $0x8] sm:$0xff] %v7975
        %7992 = vst [vmem:[%s332 + $0x10] sm:$0xff] %v7976
        %7993 = vst [vmem:[%s332 + $0x18] sm:$0xff] %v7977
        %7994 = vst [vmem:[%s332 + $0x20] sm:$0xff] %v7978
        %7995 = vst [vmem:[%s332 + $0x28] sm:$0xff] %v7979
        %7996 = vst [vmem:[%s332 + $0x30] sm:$0xff] %v7980
        %7997 = vst [vmem:[%s332 + $0x38] sm:$0xff] %v7981
        %7998 = vst [vmem:[%s332 + $0x40] sm:$0xff] %v7982
        %7999 = vst [vmem:[%s332 + $0x48] sm:$0xff] %v7983
        %8000 = vst [vmem:[%s332 + $0x50] sm:$0xff] %v7984
        %8001 = vst [vmem:[%s332 + $0x58] sm:$0xff] %v7985
        %8002 = vst [vmem:[%s332 + $0x60] sm:$0xff] %v7986
        %8003 = vst [vmem:[%s332 + $0x68] sm:$0xff] %v7987
        %8004 = vst [vmem:[%s332 + $0x70] sm:$0xff] %v7988
        %8005 = vst [vmem:[%s332 + $0x78] sm:$0xff] %v7989
        %s8006 = sand.u32 %s217, 1
        %s8007 = sand.u32 %s217, 1
        %s8008 = smul.addr %s8007, 128
        %s8009 = scalar_lea.vmem [#allocation5], %s8008
        // Predicated region
        $region57: #{_lambda_.1} parent=51 // pred_check
          %p8010 = pneg %p227
        $region58: #{_lambda_.1} parent=51 // pred_check_branch
          %8012 = sbr.rel (%p8010) target = $region60
        $region59: #{_lambda_.1} parent=51 // pred_region
          %s8013 = smul.u32 4, %s25
          %s8014 = smul.addr %s24, 32
          %s8015 = sadd.s32 %s8013, %s8014
          %s8016 = smul.addr %s8015, 8
          %s8017 = scalar_lea.vmem %s8, %s8016
          // Predicated region
          $region61: #{_lambda_.1} parent=59 // pred_check
            _
          $region62: #{_lambda_.1} parent=59 // pred_check_branch
            %8019 = sbr.rel (0) target = $region64
          $region63: #{_lambda_.1} parent=59 // pred_region
            // Predicated region
            $region65: #{_lambda_.1} parent=63 // pred_check
              _
            $region66: #{_lambda_.1} parent=63 // pred_check_branch
              %8021 = sbr.rel (0) target = $region68
            $region67: #{_lambda_.1} parent=63 // pred_region
              loop: start=0, step=1, limit=1
              $region69: #{_lambda_.1} parent=67 // loop_pre_header
                _
              $region70: #{_lambda_.1} parent=67 // loop_header
                %s8023 = sphi 0, %s8027
                %p8024 = scmp.ge.s32.totalorder %s8023, 1
                %s8028 = sphi %s8009, %s8009
                %s8029 = sphi %s8017, %s8017
              $region71: #{_lambda_.1} parent=67 // loop_header_branch
                %8026 = sbr.rel (%p8024) target = $region75
              $region72: #{_lambda_.1} parent=67 // loop_body
                %v8030 = vld [vmem:[%s8028] sm:$0xff]
                %8031 = vst [vmem:[%s8029] sm:$0xff] %v8030
                %v8032 = vld [vmem:[%s8028 + $0x8] sm:$0xff]
                %8033 = vst [vmem:[%s8029 + $0x8] sm:$0xff] %v8032
                %v8034 = vld [vmem:[%s8028 + $0x10] sm:$0xff]
                %8035 = vst [vmem:[%s8029 + $0x10] sm:$0xff] %v8034
                %v8036 = vld [vmem:[%s8028 + $0x18] sm:$0xff]
                %8037 = vst [vmem:[%s8029 + $0x18] sm:$0xff] %v8036
                %v8038 = vld [vmem:[%s8028 + $0x20] sm:$0xff]
                %8039 = vst [vmem:[%s8029 + $0x40] sm:$0xff] %v8038
                %v8040 = vld [vmem:[%s8028 + $0x28] sm:$0xff]
                %8041 = vst [vmem:[%s8029 + $0x48] sm:$0xff] %v8040
                %v8042 = vld [vmem:[%s8028 + $0x30] sm:$0xff]
                %8043 = vst [vmem:[%s8029 + $0x50] sm:$0xff] %v8042
                %v8044 = vld [vmem:[%s8028 + $0x38] sm:$0xff]
                %8045 = vst [vmem:[%s8029 + $0x58] sm:$0xff] %v8044
                %v8046 = vld [vmem:[%s8028 + $0x40] sm:$0xff]
                %8047 = vst [vmem:[%s8029 + $0x80] sm:$0xff] %v8046
                %v8048 = vld [vmem:[%s8028 + $0x48] sm:$0xff]
                %8049 = vst [vmem:[%s8029 + $0x88] sm:$0xff] %v8048
                %v8050 = vld [vmem:[%s8028 + $0x50] sm:$0xff]
                %8051 = vst [vmem:[%s8029 + $0x90] sm:$0xff] %v8050
                %v8052 = vld [vmem:[%s8028 + $0x58] sm:$0xff]
                %8053 = vst [vmem:[%s8029 + $0x98] sm:$0xff] %v8052
                %v8054 = vld [vmem:[%s8028 + $0x60] sm:$0xff]
                %8055 = vst [vmem:[%s8029 + $0xc0] sm:$0xff] %v8054
                %v8056 = vld [vmem:[%s8028 + $0x68] sm:$0xff]
                %8057 = vst [vmem:[%s8029 + $0xc8] sm:$0xff] %v8056
                %v8058 = vld [vmem:[%s8028 + $0x70] sm:$0xff]
                %8059 = vst [vmem:[%s8029 + $0xd0] sm:$0xff] %v8058
                %v8060 = vld [vmem:[%s8028 + $0x78] sm:$0xff]
                %8061 = vst [vmem:[%s8029 + $0xd8] sm:$0xff] %v8060
              $region73: #{_lambda_.1} parent=67 // loop_footer
                %s8027 = sadd.s32 1, %s8023
              $region74: #{_lambda_.1} parent=67 // loop_footer_branch
                %8022 = sbr.rel target = $region70
              $region75: #{_lambda_.1} parent=67 // loop_exit
                _
            $region68: #{_lambda_.1} parent=63 // pred_fallthru
              _
            // Predicated region
            $region76: #{_lambda_.1} parent=63 // pred_check
              _
            $region77: #{_lambda_.1} parent=63 // pred_check_branch
              %8063 = sbr.rel target = $region79
            $region78: #{_lambda_.1} parent=63 // pred_region
              _
            $region79: #{_lambda_.1} parent=63 // pred_fallthru
              _
          $region64: #{_lambda_.1} parent=59 // pred_fallthru
            _
          %8064 = vnop
        $region60: #{_lambda_.1} parent=51 // pred_fallthru
          _
      $region52: #{_lambda_.1} parent=5 // pred_fallthru
        _
      %p8065 = scmp.le.s32.totalorder 2, %s15
      // Predicated region
      $region80: #{_lambda_.1} parent=5 // pred_check
        %p8066 = pneg %p8065
      $region81: #{_lambda_.1} parent=5 // pred_check_branch
        %8068 = sbr.rel (%p8066) target = $region83
      $region82: #{_lambda_.1} parent=5 // pred_region
        %s8069 = ssub.s32 %s15, 2
        // Predicated region
        $region84: #{_lambda_.1} parent=82 // pred_check
          %p8070 = pneg %p233
        $region85: #{_lambda_.1} parent=82 // pred_check_branch
          %8072 = sbr.rel (%p8070) target = $region87
        $region86: #{_lambda_.1} parent=82 // pred_region
          %s8073 = sand.u32 %s218, 1
          %s8074 = sand.u32 %s218, 1
          %s8075 = smul.addr %s8074, 128
          %s8076 = scalar_lea.vmem [#allocation5], %s8075
        $region87: #{_lambda_.1} parent=82 // pred_fallthru
          _
      $region83: #{_lambda_.1} parent=5 // pred_fallthru
        _
    $region6: #{_lambda_.1} parent=1 // loop_footer
      %s19 = sadd.s32 1, %s15
    $region7: #{_lambda_.1} parent=1 // loop_footer_branch
      %14 = sbr.rel target = $region3
    $region8: #{_lambda_.1} parent=1 // loop_exit
      _
    %8077 = vsyncpa [#allocation4], 1
    %s8078 = scalar_lea.sflag [#allocation4], 1
    %8079 = vsyncpa %s8078, 1

</llo_original>
